<compile_context>
chip_gen: v6e
topology: v6e:2x2x1
jax: 0.10.0
libtpu: 0.0.40
codegen_flags: <defaults>
</compile_context>

<pallas_src>
import numpy as np
import jax
import jax.numpy as jnp
from jax.experimental import pallas as pl
from jax.experimental.pallas import tpu as pltpu

# ----------------------------- model config ---------------------------------
NUM_EMBEDDINGS = 32          # vocab size
EMBEDDING_DIM  = 16          # E
NUM_FIELDS     = 8           # F (fields per sample)
ATT_EMB_SIZE   = 8           # d_head
ATT_HEADS      = 2           # H
ATT_LAYERS     = 3
D_MODEL        = ATT_EMB_SIZE * ATT_HEADS      # 16
PROJ_BLOCK     = NUM_FIELDS * D_MODEL          # 128 rows per Q/K/V/Res output block
BATCH          = 200
B_TILE         = 128                           # batch lanes per grid step (multiple of 128)


# ------------------------------- kernel -------------------------------------
def _interacting_layer(h2d, w_blk):
    """One AutoInt interacting layer.

    h2d   : (F*C_in, B) bf16, row = f*C_in + c, batch on the lane axis.
    w_blk : (4*F*D_MODEL, F*C_in) bf16 block-expanded [Q; K; V; Res] weight.
    returns (F, D_MODEL, B) float32 activations (residual + ReLU applied).
    """
    B = h2d.shape[-1]
    # Single fused projection GEMM for Q, K, V and the residual path (MXU, bf16 in / f32 acc).
    proj = jnp.dot(w_blk, h2d, preferred_element_type=jnp.float32)       # (4*F*D, B)

    # Whole-vreg regroupings only (row ordering was fixed when building w_blk).
    q = proj[0 * PROJ_BLOCK:1 * PROJ_BLOCK].reshape(ATT_HEADS, ATT_EMB_SIZE, NUM_FIELDS, B)
    k = proj[1 * PROJ_BLOCK:2 * PROJ_BLOCK].reshape(ATT_HEADS, ATT_EMB_SIZE, NUM_FIELDS, B)
    v = proj[2 * PROJ_BLOCK:3 * PROJ_BLOCK].reshape(ATT_HEADS, NUM_FIELDS, ATT_EMB_SIZE, B)
    res = proj[3 * PROJ_BLOCK:4 * PROJ_BLOCK].reshape(NUM_FIELDS, D_MODEL, B)

    head_outs = []
    for hd in range(ATT_HEADS):
        qh, kh, vh = q[hd], k[hd], v[hd]                 # (d,F,B), (d,F,B), (F,d,B)
        # scores[i, j, b] = sum_d qh[d,i,b] * kh[d,j,b]   (VPU mul + cross-vreg adds;
        # no 1/sqrt(d) scaling in AutoInt)
        s = qh[0, :, None, :] * kh[0, None, :, :]
        for d in range(1, ATT_EMB_SIZE):
            s = s + qh[d, :, None, :] * kh[d, None, :, :]              # (F, F, B) f32
        # softmax over j (the sublane axis of each vreg)
        m = jnp.max(s, axis=1, keepdims=True)
        e = jnp.exp(s - m)
        p = e * pl.reciprocal(jnp.sum(e, axis=1, keepdims=True), approx=True)
        # ctx[i, d, b] = sum_j p[i,j,b] * vh[j,d,b]
        c = p[:, 0, None, :] * vh[0][None, :, :]
        for j in range(1, NUM_FIELDS):
            c = c + p[:, j, None, :] * vh[j][None, :, :]               # (F, d, B)
        head_outs.append(c)

    r = jnp.concatenate(head_outs, axis=1) + res                       # (F, D_MODEL, B)
    return jnp.maximum(r, 0.0)                                         # ReLU


def autoint_kernel(h_ref, w1_ref, w2_ref, w3_ref, ow_ref, ob_ref, out_ref):
    flat_rows = NUM_FIELDS * D_MODEL                                   # 128
    h = _interacting_layer(h_ref[...], w1_ref[...])
    h = _interacting_layer(h.reshape(flat_rows, -1).astype(jnp.bfloat16), w2_ref[...])
    h = _interacting_layer(h.reshape(flat_rows, -1).astype(jnp.bfloat16), w3_ref[...])
    flat = h.reshape(flat_rows, -1)                                    # (F*D, B) f32, row = f*D + o
    logits = jnp.dot(ow_ref[...], flat,
                     preferred_element_type=jnp.float32) + ob_ref[0]   # (1, B) lane-dense
    out_ref[...] = jax.nn.sigmoid(logits)


# --------------------- host-side weight block expansion ----------------------
def build_block_weight(w_stack, c_in):
    """w_stack: (4, c_in, D_MODEL) f32 = [W_Q, W_K, W_V, W_Res] per-field weights.

    Returns the (4*F*D_MODEL, F*c_in) block-expanded weight so that with
    h_t[f*c_in + c, b] = h[b, f, c], the GEMM  proj = W_blk @ h_t  yields rows:
      Q  : row =   0 + h*(dh*F) + d*F + f   = q[b, f, h*dh + d]
      K  : row = 128 + h*(dh*F) + d*F + f
      V  : row = 256 + h*(dh*F) + f*dh + d
      Res: row = 384 + f*D_MODEL + o
    (7/8 of the matrix is zeros; the padded GEMM is still far cheaper than the
    per-sample tiny-matmul / relayout traffic it replaces.)
    """
    wq, wk, wv, wr = [np.asarray(w_stack[i], np.float32) for i in range(4)]
    F, dh, H, D = NUM_FIELDS, ATT_EMB_SIZE, ATT_HEADS, D_MODEL
    blk = F * D                                                        # 128
    W = np.zeros((4 * blk, F * c_in), np.float32)
    for f in range(F):
        cols = slice(f * c_in, (f + 1) * c_in)
        for h in range(H):
            for d in range(dh):
                o = h * dh + d
                W[0 * blk + h * dh * F + d * F + f, cols] = wq[:, o]
                W[1 * blk + h * dh * F + d * F + f, cols] = wk[:, o]
                W[2 * blk + h * dh * F + f * dh + d, cols] = wv[:, o]
        for o in range(D):
            W[3 * blk + f * D + o, cols] = wr[:, o]
    return W


# ------------------------------- wrapper -------------------------------------
def autoint_forward(x_idx, emb_table_bf16, w_blks, out_w_row, out_b, *, b_tile=B_TILE):
    """x_idx: (B, F) int32; emb_table_bf16: (V, E) bf16;
    w_blks: 3 block-expanded (512, 128) bf16 weights; out_w_row: (1, F*D) f32;
    out_b: (1,) f32."""
    B = x_idx.shape[0]
    # Embedding gather + transpose to (F*E, B) with batch on lanes (plain-JAX glue).
    # TODO(synk): at production vocab sizes fold this gather into the kernel via
    # PrefetchScalarGridSpec scalar-prefetched indices + row-gather DMA.
    h = jnp.take(emb_table_bf16, x_idx, axis=0)                        # (B, F, E) bf16
    h_t = jnp.transpose(h, (1, 2, 0)).reshape(NUM_FIELDS * EMBEDDING_DIM, B)
    n_tiles = pl.cdiv(B, b_tile)
    b_pad = n_tiles * b_tile
    if b_pad != B:
        h_t = jnp.pad(h_t, ((0, 0), (0, b_pad - B)))                   # zero-pad batch lanes

    in_rows = NUM_FIELDS * EMBEDDING_DIM       # 128
    mid_rows = NUM_FIELDS * D_MODEL            # 128
    w_rows = 4 * PROJ_BLOCK                    # 512

    grid_spec = pltpu.PrefetchScalarGridSpec(
        num_scalar_prefetch=0,
        grid=(n_tiles,),
        in_specs=[
            pl.BlockSpec((in_rows, b_tile), lambda i: (0, i)),    # activations: tiled over batch
            pl.BlockSpec((w_rows, in_rows), lambda i: (0, 0)),    # layer-1 weight, resident
            pl.BlockSpec((w_rows, mid_rows), lambda i: (0, 0)),   # layer-2 weight, resident
            pl.BlockSpec((w_rows, mid_rows), lambda i: (0, 0)),   # layer-3 weight, resident
            pl.BlockSpec((1, mid_rows), lambda i: (0, 0)),        # output linear, resident
            pl.BlockSpec(memory_space=pltpu.MemorySpace.SMEM),    # scalar bias
        ],
        out_specs=pl.BlockSpec((1, b_tile), lambda i: (0, i)),    # lane-dense output
    )
    out = pl.pallas_call(
        autoint_kernel,
        out_shape=jax.ShapeDtypeStruct((1, b_pad), jnp.float32),
        grid_spec=grid_spec,
        compiler_params=pltpu.CompilerParams(
            dimension_semantics=("parallel",)),                   # megacore / v7x 2-TC sharding
    )(h_t, w_blks[0], w_blks[1], w_blks[2], out_w_row, out_b)
    return out[0, :B].reshape(B, 1)


# --------------------------- pure-JAX reference ------------------------------
def autoint_reference(x_idx, emb_table_f32, w_stacks_f32, out_w, out_b):
    h = jnp.take(emb_table_f32, x_idx, axis=0)
    for w in w_stacks_f32:                     # (4, C_in, D_MODEL) = [Q, K, V, Res]
        q = jnp.einsum('bfc,cd->bfd', h, w[0])
        k = jnp.einsum('bfc,cd->bfd', h, w[1])
        v = jnp.einsum('bfc,cd->bfd', h, w[2])
        res = jnp.einsum('bfc,cd->bfd', h, w[3])
        outs = []
        for hd in range(ATT_HEADS):
            sl = slice(hd * ATT_EMB_SIZE, (hd + 1) * ATT_EMB_SIZE)
            s = jnp.einsum('bid,bjd->bij', q[..., sl], k[..., sl])
            p = jax.nn.softmax(s, axis=-1)
            outs.append(jnp.einsum('bij,bjd->bid', p, v[..., sl]))
        h = jax.nn.relu(jnp.concatenate(outs, axis=-1) + res)
    flat = h.reshape(h.shape[0], -1)
    return jax.nn.sigmoid(flat @ out_w + out_b)


# --------------------------------- main --------------------------------------
if __name__ == "__main__":
    key = jax.random.PRNGKey(0)
    k_x, k_emb, k1, k2, k3, k_ow, k_ob = jax.random.split(key, 7)

    x = jax.random.randint(k_x, (BATCH, NUM_FIELDS), 0, NUM_EMBEDDINGS, dtype=jnp.int32)

    # Parameters stored in bf16 (kernel storage dtype); the f32 upcast of the same
    # values is fed to the reference so both paths use identical parameters.
    emb_bf16 = (0.1 * jax.random.normal(
        k_emb, (NUM_EMBEDDINGS, EMBEDDING_DIM), jnp.float32)).astype(jnp.bfloat16)
    w1 = (0.1 * jax.random.normal(k1, (4, EMBEDDING_DIM, D_MODEL), jnp.float32)
          ).astype(jnp.bfloat16).astype(jnp.float32)
    w2 = (0.1 * jax.random.normal(k2, (4, D_MODEL, D_MODEL), jnp.float32)
          ).astype(jnp.bfloat16).astype(jnp.float32)
    w3 = (0.1 * jax.random.normal(k3, (4, D_MODEL, D_MODEL), jnp.float32)
          ).astype(jnp.bfloat16).astype(jnp.float32)
    # TODO(synk): the original __init__ declares nn.Linear(att_embedding_size*head_num, 1)
    # but forward() flattens to (B, F*att_emb*heads); we size the output linear to the
    # flattened dim so the forward pass is shape-consistent.
    out_w = 0.1 * jax.random.normal(k_ow, (NUM_FIELDS * D_MODEL, 1), jnp.float32)
    out_b = 0.1 * jax.random.normal(k_ob, (1,), jnp.float32)

    # Block-expanded (fused Q|K|V|Res) weights: one GEMM per interacting layer.
    w1_blk = jnp.asarray(build_block_weight(np.asarray(w1), EMBEDDING_DIM), jnp.bfloat16)
    w2_blk = jnp.asarray(build_block_weight(np.asarray(w2), D_MODEL), jnp.bfloat16)
    w3_blk = jnp.asarray(build_block_weight(np.asarray(w3), D_MODEL), jnp.bfloat16)
    ow_row = out_w.reshape(1, NUM_FIELDS * D_MODEL).astype(jnp.float32)

    y = autoint_forward(x, emb_bf16, (w1_blk, w2_blk, w3_blk), ow_row, out_b)
    y = jax.block_until_ready(y)

    y_ref = autoint_reference(x, emb_bf16.astype(jnp.float32), (w1, w2, w3), out_w, out_b)
    np.testing.assert_allclose(np.asarray(y), np.asarray(y_ref), rtol=1e-2, atol=5e-3)
    assert y.shape == (BATCH, 1)
    print("KERNEL_OK")
</pallas_src>

<mosaic_0001>
module attributes {stable_mosaic.version = 11 : i64} {
  func.func @autoint_kernel(%arg0: i32, %arg1: memref<128x128xbf16, #tpu.memory_space<vmem>>, %arg2: memref<512x128xbf16, #tpu.memory_space<vmem>>, %arg3: memref<512x128xbf16, #tpu.memory_space<vmem>>, %arg4: memref<512x128xbf16, #tpu.memory_space<vmem>>, %arg5: memref<1x128xf32, #tpu.memory_space<vmem>>, %arg6: memref<1xf32, #tpu.memory_space<smem>>, %arg7: memref<1x128xf32, #tpu.memory_space<vmem>>) attributes {dimension_semantics = [#tpu.dimension_semantics<parallel>], iteration_bounds = array<i64: 2>, scalar_prefetch = 0 : i64, scratch_operands = 0 : i64, tpu.core_type = #tpu.core_type<tc>, window_params = [{transform_indices = @transform_0, window_bounds = array<i64: 128, 128>}, {pipeline_mode = #tpu.pipeline_mode<synchronous>, transform_indices = @transform_1, window_bounds = array<i64: 512, 128>}, {pipeline_mode = #tpu.pipeline_mode<synchronous>, transform_indices = @transform_2, window_bounds = array<i64: 512, 128>}, {pipeline_mode = #tpu.pipeline_mode<synchronous>, transform_indices = @transform_3, window_bounds = array<i64: 512, 128>}, {pipeline_mode = #tpu.pipeline_mode<synchronous>, transform_indices = @transform_4, window_bounds = array<i64: 1, 128>}, {transform_indices = @transform_5, window_bounds = array<i64: 1>}, {transform_indices = @transform_6, window_bounds = array<i64: 1, 128>}]} {
    %c0 = arith.constant 0 : index
    %c0_0 = arith.constant 0 : index
    %0 = vector.load %arg1[%c0, %c0_0] : memref<128x128xbf16, #tpu.memory_space<vmem>>, vector<128x128xbf16>
    %c0_1 = arith.constant 0 : index
    %c0_2 = arith.constant 0 : index
    %1 = vector.load %arg2[%c0_1, %c0_2] : memref<512x128xbf16, #tpu.memory_space<vmem>>, vector<512x128xbf16>
    %cst = arith.constant dense<0.000000e+00> : vector<512x128xf32>
    %2 = tpu.matmul %1, %0, %cst {dimension_numbers = #tpu.dot_dimension_numbers<[1], [0], [0], [1], [0, 0, 1, 1], [], []>} : vector<512x128xbf16>, vector<128x128xbf16>, vector<512x128xf32> -> vector<512x128xf32>
    %3 = vector.extract_strided_slice %2 {offsets = [0, 0], sizes = [128, 128], strides = [1, 1]} : vector<512x128xf32> to vector<128x128xf32>
    %4 = vector.shape_cast %3 : vector<128x128xf32> to vector<2x8x8x128xf32>
    %5 = vector.extract_strided_slice %2 {offsets = [128, 0], sizes = [128, 128], strides = [1, 1]} : vector<512x128xf32> to vector<128x128xf32>
    %6 = vector.shape_cast %5 : vector<128x128xf32> to vector<2x8x8x128xf32>
    %7 = vector.extract_strided_slice %2 {offsets = [256, 0], sizes = [128, 128], strides = [1, 1]} : vector<512x128xf32> to vector<128x128xf32>
    %8 = vector.shape_cast %7 : vector<128x128xf32> to vector<2x8x8x128xf32>
    %9 = vector.extract_strided_slice %2 {offsets = [384, 0], sizes = [128, 128], strides = [1, 1]} : vector<512x128xf32> to vector<128x128xf32>
    %10 = vector.shape_cast %9 : vector<128x128xf32> to vector<8x16x128xf32>
    %11 = vector.extract_strided_slice %4 {offsets = [0, 0, 0, 0], sizes = [1, 8, 8, 128], strides = [1, 1, 1, 1]} : vector<2x8x8x128xf32> to vector<1x8x8x128xf32>
    %12 = vector.shape_cast %11 : vector<1x8x8x128xf32> to vector<8x8x128xf32>
    %13 = vector.extract_strided_slice %6 {offsets = [0, 0, 0, 0], sizes = [1, 8, 8, 128], strides = [1, 1, 1, 1]} : vector<2x8x8x128xf32> to vector<1x8x8x128xf32>
    %14 = vector.shape_cast %13 : vector<1x8x8x128xf32> to vector<8x8x128xf32>
    %15 = vector.extract_strided_slice %8 {offsets = [0, 0, 0, 0], sizes = [1, 8, 8, 128], strides = [1, 1, 1, 1]} : vector<2x8x8x128xf32> to vector<1x8x8x128xf32>
    %16 = vector.shape_cast %15 : vector<1x8x8x128xf32> to vector<8x8x128xf32>
    %17 = vector.extract_strided_slice %12 {offsets = [0, 0, 0], sizes = [1, 8, 128], strides = [1, 1, 1]} : vector<8x8x128xf32> to vector<1x8x128xf32>
    %18 = vector.shape_cast %17 : vector<1x8x128xf32> to vector<8x128xf32>
    %19 = vector.shape_cast %18 : vector<8x128xf32> to vector<8x1x128xf32>
    %20 = vector.extract_strided_slice %14 {offsets = [0, 0, 0], sizes = [1, 8, 128], strides = [1, 1, 1]} : vector<8x8x128xf32> to vector<1x8x128xf32>
    %21 = vector.shape_cast %20 : vector<1x8x128xf32> to vector<8x128xf32>
    %22 = vector.shape_cast %21 : vector<8x128xf32> to vector<1x8x128xf32>
    %23 = vector.broadcast %19 : vector<8x1x128xf32> to vector<8x8x128xf32>
    %24 = vector.broadcast %22 : vector<1x8x128xf32> to vector<8x8x128xf32>
    %25 = arith.mulf %23, %24 : vector<8x8x128xf32>
    %26 = vector.extract_strided_slice %12 {offsets = [1, 0, 0], sizes = [1, 8, 128], strides = [1, 1, 1]} : vector<8x8x128xf32> to vector<1x8x128xf32>
    %27 = vector.shape_cast %26 : vector<1x8x128xf32> to vector<8x128xf32>
    %28 = vector.shape_cast %27 : vector<8x128xf32> to vector<8x1x128xf32>
    %29 = vector.extract_strided_slice %14 {offsets = [1, 0, 0], sizes = [1, 8, 128], strides = [1, 1, 1]} : vector<8x8x128xf32> to vector<1x8x128xf32>
    %30 = vector.shape_cast %29 : vector<1x8x128xf32> to vector<8x128xf32>
    %31 = vector.shape_cast %30 : vector<8x128xf32> to vector<1x8x128xf32>
    %32 = vector.broadcast %28 : vector<8x1x128xf32> to vector<8x8x128xf32>
    %33 = vector.broadcast %31 : vector<1x8x128xf32> to vector<8x8x128xf32>
    %34 = arith.mulf %32, %33 : vector<8x8x128xf32>
    %35 = arith.addf %25, %34 : vector<8x8x128xf32>
    %36 = vector.extract_strided_slice %12 {offsets = [2, 0, 0], sizes = [1, 8, 128], strides = [1, 1, 1]} : vector<8x8x128xf32> to vector<1x8x128xf32>
    %37 = vector.shape_cast %36 : vector<1x8x128xf32> to vector<8x128xf32>
    %38 = vector.shape_cast %37 : vector<8x128xf32> to vector<8x1x128xf32>
    %39 = vector.extract_strided_slice %14 {offsets = [2, 0, 0], sizes = [1, 8, 128], strides = [1, 1, 1]} : vector<8x8x128xf32> to vector<1x8x128xf32>
    %40 = vector.shape_cast %39 : vector<1x8x128xf32> to vector<8x128xf32>
    %41 = vector.shape_cast %40 : vector<8x128xf32> to vector<1x8x128xf32>
    %42 = vector.broadcast %38 : vector<8x1x128xf32> to vector<8x8x128xf32>
    %43 = vector.broadcast %41 : vector<1x8x128xf32> to vector<8x8x128xf32>
    %44 = arith.mulf %42, %43 : vector<8x8x128xf32>
    %45 = arith.addf %35, %44 : vector<8x8x128xf32>
    %46 = vector.extract_strided_slice %12 {offsets = [3, 0, 0], sizes = [1, 8, 128], strides = [1, 1, 1]} : vector<8x8x128xf32> to vector<1x8x128xf32>
    %47 = vector.shape_cast %46 : vector<1x8x128xf32> to vector<8x128xf32>
    %48 = vector.shape_cast %47 : vector<8x128xf32> to vector<8x1x128xf32>
    %49 = vector.extract_strided_slice %14 {offsets = [3, 0, 0], sizes = [1, 8, 128], strides = [1, 1, 1]} : vector<8x8x128xf32> to vector<1x8x128xf32>
    %50 = vector.shape_cast %49 : vector<1x8x128xf32> to vector<8x128xf32>
    %51 = vector.shape_cast %50 : vector<8x128xf32> to vector<1x8x128xf32>
    %52 = vector.broadcast %48 : vector<8x1x128xf32> to vector<8x8x128xf32>
    %53 = vector.broadcast %51 : vector<1x8x128xf32> to vector<8x8x128xf32>
    %54 = arith.mulf %52, %53 : vector<8x8x128xf32>
    %55 = arith.addf %45, %54 : vector<8x8x128xf32>
    %56 = vector.extract_strided_slice %12 {offsets = [4, 0, 0], sizes = [1, 8, 128], strides = [1, 1, 1]} : vector<8x8x128xf32> to vector<1x8x128xf32>
    %57 = vector.shape_cast %56 : vector<1x8x128xf32> to vector<8x128xf32>
    %58 = vector.shape_cast %57 : vector<8x128xf32> to vector<8x1x128xf32>
    %59 = vector.extract_strided_slice %14 {offsets = [4, 0, 0], sizes = [1, 8, 128], strides = [1, 1, 1]} : vector<8x8x128xf32> to vector<1x8x128xf32>
    %60 = vector.shape_cast %59 : vector<1x8x128xf32> to vector<8x128xf32>
    %61 = vector.shape_cast %60 : vector<8x128xf32> to vector<1x8x128xf32>
    %62 = vector.broadcast %58 : vector<8x1x128xf32> to vector<8x8x128xf32>
    %63 = vector.broadcast %61 : vector<1x8x128xf32> to vector<8x8x128xf32>
    %64 = arith.mulf %62, %63 : vector<8x8x128xf32>
    %65 = arith.addf %55, %64 : vector<8x8x128xf32>
    %66 = vector.extract_strided_slice %12 {offsets = [5, 0, 0], sizes = [1, 8, 128], strides = [1, 1, 1]} : vector<8x8x128xf32> to vector<1x8x128xf32>
    %67 = vector.shape_cast %66 : vector<1x8x128xf32> to vector<8x128xf32>
    %68 = vector.shape_cast %67 : vector<8x128xf32> to vector<8x1x128xf32>
    %69 = vector.extract_strided_slice %14 {offsets = [5, 0, 0], sizes = [1, 8, 128], strides = [1, 1, 1]} : vector<8x8x128xf32> to vector<1x8x128xf32>
    %70 = vector.shape_cast %69 : vector<1x8x128xf32> to vector<8x128xf32>
    %71 = vector.shape_cast %70 : vector<8x128xf32> to vector<1x8x128xf32>
    %72 = vector.broadcast %68 : vector<8x1x128xf32> to vector<8x8x128xf32>
    %73 = vector.broadcast %71 : vector<1x8x128xf32> to vector<8x8x128xf32>
    %74 = arith.mulf %72, %73 : vector<8x8x128xf32>
    %75 = arith.addf %65, %74 : vector<8x8x128xf32>
    %76 = vector.extract_strided_slice %12 {offsets = [6, 0, 0], sizes = [1, 8, 128], strides = [1, 1, 1]} : vector<8x8x128xf32> to vector<1x8x128xf32>
    %77 = vector.shape_cast %76 : vector<1x8x128xf32> to vector<8x128xf32>
    %78 = vector.shape_cast %77 : vector<8x128xf32> to vector<8x1x128xf32>
    %79 = vector.extract_strided_slice %14 {offsets = [6, 0, 0], sizes = [1, 8, 128], strides = [1, 1, 1]} : vector<8x8x128xf32> to vector<1x8x128xf32>
    %80 = vector.shape_cast %79 : vector<1x8x128xf32> to vector<8x128xf32>
    %81 = vector.shape_cast %80 : vector<8x128xf32> to vector<1x8x128xf32>
    %82 = vector.broadcast %78 : vector<8x1x128xf32> to vector<8x8x128xf32>
    %83 = vector.broadcast %81 : vector<1x8x128xf32> to vector<8x8x128xf32>
    %84 = arith.mulf %82, %83 : vector<8x8x128xf32>
    %85 = arith.addf %75, %84 : vector<8x8x128xf32>
    %86 = vector.extract_strided_slice %12 {offsets = [7, 0, 0], sizes = [1, 8, 128], strides = [1, 1, 1]} : vector<8x8x128xf32> to vector<1x8x128xf32>
    %87 = vector.shape_cast %86 : vector<1x8x128xf32> to vector<8x128xf32>
    %88 = vector.shape_cast %87 : vector<8x128xf32> to vector<8x1x128xf32>
    %89 = vector.extract_strided_slice %14 {offsets = [7, 0, 0], sizes = [1, 8, 128], strides = [1, 1, 1]} : vector<8x8x128xf32> to vector<1x8x128xf32>
    %90 = vector.shape_cast %89 : vector<1x8x128xf32> to vector<8x128xf32>
    %91 = vector.shape_cast %90 : vector<8x128xf32> to vector<1x8x128xf32>
    %92 = vector.broadcast %88 : vector<8x1x128xf32> to vector<8x8x128xf32>
    %93 = vector.broadcast %91 : vector<1x8x128xf32> to vector<8x8x128xf32>
    %94 = arith.mulf %92, %93 : vector<8x8x128xf32>
    %95 = arith.addf %85, %94 : vector<8x8x128xf32>
    %cst_3 = arith.constant dense<0xFF800000> : vector<8x128xf32>
    %96 = vector.multi_reduction <maximumf>, %95, %cst_3 [1] : vector<8x8x128xf32> to vector<8x128xf32>
    %97 = vector.shape_cast %96 : vector<8x128xf32> to vector<8x1x128xf32>
    %98 = vector.broadcast %97 : vector<8x1x128xf32> to vector<8x8x128xf32>
    %99 = arith.subf %95, %98 : vector<8x8x128xf32>
    %100 = math.exp %99 : vector<8x8x128xf32>
    %cst_4 = arith.constant dense<0.000000e+00> : vector<8x128xf32>
    %101 = vector.multi_reduction <add>, %100, %cst_4 [1] : vector<8x8x128xf32> to vector<8x128xf32>
    %102 = vector.shape_cast %101 : vector<8x128xf32> to vector<8x1x128xf32>
    %103 = tpu.reciprocal %102 {approx = true} : vector<8x1x128xf32> -> vector<8x1x128xf32>
    %104 = vector.broadcast %103 : vector<8x1x128xf32> to vector<8x8x128xf32>
    %105 = arith.mulf %100, %104 : vector<8x8x128xf32>
    %106 = vector.extract_strided_slice %105 {offsets = [0, 0, 0], sizes = [8, 1, 128], strides = [1, 1, 1]} : vector<8x8x128xf32> to vector<8x1x128xf32>
    %107 = vector.shape_cast %106 : vector<8x1x128xf32> to vector<8x128xf32>
    %108 = vector.shape_cast %107 : vector<8x128xf32> to vector<8x1x128xf32>
    %109 = vector.extract_strided_slice %16 {offsets = [0, 0, 0], sizes = [1, 8, 128], strides = [1, 1, 1]} : vector<8x8x128xf32> to vector<1x8x128xf32>
    %110 = vector.shape_cast %109 : vector<1x8x128xf32> to vector<8x128xf32>
    %111 = vector.shape_cast %110 : vector<8x128xf32> to vector<1x8x128xf32>
    %112 = vector.broadcast %108 : vector<8x1x128xf32> to vector<8x8x128xf32>
    %113 = vector.broadcast %111 : vector<1x8x128xf32> to vector<8x8x128xf32>
    %114 = arith.mulf %112, %113 : vector<8x8x128xf32>
    %115 = vector.extract_strided_slice %105 {offsets = [0, 1, 0], sizes = [8, 1, 128], strides = [1, 1, 1]} : vector<8x8x128xf32> to vector<8x1x128xf32>
    %116 = vector.shape_cast %115 : vector<8x1x128xf32> to vector<8x128xf32>
    %117 = vector.shape_cast %116 : vector<8x128xf32> to vector<8x1x128xf32>
    %118 = vector.extract_strided_slice %16 {offsets = [1, 0, 0], sizes = [1, 8, 128], strides = [1, 1, 1]} : vector<8x8x128xf32> to vector<1x8x128xf32>
    %119 = vector.shape_cast %118 : vector<1x8x128xf32> to vector<8x128xf32>
    %120 = vector.shape_cast %119 : vector<8x128xf32> to vector<1x8x128xf32>
    %121 = vector.broadcast %117 : vector<8x1x128xf32> to vector<8x8x128xf32>
    %122 = vector.broadcast %120 : vector<1x8x128xf32> to vector<8x8x128xf32>
    %123 = arith.mulf %121, %122 : vector<8x8x128xf32>
    %124 = arith.addf %114, %123 : vector<8x8x128xf32>
    %125 = vector.extract_strided_slice %105 {offsets = [0, 2, 0], sizes = [8, 1, 128], strides = [1, 1, 1]} : vector<8x8x128xf32> to vector<8x1x128xf32>
    %126 = vector.shape_cast %125 : vector<8x1x128xf32> to vector<8x128xf32>
    %127 = vector.shape_cast %126 : vector<8x128xf32> to vector<8x1x128xf32>
    %128 = vector.extract_strided_slice %16 {offsets = [2, 0, 0], sizes = [1, 8, 128], strides = [1, 1, 1]} : vector<8x8x128xf32> to vector<1x8x128xf32>
    %129 = vector.shape_cast %128 : vector<1x8x128xf32> to vector<8x128xf32>
    %130 = vector.shape_cast %129 : vector<8x128xf32> to vector<1x8x128xf32>
    %131 = vector.broadcast %127 : vector<8x1x128xf32> to vector<8x8x128xf32>
    %132 = vector.broadcast %130 : vector<1x8x128xf32> to vector<8x8x128xf32>
    %133 = arith.mulf %131, %132 : vector<8x8x128xf32>
    %134 = arith.addf %124, %133 : vector<8x8x128xf32>
    %135 = vector.extract_strided_slice %105 {offsets = [0, 3, 0], sizes = [8, 1, 128], strides = [1, 1, 1]} : vector<8x8x128xf32> to vector<8x1x128xf32>
    %136 = vector.shape_cast %135 : vector<8x1x128xf32> to vector<8x128xf32>
    %137 = vector.shape_cast %136 : vector<8x128xf32> to vector<8x1x128xf32>
    %138 = vector.extract_strided_slice %16 {offsets = [3, 0, 0], sizes = [1, 8, 128], strides = [1, 1, 1]} : vector<8x8x128xf32> to vector<1x8x128xf32>
    %139 = vector.shape_cast %138 : vector<1x8x128xf32> to vector<8x128xf32>
    %140 = vector.shape_cast %139 : vector<8x128xf32> to vector<1x8x128xf32>
    %141 = vector.broadcast %137 : vector<8x1x128xf32> to vector<8x8x128xf32>
    %142 = vector.broadcast %140 : vector<1x8x128xf32> to vector<8x8x128xf32>
    %143 = arith.mulf %141, %142 : vector<8x8x128xf32>
    %144 = arith.addf %134, %143 : vector<8x8x128xf32>
    %145 = vector.extract_strided_slice %105 {offsets = [0, 4, 0], sizes = [8, 1, 128], strides = [1, 1, 1]} : vector<8x8x128xf32> to vector<8x1x128xf32>
    %146 = vector.shape_cast %145 : vector<8x1x128xf32> to vector<8x128xf32>
    %147 = vector.shape_cast %146 : vector<8x128xf32> to vector<8x1x128xf32>
    %148 = vector.extract_strided_slice %16 {offsets = [4, 0, 0], sizes = [1, 8, 128], strides = [1, 1, 1]} : vector<8x8x128xf32> to vector<1x8x128xf32>
    %149 = vector.shape_cast %148 : vector<1x8x128xf32> to vector<8x128xf32>
    %150 = vector.shape_cast %149 : vector<8x128xf32> to vector<1x8x128xf32>
    %151 = vector.broadcast %147 : vector<8x1x128xf32> to vector<8x8x128xf32>
    %152 = vector.broadcast %150 : vector<1x8x128xf32> to vector<8x8x128xf32>
    %153 = arith.mulf %151, %152 : vector<8x8x128xf32>
    %154 = arith.addf %144, %153 : vector<8x8x128xf32>
    %155 = vector.extract_strided_slice %105 {offsets = [0, 5, 0], sizes = [8, 1, 128], strides = [1, 1, 1]} : vector<8x8x128xf32> to vector<8x1x128xf32>
    %156 = vector.shape_cast %155 : vector<8x1x128xf32> to vector<8x128xf32>
    %157 = vector.shape_cast %156 : vector<8x128xf32> to vector<8x1x128xf32>
    %158 = vector.extract_strided_slice %16 {offsets = [5, 0, 0], sizes = [1, 8, 128], strides = [1, 1, 1]} : vector<8x8x128xf32> to vector<1x8x128xf32>
    %159 = vector.shape_cast %158 : vector<1x8x128xf32> to vector<8x128xf32>
    %160 = vector.shape_cast %159 : vector<8x128xf32> to vector<1x8x128xf32>
    %161 = vector.broadcast %157 : vector<8x1x128xf32> to vector<8x8x128xf32>
    %162 = vector.broadcast %160 : vector<1x8x128xf32> to vector<8x8x128xf32>
    %163 = arith.mulf %161, %162 : vector<8x8x128xf32>
    %164 = arith.addf %154, %163 : vector<8x8x128xf32>
    %165 = vector.extract_strided_slice %105 {offsets = [0, 6, 0], sizes = [8, 1, 128], strides = [1, 1, 1]} : vector<8x8x128xf32> to vector<8x1x128xf32>
    %166 = vector.shape_cast %165 : vector<8x1x128xf32> to vector<8x128xf32>
    %167 = vector.shape_cast %166 : vector<8x128xf32> to vector<8x1x128xf32>
    %168 = vector.extract_strided_slice %16 {offsets = [6, 0, 0], sizes = [1, 8, 128], strides = [1, 1, 1]} : vector<8x8x128xf32> to vector<1x8x128xf32>
    %169 = vector.shape_cast %168 : vector<1x8x128xf32> to vector<8x128xf32>
    %170 = vector.shape_cast %169 : vector<8x128xf32> to vector<1x8x128xf32>
    %171 = vector.broadcast %167 : vector<8x1x128xf32> to vector<8x8x128xf32>
    %172 = vector.broadcast %170 : vector<1x8x128xf32> to vector<8x8x128xf32>
    %173 = arith.mulf %171, %172 : vector<8x8x128xf32>
    %174 = arith.addf %164, %173 : vector<8x8x128xf32>
    %175 = vector.extract_strided_slice %105 {offsets = [0, 7, 0], sizes = [8, 1, 128], strides = [1, 1, 1]} : vector<8x8x128xf32> to vector<8x1x128xf32>
    %176 = vector.shape_cast %175 : vector<8x1x128xf32> to vector<8x128xf32>
    %177 = vector.shape_cast %176 : vector<8x128xf32> to vector<8x1x128xf32>
    %178 = vector.extract_strided_slice %16 {offsets = [7, 0, 0], sizes = [1, 8, 128], strides = [1, 1, 1]} : vector<8x8x128xf32> to vector<1x8x128xf32>
    %179 = vector.shape_cast %178 : vector<1x8x128xf32> to vector<8x128xf32>
    %180 = vector.shape_cast %179 : vector<8x128xf32> to vector<1x8x128xf32>
    %181 = vector.broadcast %177 : vector<8x1x128xf32> to vector<8x8x128xf32>
    %182 = vector.broadcast %180 : vector<1x8x128xf32> to vector<8x8x128xf32>
    %183 = arith.mulf %181, %182 : vector<8x8x128xf32>
    %184 = arith.addf %174, %183 : vector<8x8x128xf32>
    %185 = vector.extract_strided_slice %4 {offsets = [1, 0, 0, 0], sizes = [1, 8, 8, 128], strides = [1, 1, 1, 1]} : vector<2x8x8x128xf32> to vector<1x8x8x128xf32>
    %186 = vector.shape_cast %185 : vector<1x8x8x128xf32> to vector<8x8x128xf32>
    %187 = vector.extract_strided_slice %6 {offsets = [1, 0, 0, 0], sizes = [1, 8, 8, 128], strides = [1, 1, 1, 1]} : vector<2x8x8x128xf32> to vector<1x8x8x128xf32>
    %188 = vector.shape_cast %187 : vector<1x8x8x128xf32> to vector<8x8x128xf32>
    %189 = vector.extract_strided_slice %8 {offsets = [1, 0, 0, 0], sizes = [1, 8, 8, 128], strides = [1, 1, 1, 1]} : vector<2x8x8x128xf32> to vector<1x8x8x128xf32>
    %190 = vector.shape_cast %189 : vector<1x8x8x128xf32> to vector<8x8x128xf32>
    %191 = vector.extract_strided_slice %186 {offsets = [0, 0, 0], sizes = [1, 8, 128], strides = [1, 1, 1]} : vector<8x8x128xf32> to vector<1x8x128xf32>
    %192 = vector.shape_cast %191 : vector<1x8x128xf32> to vector<8x128xf32>
    %193 = vector.shape_cast %192 : vector<8x128xf32> to vector<8x1x128xf32>
    %194 = vector.extract_strided_slice %188 {offsets = [0, 0, 0], sizes = [1, 8, 128], strides = [1, 1, 1]} : vector<8x8x128xf32> to vector<1x8x128xf32>
    %195 = vector.shape_cast %194 : vector<1x8x128xf32> to vector<8x128xf32>
    %196 = vector.shape_cast %195 : vector<8x128xf32> to vector<1x8x128xf32>
    %197 = vector.broadcast %193 : vector<8x1x128xf32> to vector<8x8x128xf32>
    %198 = vector.broadcast %196 : vector<1x8x128xf32> to vector<8x8x128xf32>
    %199 = arith.mulf %197, %198 : vector<8x8x128xf32>
    %200 = vector.extract_strided_slice %186 {offsets = [1, 0, 0], sizes = [1, 8, 128], strides = [1, 1, 1]} : vector<8x8x128xf32> to vector<1x8x128xf32>
    %201 = vector.shape_cast %200 : vector<1x8x128xf32> to vector<8x128xf32>
    %202 = vector.shape_cast %201 : vector<8x128xf32> to vector<8x1x128xf32>
    %203 = vector.extract_strided_slice %188 {offsets = [1, 0, 0], sizes = [1, 8, 128], strides = [1, 1, 1]} : vector<8x8x128xf32> to vector<1x8x128xf32>
    %204 = vector.shape_cast %203 : vector<1x8x128xf32> to vector<8x128xf32>
    %205 = vector.shape_cast %204 : vector<8x128xf32> to vector<1x8x128xf32>
    %206 = vector.broadcast %202 : vector<8x1x128xf32> to vector<8x8x128xf32>
    %207 = vector.broadcast %205 : vector<1x8x128xf32> to vector<8x8x128xf32>
    %208 = arith.mulf %206, %207 : vector<8x8x128xf32>
    %209 = arith.addf %199, %208 : vector<8x8x128xf32>
    %210 = vector.extract_strided_slice %186 {offsets = [2, 0, 0], sizes = [1, 8, 128], strides = [1, 1, 1]} : vector<8x8x128xf32> to vector<1x8x128xf32>
    %211 = vector.shape_cast %210 : vector<1x8x128xf32> to vector<8x128xf32>
    %212 = vector.shape_cast %211 : vector<8x128xf32> to vector<8x1x128xf32>
    %213 = vector.extract_strided_slice %188 {offsets = [2, 0, 0], sizes = [1, 8, 128], strides = [1, 1, 1]} : vector<8x8x128xf32> to vector<1x8x128xf32>
    %214 = vector.shape_cast %213 : vector<1x8x128xf32> to vector<8x128xf32>
    %215 = vector.shape_cast %214 : vector<8x128xf32> to vector<1x8x128xf32>
    %216 = vector.broadcast %212 : vector<8x1x128xf32> to vector<8x8x128xf32>
    %217 = vector.broadcast %215 : vector<1x8x128xf32> to vector<8x8x128xf32>
    %218 = arith.mulf %216, %217 : vector<8x8x128xf32>
    %219 = arith.addf %209, %218 : vector<8x8x128xf32>
    %220 = vector.extract_strided_slice %186 {offsets = [3, 0, 0], sizes = [1, 8, 128], strides = [1, 1, 1]} : vector<8x8x128xf32> to vector<1x8x128xf32>
    %221 = vector.shape_cast %220 : vector<1x8x128xf32> to vector<8x128xf32>
    %222 = vector.shape_cast %221 : vector<8x128xf32> to vector<8x1x128xf32>
    %223 = vector.extract_strided_slice %188 {offsets = [3, 0, 0], sizes = [1, 8, 128], strides = [1, 1, 1]} : vector<8x8x128xf32> to vector<1x8x128xf32>
    %224 = vector.shape_cast %223 : vector<1x8x128xf32> to vector<8x128xf32>
    %225 = vector.shape_cast %224 : vector<8x128xf32> to vector<1x8x128xf32>
    %226 = vector.broadcast %222 : vector<8x1x128xf32> to vector<8x8x128xf32>
    %227 = vector.broadcast %225 : vector<1x8x128xf32> to vector<8x8x128xf32>
    %228 = arith.mulf %226, %227 : vector<8x8x128xf32>
    %229 = arith.addf %219, %228 : vector<8x8x128xf32>
    %230 = vector.extract_strided_slice %186 {offsets = [4, 0, 0], sizes = [1, 8, 128], strides = [1, 1, 1]} : vector<8x8x128xf32> to vector<1x8x128xf32>
    %231 = vector.shape_cast %230 : vector<1x8x128xf32> to vector<8x128xf32>
    %232 = vector.shape_cast %231 : vector<8x128xf32> to vector<8x1x128xf32>
    %233 = vector.extract_strided_slice %188 {offsets = [4, 0, 0], sizes = [1, 8, 128], strides = [1, 1, 1]} : vector<8x8x128xf32> to vector<1x8x128xf32>
    %234 = vector.shape_cast %233 : vector<1x8x128xf32> to vector<8x128xf32>
    %235 = vector.shape_cast %234 : vector<8x128xf32> to vector<1x8x128xf32>
    %236 = vector.broadcast %232 : vector<8x1x128xf32> to vector<8x8x128xf32>
    %237 = vector.broadcast %235 : vector<1x8x128xf32> to vector<8x8x128xf32>
    %238 = arith.mulf %236, %237 : vector<8x8x128xf32>
    %239 = arith.addf %229, %238 : vector<8x8x128xf32>
    %240 = vector.extract_strided_slice %186 {offsets = [5, 0, 0], sizes = [1, 8, 128], strides = [1, 1, 1]} : vector<8x8x128xf32> to vector<1x8x128xf32>
    %241 = vector.shape_cast %240 : vector<1x8x128xf32> to vector<8x128xf32>
    %242 = vector.shape_cast %241 : vector<8x128xf32> to vector<8x1x128xf32>
    %243 = vector.extract_strided_slice %188 {offsets = [5, 0, 0], sizes = [1, 8, 128], strides = [1, 1, 1]} : vector<8x8x128xf32> to vector<1x8x128xf32>
    %244 = vector.shape_cast %243 : vector<1x8x128xf32> to vector<8x128xf32>
    %245 = vector.shape_cast %244 : vector<8x128xf32> to vector<1x8x128xf32>
    %246 = vector.broadcast %242 : vector<8x1x128xf32> to vector<8x8x128xf32>
    %247 = vector.broadcast %245 : vector<1x8x128xf32> to vector<8x8x128xf32>
    %248 = arith.mulf %246, %247 : vector<8x8x128xf32>
    %249 = arith.addf %239, %248 : vector<8x8x128xf32>
    %250 = vector.extract_strided_slice %186 {offsets = [6, 0, 0], sizes = [1, 8, 128], strides = [1, 1, 1]} : vector<8x8x128xf32> to vector<1x8x128xf32>
    %251 = vector.shape_cast %250 : vector<1x8x128xf32> to vector<8x128xf32>
    %252 = vector.shape_cast %251 : vector<8x128xf32> to vector<8x1x128xf32>
    %253 = vector.extract_strided_slice %188 {offsets = [6, 0, 0], sizes = [1, 8, 128], strides = [1, 1, 1]} : vector<8x8x128xf32> to vector<1x8x128xf32>
    %254 = vector.shape_cast %253 : vector<1x8x128xf32> to vector<8x128xf32>
    %255 = vector.shape_cast %254 : vector<8x128xf32> to vector<1x8x128xf32>
    %256 = vector.broadcast %252 : vector<8x1x128xf32> to vector<8x8x128xf32>
    %257 = vector.broadcast %255 : vector<1x8x128xf32> to vector<8x8x128xf32>
    %258 = arith.mulf %256, %257 : vector<8x8x128xf32>
    %259 = arith.addf %249, %258 : vector<8x8x128xf32>
    %260 = vector.extract_strided_slice %186 {offsets = [7, 0, 0], sizes = [1, 8, 128], strides = [1, 1, 1]} : vector<8x8x128xf32> to vector<1x8x128xf32>
    %261 = vector.shape_cast %260 : vector<1x8x128xf32> to vector<8x128xf32>
    %262 = vector.shape_cast %261 : vector<8x128xf32> to vector<8x1x128xf32>
    %263 = vector.extract_strided_slice %188 {offsets = [7, 0, 0], sizes = [1, 8, 128], strides = [1, 1, 1]} : vector<8x8x128xf32> to vector<1x8x128xf32>
    %264 = vector.shape_cast %263 : vector<1x8x128xf32> to vector<8x128xf32>
    %265 = vector.shape_cast %264 : vector<8x128xf32> to vector<1x8x128xf32>
    %266 = vector.broadcast %262 : vector<8x1x128xf32> to vector<8x8x128xf32>
    %267 = vector.broadcast %265 : vector<1x8x128xf32> to vector<8x8x128xf32>
    %268 = arith.mulf %266, %267 : vector<8x8x128xf32>
    %269 = arith.addf %259, %268 : vector<8x8x128xf32>
    %cst_5 = arith.constant dense<0xFF800000> : vector<8x128xf32>
    %270 = vector.multi_reduction <maximumf>, %269, %cst_5 [1] : vector<8x8x128xf32> to vector<8x128xf32>
    %271 = vector.shape_cast %270 : vector<8x128xf32> to vector<8x1x128xf32>
    %272 = vector.broadcast %271 : vector<8x1x128xf32> to vector<8x8x128xf32>
    %273 = arith.subf %269, %272 : vector<8x8x128xf32>
    %274 = math.exp %273 : vector<8x8x128xf32>
    %cst_6 = arith.constant dense<0.000000e+00> : vector<8x128xf32>
    %275 = vector.multi_reduction <add>, %274, %cst_6 [1] : vector<8x8x128xf32> to vector<8x128xf32>
    %276 = vector.shape_cast %275 : vector<8x128xf32> to vector<8x1x128xf32>
    %277 = tpu.reciprocal %276 {approx = true} : vector<8x1x128xf32> -> vector<8x1x128xf32>
    %278 = vector.broadcast %277 : vector<8x1x128xf32> to vector<8x8x128xf32>
    %279 = arith.mulf %274, %278 : vector<8x8x128xf32>
    %280 = vector.extract_strided_slice %279 {offsets = [0, 0, 0], sizes = [8, 1, 128], strides = [1, 1, 1]} : vector<8x8x128xf32> to vector<8x1x128xf32>
    %281 = vector.shape_cast %280 : vector<8x1x128xf32> to vector<8x128xf32>
    %282 = vector.shape_cast %281 : vector<8x128xf32> to vector<8x1x128xf32>
    %283 = vector.extract_strided_slice %190 {offsets = [0, 0, 0], sizes = [1, 8, 128], strides = [1, 1, 1]} : vector<8x8x128xf32> to vector<1x8x128xf32>
    %284 = vector.shape_cast %283 : vector<1x8x128xf32> to vector<8x128xf32>
    %285 = vector.shape_cast %284 : vector<8x128xf32> to vector<1x8x128xf32>
    %286 = vector.broadcast %282 : vector<8x1x128xf32> to vector<8x8x128xf32>
    %287 = vector.broadcast %285 : vector<1x8x128xf32> to vector<8x8x128xf32>
    %288 = arith.mulf %286, %287 : vector<8x8x128xf32>
    %289 = vector.extract_strided_slice %279 {offsets = [0, 1, 0], sizes = [8, 1, 128], strides = [1, 1, 1]} : vector<8x8x128xf32> to vector<8x1x128xf32>
    %290 = vector.shape_cast %289 : vector<8x1x128xf32> to vector<8x128xf32>
    %291 = vector.shape_cast %290 : vector<8x128xf32> to vector<8x1x128xf32>
    %292 = vector.extract_strided_slice %190 {offsets = [1, 0, 0], sizes = [1, 8, 128], strides = [1, 1, 1]} : vector<8x8x128xf32> to vector<1x8x128xf32>
    %293 = vector.shape_cast %292 : vector<1x8x128xf32> to vector<8x128xf32>
    %294 = vector.shape_cast %293 : vector<8x128xf32> to vector<1x8x128xf32>
    %295 = vector.broadcast %291 : vector<8x1x128xf32> to vector<8x8x128xf32>
    %296 = vector.broadcast %294 : vector<1x8x128xf32> to vector<8x8x128xf32>
    %297 = arith.mulf %295, %296 : vector<8x8x128xf32>
    %298 = arith.addf %288, %297 : vector<8x8x128xf32>
    %299 = vector.extract_strided_slice %279 {offsets = [0, 2, 0], sizes = [8, 1, 128], strides = [1, 1, 1]} : vector<8x8x128xf32> to vector<8x1x128xf32>
    %300 = vector.shape_cast %299 : vector<8x1x128xf32> to vector<8x128xf32>
    %301 = vector.shape_cast %300 : vector<8x128xf32> to vector<8x1x128xf32>
    %302 = vector.extract_strided_slice %190 {offsets = [2, 0, 0], sizes = [1, 8, 128], strides = [1, 1, 1]} : vector<8x8x128xf32> to vector<1x8x128xf32>
    %303 = vector.shape_cast %302 : vector<1x8x128xf32> to vector<8x128xf32>
    %304 = vector.shape_cast %303 : vector<8x128xf32> to vector<1x8x128xf32>
    %305 = vector.broadcast %301 : vector<8x1x128xf32> to vector<8x8x128xf32>
    %306 = vector.broadcast %304 : vector<1x8x128xf32> to vector<8x8x128xf32>
    %307 = arith.mulf %305, %306 : vector<8x8x128xf32>
    %308 = arith.addf %298, %307 : vector<8x8x128xf32>
    %309 = vector.extract_strided_slice %279 {offsets = [0, 3, 0], sizes = [8, 1, 128], strides = [1, 1, 1]} : vector<8x8x128xf32> to vector<8x1x128xf32>
    %310 = vector.shape_cast %309 : vector<8x1x128xf32> to vector<8x128xf32>
    %311 = vector.shape_cast %310 : vector<8x128xf32> to vector<8x1x128xf32>
    %312 = vector.extract_strided_slice %190 {offsets = [3, 0, 0], sizes = [1, 8, 128], strides = [1, 1, 1]} : vector<8x8x128xf32> to vector<1x8x128xf32>
    %313 = vector.shape_cast %312 : vector<1x8x128xf32> to vector<8x128xf32>
    %314 = vector.shape_cast %313 : vector<8x128xf32> to vector<1x8x128xf32>
    %315 = vector.broadcast %311 : vector<8x1x128xf32> to vector<8x8x128xf32>
    %316 = vector.broadcast %314 : vector<1x8x128xf32> to vector<8x8x128xf32>
    %317 = arith.mulf %315, %316 : vector<8x8x128xf32>
    %318 = arith.addf %308, %317 : vector<8x8x128xf32>
    %319 = vector.extract_strided_slice %279 {offsets = [0, 4, 0], sizes = [8, 1, 128], strides = [1, 1, 1]} : vector<8x8x128xf32> to vector<8x1x128xf32>
    %320 = vector.shape_cast %319 : vector<8x1x128xf32> to vector<8x128xf32>
    %321 = vector.shape_cast %320 : vector<8x128xf32> to vector<8x1x128xf32>
    %322 = vector.extract_strided_slice %190 {offsets = [4, 0, 0], sizes = [1, 8, 128], strides = [1, 1, 1]} : vector<8x8x128xf32> to vector<1x8x128xf32>
    %323 = vector.shape_cast %322 : vector<1x8x128xf32> to vector<8x128xf32>
    %324 = vector.shape_cast %323 : vector<8x128xf32> to vector<1x8x128xf32>
    %325 = vector.broadcast %321 : vector<8x1x128xf32> to vector<8x8x128xf32>
    %326 = vector.broadcast %324 : vector<1x8x128xf32> to vector<8x8x128xf32>
    %327 = arith.mulf %325, %326 : vector<8x8x128xf32>
    %328 = arith.addf %318, %327 : vector<8x8x128xf32>
    %329 = vector.extract_strided_slice %279 {offsets = [0, 5, 0], sizes = [8, 1, 128], strides = [1, 1, 1]} : vector<8x8x128xf32> to vector<8x1x128xf32>
    %330 = vector.shape_cast %329 : vector<8x1x128xf32> to vector<8x128xf32>
    %331 = vector.shape_cast %330 : vector<8x128xf32> to vector<8x1x128xf32>
    %332 = vector.extract_strided_slice %190 {offsets = [5, 0, 0], sizes = [1, 8, 128], strides = [1, 1, 1]} : vector<8x8x128xf32> to vector<1x8x128xf32>
    %333 = vector.shape_cast %332 : vector<1x8x128xf32> to vector<8x128xf32>
    %334 = vector.shape_cast %333 : vector<8x128xf32> to vector<1x8x128xf32>
    %335 = vector.broadcast %331 : vector<8x1x128xf32> to vector<8x8x128xf32>
    %336 = vector.broadcast %334 : vector<1x8x128xf32> to vector<8x8x128xf32>
    %337 = arith.mulf %335, %336 : vector<8x8x128xf32>
    %338 = arith.addf %328, %337 : vector<8x8x128xf32>
    %339 = vector.extract_strided_slice %279 {offsets = [0, 6, 0], sizes = [8, 1, 128], strides = [1, 1, 1]} : vector<8x8x128xf32> to vector<8x1x128xf32>
    %340 = vector.shape_cast %339 : vector<8x1x128xf32> to vector<8x128xf32>
    %341 = vector.shape_cast %340 : vector<8x128xf32> to vector<8x1x128xf32>
    %342 = vector.extract_strided_slice %190 {offsets = [6, 0, 0], sizes = [1, 8, 128], strides = [1, 1, 1]} : vector<8x8x128xf32> to vector<1x8x128xf32>
    %343 = vector.shape_cast %342 : vector<1x8x128xf32> to vector<8x128xf32>
    %344 = vector.shape_cast %343 : vector<8x128xf32> to vector<1x8x128xf32>
    %345 = vector.broadcast %341 : vector<8x1x128xf32> to vector<8x8x128xf32>
    %346 = vector.broadcast %344 : vector<1x8x128xf32> to vector<8x8x128xf32>
    %347 = arith.mulf %345, %346 : vector<8x8x128xf32>
    %348 = arith.addf %338, %347 : vector<8x8x128xf32>
    %349 = vector.extract_strided_slice %279 {offsets = [0, 7, 0], sizes = [8, 1, 128], strides = [1, 1, 1]} : vector<8x8x128xf32> to vector<8x1x128xf32>
    %350 = vector.shape_cast %349 : vector<8x1x128xf32> to vector<8x128xf32>
    %351 = vector.shape_cast %350 : vector<8x128xf32> to vector<8x1x128xf32>
    %352 = vector.extract_strided_slice %190 {offsets = [7, 0, 0], sizes = [1, 8, 128], strides = [1, 1, 1]} : vector<8x8x128xf32> to vector<1x8x128xf32>
    %353 = vector.shape_cast %352 : vector<1x8x128xf32> to vector<8x128xf32>
    %354 = vector.shape_cast %353 : vector<8x128xf32> to vector<1x8x128xf32>
    %355 = vector.broadcast %351 : vector<8x1x128xf32> to vector<8x8x128xf32>
    %356 = vector.broadcast %354 : vector<1x8x128xf32> to vector<8x8x128xf32>
    %357 = arith.mulf %355, %356 : vector<8x8x128xf32>
    %358 = arith.addf %348, %357 : vector<8x8x128xf32>
    %359 = tpu.concatenate %184, %358 in 1 : vector<8x8x128xf32>, vector<8x8x128xf32> -> vector<8x16x128xf32>
    %360 = arith.addf %359, %10 : vector<8x16x128xf32>
    %cst_7 = arith.constant 0.000000e+00 : f32
    %361 = vector.broadcast %cst_7 : f32 to vector<8x16x128xf32>
    %362 = arith.maximumf %360, %361 : vector<8x16x128xf32>
    %363 = vector.shape_cast %362 : vector<8x16x128xf32> to vector<128x128xf32>
    %364 = arith.truncf %363 : vector<128x128xf32> to vector<128x128xbf16>
    %c0_8 = arith.constant 0 : index
    %c0_9 = arith.constant 0 : index
    %365 = vector.load %arg3[%c0_8, %c0_9] : memref<512x128xbf16, #tpu.memory_space<vmem>>, vector<512x128xbf16>
    %cst_10 = arith.constant dense<0.000000e+00> : vector<512x128xf32>
    %366 = tpu.matmul %365, %364, %cst_10 {dimension_numbers = #tpu.dot_dimension_numbers<[1], [0], [0], [1], [0, 0, 1, 1], [], []>} : vector<512x128xbf16>, vector<128x128xbf16>, vector<512x128xf32> -> vector<512x128xf32>
    %367 = vector.extract_strided_slice %366 {offsets = [0, 0], sizes = [128, 128], strides = [1, 1]} : vector<512x128xf32> to vector<128x128xf32>
    %368 = vector.shape_cast %367 : vector<128x128xf32> to vector<2x8x8x128xf32>
    %369 = vector.extract_strided_slice %366 {offsets = [128, 0], sizes = [128, 128], strides = [1, 1]} : vector<512x128xf32> to vector<128x128xf32>
    %370 = vector.shape_cast %369 : vector<128x128xf32> to vector<2x8x8x128xf32>
    %371 = vector.extract_strided_slice %366 {offsets = [256, 0], sizes = [128, 128], strides = [1, 1]} : vector<512x128xf32> to vector<128x128xf32>
    %372 = vector.shape_cast %371 : vector<128x128xf32> to vector<2x8x8x128xf32>
    %373 = vector.extract_strided_slice %366 {offsets = [384, 0], sizes = [128, 128], strides = [1, 1]} : vector<512x128xf32> to vector<128x128xf32>
    %374 = vector.shape_cast %373 : vector<128x128xf32> to vector<8x16x128xf32>
    %375 = vector.extract_strided_slice %368 {offsets = [0, 0, 0, 0], sizes = [1, 8, 8, 128], strides = [1, 1, 1, 1]} : vector<2x8x8x128xf32> to vector<1x8x8x128xf32>
    %376 = vector.shape_cast %375 : vector<1x8x8x128xf32> to vector<8x8x128xf32>
    %377 = vector.extract_strided_slice %370 {offsets = [0, 0, 0, 0], sizes = [1, 8, 8, 128], strides = [1, 1, 1, 1]} : vector<2x8x8x128xf32> to vector<1x8x8x128xf32>
    %378 = vector.shape_cast %377 : vector<1x8x8x128xf32> to vector<8x8x128xf32>
    %379 = vector.extract_strided_slice %372 {offsets = [0, 0, 0, 0], sizes = [1, 8, 8, 128], strides = [1, 1, 1, 1]} : vector<2x8x8x128xf32> to vector<1x8x8x128xf32>
    %380 = vector.shape_cast %379 : vector<1x8x8x128xf32> to vector<8x8x128xf32>
    %381 = vector.extract_strided_slice %376 {offsets = [0, 0, 0], sizes = [1, 8, 128], strides = [1, 1, 1]} : vector<8x8x128xf32> to vector<1x8x128xf32>
    %382 = vector.shape_cast %381 : vector<1x8x128xf32> to vector<8x128xf32>
    %383 = vector.shape_cast %382 : vector<8x128xf32> to vector<8x1x128xf32>
    %384 = vector.extract_strided_slice %378 {offsets = [0, 0, 0], sizes = [1, 8, 128], strides = [1, 1, 1]} : vector<8x8x128xf32> to vector<1x8x128xf32>
    %385 = vector.shape_cast %384 : vector<1x8x128xf32> to vector<8x128xf32>
    %386 = vector.shape_cast %385 : vector<8x128xf32> to vector<1x8x128xf32>
    %387 = vector.broadcast %383 : vector<8x1x128xf32> to vector<8x8x128xf32>
    %388 = vector.broadcast %386 : vector<1x8x128xf32> to vector<8x8x128xf32>
    %389 = arith.mulf %387, %388 : vector<8x8x128xf32>
    %390 = vector.extract_strided_slice %376 {offsets = [1, 0, 0], sizes = [1, 8, 128], strides = [1, 1, 1]} : vector<8x8x128xf32> to vector<1x8x128xf32>
    %391 = vector.shape_cast %390 : vector<1x8x128xf32> to vector<8x128xf32>
    %392 = vector.shape_cast %391 : vector<8x128xf32> to vector<8x1x128xf32>
    %393 = vector.extract_strided_slice %378 {offsets = [1, 0, 0], sizes = [1, 8, 128], strides = [1, 1, 1]} : vector<8x8x128xf32> to vector<1x8x128xf32>
    %394 = vector.shape_cast %393 : vector<1x8x128xf32> to vector<8x128xf32>
    %395 = vector.shape_cast %394 : vector<8x128xf32> to vector<1x8x128xf32>
    %396 = vector.broadcast %392 : vector<8x1x128xf32> to vector<8x8x128xf32>
    %397 = vector.broadcast %395 : vector<1x8x128xf32> to vector<8x8x128xf32>
    %398 = arith.mulf %396, %397 : vector<8x8x128xf32>
    %399 = arith.addf %389, %398 : vector<8x8x128xf32>
    %400 = vector.extract_strided_slice %376 {offsets = [2, 0, 0], sizes = [1, 8, 128], strides = [1, 1, 1]} : vector<8x8x128xf32> to vector<1x8x128xf32>
    %401 = vector.shape_cast %400 : vector<1x8x128xf32> to vector<8x128xf32>
    %402 = vector.shape_cast %401 : vector<8x128xf32> to vector<8x1x128xf32>
    %403 = vector.extract_strided_slice %378 {offsets = [2, 0, 0], sizes = [1, 8, 128], strides = [1, 1, 1]} : vector<8x8x128xf32> to vector<1x8x128xf32>
    %404 = vector.shape_cast %403 : vector<1x8x128xf32> to vector<8x128xf32>
    %405 = vector.shape_cast %404 : vector<8x128xf32> to vector<1x8x128xf32>
    %406 = vector.broadcast %402 : vector<8x1x128xf32> to vector<8x8x128xf32>
    %407 = vector.broadcast %405 : vector<1x8x128xf32> to vector<8x8x128xf32>
    %408 = arith.mulf %406, %407 : vector<8x8x128xf32>
    %409 = arith.addf %399, %408 : vector<8x8x128xf32>
    %410 = vector.extract_strided_slice %376 {offsets = [3, 0, 0], sizes = [1, 8, 128], strides = [1, 1, 1]} : vector<8x8x128xf32> to vector<1x8x128xf32>
    %411 = vector.shape_cast %410 : vector<1x8x128xf32> to vector<8x128xf32>
    %412 = vector.shape_cast %411 : vector<8x128xf32> to vector<8x1x128xf32>
    %413 = vector.extract_strided_slice %378 {offsets = [3, 0, 0], sizes = [1, 8, 128], strides = [1, 1, 1]} : vector<8x8x128xf32> to vector<1x8x128xf32>
    %414 = vector.shape_cast %413 : vector<1x8x128xf32> to vector<8x128xf32>
    %415 = vector.shape_cast %414 : vector<8x128xf32> to vector<1x8x128xf32>
    %416 = vector.broadcast %412 : vector<8x1x128xf32> to vector<8x8x128xf32>
    %417 = vector.broadcast %415 : vector<1x8x128xf32> to vector<8x8x128xf32>
    %418 = arith.mulf %416, %417 : vector<8x8x128xf32>
    %419 = arith.addf %409, %418 : vector<8x8x128xf32>
    %420 = vector.extract_strided_slice %376 {offsets = [4, 0, 0], sizes = [1, 8, 128], strides = [1, 1, 1]} : vector<8x8x128xf32> to vector<1x8x128xf32>
    %421 = vector.shape_cast %420 : vector<1x8x128xf32> to vector<8x128xf32>
    %422 = vector.shape_cast %421 : vector<8x128xf32> to vector<8x1x128xf32>
    %423 = vector.extract_strided_slice %378 {offsets = [4, 0, 0], sizes = [1, 8, 128], strides = [1, 1, 1]} : vector<8x8x128xf32> to vector<1x8x128xf32>
    %424 = vector.shape_cast %423 : vector<1x8x128xf32> to vector<8x128xf32>
    %425 = vector.shape_cast %424 : vector<8x128xf32> to vector<1x8x128xf32>
    %426 = vector.broadcast %422 : vector<8x1x128xf32> to vector<8x8x128xf32>
    %427 = vector.broadcast %425 : vector<1x8x128xf32> to vector<8x8x128xf32>
    %428 = arith.mulf %426, %427 : vector<8x8x128xf32>
    %429 = arith.addf %419, %428 : vector<8x8x128xf32>
    %430 = vector.extract_strided_slice %376 {offsets = [5, 0, 0], sizes = [1, 8, 128], strides = [1, 1, 1]} : vector<8x8x128xf32> to vector<1x8x128xf32>
    %431 = vector.shape_cast %430 : vector<1x8x128xf32> to vector<8x128xf32>
    %432 = vector.shape_cast %431 : vector<8x128xf32> to vector<8x1x128xf32>
    %433 = vector.extract_strided_slice %378 {offsets = [5, 0, 0], sizes = [1, 8, 128], strides = [1, 1, 1]} : vector<8x8x128xf32> to vector<1x8x128xf32>
    %434 = vector.shape_cast %433 : vector<1x8x128xf32> to vector<8x128xf32>
    %435 = vector.shape_cast %434 : vector<8x128xf32> to vector<1x8x128xf32>
    %436 = vector.broadcast %432 : vector<8x1x128xf32> to vector<8x8x128xf32>
    %437 = vector.broadcast %435 : vector<1x8x128xf32> to vector<8x8x128xf32>
    %438 = arith.mulf %436, %437 : vector<8x8x128xf32>
    %439 = arith.addf %429, %438 : vector<8x8x128xf32>
    %440 = vector.extract_strided_slice %376 {offsets = [6, 0, 0], sizes = [1, 8, 128], strides = [1, 1, 1]} : vector<8x8x128xf32> to vector<1x8x128xf32>
    %441 = vector.shape_cast %440 : vector<1x8x128xf32> to vector<8x128xf32>
    %442 = vector.shape_cast %441 : vector<8x128xf32> to vector<8x1x128xf32>
    %443 = vector.extract_strided_slice %378 {offsets = [6, 0, 0], sizes = [1, 8, 128], strides = [1, 1, 1]} : vector<8x8x128xf32> to vector<1x8x128xf32>
    %444 = vector.shape_cast %443 : vector<1x8x128xf32> to vector<8x128xf32>
    %445 = vector.shape_cast %444 : vector<8x128xf32> to vector<1x8x128xf32>
    %446 = vector.broadcast %442 : vector<8x1x128xf32> to vector<8x8x128xf32>
    %447 = vector.broadcast %445 : vector<1x8x128xf32> to vector<8x8x128xf32>
    %448 = arith.mulf %446, %447 : vector<8x8x128xf32>
    %449 = arith.addf %439, %448 : vector<8x8x128xf32>
    %450 = vector.extract_strided_slice %376 {offsets = [7, 0, 0], sizes = [1, 8, 128], strides = [1, 1, 1]} : vector<8x8x128xf32> to vector<1x8x128xf32>
    %451 = vector.shape_cast %450 : vector<1x8x128xf32> to vector<8x128xf32>
    %452 = vector.shape_cast %451 : vector<8x128xf32> to vector<8x1x128xf32>
    %453 = vector.extract_strided_slice %378 {offsets = [7, 0, 0], sizes = [1, 8, 128], strides = [1, 1, 1]} : vector<8x8x128xf32> to vector<1x8x128xf32>
    %454 = vector.shape_cast %453 : vector<1x8x128xf32> to vector<8x128xf32>
    %455 = vector.shape_cast %454 : vector<8x128xf32> to vector<1x8x128xf32>
    %456 = vector.broadcast %452 : vector<8x1x128xf32> to vector<8x8x128xf32>
    %457 = vector.broadcast %455 : vector<1x8x128xf32> to vector<8x8x128xf32>
    %458 = arith.mulf %456, %457 : vector<8x8x128xf32>
    %459 = arith.addf %449, %458 : vector<8x8x128xf32>
    %cst_11 = arith.constant dense<0xFF800000> : vector<8x128xf32>
    %460 = vector.multi_reduction <maximumf>, %459, %cst_11 [1] : vector<8x8x128xf32> to vector<8x128xf32>
    %461 = vector.shape_cast %460 : vector<8x128xf32> to vector<8x1x128xf32>
    %462 = vector.broadcast %461 : vector<8x1x128xf32> to vector<8x8x128xf32>
    %463 = arith.subf %459, %462 : vector<8x8x128xf32>
    %464 = math.exp %463 : vector<8x8x128xf32>
    %cst_12 = arith.constant dense<0.000000e+00> : vector<8x128xf32>
    %465 = vector.multi_reduction <add>, %464, %cst_12 [1] : vector<8x8x128xf32> to vector<8x128xf32>
    %466 = vector.shape_cast %465 : vector<8x128xf32> to vector<8x1x128xf32>
    %467 = tpu.reciprocal %466 {approx = true} : vector<8x1x128xf32> -> vector<8x1x128xf32>
    %468 = vector.broadcast %467 : vector<8x1x128xf32> to vector<8x8x128xf32>
    %469 = arith.mulf %464, %468 : vector<8x8x128xf32>
    %470 = vector.extract_strided_slice %469 {offsets = [0, 0, 0], sizes = [8, 1, 128], strides = [1, 1, 1]} : vector<8x8x128xf32> to vector<8x1x128xf32>
    %471 = vector.shape_cast %470 : vector<8x1x128xf32> to vector<8x128xf32>
    %472 = vector.shape_cast %471 : vector<8x128xf32> to vector<8x1x128xf32>
    %473 = vector.extract_strided_slice %380 {offsets = [0, 0, 0], sizes = [1, 8, 128], strides = [1, 1, 1]} : vector<8x8x128xf32> to vector<1x8x128xf32>
    %474 = vector.shape_cast %473 : vector<1x8x128xf32> to vector<8x128xf32>
    %475 = vector.shape_cast %474 : vector<8x128xf32> to vector<1x8x128xf32>
    %476 = vector.broadcast %472 : vector<8x1x128xf32> to vector<8x8x128xf32>
    %477 = vector.broadcast %475 : vector<1x8x128xf32> to vector<8x8x128xf32>
    %478 = arith.mulf %476, %477 : vector<8x8x128xf32>
    %479 = vector.extract_strided_slice %469 {offsets = [0, 1, 0], sizes = [8, 1, 128], strides = [1, 1, 1]} : vector<8x8x128xf32> to vector<8x1x128xf32>
    %480 = vector.shape_cast %479 : vector<8x1x128xf32> to vector<8x128xf32>
    %481 = vector.shape_cast %480 : vector<8x128xf32> to vector<8x1x128xf32>
    %482 = vector.extract_strided_slice %380 {offsets = [1, 0, 0], sizes = [1, 8, 128], strides = [1, 1, 1]} : vector<8x8x128xf32> to vector<1x8x128xf32>
    %483 = vector.shape_cast %482 : vector<1x8x128xf32> to vector<8x128xf32>
    %484 = vector.shape_cast %483 : vector<8x128xf32> to vector<1x8x128xf32>
    %485 = vector.broadcast %481 : vector<8x1x128xf32> to vector<8x8x128xf32>
    %486 = vector.broadcast %484 : vector<1x8x128xf32> to vector<8x8x128xf32>
    %487 = arith.mulf %485, %486 : vector<8x8x128xf32>
    %488 = arith.addf %478, %487 : vector<8x8x128xf32>
    %489 = vector.extract_strided_slice %469 {offsets = [0, 2, 0], sizes = [8, 1, 128], strides = [1, 1, 1]} : vector<8x8x128xf32> to vector<8x1x128xf32>
    %490 = vector.shape_cast %489 : vector<8x1x128xf32> to vector<8x128xf32>
    %491 = vector.shape_cast %490 : vector<8x128xf32> to vector<8x1x128xf32>
    %492 = vector.extract_strided_slice %380 {offsets = [2, 0, 0], sizes = [1, 8, 128], strides = [1, 1, 1]} : vector<8x8x128xf32> to vector<1x8x128xf32>
    %493 = vector.shape_cast %492 : vector<1x8x128xf32> to vector<8x128xf32>
    %494 = vector.shape_cast %493 : vector<8x128xf32> to vector<1x8x128xf32>
    %495 = vector.broadcast %491 : vector<8x1x128xf32> to vector<8x8x128xf32>
    %496 = vector.broadcast %494 : vector<1x8x128xf32> to vector<8x8x128xf32>
    %497 = arith.mulf %495, %496 : vector<8x8x128xf32>
    %498 = arith.addf %488, %497 : vector<8x8x128xf32>
    %499 = vector.extract_strided_slice %469 {offsets = [0, 3, 0], sizes = [8, 1, 128], strides = [1, 1, 1]} : vector<8x8x128xf32> to vector<8x1x128xf32>
    %500 = vector.shape_cast %499 : vector<8x1x128xf32> to vector<8x128xf32>
    %501 = vector.shape_cast %500 : vector<8x128xf32> to vector<8x1x128xf32>
    %502 = vector.extract_strided_slice %380 {offsets = [3, 0, 0], sizes = [1, 8, 128], strides = [1, 1, 1]} : vector<8x8x128xf32> to vector<1x8x128xf32>
    %503 = vector.shape_cast %502 : vector<1x8x128xf32> to vector<8x128xf32>
    %504 = vector.shape_cast %503 : vector<8x128xf32> to vector<1x8x128xf32>
    %505 = vector.broadcast %501 : vector<8x1x128xf32> to vector<8x8x128xf32>
    %506 = vector.broadcast %504 : vector<1x8x128xf32> to vector<8x8x128xf32>
    %507 = arith.mulf %505, %506 : vector<8x8x128xf32>
    %508 = arith.addf %498, %507 : vector<8x8x128xf32>
    %509 = vector.extract_strided_slice %469 {offsets = [0, 4, 0], sizes = [8, 1, 128], strides = [1, 1, 1]} : vector<8x8x128xf32> to vector<8x1x128xf32>
    %510 = vector.shape_cast %509 : vector<8x1x128xf32> to vector<8x128xf32>
    %511 = vector.shape_cast %510 : vector<8x128xf32> to vector<8x1x128xf32>
    %512 = vector.extract_strided_slice %380 {offsets = [4, 0, 0], sizes = [1, 8, 128], strides = [1, 1, 1]} : vector<8x8x128xf32> to vector<1x8x128xf32>
    %513 = vector.shape_cast %512 : vector<1x8x128xf32> to vector<8x128xf32>
    %514 = vector.shape_cast %513 : vector<8x128xf32> to vector<1x8x128xf32>
    %515 = vector.broadcast %511 : vector<8x1x128xf32> to vector<8x8x128xf32>
    %516 = vector.broadcast %514 : vector<1x8x128xf32> to vector<8x8x128xf32>
    %517 = arith.mulf %515, %516 : vector<8x8x128xf32>
    %518 = arith.addf %508, %517 : vector<8x8x128xf32>
    %519 = vector.extract_strided_slice %469 {offsets = [0, 5, 0], sizes = [8, 1, 128], strides = [1, 1, 1]} : vector<8x8x128xf32> to vector<8x1x128xf32>
    %520 = vector.shape_cast %519 : vector<8x1x128xf32> to vector<8x128xf32>
    %521 = vector.shape_cast %520 : vector<8x128xf32> to vector<8x1x128xf32>
    %522 = vector.extract_strided_slice %380 {offsets = [5, 0, 0], sizes = [1, 8, 128], strides = [1, 1, 1]} : vector<8x8x128xf32> to vector<1x8x128xf32>
    %523 = vector.shape_cast %522 : vector<1x8x128xf32> to vector<8x128xf32>
    %524 = vector.shape_cast %523 : vector<8x128xf32> to vector<1x8x128xf32>
    %525 = vector.broadcast %521 : vector<8x1x128xf32> to vector<8x8x128xf32>
    %526 = vector.broadcast %524 : vector<1x8x128xf32> to vector<8x8x128xf32>
    %527 = arith.mulf %525, %526 : vector<8x8x128xf32>
    %528 = arith.addf %518, %527 : vector<8x8x128xf32>
    %529 = vector.extract_strided_slice %469 {offsets = [0, 6, 0], sizes = [8, 1, 128], strides = [1, 1, 1]} : vector<8x8x128xf32> to vector<8x1x128xf32>
    %530 = vector.shape_cast %529 : vector<8x1x128xf32> to vector<8x128xf32>
    %531 = vector.shape_cast %530 : vector<8x128xf32> to vector<8x1x128xf32>
    %532 = vector.extract_strided_slice %380 {offsets = [6, 0, 0], sizes = [1, 8, 128], strides = [1, 1, 1]} : vector<8x8x128xf32> to vector<1x8x128xf32>
    %533 = vector.shape_cast %532 : vector<1x8x128xf32> to vector<8x128xf32>
    %534 = vector.shape_cast %533 : vector<8x128xf32> to vector<1x8x128xf32>
    %535 = vector.broadcast %531 : vector<8x1x128xf32> to vector<8x8x128xf32>
    %536 = vector.broadcast %534 : vector<1x8x128xf32> to vector<8x8x128xf32>
    %537 = arith.mulf %535, %536 : vector<8x8x128xf32>
    %538 = arith.addf %528, %537 : vector<8x8x128xf32>
    %539 = vector.extract_strided_slice %469 {offsets = [0, 7, 0], sizes = [8, 1, 128], strides = [1, 1, 1]} : vector<8x8x128xf32> to vector<8x1x128xf32>
    %540 = vector.shape_cast %539 : vector<8x1x128xf32> to vector<8x128xf32>
    %541 = vector.shape_cast %540 : vector<8x128xf32> to vector<8x1x128xf32>
    %542 = vector.extract_strided_slice %380 {offsets = [7, 0, 0], sizes = [1, 8, 128], strides = [1, 1, 1]} : vector<8x8x128xf32> to vector<1x8x128xf32>
    %543 = vector.shape_cast %542 : vector<1x8x128xf32> to vector<8x128xf32>
    %544 = vector.shape_cast %543 : vector<8x128xf32> to vector<1x8x128xf32>
    %545 = vector.broadcast %541 : vector<8x1x128xf32> to vector<8x8x128xf32>
    %546 = vector.broadcast %544 : vector<1x8x128xf32> to vector<8x8x128xf32>
    %547 = arith.mulf %545, %546 : vector<8x8x128xf32>
    %548 = arith.addf %538, %547 : vector<8x8x128xf32>
    %549 = vector.extract_strided_slice %368 {offsets = [1, 0, 0, 0], sizes = [1, 8, 8, 128], strides = [1, 1, 1, 1]} : vector<2x8x8x128xf32> to vector<1x8x8x128xf32>
    %550 = vector.shape_cast %549 : vector<1x8x8x128xf32> to vector<8x8x128xf32>
    %551 = vector.extract_strided_slice %370 {offsets = [1, 0, 0, 0], sizes = [1, 8, 8, 128], strides = [1, 1, 1, 1]} : vector<2x8x8x128xf32> to vector<1x8x8x128xf32>
    %552 = vector.shape_cast %551 : vector<1x8x8x128xf32> to vector<8x8x128xf32>
    %553 = vector.extract_strided_slice %372 {offsets = [1, 0, 0, 0], sizes = [1, 8, 8, 128], strides = [1, 1, 1, 1]} : vector<2x8x8x128xf32> to vector<1x8x8x128xf32>
    %554 = vector.shape_cast %553 : vector<1x8x8x128xf32> to vector<8x8x128xf32>
    %555 = vector.extract_strided_slice %550 {offsets = [0, 0, 0], sizes = [1, 8, 128], strides = [1, 1, 1]} : vector<8x8x128xf32> to vector<1x8x128xf32>
    %556 = vector.shape_cast %555 : vector<1x8x128xf32> to vector<8x128xf32>
    %557 = vector.shape_cast %556 : vector<8x128xf32> to vector<8x1x128xf32>
    %558 = vector.extract_strided_slice %552 {offsets = [0, 0, 0], sizes = [1, 8, 128], strides = [1, 1, 1]} : vector<8x8x128xf32> to vector<1x8x128xf32>
    %559 = vector.shape_cast %558 : vector<1x8x128xf32> to vector<8x128xf32>
    %560 = vector.shape_cast %559 : vector<8x128xf32> to vector<1x8x128xf32>
    %561 = vector.broadcast %557 : vector<8x1x128xf32> to vector<8x8x128xf32>
    %562 = vector.broadcast %560 : vector<1x8x128xf32> to vector<8x8x128xf32>
    %563 = arith.mulf %561, %562 : vector<8x8x128xf32>
    %564 = vector.extract_strided_slice %550 {offsets = [1, 0, 0], sizes = [1, 8, 128], strides = [1, 1, 1]} : vector<8x8x128xf32> to vector<1x8x128xf32>
    %565 = vector.shape_cast %564 : vector<1x8x128xf32> to vector<8x128xf32>
    %566 = vector.shape_cast %565 : vector<8x128xf32> to vector<8x1x128xf32>
    %567 = vector.extract_strided_slice %552 {offsets = [1, 0, 0], sizes = [1, 8, 128], strides = [1, 1, 1]} : vector<8x8x128xf32> to vector<1x8x128xf32>
    %568 = vector.shape_cast %567 : vector<1x8x128xf32> to vector<8x128xf32>
    %569 = vector.shape_cast %568 : vector<8x128xf32> to vector<1x8x128xf32>
    %570 = vector.broadcast %566 : vector<8x1x128xf32> to vector<8x8x128xf32>
    %571 = vector.broadcast %569 : vector<1x8x128xf32> to vector<8x8x128xf32>
    %572 = arith.mulf %570, %571 : vector<8x8x128xf32>
    %573 = arith.addf %563, %572 : vector<8x8x128xf32>
    %574 = vector.extract_strided_slice %550 {offsets = [2, 0, 0], sizes = [1, 8, 128], strides = [1, 1, 1]} : vector<8x8x128xf32> to vector<1x8x128xf32>
    %575 = vector.shape_cast %574 : vector<1x8x128xf32> to vector<8x128xf32>
    %576 = vector.shape_cast %575 : vector<8x128xf32> to vector<8x1x128xf32>
    %577 = vector.extract_strided_slice %552 {offsets = [2, 0, 0], sizes = [1, 8, 128], strides = [1, 1, 1]} : vector<8x8x128xf32> to vector<1x8x128xf32>
    %578 = vector.shape_cast %577 : vector<1x8x128xf32> to vector<8x128xf32>
    %579 = vector.shape_cast %578 : vector<8x128xf32> to vector<1x8x128xf32>
    %580 = vector.broadcast %576 : vector<8x1x128xf32> to vector<8x8x128xf32>
    %581 = vector.broadcast %579 : vector<1x8x128xf32> to vector<8x8x128xf32>
    %582 = arith.mulf %580, %581 : vector<8x8x128xf32>
    %583 = arith.addf %573, %582 : vector<8x8x128xf32>
    %584 = vector.extract_strided_slice %550 {offsets = [3, 0, 0], sizes = [1, 8, 128], strides = [1, 1, 1]} : vector<8x8x128xf32> to vector<1x8x128xf32>
    %585 = vector.shape_cast %584 : vector<1x8x128xf32> to vector<8x128xf32>
    %586 = vector.shape_cast %585 : vector<8x128xf32> to vector<8x1x128xf32>
    %587 = vector.extract_strided_slice %552 {offsets = [3, 0, 0], sizes = [1, 8, 128], strides = [1, 1, 1]} : vector<8x8x128xf32> to vector<1x8x128xf32>
    %588 = vector.shape_cast %587 : vector<1x8x128xf32> to vector<8x128xf32>
    %589 = vector.shape_cast %588 : vector<8x128xf32> to vector<1x8x128xf32>
    %590 = vector.broadcast %586 : vector<8x1x128xf32> to vector<8x8x128xf32>
    %591 = vector.broadcast %589 : vector<1x8x128xf32> to vector<8x8x128xf32>
    %592 = arith.mulf %590, %591 : vector<8x8x128xf32>
    %593 = arith.addf %583, %592 : vector<8x8x128xf32>
    %594 = vector.extract_strided_slice %550 {offsets = [4, 0, 0], sizes = [1, 8, 128], strides = [1, 1, 1]} : vector<8x8x128xf32> to vector<1x8x128xf32>
    %595 = vector.shape_cast %594 : vector<1x8x128xf32> to vector<8x128xf32>
    %596 = vector.shape_cast %595 : vector<8x128xf32> to vector<8x1x128xf32>
    %597 = vector.extract_strided_slice %552 {offsets = [4, 0, 0], sizes = [1, 8, 128], strides = [1, 1, 1]} : vector<8x8x128xf32> to vector<1x8x128xf32>
    %598 = vector.shape_cast %597 : vector<1x8x128xf32> to vector<8x128xf32>
    %599 = vector.shape_cast %598 : vector<8x128xf32> to vector<1x8x128xf32>
    %600 = vector.broadcast %596 : vector<8x1x128xf32> to vector<8x8x128xf32>
    %601 = vector.broadcast %599 : vector<1x8x128xf32> to vector<8x8x128xf32>
    %602 = arith.mulf %600, %601 : vector<8x8x128xf32>
    %603 = arith.addf %593, %602 : vector<8x8x128xf32>
    %604 = vector.extract_strided_slice %550 {offsets = [5, 0, 0], sizes = [1, 8, 128], strides = [1, 1, 1]} : vector<8x8x128xf32> to vector<1x8x128xf32>
    %605 = vector.shape_cast %604 : vector<1x8x128xf32> to vector<8x128xf32>
    %606 = vector.shape_cast %605 : vector<8x128xf32> to vector<8x1x128xf32>
    %607 = vector.extract_strided_slice %552 {offsets = [5, 0, 0], sizes = [1, 8, 128], strides = [1, 1, 1]} : vector<8x8x128xf32> to vector<1x8x128xf32>
    %608 = vector.shape_cast %607 : vector<1x8x128xf32> to vector<8x128xf32>
    %609 = vector.shape_cast %608 : vector<8x128xf32> to vector<1x8x128xf32>
    %610 = vector.broadcast %606 : vector<8x1x128xf32> to vector<8x8x128xf32>
    %611 = vector.broadcast %609 : vector<1x8x128xf32> to vector<8x8x128xf32>
    %612 = arith.mulf %610, %611 : vector<8x8x128xf32>
    %613 = arith.addf %603, %612 : vector<8x8x128xf32>
    %614 = vector.extract_strided_slice %550 {offsets = [6, 0, 0], sizes = [1, 8, 128], strides = [1, 1, 1]} : vector<8x8x128xf32> to vector<1x8x128xf32>
    %615 = vector.shape_cast %614 : vector<1x8x128xf32> to vector<8x128xf32>
    %616 = vector.shape_cast %615 : vector<8x128xf32> to vector<8x1x128xf32>
    %617 = vector.extract_strided_slice %552 {offsets = [6, 0, 0], sizes = [1, 8, 128], strides = [1, 1, 1]} : vector<8x8x128xf32> to vector<1x8x128xf32>
    %618 = vector.shape_cast %617 : vector<1x8x128xf32> to vector<8x128xf32>
    %619 = vector.shape_cast %618 : vector<8x128xf32> to vector<1x8x128xf32>
    %620 = vector.broadcast %616 : vector<8x1x128xf32> to vector<8x8x128xf32>
    %621 = vector.broadcast %619 : vector<1x8x128xf32> to vector<8x8x128xf32>
    %622 = arith.mulf %620, %621 : vector<8x8x128xf32>
    %623 = arith.addf %613, %622 : vector<8x8x128xf32>
    %624 = vector.extract_strided_slice %550 {offsets = [7, 0, 0], sizes = [1, 8, 128], strides = [1, 1, 1]} : vector<8x8x128xf32> to vector<1x8x128xf32>
    %625 = vector.shape_cast %624 : vector<1x8x128xf32> to vector<8x128xf32>
    %626 = vector.shape_cast %625 : vector<8x128xf32> to vector<8x1x128xf32>
    %627 = vector.extract_strided_slice %552 {offsets = [7, 0, 0], sizes = [1, 8, 128], strides = [1, 1, 1]} : vector<8x8x128xf32> to vector<1x8x128xf32>
    %628 = vector.shape_cast %627 : vector<1x8x128xf32> to vector<8x128xf32>
    %629 = vector.shape_cast %628 : vector<8x128xf32> to vector<1x8x128xf32>
    %630 = vector.broadcast %626 : vector<8x1x128xf32> to vector<8x8x128xf32>
    %631 = vector.broadcast %629 : vector<1x8x128xf32> to vector<8x8x128xf32>
    %632 = arith.mulf %630, %631 : vector<8x8x128xf32>
    %633 = arith.addf %623, %632 : vector<8x8x128xf32>
    %cst_13 = arith.constant dense<0xFF800000> : vector<8x128xf32>
    %634 = vector.multi_reduction <maximumf>, %633, %cst_13 [1] : vector<8x8x128xf32> to vector<8x128xf32>
    %635 = vector.shape_cast %634 : vector<8x128xf32> to vector<8x1x128xf32>
    %636 = vector.broadcast %635 : vector<8x1x128xf32> to vector<8x8x128xf32>
    %637 = arith.subf %633, %636 : vector<8x8x128xf32>
    %638 = math.exp %637 : vector<8x8x128xf32>
    %cst_14 = arith.constant dense<0.000000e+00> : vector<8x128xf32>
    %639 = vector.multi_reduction <add>, %638, %cst_14 [1] : vector<8x8x128xf32> to vector<8x128xf32>
    %640 = vector.shape_cast %639 : vector<8x128xf32> to vector<8x1x128xf32>
    %641 = tpu.reciprocal %640 {approx = true} : vector<8x1x128xf32> -> vector<8x1x128xf32>
    %642 = vector.broadcast %641 : vector<8x1x128xf32> to vector<8x8x128xf32>
    %643 = arith.mulf %638, %642 : vector<8x8x128xf32>
    %644 = vector.extract_strided_slice %643 {offsets = [0, 0, 0], sizes = [8, 1, 128], strides = [1, 1, 1]} : vector<8x8x128xf32> to vector<8x1x128xf32>
    %645 = vector.shape_cast %644 : vector<8x1x128xf32> to vector<8x128xf32>
    %646 = vector.shape_cast %645 : vector<8x128xf32> to vector<8x1x128xf32>
    %647 = vector.extract_strided_slice %554 {offsets = [0, 0, 0], sizes = [1, 8, 128], strides = [1, 1, 1]} : vector<8x8x128xf32> to vector<1x8x128xf32>
    %648 = vector.shape_cast %647 : vector<1x8x128xf32> to vector<8x128xf32>
    %649 = vector.shape_cast %648 : vector<8x128xf32> to vector<1x8x128xf32>
    %650 = vector.broadcast %646 : vector<8x1x128xf32> to vector<8x8x128xf32>
    %651 = vector.broadcast %649 : vector<1x8x128xf32> to vector<8x8x128xf32>
    %652 = arith.mulf %650, %651 : vector<8x8x128xf32>
    %653 = vector.extract_strided_slice %643 {offsets = [0, 1, 0], sizes = [8, 1, 128], strides = [1, 1, 1]} : vector<8x8x128xf32> to vector<8x1x128xf32>
    %654 = vector.shape_cast %653 : vector<8x1x128xf32> to vector<8x128xf32>
    %655 = vector.shape_cast %654 : vector<8x128xf32> to vector<8x1x128xf32>
    %656 = vector.extract_strided_slice %554 {offsets = [1, 0, 0], sizes = [1, 8, 128], strides = [1, 1, 1]} : vector<8x8x128xf32> to vector<1x8x128xf32>
    %657 = vector.shape_cast %656 : vector<1x8x128xf32> to vector<8x128xf32>
    %658 = vector.shape_cast %657 : vector<8x128xf32> to vector<1x8x128xf32>
    %659 = vector.broadcast %655 : vector<8x1x128xf32> to vector<8x8x128xf32>
    %660 = vector.broadcast %658 : vector<1x8x128xf32> to vector<8x8x128xf32>
    %661 = arith.mulf %659, %660 : vector<8x8x128xf32>
    %662 = arith.addf %652, %661 : vector<8x8x128xf32>
    %663 = vector.extract_strided_slice %643 {offsets = [0, 2, 0], sizes = [8, 1, 128], strides = [1, 1, 1]} : vector<8x8x128xf32> to vector<8x1x128xf32>
    %664 = vector.shape_cast %663 : vector<8x1x128xf32> to vector<8x128xf32>
    %665 = vector.shape_cast %664 : vector<8x128xf32> to vector<8x1x128xf32>
    %666 = vector.extract_strided_slice %554 {offsets = [2, 0, 0], sizes = [1, 8, 128], strides = [1, 1, 1]} : vector<8x8x128xf32> to vector<1x8x128xf32>
    %667 = vector.shape_cast %666 : vector<1x8x128xf32> to vector<8x128xf32>
    %668 = vector.shape_cast %667 : vector<8x128xf32> to vector<1x8x128xf32>
    %669 = vector.broadcast %665 : vector<8x1x128xf32> to vector<8x8x128xf32>
    %670 = vector.broadcast %668 : vector<1x8x128xf32> to vector<8x8x128xf32>
    %671 = arith.mulf %669, %670 : vector<8x8x128xf32>
    %672 = arith.addf %662, %671 : vector<8x8x128xf32>
    %673 = vector.extract_strided_slice %643 {offsets = [0, 3, 0], sizes = [8, 1, 128], strides = [1, 1, 1]} : vector<8x8x128xf32> to vector<8x1x128xf32>
    %674 = vector.shape_cast %673 : vector<8x1x128xf32> to vector<8x128xf32>
    %675 = vector.shape_cast %674 : vector<8x128xf32> to vector<8x1x128xf32>
    %676 = vector.extract_strided_slice %554 {offsets = [3, 0, 0], sizes = [1, 8, 128], strides = [1, 1, 1]} : vector<8x8x128xf32> to vector<1x8x128xf32>
    %677 = vector.shape_cast %676 : vector<1x8x128xf32> to vector<8x128xf32>
    %678 = vector.shape_cast %677 : vector<8x128xf32> to vector<1x8x128xf32>
    %679 = vector.broadcast %675 : vector<8x1x128xf32> to vector<8x8x128xf32>
    %680 = vector.broadcast %678 : vector<1x8x128xf32> to vector<8x8x128xf32>
    %681 = arith.mulf %679, %680 : vector<8x8x128xf32>
    %682 = arith.addf %672, %681 : vector<8x8x128xf32>
    %683 = vector.extract_strided_slice %643 {offsets = [0, 4, 0], sizes = [8, 1, 128], strides = [1, 1, 1]} : vector<8x8x128xf32> to vector<8x1x128xf32>
    %684 = vector.shape_cast %683 : vector<8x1x128xf32> to vector<8x128xf32>
    %685 = vector.shape_cast %684 : vector<8x128xf32> to vector<8x1x128xf32>
    %686 = vector.extract_strided_slice %554 {offsets = [4, 0, 0], sizes = [1, 8, 128], strides = [1, 1, 1]} : vector<8x8x128xf32> to vector<1x8x128xf32>
    %687 = vector.shape_cast %686 : vector<1x8x128xf32> to vector<8x128xf32>
    %688 = vector.shape_cast %687 : vector<8x128xf32> to vector<1x8x128xf32>
    %689 = vector.broadcast %685 : vector<8x1x128xf32> to vector<8x8x128xf32>
    %690 = vector.broadcast %688 : vector<1x8x128xf32> to vector<8x8x128xf32>
    %691 = arith.mulf %689, %690 : vector<8x8x128xf32>
    %692 = arith.addf %682, %691 : vector<8x8x128xf32>
    %693 = vector.extract_strided_slice %643 {offsets = [0, 5, 0], sizes = [8, 1, 128], strides = [1, 1, 1]} : vector<8x8x128xf32> to vector<8x1x128xf32>
    %694 = vector.shape_cast %693 : vector<8x1x128xf32> to vector<8x128xf32>
    %695 = vector.shape_cast %694 : vector<8x128xf32> to vector<8x1x128xf32>
    %696 = vector.extract_strided_slice %554 {offsets = [5, 0, 0], sizes = [1, 8, 128], strides = [1, 1, 1]} : vector<8x8x128xf32> to vector<1x8x128xf32>
    %697 = vector.shape_cast %696 : vector<1x8x128xf32> to vector<8x128xf32>
    %698 = vector.shape_cast %697 : vector<8x128xf32> to vector<1x8x128xf32>
    %699 = vector.broadcast %695 : vector<8x1x128xf32> to vector<8x8x128xf32>
    %700 = vector.broadcast %698 : vector<1x8x128xf32> to vector<8x8x128xf32>
    %701 = arith.mulf %699, %700 : vector<8x8x128xf32>
    %702 = arith.addf %692, %701 : vector<8x8x128xf32>
    %703 = vector.extract_strided_slice %643 {offsets = [0, 6, 0], sizes = [8, 1, 128], strides = [1, 1, 1]} : vector<8x8x128xf32> to vector<8x1x128xf32>
    %704 = vector.shape_cast %703 : vector<8x1x128xf32> to vector<8x128xf32>
    %705 = vector.shape_cast %704 : vector<8x128xf32> to vector<8x1x128xf32>
    %706 = vector.extract_strided_slice %554 {offsets = [6, 0, 0], sizes = [1, 8, 128], strides = [1, 1, 1]} : vector<8x8x128xf32> to vector<1x8x128xf32>
    %707 = vector.shape_cast %706 : vector<1x8x128xf32> to vector<8x128xf32>
    %708 = vector.shape_cast %707 : vector<8x128xf32> to vector<1x8x128xf32>
    %709 = vector.broadcast %705 : vector<8x1x128xf32> to vector<8x8x128xf32>
    %710 = vector.broadcast %708 : vector<1x8x128xf32> to vector<8x8x128xf32>
    %711 = arith.mulf %709, %710 : vector<8x8x128xf32>
    %712 = arith.addf %702, %711 : vector<8x8x128xf32>
    %713 = vector.extract_strided_slice %643 {offsets = [0, 7, 0], sizes = [8, 1, 128], strides = [1, 1, 1]} : vector<8x8x128xf32> to vector<8x1x128xf32>
    %714 = vector.shape_cast %713 : vector<8x1x128xf32> to vector<8x128xf32>
    %715 = vector.shape_cast %714 : vector<8x128xf32> to vector<8x1x128xf32>
    %716 = vector.extract_strided_slice %554 {offsets = [7, 0, 0], sizes = [1, 8, 128], strides = [1, 1, 1]} : vector<8x8x128xf32> to vector<1x8x128xf32>
    %717 = vector.shape_cast %716 : vector<1x8x128xf32> to vector<8x128xf32>
    %718 = vector.shape_cast %717 : vector<8x128xf32> to vector<1x8x128xf32>
    %719 = vector.broadcast %715 : vector<8x1x128xf32> to vector<8x8x128xf32>
    %720 = vector.broadcast %718 : vector<1x8x128xf32> to vector<8x8x128xf32>
    %721 = arith.mulf %719, %720 : vector<8x8x128xf32>
    %722 = arith.addf %712, %721 : vector<8x8x128xf32>
    %723 = tpu.concatenate %548, %722 in 1 : vector<8x8x128xf32>, vector<8x8x128xf32> -> vector<8x16x128xf32>
    %724 = arith.addf %723, %374 : vector<8x16x128xf32>
    %cst_15 = arith.constant 0.000000e+00 : f32
    %725 = vector.broadcast %cst_15 : f32 to vector<8x16x128xf32>
    %726 = arith.maximumf %724, %725 : vector<8x16x128xf32>
    %727 = vector.shape_cast %726 : vector<8x16x128xf32> to vector<128x128xf32>
    %728 = arith.truncf %727 : vector<128x128xf32> to vector<128x128xbf16>
    %c0_16 = arith.constant 0 : index
    %c0_17 = arith.constant 0 : index
    %729 = vector.load %arg4[%c0_16, %c0_17] : memref<512x128xbf16, #tpu.memory_space<vmem>>, vector<512x128xbf16>
    %cst_18 = arith.constant dense<0.000000e+00> : vector<512x128xf32>
    %730 = tpu.matmul %729, %728, %cst_18 {dimension_numbers = #tpu.dot_dimension_numbers<[1], [0], [0], [1], [0, 0, 1, 1], [], []>} : vector<512x128xbf16>, vector<128x128xbf16>, vector<512x128xf32> -> vector<512x128xf32>
    %731 = vector.extract_strided_slice %730 {offsets = [0, 0], sizes = [128, 128], strides = [1, 1]} : vector<512x128xf32> to vector<128x128xf32>
    %732 = vector.shape_cast %731 : vector<128x128xf32> to vector<2x8x8x128xf32>
    %733 = vector.extract_strided_slice %730 {offsets = [128, 0], sizes = [128, 128], strides = [1, 1]} : vector<512x128xf32> to vector<128x128xf32>
    %734 = vector.shape_cast %733 : vector<128x128xf32> to vector<2x8x8x128xf32>
    %735 = vector.extract_strided_slice %730 {offsets = [256, 0], sizes = [128, 128], strides = [1, 1]} : vector<512x128xf32> to vector<128x128xf32>
    %736 = vector.shape_cast %735 : vector<128x128xf32> to vector<2x8x8x128xf32>
    %737 = vector.extract_strided_slice %730 {offsets = [384, 0], sizes = [128, 128], strides = [1, 1]} : vector<512x128xf32> to vector<128x128xf32>
    %738 = vector.shape_cast %737 : vector<128x128xf32> to vector<8x16x128xf32>
    %739 = vector.extract_strided_slice %732 {offsets = [0, 0, 0, 0], sizes = [1, 8, 8, 128], strides = [1, 1, 1, 1]} : vector<2x8x8x128xf32> to vector<1x8x8x128xf32>
    %740 = vector.shape_cast %739 : vector<1x8x8x128xf32> to vector<8x8x128xf32>
    %741 = vector.extract_strided_slice %734 {offsets = [0, 0, 0, 0], sizes = [1, 8, 8, 128], strides = [1, 1, 1, 1]} : vector<2x8x8x128xf32> to vector<1x8x8x128xf32>
    %742 = vector.shape_cast %741 : vector<1x8x8x128xf32> to vector<8x8x128xf32>
    %743 = vector.extract_strided_slice %736 {offsets = [0, 0, 0, 0], sizes = [1, 8, 8, 128], strides = [1, 1, 1, 1]} : vector<2x8x8x128xf32> to vector<1x8x8x128xf32>
    %744 = vector.shape_cast %743 : vector<1x8x8x128xf32> to vector<8x8x128xf32>
    %745 = vector.extract_strided_slice %740 {offsets = [0, 0, 0], sizes = [1, 8, 128], strides = [1, 1, 1]} : vector<8x8x128xf32> to vector<1x8x128xf32>
    %746 = vector.shape_cast %745 : vector<1x8x128xf32> to vector<8x128xf32>
    %747 = vector.shape_cast %746 : vector<8x128xf32> to vector<8x1x128xf32>
    %748 = vector.extract_strided_slice %742 {offsets = [0, 0, 0], sizes = [1, 8, 128], strides = [1, 1, 1]} : vector<8x8x128xf32> to vector<1x8x128xf32>
    %749 = vector.shape_cast %748 : vector<1x8x128xf32> to vector<8x128xf32>
    %750 = vector.shape_cast %749 : vector<8x128xf32> to vector<1x8x128xf32>
    %751 = vector.broadcast %747 : vector<8x1x128xf32> to vector<8x8x128xf32>
    %752 = vector.broadcast %750 : vector<1x8x128xf32> to vector<8x8x128xf32>
    %753 = arith.mulf %751, %752 : vector<8x8x128xf32>
    %754 = vector.extract_strided_slice %740 {offsets = [1, 0, 0], sizes = [1, 8, 128], strides = [1, 1, 1]} : vector<8x8x128xf32> to vector<1x8x128xf32>
    %755 = vector.shape_cast %754 : vector<1x8x128xf32> to vector<8x128xf32>
    %756 = vector.shape_cast %755 : vector<8x128xf32> to vector<8x1x128xf32>
    %757 = vector.extract_strided_slice %742 {offsets = [1, 0, 0], sizes = [1, 8, 128], strides = [1, 1, 1]} : vector<8x8x128xf32> to vector<1x8x128xf32>
    %758 = vector.shape_cast %757 : vector<1x8x128xf32> to vector<8x128xf32>
    %759 = vector.shape_cast %758 : vector<8x128xf32> to vector<1x8x128xf32>
    %760 = vector.broadcast %756 : vector<8x1x128xf32> to vector<8x8x128xf32>
    %761 = vector.broadcast %759 : vector<1x8x128xf32> to vector<8x8x128xf32>
    %762 = arith.mulf %760, %761 : vector<8x8x128xf32>
    %763 = arith.addf %753, %762 : vector<8x8x128xf32>
    %764 = vector.extract_strided_slice %740 {offsets = [2, 0, 0], sizes = [1, 8, 128], strides = [1, 1, 1]} : vector<8x8x128xf32> to vector<1x8x128xf32>
    %765 = vector.shape_cast %764 : vector<1x8x128xf32> to vector<8x128xf32>
    %766 = vector.shape_cast %765 : vector<8x128xf32> to vector<8x1x128xf32>
    %767 = vector.extract_strided_slice %742 {offsets = [2, 0, 0], sizes = [1, 8, 128], strides = [1, 1, 1]} : vector<8x8x128xf32> to vector<1x8x128xf32>
    %768 = vector.shape_cast %767 : vector<1x8x128xf32> to vector<8x128xf32>
    %769 = vector.shape_cast %768 : vector<8x128xf32> to vector<1x8x128xf32>
    %770 = vector.broadcast %766 : vector<8x1x128xf32> to vector<8x8x128xf32>
    %771 = vector.broadcast %769 : vector<1x8x128xf32> to vector<8x8x128xf32>
    %772 = arith.mulf %770, %771 : vector<8x8x128xf32>
    %773 = arith.addf %763, %772 : vector<8x8x128xf32>
    %774 = vector.extract_strided_slice %740 {offsets = [3, 0, 0], sizes = [1, 8, 128], strides = [1, 1, 1]} : vector<8x8x128xf32> to vector<1x8x128xf32>
    %775 = vector.shape_cast %774 : vector<1x8x128xf32> to vector<8x128xf32>
    %776 = vector.shape_cast %775 : vector<8x128xf32> to vector<8x1x128xf32>
    %777 = vector.extract_strided_slice %742 {offsets = [3, 0, 0], sizes = [1, 8, 128], strides = [1, 1, 1]} : vector<8x8x128xf32> to vector<1x8x128xf32>
    %778 = vector.shape_cast %777 : vector<1x8x128xf32> to vector<8x128xf32>
    %779 = vector.shape_cast %778 : vector<8x128xf32> to vector<1x8x128xf32>
    %780 = vector.broadcast %776 : vector<8x1x128xf32> to vector<8x8x128xf32>
    %781 = vector.broadcast %779 : vector<1x8x128xf32> to vector<8x8x128xf32>
    %782 = arith.mulf %780, %781 : vector<8x8x128xf32>
    %783 = arith.addf %773, %782 : vector<8x8x128xf32>
    %784 = vector.extract_strided_slice %740 {offsets = [4, 0, 0], sizes = [1, 8, 128], strides = [1, 1, 1]} : vector<8x8x128xf32> to vector<1x8x128xf32>
    %785 = vector.shape_cast %784 : vector<1x8x128xf32> to vector<8x128xf32>
    %786 = vector.shape_cast %785 : vector<8x128xf32> to vector<8x1x128xf32>
    %787 = vector.extract_strided_slice %742 {offsets = [4, 0, 0], sizes = [1, 8, 128], strides = [1, 1, 1]} : vector<8x8x128xf32> to vector<1x8x128xf32>
    %788 = vector.shape_cast %787 : vector<1x8x128xf32> to vector<8x128xf32>
    %789 = vector.shape_cast %788 : vector<8x128xf32> to vector<1x8x128xf32>
    %790 = vector.broadcast %786 : vector<8x1x128xf32> to vector<8x8x128xf32>
    %791 = vector.broadcast %789 : vector<1x8x128xf32> to vector<8x8x128xf32>
    %792 = arith.mulf %790, %791 : vector<8x8x128xf32>
    %793 = arith.addf %783, %792 : vector<8x8x128xf32>
    %794 = vector.extract_strided_slice %740 {offsets = [5, 0, 0], sizes = [1, 8, 128], strides = [1, 1, 1]} : vector<8x8x128xf32> to vector<1x8x128xf32>
    %795 = vector.shape_cast %794 : vector<1x8x128xf32> to vector<8x128xf32>
    %796 = vector.shape_cast %795 : vector<8x128xf32> to vector<8x1x128xf32>
    %797 = vector.extract_strided_slice %742 {offsets = [5, 0, 0], sizes = [1, 8, 128], strides = [1, 1, 1]} : vector<8x8x128xf32> to vector<1x8x128xf32>
    %798 = vector.shape_cast %797 : vector<1x8x128xf32> to vector<8x128xf32>
    %799 = vector.shape_cast %798 : vector<8x128xf32> to vector<1x8x128xf32>
    %800 = vector.broadcast %796 : vector<8x1x128xf32> to vector<8x8x128xf32>
    %801 = vector.broadcast %799 : vector<1x8x128xf32> to vector<8x8x128xf32>
    %802 = arith.mulf %800, %801 : vector<8x8x128xf32>
    %803 = arith.addf %793, %802 : vector<8x8x128xf32>
    %804 = vector.extract_strided_slice %740 {offsets = [6, 0, 0], sizes = [1, 8, 128], strides = [1, 1, 1]} : vector<8x8x128xf32> to vector<1x8x128xf32>
    %805 = vector.shape_cast %804 : vector<1x8x128xf32> to vector<8x128xf32>
    %806 = vector.shape_cast %805 : vector<8x128xf32> to vector<8x1x128xf32>
    %807 = vector.extract_strided_slice %742 {offsets = [6, 0, 0], sizes = [1, 8, 128], strides = [1, 1, 1]} : vector<8x8x128xf32> to vector<1x8x128xf32>
    %808 = vector.shape_cast %807 : vector<1x8x128xf32> to vector<8x128xf32>
    %809 = vector.shape_cast %808 : vector<8x128xf32> to vector<1x8x128xf32>
    %810 = vector.broadcast %806 : vector<8x1x128xf32> to vector<8x8x128xf32>
    %811 = vector.broadcast %809 : vector<1x8x128xf32> to vector<8x8x128xf32>
    %812 = arith.mulf %810, %811 : vector<8x8x128xf32>
    %813 = arith.addf %803, %812 : vector<8x8x128xf32>
    %814 = vector.extract_strided_slice %740 {offsets = [7, 0, 0], sizes = [1, 8, 128], strides = [1, 1, 1]} : vector<8x8x128xf32> to vector<1x8x128xf32>
    %815 = vector.shape_cast %814 : vector<1x8x128xf32> to vector<8x128xf32>
    %816 = vector.shape_cast %815 : vector<8x128xf32> to vector<8x1x128xf32>
    %817 = vector.extract_strided_slice %742 {offsets = [7, 0, 0], sizes = [1, 8, 128], strides = [1, 1, 1]} : vector<8x8x128xf32> to vector<1x8x128xf32>
    %818 = vector.shape_cast %817 : vector<1x8x128xf32> to vector<8x128xf32>
    %819 = vector.shape_cast %818 : vector<8x128xf32> to vector<1x8x128xf32>
    %820 = vector.broadcast %816 : vector<8x1x128xf32> to vector<8x8x128xf32>
    %821 = vector.broadcast %819 : vector<1x8x128xf32> to vector<8x8x128xf32>
    %822 = arith.mulf %820, %821 : vector<8x8x128xf32>
    %823 = arith.addf %813, %822 : vector<8x8x128xf32>
    %cst_19 = arith.constant dense<0xFF800000> : vector<8x128xf32>
    %824 = vector.multi_reduction <maximumf>, %823, %cst_19 [1] : vector<8x8x128xf32> to vector<8x128xf32>
    %825 = vector.shape_cast %824 : vector<8x128xf32> to vector<8x1x128xf32>
    %826 = vector.broadcast %825 : vector<8x1x128xf32> to vector<8x8x128xf32>
    %827 = arith.subf %823, %826 : vector<8x8x128xf32>
    %828 = math.exp %827 : vector<8x8x128xf32>
    %cst_20 = arith.constant dense<0.000000e+00> : vector<8x128xf32>
    %829 = vector.multi_reduction <add>, %828, %cst_20 [1] : vector<8x8x128xf32> to vector<8x128xf32>
    %830 = vector.shape_cast %829 : vector<8x128xf32> to vector<8x1x128xf32>
    %831 = tpu.reciprocal %830 {approx = true} : vector<8x1x128xf32> -> vector<8x1x128xf32>
    %832 = vector.broadcast %831 : vector<8x1x128xf32> to vector<8x8x128xf32>
    %833 = arith.mulf %828, %832 : vector<8x8x128xf32>
    %834 = vector.extract_strided_slice %833 {offsets = [0, 0, 0], sizes = [8, 1, 128], strides = [1, 1, 1]} : vector<8x8x128xf32> to vector<8x1x128xf32>
    %835 = vector.shape_cast %834 : vector<8x1x128xf32> to vector<8x128xf32>
    %836 = vector.shape_cast %835 : vector<8x128xf32> to vector<8x1x128xf32>
    %837 = vector.extract_strided_slice %744 {offsets = [0, 0, 0], sizes = [1, 8, 128], strides = [1, 1, 1]} : vector<8x8x128xf32> to vector<1x8x128xf32>
    %838 = vector.shape_cast %837 : vector<1x8x128xf32> to vector<8x128xf32>
    %839 = vector.shape_cast %838 : vector<8x128xf32> to vector<1x8x128xf32>
    %840 = vector.broadcast %836 : vector<8x1x128xf32> to vector<8x8x128xf32>
    %841 = vector.broadcast %839 : vector<1x8x128xf32> to vector<8x8x128xf32>
    %842 = arith.mulf %840, %841 : vector<8x8x128xf32>
    %843 = vector.extract_strided_slice %833 {offsets = [0, 1, 0], sizes = [8, 1, 128], strides = [1, 1, 1]} : vector<8x8x128xf32> to vector<8x1x128xf32>
    %844 = vector.shape_cast %843 : vector<8x1x128xf32> to vector<8x128xf32>
    %845 = vector.shape_cast %844 : vector<8x128xf32> to vector<8x1x128xf32>
    %846 = vector.extract_strided_slice %744 {offsets = [1, 0, 0], sizes = [1, 8, 128], strides = [1, 1, 1]} : vector<8x8x128xf32> to vector<1x8x128xf32>
    %847 = vector.shape_cast %846 : vector<1x8x128xf32> to vector<8x128xf32>
    %848 = vector.shape_cast %847 : vector<8x128xf32> to vector<1x8x128xf32>
    %849 = vector.broadcast %845 : vector<8x1x128xf32> to vector<8x8x128xf32>
    %850 = vector.broadcast %848 : vector<1x8x128xf32> to vector<8x8x128xf32>
    %851 = arith.mulf %849, %850 : vector<8x8x128xf32>
    %852 = arith.addf %842, %851 : vector<8x8x128xf32>
    %853 = vector.extract_strided_slice %833 {offsets = [0, 2, 0], sizes = [8, 1, 128], strides = [1, 1, 1]} : vector<8x8x128xf32> to vector<8x1x128xf32>
    %854 = vector.shape_cast %853 : vector<8x1x128xf32> to vector<8x128xf32>
    %855 = vector.shape_cast %854 : vector<8x128xf32> to vector<8x1x128xf32>
    %856 = vector.extract_strided_slice %744 {offsets = [2, 0, 0], sizes = [1, 8, 128], strides = [1, 1, 1]} : vector<8x8x128xf32> to vector<1x8x128xf32>
    %857 = vector.shape_cast %856 : vector<1x8x128xf32> to vector<8x128xf32>
    %858 = vector.shape_cast %857 : vector<8x128xf32> to vector<1x8x128xf32>
    %859 = vector.broadcast %855 : vector<8x1x128xf32> to vector<8x8x128xf32>
    %860 = vector.broadcast %858 : vector<1x8x128xf32> to vector<8x8x128xf32>
    %861 = arith.mulf %859, %860 : vector<8x8x128xf32>
    %862 = arith.addf %852, %861 : vector<8x8x128xf32>
    %863 = vector.extract_strided_slice %833 {offsets = [0, 3, 0], sizes = [8, 1, 128], strides = [1, 1, 1]} : vector<8x8x128xf32> to vector<8x1x128xf32>
    %864 = vector.shape_cast %863 : vector<8x1x128xf32> to vector<8x128xf32>
    %865 = vector.shape_cast %864 : vector<8x128xf32> to vector<8x1x128xf32>
    %866 = vector.extract_strided_slice %744 {offsets = [3, 0, 0], sizes = [1, 8, 128], strides = [1, 1, 1]} : vector<8x8x128xf32> to vector<1x8x128xf32>
    %867 = vector.shape_cast %866 : vector<1x8x128xf32> to vector<8x128xf32>
    %868 = vector.shape_cast %867 : vector<8x128xf32> to vector<1x8x128xf32>
    %869 = vector.broadcast %865 : vector<8x1x128xf32> to vector<8x8x128xf32>
    %870 = vector.broadcast %868 : vector<1x8x128xf32> to vector<8x8x128xf32>
    %871 = arith.mulf %869, %870 : vector<8x8x128xf32>
    %872 = arith.addf %862, %871 : vector<8x8x128xf32>
    %873 = vector.extract_strided_slice %833 {offsets = [0, 4, 0], sizes = [8, 1, 128], strides = [1, 1, 1]} : vector<8x8x128xf32> to vector<8x1x128xf32>
    %874 = vector.shape_cast %873 : vector<8x1x128xf32> to vector<8x128xf32>
    %875 = vector.shape_cast %874 : vector<8x128xf32> to vector<8x1x128xf32>
    %876 = vector.extract_strided_slice %744 {offsets = [4, 0, 0], sizes = [1, 8, 128], strides = [1, 1, 1]} : vector<8x8x128xf32> to vector<1x8x128xf32>
    %877 = vector.shape_cast %876 : vector<1x8x128xf32> to vector<8x128xf32>
    %878 = vector.shape_cast %877 : vector<8x128xf32> to vector<1x8x128xf32>
    %879 = vector.broadcast %875 : vector<8x1x128xf32> to vector<8x8x128xf32>
    %880 = vector.broadcast %878 : vector<1x8x128xf32> to vector<8x8x128xf32>
    %881 = arith.mulf %879, %880 : vector<8x8x128xf32>
    %882 = arith.addf %872, %881 : vector<8x8x128xf32>
    %883 = vector.extract_strided_slice %833 {offsets = [0, 5, 0], sizes = [8, 1, 128], strides = [1, 1, 1]} : vector<8x8x128xf32> to vector<8x1x128xf32>
    %884 = vector.shape_cast %883 : vector<8x1x128xf32> to vector<8x128xf32>
    %885 = vector.shape_cast %884 : vector<8x128xf32> to vector<8x1x128xf32>
    %886 = vector.extract_strided_slice %744 {offsets = [5, 0, 0], sizes = [1, 8, 128], strides = [1, 1, 1]} : vector<8x8x128xf32> to vector<1x8x128xf32>
    %887 = vector.shape_cast %886 : vector<1x8x128xf32> to vector<8x128xf32>
    %888 = vector.shape_cast %887 : vector<8x128xf32> to vector<1x8x128xf32>
    %889 = vector.broadcast %885 : vector<8x1x128xf32> to vector<8x8x128xf32>
    %890 = vector.broadcast %888 : vector<1x8x128xf32> to vector<8x8x128xf32>
    %891 = arith.mulf %889, %890 : vector<8x8x128xf32>
    %892 = arith.addf %882, %891 : vector<8x8x128xf32>
    %893 = vector.extract_strided_slice %833 {offsets = [0, 6, 0], sizes = [8, 1, 128], strides = [1, 1, 1]} : vector<8x8x128xf32> to vector<8x1x128xf32>
    %894 = vector.shape_cast %893 : vector<8x1x128xf32> to vector<8x128xf32>
    %895 = vector.shape_cast %894 : vector<8x128xf32> to vector<8x1x128xf32>
    %896 = vector.extract_strided_slice %744 {offsets = [6, 0, 0], sizes = [1, 8, 128], strides = [1, 1, 1]} : vector<8x8x128xf32> to vector<1x8x128xf32>
    %897 = vector.shape_cast %896 : vector<1x8x128xf32> to vector<8x128xf32>
    %898 = vector.shape_cast %897 : vector<8x128xf32> to vector<1x8x128xf32>
    %899 = vector.broadcast %895 : vector<8x1x128xf32> to vector<8x8x128xf32>
    %900 = vector.broadcast %898 : vector<1x8x128xf32> to vector<8x8x128xf32>
    %901 = arith.mulf %899, %900 : vector<8x8x128xf32>
    %902 = arith.addf %892, %901 : vector<8x8x128xf32>
    %903 = vector.extract_strided_slice %833 {offsets = [0, 7, 0], sizes = [8, 1, 128], strides = [1, 1, 1]} : vector<8x8x128xf32> to vector<8x1x128xf32>
    %904 = vector.shape_cast %903 : vector<8x1x128xf32> to vector<8x128xf32>
    %905 = vector.shape_cast %904 : vector<8x128xf32> to vector<8x1x128xf32>
    %906 = vector.extract_strided_slice %744 {offsets = [7, 0, 0], sizes = [1, 8, 128], strides = [1, 1, 1]} : vector<8x8x128xf32> to vector<1x8x128xf32>
    %907 = vector.shape_cast %906 : vector<1x8x128xf32> to vector<8x128xf32>
    %908 = vector.shape_cast %907 : vector<8x128xf32> to vector<1x8x128xf32>
    %909 = vector.broadcast %905 : vector<8x1x128xf32> to vector<8x8x128xf32>
    %910 = vector.broadcast %908 : vector<1x8x128xf32> to vector<8x8x128xf32>
    %911 = arith.mulf %909, %910 : vector<8x8x128xf32>
    %912 = arith.addf %902, %911 : vector<8x8x128xf32>
    %913 = vector.extract_strided_slice %732 {offsets = [1, 0, 0, 0], sizes = [1, 8, 8, 128], strides = [1, 1, 1, 1]} : vector<2x8x8x128xf32> to vector<1x8x8x128xf32>
    %914 = vector.shape_cast %913 : vector<1x8x8x128xf32> to vector<8x8x128xf32>
    %915 = vector.extract_strided_slice %734 {offsets = [1, 0, 0, 0], sizes = [1, 8, 8, 128], strides = [1, 1, 1, 1]} : vector<2x8x8x128xf32> to vector<1x8x8x128xf32>
    %916 = vector.shape_cast %915 : vector<1x8x8x128xf32> to vector<8x8x128xf32>
    %917 = vector.extract_strided_slice %736 {offsets = [1, 0, 0, 0], sizes = [1, 8, 8, 128], strides = [1, 1, 1, 1]} : vector<2x8x8x128xf32> to vector<1x8x8x128xf32>
    %918 = vector.shape_cast %917 : vector<1x8x8x128xf32> to vector<8x8x128xf32>
    %919 = vector.extract_strided_slice %914 {offsets = [0, 0, 0], sizes = [1, 8, 128], strides = [1, 1, 1]} : vector<8x8x128xf32> to vector<1x8x128xf32>
    %920 = vector.shape_cast %919 : vector<1x8x128xf32> to vector<8x128xf32>
    %921 = vector.shape_cast %920 : vector<8x128xf32> to vector<8x1x128xf32>
    %922 = vector.extract_strided_slice %916 {offsets = [0, 0, 0], sizes = [1, 8, 128], strides = [1, 1, 1]} : vector<8x8x128xf32> to vector<1x8x128xf32>
    %923 = vector.shape_cast %922 : vector<1x8x128xf32> to vector<8x128xf32>
    %924 = vector.shape_cast %923 : vector<8x128xf32> to vector<1x8x128xf32>
    %925 = vector.broadcast %921 : vector<8x1x128xf32> to vector<8x8x128xf32>
    %926 = vector.broadcast %924 : vector<1x8x128xf32> to vector<8x8x128xf32>
    %927 = arith.mulf %925, %926 : vector<8x8x128xf32>
    %928 = vector.extract_strided_slice %914 {offsets = [1, 0, 0], sizes = [1, 8, 128], strides = [1, 1, 1]} : vector<8x8x128xf32> to vector<1x8x128xf32>
    %929 = vector.shape_cast %928 : vector<1x8x128xf32> to vector<8x128xf32>
    %930 = vector.shape_cast %929 : vector<8x128xf32> to vector<8x1x128xf32>
    %931 = vector.extract_strided_slice %916 {offsets = [1, 0, 0], sizes = [1, 8, 128], strides = [1, 1, 1]} : vector<8x8x128xf32> to vector<1x8x128xf32>
    %932 = vector.shape_cast %931 : vector<1x8x128xf32> to vector<8x128xf32>
    %933 = vector.shape_cast %932 : vector<8x128xf32> to vector<1x8x128xf32>
    %934 = vector.broadcast %930 : vector<8x1x128xf32> to vector<8x8x128xf32>
    %935 = vector.broadcast %933 : vector<1x8x128xf32> to vector<8x8x128xf32>
    %936 = arith.mulf %934, %935 : vector<8x8x128xf32>
    %937 = arith.addf %927, %936 : vector<8x8x128xf32>
    %938 = vector.extract_strided_slice %914 {offsets = [2, 0, 0], sizes = [1, 8, 128], strides = [1, 1, 1]} : vector<8x8x128xf32> to vector<1x8x128xf32>
    %939 = vector.shape_cast %938 : vector<1x8x128xf32> to vector<8x128xf32>
    %940 = vector.shape_cast %939 : vector<8x128xf32> to vector<8x1x128xf32>
    %941 = vector.extract_strided_slice %916 {offsets = [2, 0, 0], sizes = [1, 8, 128], strides = [1, 1, 1]} : vector<8x8x128xf32> to vector<1x8x128xf32>
    %942 = vector.shape_cast %941 : vector<1x8x128xf32> to vector<8x128xf32>
    %943 = vector.shape_cast %942 : vector<8x128xf32> to vector<1x8x128xf32>
    %944 = vector.broadcast %940 : vector<8x1x128xf32> to vector<8x8x128xf32>
    %945 = vector.broadcast %943 : vector<1x8x128xf32> to vector<8x8x128xf32>
    %946 = arith.mulf %944, %945 : vector<8x8x128xf32>
    %947 = arith.addf %937, %946 : vector<8x8x128xf32>
    %948 = vector.extract_strided_slice %914 {offsets = [3, 0, 0], sizes = [1, 8, 128], strides = [1, 1, 1]} : vector<8x8x128xf32> to vector<1x8x128xf32>
    %949 = vector.shape_cast %948 : vector<1x8x128xf32> to vector<8x128xf32>
    %950 = vector.shape_cast %949 : vector<8x128xf32> to vector<8x1x128xf32>
    %951 = vector.extract_strided_slice %916 {offsets = [3, 0, 0], sizes = [1, 8, 128], strides = [1, 1, 1]} : vector<8x8x128xf32> to vector<1x8x128xf32>
    %952 = vector.shape_cast %951 : vector<1x8x128xf32> to vector<8x128xf32>
    %953 = vector.shape_cast %952 : vector<8x128xf32> to vector<1x8x128xf32>
    %954 = vector.broadcast %950 : vector<8x1x128xf32> to vector<8x8x128xf32>
    %955 = vector.broadcast %953 : vector<1x8x128xf32> to vector<8x8x128xf32>
    %956 = arith.mulf %954, %955 : vector<8x8x128xf32>
    %957 = arith.addf %947, %956 : vector<8x8x128xf32>
    %958 = vector.extract_strided_slice %914 {offsets = [4, 0, 0], sizes = [1, 8, 128], strides = [1, 1, 1]} : vector<8x8x128xf32> to vector<1x8x128xf32>
    %959 = vector.shape_cast %958 : vector<1x8x128xf32> to vector<8x128xf32>
    %960 = vector.shape_cast %959 : vector<8x128xf32> to vector<8x1x128xf32>
    %961 = vector.extract_strided_slice %916 {offsets = [4, 0, 0], sizes = [1, 8, 128], strides = [1, 1, 1]} : vector<8x8x128xf32> to vector<1x8x128xf32>
    %962 = vector.shape_cast %961 : vector<1x8x128xf32> to vector<8x128xf32>
    %963 = vector.shape_cast %962 : vector<8x128xf32> to vector<1x8x128xf32>
    %964 = vector.broadcast %960 : vector<8x1x128xf32> to vector<8x8x128xf32>
    %965 = vector.broadcast %963 : vector<1x8x128xf32> to vector<8x8x128xf32>
    %966 = arith.mulf %964, %965 : vector<8x8x128xf32>
    %967 = arith.addf %957, %966 : vector<8x8x128xf32>
    %968 = vector.extract_strided_slice %914 {offsets = [5, 0, 0], sizes = [1, 8, 128], strides = [1, 1, 1]} : vector<8x8x128xf32> to vector<1x8x128xf32>
    %969 = vector.shape_cast %968 : vector<1x8x128xf32> to vector<8x128xf32>
    %970 = vector.shape_cast %969 : vector<8x128xf32> to vector<8x1x128xf32>
    %971 = vector.extract_strided_slice %916 {offsets = [5, 0, 0], sizes = [1, 8, 128], strides = [1, 1, 1]} : vector<8x8x128xf32> to vector<1x8x128xf32>
    %972 = vector.shape_cast %971 : vector<1x8x128xf32> to vector<8x128xf32>
    %973 = vector.shape_cast %972 : vector<8x128xf32> to vector<1x8x128xf32>
    %974 = vector.broadcast %970 : vector<8x1x128xf32> to vector<8x8x128xf32>
    %975 = vector.broadcast %973 : vector<1x8x128xf32> to vector<8x8x128xf32>
    %976 = arith.mulf %974, %975 : vector<8x8x128xf32>
    %977 = arith.addf %967, %976 : vector<8x8x128xf32>
    %978 = vector.extract_strided_slice %914 {offsets = [6, 0, 0], sizes = [1, 8, 128], strides = [1, 1, 1]} : vector<8x8x128xf32> to vector<1x8x128xf32>
    %979 = vector.shape_cast %978 : vector<1x8x128xf32> to vector<8x128xf32>
    %980 = vector.shape_cast %979 : vector<8x128xf32> to vector<8x1x128xf32>
    %981 = vector.extract_strided_slice %916 {offsets = [6, 0, 0], sizes = [1, 8, 128], strides = [1, 1, 1]} : vector<8x8x128xf32> to vector<1x8x128xf32>
    %982 = vector.shape_cast %981 : vector<1x8x128xf32> to vector<8x128xf32>
    %983 = vector.shape_cast %982 : vector<8x128xf32> to vector<1x8x128xf32>
    %984 = vector.broadcast %980 : vector<8x1x128xf32> to vector<8x8x128xf32>
    %985 = vector.broadcast %983 : vector<1x8x128xf32> to vector<8x8x128xf32>
    %986 = arith.mulf %984, %985 : vector<8x8x128xf32>
    %987 = arith.addf %977, %986 : vector<8x8x128xf32>
    %988 = vector.extract_strided_slice %914 {offsets = [7, 0, 0], sizes = [1, 8, 128], strides = [1, 1, 1]} : vector<8x8x128xf32> to vector<1x8x128xf32>
    %989 = vector.shape_cast %988 : vector<1x8x128xf32> to vector<8x128xf32>
    %990 = vector.shape_cast %989 : vector<8x128xf32> to vector<8x1x128xf32>
    %991 = vector.extract_strided_slice %916 {offsets = [7, 0, 0], sizes = [1, 8, 128], strides = [1, 1, 1]} : vector<8x8x128xf32> to vector<1x8x128xf32>
    %992 = vector.shape_cast %991 : vector<1x8x128xf32> to vector<8x128xf32>
    %993 = vector.shape_cast %992 : vector<8x128xf32> to vector<1x8x128xf32>
    %994 = vector.broadcast %990 : vector<8x1x128xf32> to vector<8x8x128xf32>
    %995 = vector.broadcast %993 : vector<1x8x128xf32> to vector<8x8x128xf32>
    %996 = arith.mulf %994, %995 : vector<8x8x128xf32>
    %997 = arith.addf %987, %996 : vector<8x8x128xf32>
    %cst_21 = arith.constant dense<0xFF800000> : vector<8x128xf32>
    %998 = vector.multi_reduction <maximumf>, %997, %cst_21 [1] : vector<8x8x128xf32> to vector<8x128xf32>
    %999 = vector.shape_cast %998 : vector<8x128xf32> to vector<8x1x128xf32>
    %1000 = vector.broadcast %999 : vector<8x1x128xf32> to vector<8x8x128xf32>
    %1001 = arith.subf %997, %1000 : vector<8x8x128xf32>
    %1002 = math.exp %1001 : vector<8x8x128xf32>
    %cst_22 = arith.constant dense<0.000000e+00> : vector<8x128xf32>
    %1003 = vector.multi_reduction <add>, %1002, %cst_22 [1] : vector<8x8x128xf32> to vector<8x128xf32>
    %1004 = vector.shape_cast %1003 : vector<8x128xf32> to vector<8x1x128xf32>
    %1005 = tpu.reciprocal %1004 {approx = true} : vector<8x1x128xf32> -> vector<8x1x128xf32>
    %1006 = vector.broadcast %1005 : vector<8x1x128xf32> to vector<8x8x128xf32>
    %1007 = arith.mulf %1002, %1006 : vector<8x8x128xf32>
    %1008 = vector.extract_strided_slice %1007 {offsets = [0, 0, 0], sizes = [8, 1, 128], strides = [1, 1, 1]} : vector<8x8x128xf32> to vector<8x1x128xf32>
    %1009 = vector.shape_cast %1008 : vector<8x1x128xf32> to vector<8x128xf32>
    %1010 = vector.shape_cast %1009 : vector<8x128xf32> to vector<8x1x128xf32>
    %1011 = vector.extract_strided_slice %918 {offsets = [0, 0, 0], sizes = [1, 8, 128], strides = [1, 1, 1]} : vector<8x8x128xf32> to vector<1x8x128xf32>
    %1012 = vector.shape_cast %1011 : vector<1x8x128xf32> to vector<8x128xf32>
    %1013 = vector.shape_cast %1012 : vector<8x128xf32> to vector<1x8x128xf32>
    %1014 = vector.broadcast %1010 : vector<8x1x128xf32> to vector<8x8x128xf32>
    %1015 = vector.broadcast %1013 : vector<1x8x128xf32> to vector<8x8x128xf32>
    %1016 = arith.mulf %1014, %1015 : vector<8x8x128xf32>
    %1017 = vector.extract_strided_slice %1007 {offsets = [0, 1, 0], sizes = [8, 1, 128], strides = [1, 1, 1]} : vector<8x8x128xf32> to vector<8x1x128xf32>
    %1018 = vector.shape_cast %1017 : vector<8x1x128xf32> to vector<8x128xf32>
    %1019 = vector.shape_cast %1018 : vector<8x128xf32> to vector<8x1x128xf32>
    %1020 = vector.extract_strided_slice %918 {offsets = [1, 0, 0], sizes = [1, 8, 128], strides = [1, 1, 1]} : vector<8x8x128xf32> to vector<1x8x128xf32>
    %1021 = vector.shape_cast %1020 : vector<1x8x128xf32> to vector<8x128xf32>
    %1022 = vector.shape_cast %1021 : vector<8x128xf32> to vector<1x8x128xf32>
    %1023 = vector.broadcast %1019 : vector<8x1x128xf32> to vector<8x8x128xf32>
    %1024 = vector.broadcast %1022 : vector<1x8x128xf32> to vector<8x8x128xf32>
    %1025 = arith.mulf %1023, %1024 : vector<8x8x128xf32>
    %1026 = arith.addf %1016, %1025 : vector<8x8x128xf32>
    %1027 = vector.extract_strided_slice %1007 {offsets = [0, 2, 0], sizes = [8, 1, 128], strides = [1, 1, 1]} : vector<8x8x128xf32> to vector<8x1x128xf32>
    %1028 = vector.shape_cast %1027 : vector<8x1x128xf32> to vector<8x128xf32>
    %1029 = vector.shape_cast %1028 : vector<8x128xf32> to vector<8x1x128xf32>
    %1030 = vector.extract_strided_slice %918 {offsets = [2, 0, 0], sizes = [1, 8, 128], strides = [1, 1, 1]} : vector<8x8x128xf32> to vector<1x8x128xf32>
    %1031 = vector.shape_cast %1030 : vector<1x8x128xf32> to vector<8x128xf32>
    %1032 = vector.shape_cast %1031 : vector<8x128xf32> to vector<1x8x128xf32>
    %1033 = vector.broadcast %1029 : vector<8x1x128xf32> to vector<8x8x128xf32>
    %1034 = vector.broadcast %1032 : vector<1x8x128xf32> to vector<8x8x128xf32>
    %1035 = arith.mulf %1033, %1034 : vector<8x8x128xf32>
    %1036 = arith.addf %1026, %1035 : vector<8x8x128xf32>
    %1037 = vector.extract_strided_slice %1007 {offsets = [0, 3, 0], sizes = [8, 1, 128], strides = [1, 1, 1]} : vector<8x8x128xf32> to vector<8x1x128xf32>
    %1038 = vector.shape_cast %1037 : vector<8x1x128xf32> to vector<8x128xf32>
    %1039 = vector.shape_cast %1038 : vector<8x128xf32> to vector<8x1x128xf32>
    %1040 = vector.extract_strided_slice %918 {offsets = [3, 0, 0], sizes = [1, 8, 128], strides = [1, 1, 1]} : vector<8x8x128xf32> to vector<1x8x128xf32>
    %1041 = vector.shape_cast %1040 : vector<1x8x128xf32> to vector<8x128xf32>
    %1042 = vector.shape_cast %1041 : vector<8x128xf32> to vector<1x8x128xf32>
    %1043 = vector.broadcast %1039 : vector<8x1x128xf32> to vector<8x8x128xf32>
    %1044 = vector.broadcast %1042 : vector<1x8x128xf32> to vector<8x8x128xf32>
    %1045 = arith.mulf %1043, %1044 : vector<8x8x128xf32>
    %1046 = arith.addf %1036, %1045 : vector<8x8x128xf32>
    %1047 = vector.extract_strided_slice %1007 {offsets = [0, 4, 0], sizes = [8, 1, 128], strides = [1, 1, 1]} : vector<8x8x128xf32> to vector<8x1x128xf32>
    %1048 = vector.shape_cast %1047 : vector<8x1x128xf32> to vector<8x128xf32>
    %1049 = vector.shape_cast %1048 : vector<8x128xf32> to vector<8x1x128xf32>
    %1050 = vector.extract_strided_slice %918 {offsets = [4, 0, 0], sizes = [1, 8, 128], strides = [1, 1, 1]} : vector<8x8x128xf32> to vector<1x8x128xf32>
    %1051 = vector.shape_cast %1050 : vector<1x8x128xf32> to vector<8x128xf32>
    %1052 = vector.shape_cast %1051 : vector<8x128xf32> to vector<1x8x128xf32>
    %1053 = vector.broadcast %1049 : vector<8x1x128xf32> to vector<8x8x128xf32>
    %1054 = vector.broadcast %1052 : vector<1x8x128xf32> to vector<8x8x128xf32>
    %1055 = arith.mulf %1053, %1054 : vector<8x8x128xf32>
    %1056 = arith.addf %1046, %1055 : vector<8x8x128xf32>
    %1057 = vector.extract_strided_slice %1007 {offsets = [0, 5, 0], sizes = [8, 1, 128], strides = [1, 1, 1]} : vector<8x8x128xf32> to vector<8x1x128xf32>
    %1058 = vector.shape_cast %1057 : vector<8x1x128xf32> to vector<8x128xf32>
    %1059 = vector.shape_cast %1058 : vector<8x128xf32> to vector<8x1x128xf32>
    %1060 = vector.extract_strided_slice %918 {offsets = [5, 0, 0], sizes = [1, 8, 128], strides = [1, 1, 1]} : vector<8x8x128xf32> to vector<1x8x128xf32>
    %1061 = vector.shape_cast %1060 : vector<1x8x128xf32> to vector<8x128xf32>
    %1062 = vector.shape_cast %1061 : vector<8x128xf32> to vector<1x8x128xf32>
    %1063 = vector.broadcast %1059 : vector<8x1x128xf32> to vector<8x8x128xf32>
    %1064 = vector.broadcast %1062 : vector<1x8x128xf32> to vector<8x8x128xf32>
    %1065 = arith.mulf %1063, %1064 : vector<8x8x128xf32>
    %1066 = arith.addf %1056, %1065 : vector<8x8x128xf32>
    %1067 = vector.extract_strided_slice %1007 {offsets = [0, 6, 0], sizes = [8, 1, 128], strides = [1, 1, 1]} : vector<8x8x128xf32> to vector<8x1x128xf32>
    %1068 = vector.shape_cast %1067 : vector<8x1x128xf32> to vector<8x128xf32>
    %1069 = vector.shape_cast %1068 : vector<8x128xf32> to vector<8x1x128xf32>
    %1070 = vector.extract_strided_slice %918 {offsets = [6, 0, 0], sizes = [1, 8, 128], strides = [1, 1, 1]} : vector<8x8x128xf32> to vector<1x8x128xf32>
    %1071 = vector.shape_cast %1070 : vector<1x8x128xf32> to vector<8x128xf32>
    %1072 = vector.shape_cast %1071 : vector<8x128xf32> to vector<1x8x128xf32>
    %1073 = vector.broadcast %1069 : vector<8x1x128xf32> to vector<8x8x128xf32>
    %1074 = vector.broadcast %1072 : vector<1x8x128xf32> to vector<8x8x128xf32>
    %1075 = arith.mulf %1073, %1074 : vector<8x8x128xf32>
    %1076 = arith.addf %1066, %1075 : vector<8x8x128xf32>
    %1077 = vector.extract_strided_slice %1007 {offsets = [0, 7, 0], sizes = [8, 1, 128], strides = [1, 1, 1]} : vector<8x8x128xf32> to vector<8x1x128xf32>
    %1078 = vector.shape_cast %1077 : vector<8x1x128xf32> to vector<8x128xf32>
    %1079 = vector.shape_cast %1078 : vector<8x128xf32> to vector<8x1x128xf32>
    %1080 = vector.extract_strided_slice %918 {offsets = [7, 0, 0], sizes = [1, 8, 128], strides = [1, 1, 1]} : vector<8x8x128xf32> to vector<1x8x128xf32>
    %1081 = vector.shape_cast %1080 : vector<1x8x128xf32> to vector<8x128xf32>
    %1082 = vector.shape_cast %1081 : vector<8x128xf32> to vector<1x8x128xf32>
    %1083 = vector.broadcast %1079 : vector<8x1x128xf32> to vector<8x8x128xf32>
    %1084 = vector.broadcast %1082 : vector<1x8x128xf32> to vector<8x8x128xf32>
    %1085 = arith.mulf %1083, %1084 : vector<8x8x128xf32>
    %1086 = arith.addf %1076, %1085 : vector<8x8x128xf32>
    %1087 = tpu.concatenate %912, %1086 in 1 : vector<8x8x128xf32>, vector<8x8x128xf32> -> vector<8x16x128xf32>
    %1088 = arith.addf %1087, %738 : vector<8x16x128xf32>
    %cst_23 = arith.constant 0.000000e+00 : f32
    %1089 = vector.broadcast %cst_23 : f32 to vector<8x16x128xf32>
    %1090 = arith.maximumf %1088, %1089 : vector<8x16x128xf32>
    %1091 = vector.shape_cast %1090 : vector<8x16x128xf32> to vector<128x128xf32>
    %c0_24 = arith.constant 0 : index
    %c0_25 = arith.constant 0 : index
    %1092 = vector.load %arg5[%c0_24, %c0_25] : memref<1x128xf32, #tpu.memory_space<vmem>>, vector<1x128xf32>
    %cst_26 = arith.constant dense<0.000000e+00> : vector<1x128xf32>
    %1093 = tpu.matmul %1092, %1091, %cst_26 {dimension_numbers = #tpu.dot_dimension_numbers<[1], [0], [0], [1], [0, 0, 1, 1], [], []>} : vector<1x128xf32>, vector<128x128xf32>, vector<1x128xf32> -> vector<1x128xf32>
    %c0_27 = arith.constant 0 : index
    %1094 = memref.load %arg6[%c0_27] : memref<1xf32, #tpu.memory_space<smem>>
    %1095 = vector.broadcast %1094 : f32 to vector<1x128xf32>
    %1096 = arith.addf %1093, %1095 : vector<1x128xf32>
    %1097 = arith.negf %1096 : vector<1x128xf32>
    %1098 = math.exp %1097 : vector<1x128xf32>
    %cst_28 = arith.constant 1.000000e+00 : f32
    %1099 = vector.broadcast %cst_28 : f32 to vector<1x128xf32>
    %1100 = arith.addf %1099, %1098 : vector<1x128xf32>
    %1101 = arith.divf %1099, %1100 : vector<1x128xf32>
    %c0_29 = arith.constant 0 : index
    %c0_30 = arith.constant 0 : index
    %1102 = vector.load %arg7[%c0_29, %c0_30] : memref<1x128xf32, #tpu.memory_space<vmem>>, vector<1x128xf32>
    tpu.vector_store %arg7[%c0_29, %c0_30], %1101 {strides = array<i32>} : memref<1x128xf32, #tpu.memory_space<vmem>>, vector<1x128xf32>,
    return
  }
  func.func @transform_0(%arg0: i32) -> (i32, i32) {
    %c0_i32 = arith.constant 0 : i32
    %c0_i32_0 = arith.constant 0 : i32
    return %c0_i32, %arg0 : i32, i32
  }
  func.func @transform_1(%arg0: i32) -> (i32, i32) {
    %c0_i32 = arith.constant 0 : i32
    %c0_i32_0 = arith.constant 0 : i32
    %c0_i32_1 = arith.constant 0 : i32
    return %c0_i32, %c0_i32_0 : i32, i32
  }
  func.func @transform_2(%arg0: i32) -> (i32, i32) {
    %c0_i32 = arith.constant 0 : i32
    %c0_i32_0 = arith.constant 0 : i32
    %c0_i32_1 = arith.constant 0 : i32
    return %c0_i32, %c0_i32_0 : i32, i32
  }
  func.func @transform_3(%arg0: i32) -> (i32, i32) {
    %c0_i32 = arith.constant 0 : i32
    %c0_i32_0 = arith.constant 0 : i32
    %c0_i32_1 = arith.constant 0 : i32
    return %c0_i32, %c0_i32_0 : i32, i32
  }
  func.func @transform_4(%arg0: i32) -> (i32, i32) {
    %c0_i32 = arith.constant 0 : i32
    %c0_i32_0 = arith.constant 0 : i32
    %c0_i32_1 = arith.constant 0 : i32
    return %c0_i32, %c0_i32_0 : i32, i32
  }
  func.func @transform_5(%arg0: i32) -> i32 {
    %c0_i32 = arith.constant 0 : i32
    %c0_i32_0 = arith.constant 0 : i32
    return %c0_i32 : i32
  }
  func.func @transform_6(%arg0: i32) -> (i32, i32) {
    %c0_i32 = arith.constant 0 : i32
    %c0_i32_0 = arith.constant 0 : i32
    return %c0_i32, %arg0 : i32, i32
  }
}

</mosaic_0001>

<llo_original>
// kernel: tpu_custom_call.1
$region0: #{tpu_custom_call.1}
  #allocation0 [shape = 'u32[]', space=smem, size = 0x4, offset = 0x4, fixed_abs, tag = 'smem constant byte address 0x4 - core index']
  #allocation1 [shape = 'u32[144,128]{1,0:T(1,128)}', space=vmem, size = 0x12000, scoped, tag = 'internal scratch']
  #allocation2 [shape = 'f32[1]{0:T(128)S(6)}', space=smem, size = 0x200, scoped, tag = 'scoped memory for tpu_custom_call.1']
  %s0 = inlined_call_operand.hbm [shape: bf16[128,256], index: 0, kind: input, shape index: {}]
  %s1 = inlined_call_operand.hbm [shape: bf16[512,128], index: 1, kind: input, shape index: {}]
  %s2 = inlined_call_operand.hbm [shape: bf16[512,128], index: 2, kind: input, shape index: {}]
  %s3 = inlined_call_operand.hbm [shape: bf16[512,128], index: 3, kind: input, shape index: {}]
  %s4 = inlined_call_operand.vmem [shape: f32[1,128], index: 4, kind: input, shape index: {}]
  %s5 = inlined_call_operand.<no memory space> [shape: f32[1], index: 5, kind: input, shape index: {}]
  %s6 = inlined_call_operand.hbm [shape: f32[1,256], index: 6, kind: output, shape index: {}]
  %s7 = sld [smem:[#allocation0]]
  $region73: #{tpu_custom_call.1} parent=0
    _
  %s9 = ssub.s32 1, %s7
  %s10 = scalar_select 0, %s9, %s7
  %11 = sst [smem:[#allocation2]] %s5
  $region1: #{tpu_custom_call.1} parent=0
    #allocation3 [shape = 'u8[65536]{0}', space=vmem, size = 0x10000, scoped, tag = 'input window, operand 0']
    #allocation4 [shape = 's32[2]{0}', space=sflag, size = 0x8, scoped, tag = 'scoped memory for tpu_custom_call.1']
    #allocation5 [shape = 's32[2]{0}', space=sflag, size = 0x8, scoped, tag = 'scoped memory for tpu_custom_call.1']
    #allocation6 [shape = 'u8[131072]{0}', space=vmem, size = 0x20000, scoped, tag = 'input window, operand 1, single buffered']
    #allocation7 [shape = 's32[1]{0}', space=sflag, size = 0x4, scoped, tag = 'scoped memory for tpu_custom_call.1']
    #allocation8 [shape = 'u8[131072]{0}', space=vmem, size = 0x20000, scoped, tag = 'input window, operand 2, single buffered']
    #allocation9 [shape = 'u8[131072]{0}', space=vmem, size = 0x20000, scoped, tag = 'input window, operand 3, single buffered']
    #allocation10 [shape = 's32[1]{0}', space=sflag, size = 0x4, scoped, tag = 'scoped memory for tpu_custom_call.1']
    #allocation11 [shape = 'u8[1024]{0}', space=vmem, size = 0x400, scoped, tag = 'output window, operand 0']
    %12 = vsyncpa [#allocation4], 0
    %s13 = scalar_lea.sflag [#allocation4], 1
    %14 = vsyncpa %s13, 0
    %15 = vsyncpa [#allocation7], 0
    %16 = vsyncpa [#allocation10], 0
    %17 = vsyncpa [#allocation5], 0
    %s18 = scalar_lea.sflag [#allocation5], 1
    %19 = vsyncpa %s18, 0
    loop: start=0, step=1, limit=4
    $region2: #{tpu_custom_call.1} parent=1 // loop_pre_header
      _
    $region3: #{tpu_custom_call.1} parent=1 // loop_header
      %s21 = sphi 0, %s25
      %p22 = scmp.ge.s32.totalorder %s21, 4
      %s31 = sphi 0, %s33
      %s34 = sphi 0, %s31
      %s35 = sphi 0, %s34
      %s51 = sphi 0, %s35
      %s55 = sphi 0, %s55
      %s57 = sphi 0, %s55
      %s58 = sphi 0, %s57
      %s72 = sphi 0, %s58
      %s76 = sphi 0, %s76
      %s78 = sphi 0, %s76
      %s79 = sphi 0, %s78
      %s93 = sphi 0, %s79
      %s97 = sphi 0, %s97
      %s99 = sphi 0, %s97
      %s100 = sphi 0, %s99
      %s114 = sphi 0, %s100
      %s118 = sphi 0, %s118
      %s120 = sphi 0, %s118
      %s121 = sphi 0, %s120
      %s135 = sphi 0, %s121
      %s139 = sphi 0, %s139
      %s141 = sphi 0, %s139
      %s142 = sphi 0, %s141
      %s156 = sphi 0, %s142
      %s162 = sphi 0, %s164
      %s165 = sphi 0, %s162
      %s166 = sphi 0, %s165
      %s182 = sphi 0, %s166
    $region4: #{tpu_custom_call.1} parent=1 // loop_header_branch
      %24 = sbr.rel (%p22) target = $region8
    $region5: #{tpu_custom_call.1} parent=1 // loop_body
      %s26 = ssub.s32 %s21, 1
      %s27 = ssub.s32 %s21, 2
      %s28 = sadd.s32 %s21, 1
      %s29 = ssub.s32 %s21, %s28
      %p30 = scmp.eq.s32.totalorder %s29, 0
      %s32 = sadd.s32 %s31, 1
      %s33 = scalar_select %p30, %s31, %s32
      %p36 = pneg %p30
      %p37 = scmp.eq.s32.totalorder %s21, 1
      %p38 = por %p36, %p37
      %p39 = scmp.ne.s32.totalorder %s31, %s34
      %p40 = scmp.eq.s32.totalorder %s21, 0
      %p41 = por %p39, %p40
      %p42 = scmp.ne.s32.totalorder %s31, %s34
      %p43 = scmp.eq.s32.totalorder %s26, 1
      %p44 = por %p42, %p43
      %p45 = scmp.ne.s32.totalorder %s34, %s35
      %p46 = scmp.eq.s32.totalorder %s26, 0
      %p47 = por %p45, %p46
      %p48 = scmp.ne.s32.totalorder %s34, %s35
      %p49 = scmp.eq.s32.totalorder %s27, 1
      %p50 = por %p48, %p49
      %p52 = scmp.ne.s32.totalorder %s35, %s51
      %p53 = scmp.eq.s32.totalorder %s27, 0
      %p54 = por %p52, %p53
      %s56 = sadd.s32 %s55, 1
      %p59 = scmp.eq.s32.totalorder %s21, 1
      %p60 = scmp.ne.s32.totalorder %s55, %s57
      %p61 = scmp.eq.s32.totalorder %s21, 0
      %p62 = por %p60, %p61
      %p63 = scmp.ne.s32.totalorder %s55, %s57
      %p64 = scmp.eq.s32.totalorder %s26, 1
      %p65 = por %p63, %p64
      %p66 = scmp.ne.s32.totalorder %s57, %s58
      %p67 = scmp.eq.s32.totalorder %s26, 0
      %p68 = por %p66, %p67
      %p69 = scmp.ne.s32.totalorder %s57, %s58
      %p70 = scmp.eq.s32.totalorder %s27, 1
      %p71 = por %p69, %p70
      %p73 = scmp.ne.s32.totalorder %s58, %s72
      %p74 = scmp.eq.s32.totalorder %s27, 0
      %p75 = por %p73, %p74
      %s77 = sadd.s32 %s76, 1
      %p80 = scmp.eq.s32.totalorder %s21, 1
      %p81 = scmp.ne.s32.totalorder %s76, %s78
      %p82 = scmp.eq.s32.totalorder %s21, 0
      %p83 = por %p81, %p82
      %p84 = scmp.ne.s32.totalorder %s76, %s78
      %p85 = scmp.eq.s32.totalorder %s26, 1
      %p86 = por %p84, %p85
      %p87 = scmp.ne.s32.totalorder %s78, %s79
      %p88 = scmp.eq.s32.totalorder %s26, 0
      %p89 = por %p87, %p88
      %p90 = scmp.ne.s32.totalorder %s78, %s79
      %p91 = scmp.eq.s32.totalorder %s27, 1
      %p92 = por %p90, %p91
      %p94 = scmp.ne.s32.totalorder %s79, %s93
      %p95 = scmp.eq.s32.totalorder %s27, 0
      %p96 = por %p94, %p95
      %s98 = sadd.s32 %s97, 1
      %p101 = scmp.eq.s32.totalorder %s21, 1
      %p102 = scmp.ne.s32.totalorder %s97, %s99
      %p103 = scmp.eq.s32.totalorder %s21, 0
      %p104 = por %p102, %p103
      %p105 = scmp.ne.s32.totalorder %s97, %s99
      %p106 = scmp.eq.s32.totalorder %s26, 1
      %p107 = por %p105, %p106
      %p108 = scmp.ne.s32.totalorder %s99, %s100
      %p109 = scmp.eq.s32.totalorder %s26, 0
      %p110 = por %p108, %p109
      %p111 = scmp.ne.s32.totalorder %s99, %s100
      %p112 = scmp.eq.s32.totalorder %s27, 1
      %p113 = por %p111, %p112
      %p115 = scmp.ne.s32.totalorder %s100, %s114
      %p116 = scmp.eq.s32.totalorder %s27, 0
      %p117 = por %p115, %p116
      %s119 = sadd.s32 %s118, 1
      %p122 = scmp.eq.s32.totalorder %s21, 1
      %p123 = scmp.ne.s32.totalorder %s118, %s120
      %p124 = scmp.eq.s32.totalorder %s21, 0
      %p125 = por %p123, %p124
      %p126 = scmp.ne.s32.totalorder %s118, %s120
      %p127 = scmp.eq.s32.totalorder %s26, 1
      %p128 = por %p126, %p127
      %p129 = scmp.ne.s32.totalorder %s120, %s121
      %p130 = scmp.eq.s32.totalorder %s26, 0
      %p131 = por %p129, %p130
      %p132 = scmp.ne.s32.totalorder %s120, %s121
      %p133 = scmp.eq.s32.totalorder %s27, 1
      %p134 = por %p132, %p133
      %p136 = scmp.ne.s32.totalorder %s121, %s135
      %p137 = scmp.eq.s32.totalorder %s27, 0
      %p138 = por %p136, %p137
      %s140 = sadd.s32 %s139, 1
      %p143 = scmp.eq.s32.totalorder %s21, 1
      %p144 = scmp.ne.s32.totalorder %s139, %s141
      %p145 = scmp.eq.s32.totalorder %s21, 0
      %p146 = por %p144, %p145
      %p147 = scmp.ne.s32.totalorder %s139, %s141
      %p148 = scmp.eq.s32.totalorder %s26, 1
      %p149 = por %p147, %p148
      %p150 = scmp.ne.s32.totalorder %s141, %s142
      %p151 = scmp.eq.s32.totalorder %s26, 0
      %p152 = por %p150, %p151
      %p153 = scmp.ne.s32.totalorder %s141, %s142
      %p154 = scmp.eq.s32.totalorder %s27, 1
      %p155 = por %p153, %p154
      %p157 = scmp.ne.s32.totalorder %s142, %s156
      %p158 = scmp.eq.s32.totalorder %s27, 0
      %p159 = por %p157, %p158
      %s160 = ssub.s32 %s21, %s28
      %p161 = scmp.eq.s32.totalorder %s160, 0
      %s163 = sadd.s32 %s162, 1
      %s164 = scalar_select %p161, %s162, %s163
      %p167 = pneg %p161
      %p168 = scmp.eq.s32.totalorder %s21, 1
      %p169 = por %p167, %p168
      %p170 = scmp.ne.s32.totalorder %s162, %s165
      %p171 = scmp.eq.s32.totalorder %s21, 0
      %p172 = por %p170, %p171
      %p173 = scmp.ne.s32.totalorder %s162, %s165
      %p174 = scmp.eq.s32.totalorder %s26, 1
      %p175 = por %p173, %p174
      %p176 = scmp.ne.s32.totalorder %s165, %s166
      %p177 = scmp.eq.s32.totalorder %s26, 0
      %p178 = por %p176, %p177
      %p179 = scmp.ne.s32.totalorder %s165, %s166
      %p180 = scmp.eq.s32.totalorder %s27, 1
      %p181 = por %p179, %p180
      %p183 = scmp.ne.s32.totalorder %s166, %s182
      %p184 = scmp.eq.s32.totalorder %s27, 0
      %p185 = por %p183, %p184
      %p186 = scmp.le.s32.totalorder 1, %s21
      %p187 = scmp.lt.s32.totalorder %s21, 3
      %p188 = pnand %p186, %p187
      %p189 = pneg %p188
      // Predicated region
      $region9: #{tpu_custom_call.1} parent=5 // pred_check
        _
      $region10: #{tpu_custom_call.1} parent=5 // pred_check_branch
        %191 = sbr.rel (%p188) target = $region12
      $region11: #{tpu_custom_call.1} parent=5 // pred_region
        %s192 = ssub.s32 %s21, 1
        // Predicated region
        $region13: #{tpu_custom_call.1} parent=11 // pred_check
          %p193 = pneg %p68
        $region14: #{tpu_custom_call.1} parent=11 // pred_check_branch
          %195 = sbr.rel (%p193) target = $region16
        $region15: #{tpu_custom_call.1} parent=11 // pred_region
          %s197 = ssub.s32 4096, 4096
          %198 = vsyncadd [#allocation7], %s197
          %s199 = sshll.u32 [#allocation6], 4
          %s200 = int_to_ptr.vmem [resolvable:$true] %s199
          %205 = dma.hbm_to_vmem [thread:$0]  %s1, 4096, %s200, [#allocation7], 64, 64, 4
        $region16: #{tpu_custom_call.1} parent=11 // pred_fallthru
          _
        // Predicated region
        $region17: #{tpu_custom_call.1} parent=11 // pred_check
          %p206 = pneg %p89
        $region18: #{tpu_custom_call.1} parent=11 // pred_check_branch
          %208 = sbr.rel (%p206) target = $region20
        $region19: #{tpu_custom_call.1} parent=11 // pred_region
          %s210 = ssub.s32 4096, 4096
          %211 = vsyncadd [#allocation7], %s210
          %s212 = sshll.u32 [#allocation8], 4
          %s213 = int_to_ptr.vmem [resolvable:$true] %s212
          %218 = dma.hbm_to_vmem [thread:$0]  %s2, 4096, %s213, [#allocation7], 64, 64, 4
        $region20: #{tpu_custom_call.1} parent=11 // pred_fallthru
          _
        // Predicated region
        $region21: #{tpu_custom_call.1} parent=11 // pred_check
          %p219 = pneg %p110
        $region22: #{tpu_custom_call.1} parent=11 // pred_check_branch
          %221 = sbr.rel (%p219) target = $region24
        $region23: #{tpu_custom_call.1} parent=11 // pred_region
          %s223 = ssub.s32 4096, 4096
          %224 = vsyncadd [#allocation10], %s223
          %s225 = sshll.u32 [#allocation9], 4
          %s226 = int_to_ptr.vmem [resolvable:$true] %s225
          %231 = dma.hbm_to_vmem [thread:$0]  %s3, 4096, %s226, [#allocation10], 64, 64, 4
        $region24: #{tpu_custom_call.1} parent=11 // pred_fallthru
          _
        // Predicated region
        $region25: #{tpu_custom_call.1} parent=11 // pred_check
          %p232 = pneg %p131
        $region26: #{tpu_custom_call.1} parent=11 // pred_check_branch
          %234 = sbr.rel (%p232) target = $region28
        $region27: #{tpu_custom_call.1} parent=11 // pred_region
          _
        $region28: #{tpu_custom_call.1} parent=11 // pred_fallthru
          _
        // Predicated region
        $region29: #{tpu_custom_call.1} parent=11 // pred_check
          %p235 = pneg %p152
        $region30: #{tpu_custom_call.1} parent=11 // pred_check_branch
          %237 = sbr.rel (%p235) target = $region32
        $region31: #{tpu_custom_call.1} parent=11 // pred_region
          _
        $region32: #{tpu_custom_call.1} parent=11 // pred_fallthru
          _
      $region12: #{tpu_custom_call.1} parent=5 // pred_fallthru
        _
      %p238 = scmp.lt.s32.totalorder %s21, 2
      // Predicated region
      $region33: #{tpu_custom_call.1} parent=5 // pred_check
        %p239 = pneg %p238
      $region34: #{tpu_custom_call.1} parent=5 // pred_check_branch
        %241 = sbr.rel (%p239) target = $region36
      $region35: #{tpu_custom_call.1} parent=5 // pred_region
        // Predicated region
        $region37: #{tpu_custom_call.1} parent=35 // pred_check
          %p242 = pneg %p41
        $region38: #{tpu_custom_call.1} parent=35 // pred_check_branch
          %244 = sbr.rel (%p242) target = $region40
        $region39: #{tpu_custom_call.1} parent=35 // pred_region
          %s245 = sand.u32 %s31, 1
          %s246 = scalar_lea.sflag [#allocation4], %s245
          %s247 = sand.u32 %s31, 1
          %s248 = smul.addr %s247, 64
          %s249 = scalar_lea.vmem [#allocation3], %s248
          %s251 = ssub.s32 1024, 1024
          %252 = vsyncadd %s246, %s251
          %s253 = smul.addr %s21, 64
          %s254 = scalar_lea.hbm %s0, %s253
          %s255 = sshll.u32 %s249, 4
          %s256 = int_to_ptr.vmem [resolvable:$true] %s255
          %261 = dma.hbm_to_vmem [thread:$0]  %s254, 1024, %s256, %s246, 128, 64, 4
        $region40: #{tpu_custom_call.1} parent=35 // pred_fallthru
          _
      $region36: #{tpu_custom_call.1} parent=5 // pred_fallthru
        _
      %p262 = scmp.le.s32.totalorder 1, %s21
      %p263 = scmp.lt.s32.totalorder %s21, 3
      %p264 = pnand %p262, %p263
      %p265 = pneg %p264
      // Predicated region
      $region41: #{tpu_custom_call.1} parent=5 // pred_check
        _
      $region42: #{tpu_custom_call.1} parent=5 // pred_check_branch
        %267 = sbr.rel (%p264) target = $region44
      $region43: #{tpu_custom_call.1} parent=5 // pred_region
        %s268 = ssub.s32 %s21, 1
        %s269 = sand.u32 %s34, 1
        %s270 = scalar_lea.sflag [#allocation4], %s269
        %s271 = sand.u32 %s34, 1
        %s272 = smul.addr %s271, 64
        %s273 = scalar_lea.vmem [#allocation3], %s272
        // Predicated region
        $region45: #{tpu_custom_call.1} parent=43 // pred_check
          %p274 = pneg %p47
        $region46: #{tpu_custom_call.1} parent=43 // pred_check_branch
          %276 = sbr.rel (%p274) target = $region48
        $region47: #{tpu_custom_call.1} parent=43 // pred_region
          %277 = dma.done %s270, 1024
        $region48: #{tpu_custom_call.1} parent=43 // pred_fallthru
          _
        // Predicated region
        $region49: #{tpu_custom_call.1} parent=43 // pred_check
          %p278 = pneg %p68
        $region50: #{tpu_custom_call.1} parent=43 // pred_check_branch
          %280 = sbr.rel (%p278) target = $region52
        $region51: #{tpu_custom_call.1} parent=43 // pred_region
          %281 = dma.done [#allocation7], 4096
        $region52: #{tpu_custom_call.1} parent=43 // pred_fallthru
          _
        // Predicated region
        $region53: #{tpu_custom_call.1} parent=43 // pred_check
          %p282 = pneg %p89
        $region54: #{tpu_custom_call.1} parent=43 // pred_check_branch
          %284 = sbr.rel (%p282) target = $region56
        $region55: #{tpu_custom_call.1} parent=43 // pred_region
          %285 = dma.done [#allocation7], 4096
        $region56: #{tpu_custom_call.1} parent=43 // pred_fallthru
          _
        // Predicated region
        $region57: #{tpu_custom_call.1} parent=43 // pred_check
          %p286 = pneg %p110
        $region58: #{tpu_custom_call.1} parent=43 // pred_check_branch
          %288 = sbr.rel (%p286) target = $region60
        $region59: #{tpu_custom_call.1} parent=43 // pred_region
          %289 = dma.done [#allocation10], 4096
        $region60: #{tpu_custom_call.1} parent=43 // pred_fallthru
          _
        %s290 = sand.u32 %s34, 1
        %s291 = scalar_lea.sflag [#allocation4], %s290
        %s292 = sand.u32 %s34, 1
        %s293 = smul.addr %s292, 64
        %s294 = scalar_lea.vmem [#allocation3], %s293
        %p295 = pneg %p47
        %p296 = pneg %p44
        %p297 = pneg %p68
        %p298 = pneg %p65
        %p299 = pneg %p89
        %p300 = pneg %p86
        %p301 = pneg %p110
        %p302 = pneg %p107
        %p303 = pneg %p131
        %p304 = pneg %p128
        %p305 = pneg %p152
        %p306 = pneg %p149
        %p307 = pneg %p178
        %p308 = pneg %p175
        %s309 = sand.u32 %s165, 1
        %s310 = scalar_lea.sflag [#allocation5], %s309
        %s311 = sand.u32 %s165, 1
        %s312 = scalar_lea.vmem [#allocation11], %s311
        %v314 = vld [vmem:[%s273] sm:$0xf]
        %v315 = vld [vmem:[%s273 + $0x4] sm:$0xf]
        %v316 = vld [vmem:[%s273 + $0x8] sm:$0xf]
        %v317 = vld [vmem:[%s273 + $0xc] sm:$0xf]
        %v318 = vld [vmem:[%s273 + $0x10] sm:$0xf]
        %v319 = vld [vmem:[%s273 + $0x14] sm:$0xf]
        %v320 = vld [vmem:[%s273 + $0x18] sm:$0xf]
        %v321 = vld [vmem:[%s273 + $0x1c] sm:$0xf]
        %v322 = vld [vmem:[%s273 + $0x20] sm:$0xf]
        %v323 = vld [vmem:[%s273 + $0x24] sm:$0xf]
        %v324 = vld [vmem:[%s273 + $0x28] sm:$0xf]
        %v325 = vld [vmem:[%s273 + $0x2c] sm:$0xf]
        %v326 = vld [vmem:[%s273 + $0x30] sm:$0xf]
        %v327 = vld [vmem:[%s273 + $0x34] sm:$0xf]
        %v328 = vld [vmem:[%s273 + $0x38] sm:$0xf]
        %v329 = vld [vmem:[%s273 + $0x3c] sm:$0xf]
        %v330 = vld [vmem:[#allocation6] sm:$0xf]
        %v331 = vld [vmem:[#allocation6 + $0x4] sm:$0xf]
        %v332 = vld [vmem:[#allocation6 + $0x8] sm:$0xf]
        %v333 = vld [vmem:[#allocation6 + $0xc] sm:$0xf]
        %v334 = vld [vmem:[#allocation6 + $0x10] sm:$0xf]
        %v335 = vld [vmem:[#allocation6 + $0x14] sm:$0xf]
        %v336 = vld [vmem:[#allocation6 + $0x18] sm:$0xf]
        %v337 = vld [vmem:[#allocation6 + $0x1c] sm:$0xf]
        %v338 = vld [vmem:[#allocation6 + $0x20] sm:$0xf]
        %v339 = vld [vmem:[#allocation6 + $0x24] sm:$0xf]
        %v340 = vld [vmem:[#allocation6 + $0x28] sm:$0xf]
        %v341 = vld [vmem:[#allocation6 + $0x2c] sm:$0xf]
        %v342 = vld [vmem:[#allocation6 + $0x30] sm:$0xf]
        %v343 = vld [vmem:[#allocation6 + $0x34] sm:$0xf]
        %v344 = vld [vmem:[#allocation6 + $0x38] sm:$0xf]
        %v345 = vld [vmem:[#allocation6 + $0x3c] sm:$0xf]
        %v346 = vld [vmem:[#allocation6 + $0x40] sm:$0xf]
        %v347 = vld [vmem:[#allocation6 + $0x44] sm:$0xf]
        %v348 = vld [vmem:[#allocation6 + $0x48] sm:$0xf]
        %v349 = vld [vmem:[#allocation6 + $0x4c] sm:$0xf]
        %v350 = vld [vmem:[#allocation6 + $0x50] sm:$0xf]
        %v351 = vld [vmem:[#allocation6 + $0x54] sm:$0xf]
        %v352 = vld [vmem:[#allocation6 + $0x58] sm:$0xf]
        %v353 = vld [vmem:[#allocation6 + $0x5c] sm:$0xf]
        %v354 = vld [vmem:[#allocation6 + $0x60] sm:$0xf]
        %v355 = vld [vmem:[#allocation6 + $0x64] sm:$0xf]
        %v356 = vld [vmem:[#allocation6 + $0x68] sm:$0xf]
        %v357 = vld [vmem:[#allocation6 + $0x6c] sm:$0xf]
        %v358 = vld [vmem:[#allocation6 + $0x70] sm:$0xf]
        %v359 = vld [vmem:[#allocation6 + $0x74] sm:$0xf]
        %v360 = vld [vmem:[#allocation6 + $0x78] sm:$0xf]
        %v361 = vld [vmem:[#allocation6 + $0x7c] sm:$0xf]
        %v362 = vld [vmem:[#allocation6 + $0x80] sm:$0xf]
        %v363 = vld [vmem:[#allocation6 + $0x84] sm:$0xf]
        %v364 = vld [vmem:[#allocation6 + $0x88] sm:$0xf]
        %v365 = vld [vmem:[#allocation6 + $0x8c] sm:$0xf]
        %v366 = vld [vmem:[#allocation6 + $0x90] sm:$0xf]
        %v367 = vld [vmem:[#allocation6 + $0x94] sm:$0xf]
        %v368 = vld [vmem:[#allocation6 + $0x98] sm:$0xf]
        %v369 = vld [vmem:[#allocation6 + $0x9c] sm:$0xf]
        %v370 = vld [vmem:[#allocation6 + $0xa0] sm:$0xf]
        %v371 = vld [vmem:[#allocation6 + $0xa4] sm:$0xf]
        %v372 = vld [vmem:[#allocation6 + $0xa8] sm:$0xf]
        %v373 = vld [vmem:[#allocation6 + $0xac] sm:$0xf]
        %v374 = vld [vmem:[#allocation6 + $0xb0] sm:$0xf]
        %v375 = vld [vmem:[#allocation6 + $0xb4] sm:$0xf]
        %v376 = vld [vmem:[#allocation6 + $0xb8] sm:$0xf]
        %v377 = vld [vmem:[#allocation6 + $0xbc] sm:$0xf]
        %v378 = vld [vmem:[#allocation6 + $0xc0] sm:$0xf]
        %v379 = vld [vmem:[#allocation6 + $0xc4] sm:$0xf]
        %v380 = vld [vmem:[#allocation6 + $0xc8] sm:$0xf]
        %v381 = vld [vmem:[#allocation6 + $0xcc] sm:$0xf]
        %v382 = vld [vmem:[#allocation6 + $0xd0] sm:$0xf]
        %v383 = vld [vmem:[#allocation6 + $0xd4] sm:$0xf]
        %v384 = vld [vmem:[#allocation6 + $0xd8] sm:$0xf]
        %v385 = vld [vmem:[#allocation6 + $0xdc] sm:$0xf]
        %v386 = vld [vmem:[#allocation6 + $0xe0] sm:$0xf]
        %v387 = vld [vmem:[#allocation6 + $0xe4] sm:$0xf]
        %v388 = vld [vmem:[#allocation6 + $0xe8] sm:$0xf]
        %v389 = vld [vmem:[#allocation6 + $0xec] sm:$0xf]
        %v390 = vld [vmem:[#allocation6 + $0xf0] sm:$0xf]
        %v391 = vld [vmem:[#allocation6 + $0xf4] sm:$0xf]
        %v392 = vld [vmem:[#allocation6 + $0xf8] sm:$0xf]
        %v393 = vld [vmem:[#allocation6 + $0xfc] sm:$0xf]
        %v458 = vunpack.c.l.b16 %v330
        %v459 = vunpack.c.l.b16 %v331
        %v460 = vunpack.c.l.b16 %v332
        %v461 = vunpack.c.l.b16 %v333
        %v462 = vunpack.c.l.b16 %v334
        %v463 = vunpack.c.l.b16 %v335
        %v464 = vunpack.c.l.b16 %v336
        %v465 = vunpack.c.l.b16 %v337
        %v466 = vunpack.c.l.b16 %v338
        %v467 = vunpack.c.l.b16 %v339
        %v468 = vunpack.c.l.b16 %v340
        %v469 = vunpack.c.l.b16 %v341
        %v470 = vunpack.c.l.b16 %v342
        %v471 = vunpack.c.l.b16 %v343
        %v472 = vunpack.c.l.b16 %v344
        %v473 = vunpack.c.l.b16 %v345
        %v474 = vunpack.c.l.b16 %v346
        %v475 = vunpack.c.l.b16 %v347
        %v476 = vunpack.c.l.b16 %v348
        %v477 = vunpack.c.l.b16 %v349
        %v478 = vunpack.c.l.b16 %v350
        %v479 = vunpack.c.l.b16 %v351
        %v480 = vunpack.c.l.b16 %v352
        %v481 = vunpack.c.l.b16 %v353
        %v482 = vunpack.c.l.b16 %v354
        %v483 = vunpack.c.l.b16 %v355
        %v484 = vunpack.c.l.b16 %v356
        %v485 = vunpack.c.l.b16 %v357
        %v486 = vunpack.c.l.b16 %v358
        %v487 = vunpack.c.l.b16 %v359
        %v488 = vunpack.c.l.b16 %v360
        %v489 = vunpack.c.l.b16 %v361
        %v490 = vunpack.c.l.b16 %v362
        %v491 = vunpack.c.l.b16 %v363
        %v492 = vunpack.c.l.b16 %v364
        %v493 = vunpack.c.l.b16 %v365
        %v494 = vunpack.c.l.b16 %v366
        %v495 = vunpack.c.l.b16 %v367
        %v496 = vunpack.c.l.b16 %v368
        %v497 = vunpack.c.l.b16 %v369
        %v498 = vunpack.c.l.b16 %v370
        %v499 = vunpack.c.l.b16 %v371
        %v500 = vunpack.c.l.b16 %v372
        %v501 = vunpack.c.l.b16 %v373
        %v502 = vunpack.c.l.b16 %v374
        %v503 = vunpack.c.l.b16 %v375
        %v504 = vunpack.c.l.b16 %v376
        %v505 = vunpack.c.l.b16 %v377
        %v506 = vunpack.c.l.b16 %v378
        %v507 = vunpack.c.l.b16 %v379
        %v508 = vunpack.c.l.b16 %v380
        %v509 = vunpack.c.l.b16 %v381
        %v510 = vunpack.c.l.b16 %v382
        %v511 = vunpack.c.l.b16 %v383
        %v512 = vunpack.c.l.b16 %v384
        %v513 = vunpack.c.l.b16 %v385
        %v514 = vunpack.c.l.b16 %v386
        %v515 = vunpack.c.l.b16 %v387
        %v516 = vunpack.c.l.b16 %v388
        %v517 = vunpack.c.l.b16 %v389
        %v518 = vunpack.c.l.b16 %v390
        %v519 = vunpack.c.l.b16 %v391
        %v520 = vunpack.c.l.b16 %v392
        %v521 = vunpack.c.l.b16 %v393
        %v522 = vpack.c.b16 %v459, %v458
        %v523 = vpack.c.b16 %v461, %v460
        %v524 = vpack.c.b16 %v463, %v462
        %v525 = vpack.c.b16 %v465, %v464
        %v526 = vpack.c.b16 %v467, %v466
        %v527 = vpack.c.b16 %v469, %v468
        %v528 = vpack.c.b16 %v471, %v470
        %v529 = vpack.c.b16 %v473, %v472
        %v530 = vpack.c.b16 %v475, %v474
        %v531 = vpack.c.b16 %v477, %v476
        %v532 = vpack.c.b16 %v479, %v478
        %v533 = vpack.c.b16 %v481, %v480
        %v534 = vpack.c.b16 %v483, %v482
        %v535 = vpack.c.b16 %v485, %v484
        %v536 = vpack.c.b16 %v487, %v486
        %v537 = vpack.c.b16 %v489, %v488
        %v538 = vpack.c.b16 %v491, %v490
        %v539 = vpack.c.b16 %v493, %v492
        %v540 = vpack.c.b16 %v495, %v494
        %v541 = vpack.c.b16 %v497, %v496
        %v542 = vpack.c.b16 %v499, %v498
        %v543 = vpack.c.b16 %v501, %v500
        %v544 = vpack.c.b16 %v503, %v502
        %v545 = vpack.c.b16 %v505, %v504
        %v546 = vpack.c.b16 %v507, %v506
        %v547 = vpack.c.b16 %v509, %v508
        %v548 = vpack.c.b16 %v511, %v510
        %v549 = vpack.c.b16 %v513, %v512
        %v550 = vpack.c.b16 %v515, %v514
        %v551 = vpack.c.b16 %v517, %v516
        %v552 = vpack.c.b16 %v519, %v518
        %v553 = vpack.c.b16 %v521, %v520
        %v602 = vunpack.c.l.b16 %v314
        %v603 = vunpack.c.l.b16 %v315
        %v604 = vunpack.c.l.b16 %v316
        %v605 = vunpack.c.l.b16 %v317
        %v606 = vunpack.c.l.b16 %v318
        %v607 = vunpack.c.l.b16 %v319
        %v608 = vunpack.c.l.b16 %v320
        %v609 = vunpack.c.l.b16 %v321
        %v610 = vunpack.c.l.b16 %v322
        %v611 = vunpack.c.l.b16 %v323
        %v612 = vunpack.c.l.b16 %v324
        %v613 = vunpack.c.l.b16 %v325
        %v614 = vunpack.c.l.b16 %v326
        %v615 = vunpack.c.l.b16 %v327
        %v616 = vunpack.c.l.b16 %v328
        %v617 = vunpack.c.l.b16 %v329
        %v618 = vpack.c.b16 %v603, %v602
        %v619 = vpack.c.b16 %v605, %v604
        %v620 = vpack.c.b16 %v607, %v606
        %v621 = vpack.c.b16 %v609, %v608
        %v622 = vpack.c.b16 %v611, %v610
        %v623 = vpack.c.b16 %v613, %v612
        %v624 = vpack.c.b16 %v615, %v614
        %v625 = vpack.c.b16 %v617, %v616
        %634 = vmatprep.subr.bf16.mxu0 0
        %635 = vmatpush1.bf16.msra.mxu0 %v625
        %636 = vmatprep.subr.bf16.mxu0 0
        %637 = vmatpush1.bf16.msra.mxu0 %v624
        %638 = vmatprep.subr.bf16.mxu0 0
        %639 = vmatpush1.bf16.msra.mxu0 %v623
        %640 = vmatprep.subr.bf16.mxu0 0
        %641 = vmatpush1.bf16.msra.mxu0 %v622
        %642 = vmatprep.subr.bf16.mxu0 0
        %643 = vmatpush1.bf16.msra.mxu0 %v621
        %644 = vmatprep.subr.bf16.mxu0 0
        %645 = vmatpush1.bf16.msra.mxu0 %v620
        %646 = vmatprep.subr.bf16.mxu0 0
        %647 = vmatpush1.bf16.msra.mxu0 %v619
        %648 = vmatprep.subr.bf16.mxu0 0
        %649 = vmatpush1.bf16.msra.mxu0 %v618
        %650 = vmatprep.subr.bf16.mxu0 0
        %651 = vmatpush2.bf16.msra.mxu0 0
        %652 = vmatprep.subr.bf16.mxu0 0
        %653 = vmatpush2.bf16.msra.mxu0 0
        %654 = vmatprep.subr.bf16.mxu0 0
        %655 = vmatpush2.bf16.msra.mxu0 0
        %656 = vmatprep.subr.bf16.mxu0 0
        %657 = vmatpush2.bf16.msra.mxu0 0
        %658 = vmatprep.subr.bf16.mxu0 0
        %659 = vmatpush2.bf16.msra.mxu0 0
        %660 = vmatprep.subr.bf16.mxu0 0
        %661 = vmatpush2.bf16.msra.mxu0 0
        %662 = vmatprep.subr.bf16.mxu0 0
        %663 = vmatpush2.bf16.msra.mxu0 0
        %664 = vmatprep.subr.bf16.mxu0 0
        %665 = vmatpush2.bf16.msra.mxu0 0
        %666 = vmatprep.mubr.bf16.mxu0 0
        %667 = vmatmul.mubr.bf16.gmra.mxu0 %v522
        %v668 = vpop.f32.mrf.mxu0
        %v669 = vadd.f32 0.0, %v668
        %v670 = vpop.f32.mrf.mxu0
        %v671 = vpop.f32.mrf.mxu0
        %v672 = vadd.f32 0.0, %v671
        %v673 = vpop.f32.mrf.mxu0
        %674 = vmatprep.mubr.bf16.mxu0 0
        %675 = vmatmul.mubr.bf16.gmra.mxu0 %v523
        %v676 = vpop.f32.mrf.mxu0
        %v677 = vadd.f32 0.0, %v676
        %v678 = vpop.f32.mrf.mxu0
        %v679 = vpop.f32.mrf.mxu0
        %v680 = vadd.f32 0.0, %v679
        %v681 = vpop.f32.mrf.mxu0
        %682 = vmatprep.mubr.bf16.mxu0 0
        %683 = vmatmul.mubr.bf16.gmra.mxu0 %v524
        %v684 = vpop.f32.mrf.mxu0
        %v685 = vadd.f32 0.0, %v684
        %v686 = vpop.f32.mrf.mxu0
        %v687 = vpop.f32.mrf.mxu0
        %v688 = vadd.f32 0.0, %v687
        %v689 = vpop.f32.mrf.mxu0
        %690 = vmatprep.mubr.bf16.mxu0 0
        %691 = vmatmul.mubr.bf16.gmra.mxu0 %v525
        %v692 = vpop.f32.mrf.mxu0
        %v693 = vadd.f32 0.0, %v692
        %v694 = vpop.f32.mrf.mxu0
        %v695 = vpop.f32.mrf.mxu0
        %v696 = vadd.f32 0.0, %v695
        %v697 = vpop.f32.mrf.mxu0
        %698 = vmatprep.mubr.bf16.mxu0 0
        %699 = vmatmul.mubr.bf16.gmra.mxu0 %v526
        %v700 = vpop.f32.mrf.mxu0
        %v701 = vadd.f32 0.0, %v700
        %v702 = vpop.f32.mrf.mxu0
        %v703 = vpop.f32.mrf.mxu0
        %v704 = vadd.f32 0.0, %v703
        %v705 = vpop.f32.mrf.mxu0
        %706 = vmatprep.mubr.bf16.mxu0 0
        %707 = vmatmul.mubr.bf16.gmra.mxu0 %v527
        %v708 = vpop.f32.mrf.mxu0
        %v709 = vadd.f32 0.0, %v708
        %v710 = vpop.f32.mrf.mxu0
        %v711 = vpop.f32.mrf.mxu0
        %v712 = vadd.f32 0.0, %v711
        %v713 = vpop.f32.mrf.mxu0
        %714 = vmatprep.mubr.bf16.mxu0 0
        %715 = vmatmul.mubr.bf16.gmra.mxu0 %v528
        %v716 = vpop.f32.mrf.mxu0
        %v717 = vadd.f32 0.0, %v716
        %v718 = vpop.f32.mrf.mxu0
        %v719 = vpop.f32.mrf.mxu0
        %v720 = vadd.f32 0.0, %v719
        %v721 = vpop.f32.mrf.mxu0
        %722 = vmatprep.mubr.bf16.mxu0 0
        %723 = vmatmul.mubr.bf16.gmra.mxu0 %v529
        %v724 = vpop.f32.mrf.mxu0
        %v725 = vadd.f32 0.0, %v724
        %v726 = vpop.f32.mrf.mxu0
        %v727 = vpop.f32.mrf.mxu0
        %v728 = vadd.f32 0.0, %v727
        %v729 = vpop.f32.mrf.mxu0
        %730 = vmatprep.mubr.bf16.mxu0 0
        %731 = vmatmul.mubr.bf16.gmra.mxu0 %v530
        %v732 = vpop.f32.mrf.mxu0
        %v733 = vadd.f32 0.0, %v732
        %v734 = vpop.f32.mrf.mxu0
        %v735 = vpop.f32.mrf.mxu0
        %v736 = vadd.f32 0.0, %v735
        %v737 = vpop.f32.mrf.mxu0
        %738 = vmatprep.mubr.bf16.mxu0 0
        %739 = vmatmul.mubr.bf16.gmra.mxu0 %v531
        %v740 = vpop.f32.mrf.mxu0
        %v741 = vadd.f32 0.0, %v740
        %v742 = vpop.f32.mrf.mxu0
        %v743 = vpop.f32.mrf.mxu0
        %v744 = vadd.f32 0.0, %v743
        %v745 = vpop.f32.mrf.mxu0
        %746 = vmatprep.mubr.bf16.mxu0 0
        %747 = vmatmul.mubr.bf16.gmra.mxu0 %v532
        %v748 = vpop.f32.mrf.mxu0
        %v749 = vadd.f32 0.0, %v748
        %v750 = vpop.f32.mrf.mxu0
        %v751 = vpop.f32.mrf.mxu0
        %v752 = vadd.f32 0.0, %v751
        %v753 = vpop.f32.mrf.mxu0
        %754 = vmatprep.mubr.bf16.mxu0 0
        %755 = vmatmul.mubr.bf16.gmra.mxu0 %v533
        %v756 = vpop.f32.mrf.mxu0
        %v757 = vadd.f32 0.0, %v756
        %v758 = vpop.f32.mrf.mxu0
        %v759 = vpop.f32.mrf.mxu0
        %v760 = vadd.f32 0.0, %v759
        %v761 = vpop.f32.mrf.mxu0
        %762 = vmatprep.mubr.bf16.mxu0 0
        %763 = vmatmul.mubr.bf16.gmra.mxu0 %v534
        %v764 = vpop.f32.mrf.mxu0
        %v765 = vadd.f32 0.0, %v764
        %v766 = vpop.f32.mrf.mxu0
        %v767 = vpop.f32.mrf.mxu0
        %v768 = vadd.f32 0.0, %v767
        %v769 = vpop.f32.mrf.mxu0
        %770 = vmatprep.mubr.bf16.mxu0 0
        %771 = vmatmul.mubr.bf16.gmra.mxu0 %v535
        %v772 = vpop.f32.mrf.mxu0
        %v773 = vadd.f32 0.0, %v772
        %v774 = vpop.f32.mrf.mxu0
        %v775 = vpop.f32.mrf.mxu0
        %v776 = vadd.f32 0.0, %v775
        %v777 = vpop.f32.mrf.mxu0
        %778 = vmatprep.mubr.bf16.mxu0 0
        %779 = vmatmul.mubr.bf16.gmra.mxu0 %v536
        %v780 = vpop.f32.mrf.mxu0
        %v781 = vadd.f32 0.0, %v780
        %v782 = vpop.f32.mrf.mxu0
        %v783 = vpop.f32.mrf.mxu0
        %v784 = vadd.f32 0.0, %v783
        %v785 = vpop.f32.mrf.mxu0
        %786 = vmatprep.mubr.bf16.mxu0 0
        %787 = vmatmul.mubr.bf16.gmra.mxu0 %v537
        %v788 = vpop.f32.mrf.mxu0
        %v789 = vadd.f32 0.0, %v788
        %v790 = vpop.f32.mrf.mxu0
        %v791 = vpop.f32.mrf.mxu0
        %v792 = vadd.f32 0.0, %v791
        %v793 = vpop.f32.mrf.mxu0
        %794 = vmatprep.mubr.bf16.mxu0 0
        %795 = vmatmul.mubr.bf16.gmra.mxu0 %v538
        %v796 = vpop.f32.mrf.mxu0
        %v797 = vadd.f32 0.0, %v796
        %v798 = vpop.f32.mrf.mxu0
        %v799 = vpop.f32.mrf.mxu0
        %v800 = vadd.f32 0.0, %v799
        %v801 = vpop.f32.mrf.mxu0
        %802 = vmatprep.mubr.bf16.mxu0 0
        %803 = vmatmul.mubr.bf16.gmra.mxu0 %v539
        %v804 = vpop.f32.mrf.mxu0
        %v805 = vadd.f32 0.0, %v804
        %v806 = vpop.f32.mrf.mxu0
        %v807 = vpop.f32.mrf.mxu0
        %v808 = vadd.f32 0.0, %v807
        %v809 = vpop.f32.mrf.mxu0
        %810 = vmatprep.mubr.bf16.mxu0 0
        %811 = vmatmul.mubr.bf16.gmra.mxu0 %v540
        %v812 = vpop.f32.mrf.mxu0
        %v813 = vadd.f32 0.0, %v812
        %v814 = vpop.f32.mrf.mxu0
        %v815 = vpop.f32.mrf.mxu0
        %v816 = vadd.f32 0.0, %v815
        %v817 = vpop.f32.mrf.mxu0
        %818 = vmatprep.mubr.bf16.mxu0 0
        %819 = vmatmul.mubr.bf16.gmra.mxu0 %v541
        %v820 = vpop.f32.mrf.mxu0
        %v821 = vadd.f32 0.0, %v820
        %v822 = vpop.f32.mrf.mxu0
        %v823 = vpop.f32.mrf.mxu0
        %v824 = vadd.f32 0.0, %v823
        %v825 = vpop.f32.mrf.mxu0
        %826 = vmatprep.mubr.bf16.mxu0 0
        %827 = vmatmul.mubr.bf16.gmra.mxu0 %v542
        %v828 = vpop.f32.mrf.mxu0
        %v829 = vadd.f32 0.0, %v828
        %v830 = vpop.f32.mrf.mxu0
        %v831 = vpop.f32.mrf.mxu0
        %v832 = vadd.f32 0.0, %v831
        %v833 = vpop.f32.mrf.mxu0
        %834 = vmatprep.mubr.bf16.mxu0 0
        %835 = vmatmul.mubr.bf16.gmra.mxu0 %v543
        %v836 = vpop.f32.mrf.mxu0
        %v837 = vadd.f32 0.0, %v836
        %v838 = vpop.f32.mrf.mxu0
        %v839 = vpop.f32.mrf.mxu0
        %v840 = vadd.f32 0.0, %v839
        %v841 = vpop.f32.mrf.mxu0
        %842 = vmatprep.mubr.bf16.mxu0 0
        %843 = vmatmul.mubr.bf16.gmra.mxu0 %v544
        %v844 = vpop.f32.mrf.mxu0
        %v845 = vadd.f32 0.0, %v844
        %v846 = vpop.f32.mrf.mxu0
        %v847 = vpop.f32.mrf.mxu0
        %v848 = vadd.f32 0.0, %v847
        %v849 = vpop.f32.mrf.mxu0
        %850 = vmatprep.mubr.bf16.mxu0 0
        %851 = vmatmul.mubr.bf16.gmra.mxu0 %v545
        %v852 = vpop.f32.mrf.mxu0
        %v853 = vadd.f32 0.0, %v852
        %v854 = vpop.f32.mrf.mxu0
        %v855 = vpop.f32.mrf.mxu0
        %v856 = vadd.f32 0.0, %v855
        %v857 = vpop.f32.mrf.mxu0
        %858 = vmatprep.mubr.bf16.mxu0 0
        %859 = vmatmul.mubr.bf16.gmra.mxu0 %v546
        %v860 = vpop.f32.mrf.mxu0
        %v861 = vadd.f32 0.0, %v860
        %v862 = vpop.f32.mrf.mxu0
        %v863 = vpop.f32.mrf.mxu0
        %v864 = vadd.f32 0.0, %v863
        %v865 = vpop.f32.mrf.mxu0
        %866 = vmatprep.mubr.bf16.mxu0 0
        %867 = vmatmul.mubr.bf16.gmra.mxu0 %v547
        %v868 = vpop.f32.mrf.mxu0
        %v869 = vadd.f32 0.0, %v868
        %v870 = vpop.f32.mrf.mxu0
        %v871 = vpop.f32.mrf.mxu0
        %v872 = vadd.f32 0.0, %v871
        %v873 = vpop.f32.mrf.mxu0
        %874 = vmatprep.mubr.bf16.mxu0 0
        %875 = vmatmul.mubr.bf16.gmra.mxu0 %v548
        %v876 = vpop.f32.mrf.mxu0
        %v877 = vadd.f32 0.0, %v876
        %v878 = vpop.f32.mrf.mxu0
        %v879 = vpop.f32.mrf.mxu0
        %v880 = vadd.f32 0.0, %v879
        %v881 = vpop.f32.mrf.mxu0
        %882 = vmatprep.mubr.bf16.mxu0 0
        %883 = vmatmul.mubr.bf16.gmra.mxu0 %v549
        %v884 = vpop.f32.mrf.mxu0
        %v885 = vadd.f32 0.0, %v884
        %v886 = vpop.f32.mrf.mxu0
        %v887 = vpop.f32.mrf.mxu0
        %v888 = vadd.f32 0.0, %v887
        %v889 = vpop.f32.mrf.mxu0
        %890 = vmatprep.mubr.bf16.mxu0 0
        %891 = vmatmul.mubr.bf16.gmra.mxu0 %v550
        %v892 = vpop.f32.mrf.mxu0
        %v893 = vadd.f32 0.0, %v892
        %v894 = vpop.f32.mrf.mxu0
        %v895 = vpop.f32.mrf.mxu0
        %v896 = vadd.f32 0.0, %v895
        %v897 = vpop.f32.mrf.mxu0
        %898 = vmatprep.mubr.bf16.mxu0 0
        %899 = vmatmul.mubr.bf16.gmra.mxu0 %v551
        %v900 = vpop.f32.mrf.mxu0
        %v901 = vadd.f32 0.0, %v900
        %v902 = vpop.f32.mrf.mxu0
        %v903 = vpop.f32.mrf.mxu0
        %v904 = vadd.f32 0.0, %v903
        %v905 = vpop.f32.mrf.mxu0
        %906 = vmatprep.mubr.bf16.mxu0 0
        %907 = vmatmul.mubr.bf16.gmra.mxu0 %v552
        %v908 = vpop.f32.mrf.mxu0
        %v909 = vadd.f32 0.0, %v908
        %v910 = vpop.f32.mrf.mxu0
        %v911 = vpop.f32.mrf.mxu0
        %v912 = vadd.f32 0.0, %v911
        %v913 = vpop.f32.mrf.mxu0
        %914 = vmatprep.mubr.bf16.mxu0 0
        %915 = vmatmul.mubr.bf16.gmra.mxu0 %v553
        %v916 = vpop.f32.mrf.mxu0
        %v917 = vadd.f32 0.0, %v916
        %v918 = vpop.f32.mrf.mxu0
        %v919 = vpop.f32.mrf.mxu0
        %v920 = vadd.f32 0.0, %v919
        %v921 = vpop.f32.mrf.mxu0
        %922 = vdwg.mxu0
        %v924 = vcombine.high %v669, %v669
        %v926 = vunpack.c.l.s4 1966171168
        %v927 = vunpack.c.0.s8 %v926
        %v928 = vlaneseq
        %v929 = vshrl.u32 %v928, 7
        %v930 = vsub.s32 %v927, %v929
        %v931 = vrot.slane %v669, %v930
        %v933 = vunpack.c.l.s4 1966171168
        %v934 = vunpack.c.0.s8 %v933
        %v935 = vlaneseq
        %v936 = vshrl.u32 %v935, 7
        %v937 = vsub.s32 %v934, %v936
        %v938 = vrot.slane %v924, %v937
        %v939 = vcombine.high %v931, %v931
        %v940 = vcombine.high %v938, %v938
        %v942 = vunpack.c.l.s4 1966171168
        %v943 = vunpack.c.0.s8 %v942
        %v944 = vlaneseq
        %v945 = vshrl.u32 %v944, 7
        %v946 = vsub.s32 %v943, %v945
        %v947 = vrot.slane %v931, %v946
        %v949 = vunpack.c.l.s4 1966171168
        %v950 = vunpack.c.0.s8 %v949
        %v951 = vlaneseq
        %v952 = vshrl.u32 %v951, 7
        %v953 = vsub.s32 %v950, %v952
        %v954 = vrot.slane %v938, %v953
        %v956 = vunpack.c.l.s4 1966171168
        %v957 = vunpack.c.0.s8 %v956
        %v958 = vlaneseq
        %v959 = vshrl.u32 %v958, 7
        %v960 = vsub.s32 %v957, %v959
        %v961 = vrot.slane %v939, %v960
        %v963 = vunpack.c.l.s4 1966171168
        %v964 = vunpack.c.0.s8 %v963
        %v965 = vlaneseq
        %v966 = vshrl.u32 %v965, 7
        %v967 = vsub.s32 %v964, %v966
        %v968 = vrot.slane %v940, %v967
        %v969 = vcombine.high %v947, %v947
        %v970 = vcombine.high %v954, %v954
        %v971 = vcombine.high %v961, %v961
        %v972 = vcombine.high %v968, %v968
        %v973 = vlaneseq
        %v974 = vshrl.u32 %v973, 7
        %v975 = vsub.s32 0, %v974
        %v976 = vrot.slane %v947, %v975
        %v977 = vlaneseq
        %v978 = vshrl.u32 %v977, 7
        %v979 = vsub.s32 0, %v978
        %v980 = vrot.slane %v961, %v979
        %v981 = vlaneseq
        %v982 = vshrl.u32 %v981, 7
        %v983 = vsub.s32 0, %v982
        %v984 = vrot.slane %v969, %v983
        %v985 = vlaneseq
        %v986 = vshrl.u32 %v985, 7
        %v987 = vsub.s32 0, %v986
        %v988 = vrot.slane %v971, %v987
        %v989 = vlaneseq
        %v990 = vshrl.u32 %v989, 7
        %v991 = vsub.s32 0, %v990
        %v992 = vrot.slane %v954, %v991
        %v993 = vlaneseq
        %v994 = vshrl.u32 %v993, 7
        %v995 = vsub.s32 0, %v994
        %v996 = vrot.slane %v968, %v995
        %v997 = vlaneseq
        %v998 = vshrl.u32 %v997, 7
        %v999 = vsub.s32 0, %v998
        %v1000 = vrot.slane %v970, %v999
        %v1001 = vlaneseq
        %v1002 = vshrl.u32 %v1001, 7
        %v1003 = vsub.s32 0, %v1002
        %v1004 = vrot.slane %v972, %v1003
        %v1013 = vmul.f32 %v976, %v733
        %v1014 = vmul.f32 %v980, %v733
        %v1015 = vmul.f32 %v984, %v733
        %v1016 = vmul.f32 %v988, %v733
        %v1017 = vmul.f32 %v992, %v733
        %v1018 = vmul.f32 %v996, %v733
        %v1019 = vmul.f32 %v1000, %v733
        %v1020 = vmul.f32 %v1004, %v733
        %v1022 = vcombine.high %v672, %v672
        %v1024 = vunpack.c.l.s4 1966171168
        %v1025 = vunpack.c.0.s8 %v1024
        %v1026 = vlaneseq
        %v1027 = vshrl.u32 %v1026, 7
        %v1028 = vsub.s32 %v1025, %v1027
        %v1029 = vrot.slane %v672, %v1028
        %v1031 = vunpack.c.l.s4 1966171168
        %v1032 = vunpack.c.0.s8 %v1031
        %v1033 = vlaneseq
        %v1034 = vshrl.u32 %v1033, 7
        %v1035 = vsub.s32 %v1032, %v1034
        %v1036 = vrot.slane %v1022, %v1035
        %v1037 = vcombine.high %v1029, %v1029
        %v1038 = vcombine.high %v1036, %v1036
        %v1040 = vunpack.c.l.s4 1966171168
        %v1041 = vunpack.c.0.s8 %v1040
        %v1042 = vlaneseq
        %v1043 = vshrl.u32 %v1042, 7
        %v1044 = vsub.s32 %v1041, %v1043
        %v1045 = vrot.slane %v1029, %v1044
        %v1047 = vunpack.c.l.s4 1966171168
        %v1048 = vunpack.c.0.s8 %v1047
        %v1049 = vlaneseq
        %v1050 = vshrl.u32 %v1049, 7
        %v1051 = vsub.s32 %v1048, %v1050
        %v1052 = vrot.slane %v1036, %v1051
        %v1054 = vunpack.c.l.s4 1966171168
        %v1055 = vunpack.c.0.s8 %v1054
        %v1056 = vlaneseq
        %v1057 = vshrl.u32 %v1056, 7
        %v1058 = vsub.s32 %v1055, %v1057
        %v1059 = vrot.slane %v1037, %v1058
        %v1061 = vunpack.c.l.s4 1966171168
        %v1062 = vunpack.c.0.s8 %v1061
        %v1063 = vlaneseq
        %v1064 = vshrl.u32 %v1063, 7
        %v1065 = vsub.s32 %v1062, %v1064
        %v1066 = vrot.slane %v1038, %v1065
        %v1067 = vcombine.high %v1045, %v1045
        %v1068 = vcombine.high %v1052, %v1052
        %v1069 = vcombine.high %v1059, %v1059
        %v1070 = vcombine.high %v1066, %v1066
        %v1071 = vlaneseq
        %v1072 = vshrl.u32 %v1071, 7
        %v1073 = vsub.s32 0, %v1072
        %v1074 = vrot.slane %v1045, %v1073
        %v1075 = vlaneseq
        %v1076 = vshrl.u32 %v1075, 7
        %v1077 = vsub.s32 0, %v1076
        %v1078 = vrot.slane %v1059, %v1077
        %v1079 = vlaneseq
        %v1080 = vshrl.u32 %v1079, 7
        %v1081 = vsub.s32 0, %v1080
        %v1082 = vrot.slane %v1067, %v1081
        %v1083 = vlaneseq
        %v1084 = vshrl.u32 %v1083, 7
        %v1085 = vsub.s32 0, %v1084
        %v1086 = vrot.slane %v1069, %v1085
        %v1087 = vlaneseq
        %v1088 = vshrl.u32 %v1087, 7
        %v1089 = vsub.s32 0, %v1088
        %v1090 = vrot.slane %v1052, %v1089
        %v1091 = vlaneseq
        %v1092 = vshrl.u32 %v1091, 7
        %v1093 = vsub.s32 0, %v1092
        %v1094 = vrot.slane %v1066, %v1093
        %v1095 = vlaneseq
        %v1096 = vshrl.u32 %v1095, 7
        %v1097 = vsub.s32 0, %v1096
        %v1098 = vrot.slane %v1068, %v1097
        %v1099 = vlaneseq
        %v1100 = vshrl.u32 %v1099, 7
        %v1101 = vsub.s32 0, %v1100
        %v1102 = vrot.slane %v1070, %v1101
        %v1111 = vmul.f32 %v1074, %v736
        %v1112 = vmul.f32 %v1078, %v736
        %v1113 = vmul.f32 %v1082, %v736
        %v1114 = vmul.f32 %v1086, %v736
        %v1115 = vmul.f32 %v1090, %v736
        %v1116 = vmul.f32 %v1094, %v736
        %v1117 = vmul.f32 %v1098, %v736
        %v1118 = vmul.f32 %v1102, %v736
        %v1119 = vadd.f32 %v1013, %v1111
        %v1120 = vadd.f32 %v1014, %v1112
        %v1121 = vadd.f32 %v1015, %v1113
        %v1122 = vadd.f32 %v1016, %v1114
        %v1123 = vadd.f32 %v1017, %v1115
        %v1124 = vadd.f32 %v1018, %v1116
        %v1125 = vadd.f32 %v1019, %v1117
        %v1126 = vadd.f32 %v1020, %v1118
        %v1128 = vcombine.high %v677, %v677
        %v1130 = vunpack.c.l.s4 1966171168
        %v1131 = vunpack.c.0.s8 %v1130
        %v1132 = vlaneseq
        %v1133 = vshrl.u32 %v1132, 7
        %v1134 = vsub.s32 %v1131, %v1133
        %v1135 = vrot.slane %v677, %v1134
        %v1137 = vunpack.c.l.s4 1966171168
        %v1138 = vunpack.c.0.s8 %v1137
        %v1139 = vlaneseq
        %v1140 = vshrl.u32 %v1139, 7
        %v1141 = vsub.s32 %v1138, %v1140
        %v1142 = vrot.slane %v1128, %v1141
        %v1143 = vcombine.high %v1135, %v1135
        %v1144 = vcombine.high %v1142, %v1142
        %v1146 = vunpack.c.l.s4 1966171168
        %v1147 = vunpack.c.0.s8 %v1146
        %v1148 = vlaneseq
        %v1149 = vshrl.u32 %v1148, 7
        %v1150 = vsub.s32 %v1147, %v1149
        %v1151 = vrot.slane %v1135, %v1150
        %v1153 = vunpack.c.l.s4 1966171168
        %v1154 = vunpack.c.0.s8 %v1153
        %v1155 = vlaneseq
        %v1156 = vshrl.u32 %v1155, 7
        %v1157 = vsub.s32 %v1154, %v1156
        %v1158 = vrot.slane %v1142, %v1157
        %v1160 = vunpack.c.l.s4 1966171168
        %v1161 = vunpack.c.0.s8 %v1160
        %v1162 = vlaneseq
        %v1163 = vshrl.u32 %v1162, 7
        %v1164 = vsub.s32 %v1161, %v1163
        %v1165 = vrot.slane %v1143, %v1164
        %v1167 = vunpack.c.l.s4 1966171168
        %v1168 = vunpack.c.0.s8 %v1167
        %v1169 = vlaneseq
        %v1170 = vshrl.u32 %v1169, 7
        %v1171 = vsub.s32 %v1168, %v1170
        %v1172 = vrot.slane %v1144, %v1171
        %v1173 = vcombine.high %v1151, %v1151
        %v1174 = vcombine.high %v1158, %v1158
        %v1175 = vcombine.high %v1165, %v1165
        %v1176 = vcombine.high %v1172, %v1172
        %v1177 = vlaneseq
        %v1178 = vshrl.u32 %v1177, 7
        %v1179 = vsub.s32 0, %v1178
        %v1180 = vrot.slane %v1151, %v1179
        %v1181 = vlaneseq
        %v1182 = vshrl.u32 %v1181, 7
        %v1183 = vsub.s32 0, %v1182
        %v1184 = vrot.slane %v1165, %v1183
        %v1185 = vlaneseq
        %v1186 = vshrl.u32 %v1185, 7
        %v1187 = vsub.s32 0, %v1186
        %v1188 = vrot.slane %v1173, %v1187
        %v1189 = vlaneseq
        %v1190 = vshrl.u32 %v1189, 7
        %v1191 = vsub.s32 0, %v1190
        %v1192 = vrot.slane %v1175, %v1191
        %v1193 = vlaneseq
        %v1194 = vshrl.u32 %v1193, 7
        %v1195 = vsub.s32 0, %v1194
        %v1196 = vrot.slane %v1158, %v1195
        %v1197 = vlaneseq
        %v1198 = vshrl.u32 %v1197, 7
        %v1199 = vsub.s32 0, %v1198
        %v1200 = vrot.slane %v1172, %v1199
        %v1201 = vlaneseq
        %v1202 = vshrl.u32 %v1201, 7
        %v1203 = vsub.s32 0, %v1202
        %v1204 = vrot.slane %v1174, %v1203
        %v1205 = vlaneseq
        %v1206 = vshrl.u32 %v1205, 7
        %v1207 = vsub.s32 0, %v1206
        %v1208 = vrot.slane %v1176, %v1207
        %v1217 = vmul.f32 %v1180, %v741
        %v1218 = vmul.f32 %v1184, %v741
        %v1219 = vmul.f32 %v1188, %v741
        %v1220 = vmul.f32 %v1192, %v741
        %v1221 = vmul.f32 %v1196, %v741
        %v1222 = vmul.f32 %v1200, %v741
        %v1223 = vmul.f32 %v1204, %v741
        %v1224 = vmul.f32 %v1208, %v741
        %v1225 = vadd.f32 %v1119, %v1217
        %v1226 = vadd.f32 %v1120, %v1218
        %v1227 = vadd.f32 %v1121, %v1219
        %v1228 = vadd.f32 %v1122, %v1220
        %v1229 = vadd.f32 %v1123, %v1221
        %v1230 = vadd.f32 %v1124, %v1222
        %v1231 = vadd.f32 %v1125, %v1223
        %v1232 = vadd.f32 %v1126, %v1224
        %v1234 = vcombine.high %v680, %v680
        %v1236 = vunpack.c.l.s4 1966171168
        %v1237 = vunpack.c.0.s8 %v1236
        %v1238 = vlaneseq
        %v1239 = vshrl.u32 %v1238, 7
        %v1240 = vsub.s32 %v1237, %v1239
        %v1241 = vrot.slane %v680, %v1240
        %v1243 = vunpack.c.l.s4 1966171168
        %v1244 = vunpack.c.0.s8 %v1243
        %v1245 = vlaneseq
        %v1246 = vshrl.u32 %v1245, 7
        %v1247 = vsub.s32 %v1244, %v1246
        %v1248 = vrot.slane %v1234, %v1247
        %v1249 = vcombine.high %v1241, %v1241
        %v1250 = vcombine.high %v1248, %v1248
        %v1252 = vunpack.c.l.s4 1966171168
        %v1253 = vunpack.c.0.s8 %v1252
        %v1254 = vlaneseq
        %v1255 = vshrl.u32 %v1254, 7
        %v1256 = vsub.s32 %v1253, %v1255
        %v1257 = vrot.slane %v1241, %v1256
        %v1259 = vunpack.c.l.s4 1966171168
        %v1260 = vunpack.c.0.s8 %v1259
        %v1261 = vlaneseq
        %v1262 = vshrl.u32 %v1261, 7
        %v1263 = vsub.s32 %v1260, %v1262
        %v1264 = vrot.slane %v1248, %v1263
        %v1266 = vunpack.c.l.s4 1966171168
        %v1267 = vunpack.c.0.s8 %v1266
        %v1268 = vlaneseq
        %v1269 = vshrl.u32 %v1268, 7
        %v1270 = vsub.s32 %v1267, %v1269
        %v1271 = vrot.slane %v1249, %v1270
        %v1273 = vunpack.c.l.s4 1966171168
        %v1274 = vunpack.c.0.s8 %v1273
        %v1275 = vlaneseq
        %v1276 = vshrl.u32 %v1275, 7
        %v1277 = vsub.s32 %v1274, %v1276
        %v1278 = vrot.slane %v1250, %v1277
        %v1279 = vcombine.high %v1257, %v1257
        %v1280 = vcombine.high %v1264, %v1264
        %v1281 = vcombine.high %v1271, %v1271
        %v1282 = vcombine.high %v1278, %v1278
        %v1283 = vlaneseq
        %v1284 = vshrl.u32 %v1283, 7
        %v1285 = vsub.s32 0, %v1284
        %v1286 = vrot.slane %v1257, %v1285
        %v1287 = vlaneseq
        %v1288 = vshrl.u32 %v1287, 7
        %v1289 = vsub.s32 0, %v1288
        %v1290 = vrot.slane %v1271, %v1289
        %v1291 = vlaneseq
        %v1292 = vshrl.u32 %v1291, 7
        %v1293 = vsub.s32 0, %v1292
        %v1294 = vrot.slane %v1279, %v1293
        %v1295 = vlaneseq
        %v1296 = vshrl.u32 %v1295, 7
        %v1297 = vsub.s32 0, %v1296
        %v1298 = vrot.slane %v1281, %v1297
        %v1299 = vlaneseq
        %v1300 = vshrl.u32 %v1299, 7
        %v1301 = vsub.s32 0, %v1300
        %v1302 = vrot.slane %v1264, %v1301
        %v1303 = vlaneseq
        %v1304 = vshrl.u32 %v1303, 7
        %v1305 = vsub.s32 0, %v1304
        %v1306 = vrot.slane %v1278, %v1305
        %v1307 = vlaneseq
        %v1308 = vshrl.u32 %v1307, 7
        %v1309 = vsub.s32 0, %v1308
        %v1310 = vrot.slane %v1280, %v1309
        %v1311 = vlaneseq
        %v1312 = vshrl.u32 %v1311, 7
        %v1313 = vsub.s32 0, %v1312
        %v1314 = vrot.slane %v1282, %v1313
        %v1323 = vmul.f32 %v1286, %v744
        %v1324 = vmul.f32 %v1290, %v744
        %v1325 = vmul.f32 %v1294, %v744
        %v1326 = vmul.f32 %v1298, %v744
        %v1327 = vmul.f32 %v1302, %v744
        %v1328 = vmul.f32 %v1306, %v744
        %v1329 = vmul.f32 %v1310, %v744
        %v1330 = vmul.f32 %v1314, %v744
        %v1331 = vadd.f32 %v1225, %v1323
        %v1332 = vadd.f32 %v1226, %v1324
        %v1333 = vadd.f32 %v1227, %v1325
        %v1334 = vadd.f32 %v1228, %v1326
        %v1335 = vadd.f32 %v1229, %v1327
        %v1336 = vadd.f32 %v1230, %v1328
        %v1337 = vadd.f32 %v1231, %v1329
        %v1338 = vadd.f32 %v1232, %v1330
        %v1340 = vcombine.high %v685, %v685
        %v1342 = vunpack.c.l.s4 1966171168
        %v1343 = vunpack.c.0.s8 %v1342
        %v1344 = vlaneseq
        %v1345 = vshrl.u32 %v1344, 7
        %v1346 = vsub.s32 %v1343, %v1345
        %v1347 = vrot.slane %v685, %v1346
        %v1349 = vunpack.c.l.s4 1966171168
        %v1350 = vunpack.c.0.s8 %v1349
        %v1351 = vlaneseq
        %v1352 = vshrl.u32 %v1351, 7
        %v1353 = vsub.s32 %v1350, %v1352
        %v1354 = vrot.slane %v1340, %v1353
        %v1355 = vcombine.high %v1347, %v1347
        %v1356 = vcombine.high %v1354, %v1354
        %v1358 = vunpack.c.l.s4 1966171168
        %v1359 = vunpack.c.0.s8 %v1358
        %v1360 = vlaneseq
        %v1361 = vshrl.u32 %v1360, 7
        %v1362 = vsub.s32 %v1359, %v1361
        %v1363 = vrot.slane %v1347, %v1362
        %v1365 = vunpack.c.l.s4 1966171168
        %v1366 = vunpack.c.0.s8 %v1365
        %v1367 = vlaneseq
        %v1368 = vshrl.u32 %v1367, 7
        %v1369 = vsub.s32 %v1366, %v1368
        %v1370 = vrot.slane %v1354, %v1369
        %v1372 = vunpack.c.l.s4 1966171168
        %v1373 = vunpack.c.0.s8 %v1372
        %v1374 = vlaneseq
        %v1375 = vshrl.u32 %v1374, 7
        %v1376 = vsub.s32 %v1373, %v1375
        %v1377 = vrot.slane %v1355, %v1376
        %v1379 = vunpack.c.l.s4 1966171168
        %v1380 = vunpack.c.0.s8 %v1379
        %v1381 = vlaneseq
        %v1382 = vshrl.u32 %v1381, 7
        %v1383 = vsub.s32 %v1380, %v1382
        %v1384 = vrot.slane %v1356, %v1383
        %v1385 = vcombine.high %v1363, %v1363
        %v1386 = vcombine.high %v1370, %v1370
        %v1387 = vcombine.high %v1377, %v1377
        %v1388 = vcombine.high %v1384, %v1384
        %v1389 = vlaneseq
        %v1390 = vshrl.u32 %v1389, 7
        %v1391 = vsub.s32 0, %v1390
        %v1392 = vrot.slane %v1363, %v1391
        %v1393 = vlaneseq
        %v1394 = vshrl.u32 %v1393, 7
        %v1395 = vsub.s32 0, %v1394
        %v1396 = vrot.slane %v1377, %v1395
        %v1397 = vlaneseq
        %v1398 = vshrl.u32 %v1397, 7
        %v1399 = vsub.s32 0, %v1398
        %v1400 = vrot.slane %v1385, %v1399
        %v1401 = vlaneseq
        %v1402 = vshrl.u32 %v1401, 7
        %v1403 = vsub.s32 0, %v1402
        %v1404 = vrot.slane %v1387, %v1403
        %v1405 = vlaneseq
        %v1406 = vshrl.u32 %v1405, 7
        %v1407 = vsub.s32 0, %v1406
        %v1408 = vrot.slane %v1370, %v1407
        %v1409 = vlaneseq
        %v1410 = vshrl.u32 %v1409, 7
        %v1411 = vsub.s32 0, %v1410
        %v1412 = vrot.slane %v1384, %v1411
        %v1413 = vlaneseq
        %v1414 = vshrl.u32 %v1413, 7
        %v1415 = vsub.s32 0, %v1414
        %v1416 = vrot.slane %v1386, %v1415
        %v1417 = vlaneseq
        %v1418 = vshrl.u32 %v1417, 7
        %v1419 = vsub.s32 0, %v1418
        %v1420 = vrot.slane %v1388, %v1419
        %v1429 = vmul.f32 %v1392, %v749
        %v1430 = vmul.f32 %v1396, %v749
        %v1431 = vmul.f32 %v1400, %v749
        %v1432 = vmul.f32 %v1404, %v749
        %v1433 = vmul.f32 %v1408, %v749
        %v1434 = vmul.f32 %v1412, %v749
        %v1435 = vmul.f32 %v1416, %v749
        %v1436 = vmul.f32 %v1420, %v749
        %v1437 = vadd.f32 %v1331, %v1429
        %v1438 = vadd.f32 %v1332, %v1430
        %v1439 = vadd.f32 %v1333, %v1431
        %v1440 = vadd.f32 %v1334, %v1432
        %v1441 = vadd.f32 %v1335, %v1433
        %v1442 = vadd.f32 %v1336, %v1434
        %v1443 = vadd.f32 %v1337, %v1435
        %v1444 = vadd.f32 %v1338, %v1436
        %v1446 = vcombine.high %v688, %v688
        %v1448 = vunpack.c.l.s4 1966171168
        %v1449 = vunpack.c.0.s8 %v1448
        %v1450 = vlaneseq
        %v1451 = vshrl.u32 %v1450, 7
        %v1452 = vsub.s32 %v1449, %v1451
        %v1453 = vrot.slane %v688, %v1452
        %v1455 = vunpack.c.l.s4 1966171168
        %v1456 = vunpack.c.0.s8 %v1455
        %v1457 = vlaneseq
        %v1458 = vshrl.u32 %v1457, 7
        %v1459 = vsub.s32 %v1456, %v1458
        %v1460 = vrot.slane %v1446, %v1459
        %v1461 = vcombine.high %v1453, %v1453
        %v1462 = vcombine.high %v1460, %v1460
        %v1464 = vunpack.c.l.s4 1966171168
        %v1465 = vunpack.c.0.s8 %v1464
        %v1466 = vlaneseq
        %v1467 = vshrl.u32 %v1466, 7
        %v1468 = vsub.s32 %v1465, %v1467
        %v1469 = vrot.slane %v1453, %v1468
        %v1471 = vunpack.c.l.s4 1966171168
        %v1472 = vunpack.c.0.s8 %v1471
        %v1473 = vlaneseq
        %v1474 = vshrl.u32 %v1473, 7
        %v1475 = vsub.s32 %v1472, %v1474
        %v1476 = vrot.slane %v1460, %v1475
        %v1478 = vunpack.c.l.s4 1966171168
        %v1479 = vunpack.c.0.s8 %v1478
        %v1480 = vlaneseq
        %v1481 = vshrl.u32 %v1480, 7
        %v1482 = vsub.s32 %v1479, %v1481
        %v1483 = vrot.slane %v1461, %v1482
        %v1485 = vunpack.c.l.s4 1966171168
        %v1486 = vunpack.c.0.s8 %v1485
        %v1487 = vlaneseq
        %v1488 = vshrl.u32 %v1487, 7
        %v1489 = vsub.s32 %v1486, %v1488
        %v1490 = vrot.slane %v1462, %v1489
        %v1491 = vcombine.high %v1469, %v1469
        %v1492 = vcombine.high %v1476, %v1476
        %v1493 = vcombine.high %v1483, %v1483
        %v1494 = vcombine.high %v1490, %v1490
        %v1495 = vlaneseq
        %v1496 = vshrl.u32 %v1495, 7
        %v1497 = vsub.s32 0, %v1496
        %v1498 = vrot.slane %v1469, %v1497
        %v1499 = vlaneseq
        %v1500 = vshrl.u32 %v1499, 7
        %v1501 = vsub.s32 0, %v1500
        %v1502 = vrot.slane %v1483, %v1501
        %v1503 = vlaneseq
        %v1504 = vshrl.u32 %v1503, 7
        %v1505 = vsub.s32 0, %v1504
        %v1506 = vrot.slane %v1491, %v1505
        %v1507 = vlaneseq
        %v1508 = vshrl.u32 %v1507, 7
        %v1509 = vsub.s32 0, %v1508
        %v1510 = vrot.slane %v1493, %v1509
        %v1511 = vlaneseq
        %v1512 = vshrl.u32 %v1511, 7
        %v1513 = vsub.s32 0, %v1512
        %v1514 = vrot.slane %v1476, %v1513
        %v1515 = vlaneseq
        %v1516 = vshrl.u32 %v1515, 7
        %v1517 = vsub.s32 0, %v1516
        %v1518 = vrot.slane %v1490, %v1517
        %v1519 = vlaneseq
        %v1520 = vshrl.u32 %v1519, 7
        %v1521 = vsub.s32 0, %v1520
        %v1522 = vrot.slane %v1492, %v1521
        %v1523 = vlaneseq
        %v1524 = vshrl.u32 %v1523, 7
        %v1525 = vsub.s32 0, %v1524
        %v1526 = vrot.slane %v1494, %v1525
        %v1535 = vmul.f32 %v1498, %v752
        %v1536 = vmul.f32 %v1502, %v752
        %v1537 = vmul.f32 %v1506, %v752
        %v1538 = vmul.f32 %v1510, %v752
        %v1539 = vmul.f32 %v1514, %v752
        %v1540 = vmul.f32 %v1518, %v752
        %v1541 = vmul.f32 %v1522, %v752
        %v1542 = vmul.f32 %v1526, %v752
        %v1543 = vadd.f32 %v1437, %v1535
        %v1544 = vadd.f32 %v1438, %v1536
        %v1545 = vadd.f32 %v1439, %v1537
        %v1546 = vadd.f32 %v1440, %v1538
        %v1547 = vadd.f32 %v1441, %v1539
        %v1548 = vadd.f32 %v1442, %v1540
        %v1549 = vadd.f32 %v1443, %v1541
        %v1550 = vadd.f32 %v1444, %v1542
        %v1552 = vcombine.high %v693, %v693
        %v1554 = vunpack.c.l.s4 1966171168
        %v1555 = vunpack.c.0.s8 %v1554
        %v1556 = vlaneseq
        %v1557 = vshrl.u32 %v1556, 7
        %v1558 = vsub.s32 %v1555, %v1557
        %v1559 = vrot.slane %v693, %v1558
        %v1561 = vunpack.c.l.s4 1966171168
        %v1562 = vunpack.c.0.s8 %v1561
        %v1563 = vlaneseq
        %v1564 = vshrl.u32 %v1563, 7
        %v1565 = vsub.s32 %v1562, %v1564
        %v1566 = vrot.slane %v1552, %v1565
        %v1567 = vcombine.high %v1559, %v1559
        %v1568 = vcombine.high %v1566, %v1566
        %v1570 = vunpack.c.l.s4 1966171168
        %v1571 = vunpack.c.0.s8 %v1570
        %v1572 = vlaneseq
        %v1573 = vshrl.u32 %v1572, 7
        %v1574 = vsub.s32 %v1571, %v1573
        %v1575 = vrot.slane %v1559, %v1574
        %v1577 = vunpack.c.l.s4 1966171168
        %v1578 = vunpack.c.0.s8 %v1577
        %v1579 = vlaneseq
        %v1580 = vshrl.u32 %v1579, 7
        %v1581 = vsub.s32 %v1578, %v1580
        %v1582 = vrot.slane %v1566, %v1581
        %v1584 = vunpack.c.l.s4 1966171168
        %v1585 = vunpack.c.0.s8 %v1584
        %v1586 = vlaneseq
        %v1587 = vshrl.u32 %v1586, 7
        %v1588 = vsub.s32 %v1585, %v1587
        %v1589 = vrot.slane %v1567, %v1588
        %v1591 = vunpack.c.l.s4 1966171168
        %v1592 = vunpack.c.0.s8 %v1591
        %v1593 = vlaneseq
        %v1594 = vshrl.u32 %v1593, 7
        %v1595 = vsub.s32 %v1592, %v1594
        %v1596 = vrot.slane %v1568, %v1595
        %v1597 = vcombine.high %v1575, %v1575
        %v1598 = vcombine.high %v1582, %v1582
        %v1599 = vcombine.high %v1589, %v1589
        %v1600 = vcombine.high %v1596, %v1596
        %v1601 = vlaneseq
        %v1602 = vshrl.u32 %v1601, 7
        %v1603 = vsub.s32 0, %v1602
        %v1604 = vrot.slane %v1575, %v1603
        %v1605 = vlaneseq
        %v1606 = vshrl.u32 %v1605, 7
        %v1607 = vsub.s32 0, %v1606
        %v1608 = vrot.slane %v1589, %v1607
        %v1609 = vlaneseq
        %v1610 = vshrl.u32 %v1609, 7
        %v1611 = vsub.s32 0, %v1610
        %v1612 = vrot.slane %v1597, %v1611
        %v1613 = vlaneseq
        %v1614 = vshrl.u32 %v1613, 7
        %v1615 = vsub.s32 0, %v1614
        %v1616 = vrot.slane %v1599, %v1615
        %v1617 = vlaneseq
        %v1618 = vshrl.u32 %v1617, 7
        %v1619 = vsub.s32 0, %v1618
        %v1620 = vrot.slane %v1582, %v1619
        %v1621 = vlaneseq
        %v1622 = vshrl.u32 %v1621, 7
        %v1623 = vsub.s32 0, %v1622
        %v1624 = vrot.slane %v1596, %v1623
        %v1625 = vlaneseq
        %v1626 = vshrl.u32 %v1625, 7
        %v1627 = vsub.s32 0, %v1626
        %v1628 = vrot.slane %v1598, %v1627
        %v1629 = vlaneseq
        %v1630 = vshrl.u32 %v1629, 7
        %v1631 = vsub.s32 0, %v1630
        %v1632 = vrot.slane %v1600, %v1631
        %v1641 = vmul.f32 %v1604, %v757
        %v1642 = vmul.f32 %v1608, %v757
        %v1643 = vmul.f32 %v1612, %v757
        %v1644 = vmul.f32 %v1616, %v757
        %v1645 = vmul.f32 %v1620, %v757
        %v1646 = vmul.f32 %v1624, %v757
        %v1647 = vmul.f32 %v1628, %v757
        %v1648 = vmul.f32 %v1632, %v757
        %v1649 = vadd.f32 %v1543, %v1641
        %v1650 = vadd.f32 %v1544, %v1642
        %v1651 = vadd.f32 %v1545, %v1643
        %v1652 = vadd.f32 %v1546, %v1644
        %v1653 = vadd.f32 %v1547, %v1645
        %v1654 = vadd.f32 %v1548, %v1646
        %v1655 = vadd.f32 %v1549, %v1647
        %v1656 = vadd.f32 %v1550, %v1648
        %v1658 = vcombine.high %v696, %v696
        %v1660 = vunpack.c.l.s4 1966171168
        %v1661 = vunpack.c.0.s8 %v1660
        %v1662 = vlaneseq
        %v1663 = vshrl.u32 %v1662, 7
        %v1664 = vsub.s32 %v1661, %v1663
        %v1665 = vrot.slane %v696, %v1664
        %v1667 = vunpack.c.l.s4 1966171168
        %v1668 = vunpack.c.0.s8 %v1667
        %v1669 = vlaneseq
        %v1670 = vshrl.u32 %v1669, 7
        %v1671 = vsub.s32 %v1668, %v1670
        %v1672 = vrot.slane %v1658, %v1671
        %v1673 = vcombine.high %v1665, %v1665
        %v1674 = vcombine.high %v1672, %v1672
        %v1676 = vunpack.c.l.s4 1966171168
        %v1677 = vunpack.c.0.s8 %v1676
        %v1678 = vlaneseq
        %v1679 = vshrl.u32 %v1678, 7
        %v1680 = vsub.s32 %v1677, %v1679
        %v1681 = vrot.slane %v1665, %v1680
        %v1683 = vunpack.c.l.s4 1966171168
        %v1684 = vunpack.c.0.s8 %v1683
        %v1685 = vlaneseq
        %v1686 = vshrl.u32 %v1685, 7
        %v1687 = vsub.s32 %v1684, %v1686
        %v1688 = vrot.slane %v1672, %v1687
        %v1690 = vunpack.c.l.s4 1966171168
        %v1691 = vunpack.c.0.s8 %v1690
        %v1692 = vlaneseq
        %v1693 = vshrl.u32 %v1692, 7
        %v1694 = vsub.s32 %v1691, %v1693
        %v1695 = vrot.slane %v1673, %v1694
        %v1697 = vunpack.c.l.s4 1966171168
        %v1698 = vunpack.c.0.s8 %v1697
        %v1699 = vlaneseq
        %v1700 = vshrl.u32 %v1699, 7
        %v1701 = vsub.s32 %v1698, %v1700
        %v1702 = vrot.slane %v1674, %v1701
        %v1703 = vcombine.high %v1681, %v1681
        %v1704 = vcombine.high %v1688, %v1688
        %v1705 = vcombine.high %v1695, %v1695
        %v1706 = vcombine.high %v1702, %v1702
        %v1707 = vlaneseq
        %v1708 = vshrl.u32 %v1707, 7
        %v1709 = vsub.s32 0, %v1708
        %v1710 = vrot.slane %v1681, %v1709
        %v1711 = vlaneseq
        %v1712 = vshrl.u32 %v1711, 7
        %v1713 = vsub.s32 0, %v1712
        %v1714 = vrot.slane %v1695, %v1713
        %v1715 = vlaneseq
        %v1716 = vshrl.u32 %v1715, 7
        %v1717 = vsub.s32 0, %v1716
        %v1718 = vrot.slane %v1703, %v1717
        %v1719 = vlaneseq
        %v1720 = vshrl.u32 %v1719, 7
        %v1721 = vsub.s32 0, %v1720
        %v1722 = vrot.slane %v1705, %v1721
        %v1723 = vlaneseq
        %v1724 = vshrl.u32 %v1723, 7
        %v1725 = vsub.s32 0, %v1724
        %v1726 = vrot.slane %v1688, %v1725
        %v1727 = vlaneseq
        %v1728 = vshrl.u32 %v1727, 7
        %v1729 = vsub.s32 0, %v1728
        %v1730 = vrot.slane %v1702, %v1729
        %v1731 = vlaneseq
        %v1732 = vshrl.u32 %v1731, 7
        %v1733 = vsub.s32 0, %v1732
        %v1734 = vrot.slane %v1704, %v1733
        %v1735 = vlaneseq
        %v1736 = vshrl.u32 %v1735, 7
        %v1737 = vsub.s32 0, %v1736
        %v1738 = vrot.slane %v1706, %v1737
        %v1747 = vmul.f32 %v1710, %v760
        %v1748 = vmul.f32 %v1714, %v760
        %v1749 = vmul.f32 %v1718, %v760
        %v1750 = vmul.f32 %v1722, %v760
        %v1751 = vmul.f32 %v1726, %v760
        %v1752 = vmul.f32 %v1730, %v760
        %v1753 = vmul.f32 %v1734, %v760
        %v1754 = vmul.f32 %v1738, %v760
        %v1755 = vadd.f32 %v1649, %v1747
        %v1756 = vadd.f32 %v1650, %v1748
        %v1757 = vadd.f32 %v1651, %v1749
        %v1758 = vadd.f32 %v1652, %v1750
        %v1759 = vadd.f32 %v1653, %v1751
        %v1760 = vadd.f32 %v1654, %v1752
        %v1761 = vadd.f32 %v1655, %v1753
        %v1762 = vadd.f32 %v1656, %v1754
        %v1763 = vrot.slane %v1755, 4
        %v1764 = vmax.f32 %v1755, %v1763
        %v1765 = vrot.slane %v1764, 2
        %v1766 = vmax.f32 %v1764, %v1765
        %v1767 = vrot.slane %v1766, 1
        %v1768 = vmax.f32 %v1766, %v1767
        %v1769 = vrot.slane %v1756, 4
        %v1770 = vmax.f32 %v1756, %v1769
        %v1771 = vrot.slane %v1770, 2
        %v1772 = vmax.f32 %v1770, %v1771
        %v1773 = vrot.slane %v1772, 1
        %v1774 = vmax.f32 %v1772, %v1773
        %v1775 = vrot.slane %v1757, 4
        %v1776 = vmax.f32 %v1757, %v1775
        %v1777 = vrot.slane %v1776, 2
        %v1778 = vmax.f32 %v1776, %v1777
        %v1779 = vrot.slane %v1778, 1
        %v1780 = vmax.f32 %v1778, %v1779
        %v1781 = vrot.slane %v1758, 4
        %v1782 = vmax.f32 %v1758, %v1781
        %v1783 = vrot.slane %v1782, 2
        %v1784 = vmax.f32 %v1782, %v1783
        %v1785 = vrot.slane %v1784, 1
        %v1786 = vmax.f32 %v1784, %v1785
        %v1787 = vrot.slane %v1759, 4
        %v1788 = vmax.f32 %v1759, %v1787
        %v1789 = vrot.slane %v1788, 2
        %v1790 = vmax.f32 %v1788, %v1789
        %v1791 = vrot.slane %v1790, 1
        %v1792 = vmax.f32 %v1790, %v1791
        %v1793 = vrot.slane %v1760, 4
        %v1794 = vmax.f32 %v1760, %v1793
        %v1795 = vrot.slane %v1794, 2
        %v1796 = vmax.f32 %v1794, %v1795
        %v1797 = vrot.slane %v1796, 1
        %v1798 = vmax.f32 %v1796, %v1797
        %v1799 = vrot.slane %v1761, 4
        %v1800 = vmax.f32 %v1761, %v1799
        %v1801 = vrot.slane %v1800, 2
        %v1802 = vmax.f32 %v1800, %v1801
        %v1803 = vrot.slane %v1802, 1
        %v1804 = vmax.f32 %v1802, %v1803
        %v1805 = vrot.slane %v1762, 4
        %v1806 = vmax.f32 %v1762, %v1805
        %v1807 = vrot.slane %v1806, 2
        %v1808 = vmax.f32 %v1806, %v1807
        %v1809 = vrot.slane %v1808, 1
        %v1810 = vmax.f32 %v1808, %v1809
        %v1811 = vsub.f32 %v1755, %v1768
        %v1812 = vsub.f32 %v1756, %v1774
        %v1813 = vsub.f32 %v1757, %v1780
        %v1814 = vsub.f32 %v1758, %v1786
        %v1815 = vsub.f32 %v1759, %v1792
        %v1816 = vsub.f32 %v1760, %v1798
        %v1817 = vsub.f32 %v1761, %v1804
        %v1818 = vsub.f32 %v1762, %v1810
        %v1819 = vmul.f32 %v1811, 1.442695
        %v1820 = vpow.pop %v1819
        %v1821 = vmul.f32 %v1812, 1.442695
        %v1822 = vpow.pop %v1821
        %v1823 = vmul.f32 %v1813, 1.442695
        %v1824 = vpow.pop %v1823
        %v1825 = vmul.f32 %v1814, 1.442695
        %v1826 = vpow.pop %v1825
        %v1827 = vmul.f32 %v1815, 1.442695
        %v1828 = vpow.pop %v1827
        %v1829 = vmul.f32 %v1816, 1.442695
        %v1830 = vpow.pop %v1829
        %v1831 = vmul.f32 %v1817, 1.442695
        %v1832 = vpow.pop %v1831
        %v1833 = vmul.f32 %v1818, 1.442695
        %v1834 = vpow.pop %v1833
        %v1835 = vrot.slane %v1820, 4
        %v1836 = vadd.f32 %v1820, %v1835
        %v1837 = vrot.slane %v1836, 2
        %v1838 = vadd.f32 %v1836, %v1837
        %v1839 = vrot.slane %v1838, 1
        %v1840 = vadd.f32 %v1838, %v1839
        %v1841 = vrot.slane %v1822, 4
        %v1842 = vadd.f32 %v1822, %v1841
        %v1843 = vrot.slane %v1842, 2
        %v1844 = vadd.f32 %v1842, %v1843
        %v1845 = vrot.slane %v1844, 1
        %v1846 = vadd.f32 %v1844, %v1845
        %v1847 = vrot.slane %v1824, 4
        %v1848 = vadd.f32 %v1824, %v1847
        %v1849 = vrot.slane %v1848, 2
        %v1850 = vadd.f32 %v1848, %v1849
        %v1851 = vrot.slane %v1850, 1
        %v1852 = vadd.f32 %v1850, %v1851
        %v1853 = vrot.slane %v1826, 4
        %v1854 = vadd.f32 %v1826, %v1853
        %v1855 = vrot.slane %v1854, 2
        %v1856 = vadd.f32 %v1854, %v1855
        %v1857 = vrot.slane %v1856, 1
        %v1858 = vadd.f32 %v1856, %v1857
        %v1859 = vrot.slane %v1828, 4
        %v1860 = vadd.f32 %v1828, %v1859
        %v1861 = vrot.slane %v1860, 2
        %v1862 = vadd.f32 %v1860, %v1861
        %v1863 = vrot.slane %v1862, 1
        %v1864 = vadd.f32 %v1862, %v1863
        %v1865 = vrot.slane %v1830, 4
        %v1866 = vadd.f32 %v1830, %v1865
        %v1867 = vrot.slane %v1866, 2
        %v1868 = vadd.f32 %v1866, %v1867
        %v1869 = vrot.slane %v1868, 1
        %v1870 = vadd.f32 %v1868, %v1869
        %v1871 = vrot.slane %v1832, 4
        %v1872 = vadd.f32 %v1832, %v1871
        %v1873 = vrot.slane %v1872, 2
        %v1874 = vadd.f32 %v1872, %v1873
        %v1875 = vrot.slane %v1874, 1
        %v1876 = vadd.f32 %v1874, %v1875
        %v1877 = vrot.slane %v1834, 4
        %v1878 = vadd.f32 %v1834, %v1877
        %v1879 = vrot.slane %v1878, 2
        %v1880 = vadd.f32 %v1878, %v1879
        %v1881 = vrot.slane %v1880, 1
        %v1882 = vadd.f32 %v1880, %v1881
        %v1883 = vrcp.pop %v1840
        %v1884 = vrcp.pop %v1846
        %v1885 = vrcp.pop %v1852
        %v1886 = vrcp.pop %v1858
        %v1887 = vrcp.pop %v1864
        %v1888 = vrcp.pop %v1870
        %v1889 = vrcp.pop %v1876
        %v1890 = vrcp.pop %v1882
        %v1891 = vmul.f32 %v1820, %v1883
        %v1892 = vmul.f32 %v1822, %v1884
        %v1893 = vmul.f32 %v1824, %v1885
        %v1894 = vmul.f32 %v1826, %v1886
        %v1895 = vmul.f32 %v1828, %v1887
        %v1896 = vmul.f32 %v1830, %v1888
        %v1897 = vmul.f32 %v1832, %v1889
        %v1898 = vmul.f32 %v1834, %v1890
        %v1899 = vlaneseq
        %v1900 = vshrl.u32 %v1899, 7
        %v1901 = vsub.s32 0, %v1900
        %v1902 = vrot.slane %v1891, %v1901
        %v1903 = vlaneseq
        %v1904 = vshrl.u32 %v1903, 7
        %v1905 = vsub.s32 0, %v1904
        %v1906 = vrot.slane %v1892, %v1905
        %v1907 = vlaneseq
        %v1908 = vshrl.u32 %v1907, 7
        %v1909 = vsub.s32 0, %v1908
        %v1910 = vrot.slane %v1893, %v1909
        %v1911 = vlaneseq
        %v1912 = vshrl.u32 %v1911, 7
        %v1913 = vsub.s32 0, %v1912
        %v1914 = vrot.slane %v1894, %v1913
        %v1915 = vlaneseq
        %v1916 = vshrl.u32 %v1915, 7
        %v1917 = vsub.s32 0, %v1916
        %v1918 = vrot.slane %v1895, %v1917
        %v1919 = vlaneseq
        %v1920 = vshrl.u32 %v1919, 7
        %v1921 = vsub.s32 0, %v1920
        %v1922 = vrot.slane %v1896, %v1921
        %v1923 = vlaneseq
        %v1924 = vshrl.u32 %v1923, 7
        %v1925 = vsub.s32 0, %v1924
        %v1926 = vrot.slane %v1897, %v1925
        %v1927 = vlaneseq
        %v1928 = vshrl.u32 %v1927, 7
        %v1929 = vsub.s32 0, %v1928
        %v1930 = vrot.slane %v1898, %v1929
        %v1931 = vmul.f32 %v1902, %v797
        %v1932 = vmul.f32 %v1906, %v797
        %v1933 = vmul.f32 %v1910, %v797
        %v1934 = vmul.f32 %v1914, %v797
        %v1935 = vmul.f32 %v1918, %v797
        %v1936 = vmul.f32 %v1922, %v797
        %v1937 = vmul.f32 %v1926, %v797
        %v1938 = vmul.f32 %v1930, %v797
        %v1939 = vlaneseq
        %v1940 = vshrl.u32 %v1939, 7
        %v1941 = vsub.s32 1, %v1940
        %v1942 = vrot.slane %v1891, %v1941
        %v1943 = vlaneseq
        %v1944 = vshrl.u32 %v1943, 7
        %v1945 = vsub.s32 1, %v1944
        %v1946 = vrot.slane %v1892, %v1945
        %v1947 = vlaneseq
        %v1948 = vshrl.u32 %v1947, 7
        %v1949 = vsub.s32 1, %v1948
        %v1950 = vrot.slane %v1893, %v1949
        %v1951 = vlaneseq
        %v1952 = vshrl.u32 %v1951, 7
        %v1953 = vsub.s32 1, %v1952
        %v1954 = vrot.slane %v1894, %v1953
        %v1955 = vlaneseq
        %v1956 = vshrl.u32 %v1955, 7
        %v1957 = vsub.s32 1, %v1956
        %v1958 = vrot.slane %v1895, %v1957
        %v1959 = vlaneseq
        %v1960 = vshrl.u32 %v1959, 7
        %v1961 = vsub.s32 1, %v1960
        %v1962 = vrot.slane %v1896, %v1961
        %v1963 = vlaneseq
        %v1964 = vshrl.u32 %v1963, 7
        %v1965 = vsub.s32 1, %v1964
        %v1966 = vrot.slane %v1897, %v1965
        %v1967 = vlaneseq
        %v1968 = vshrl.u32 %v1967, 7
        %v1969 = vsub.s32 1, %v1968
        %v1970 = vrot.slane %v1898, %v1969
        %v1971 = vmul.f32 %v1942, %v800
        %v1972 = vmul.f32 %v1946, %v800
        %v1973 = vmul.f32 %v1950, %v800
        %v1974 = vmul.f32 %v1954, %v800
        %v1975 = vmul.f32 %v1958, %v800
        %v1976 = vmul.f32 %v1962, %v800
        %v1977 = vmul.f32 %v1966, %v800
        %v1978 = vmul.f32 %v1970, %v800
        %v1979 = vadd.f32 %v1931, %v1971
        %v1980 = vadd.f32 %v1932, %v1972
        %v1981 = vadd.f32 %v1933, %v1973
        %v1982 = vadd.f32 %v1934, %v1974
        %v1983 = vadd.f32 %v1935, %v1975
        %v1984 = vadd.f32 %v1936, %v1976
        %v1985 = vadd.f32 %v1937, %v1977
        %v1986 = vadd.f32 %v1938, %v1978
        %v1987 = vlaneseq
        %v1988 = vshrl.u32 %v1987, 7
        %v1989 = vsub.s32 2, %v1988
        %v1990 = vrot.slane %v1891, %v1989
        %v1991 = vlaneseq
        %v1992 = vshrl.u32 %v1991, 7
        %v1993 = vsub.s32 2, %v1992
        %v1994 = vrot.slane %v1892, %v1993
        %v1995 = vlaneseq
        %v1996 = vshrl.u32 %v1995, 7
        %v1997 = vsub.s32 2, %v1996
        %v1998 = vrot.slane %v1893, %v1997
        %v1999 = vlaneseq
        %v2000 = vshrl.u32 %v1999, 7
        %v2001 = vsub.s32 2, %v2000
        %v2002 = vrot.slane %v1894, %v2001
        %v2003 = vlaneseq
        %v2004 = vshrl.u32 %v2003, 7
        %v2005 = vsub.s32 2, %v2004
        %v2006 = vrot.slane %v1895, %v2005
        %v2007 = vlaneseq
        %v2008 = vshrl.u32 %v2007, 7
        %v2009 = vsub.s32 2, %v2008
        %v2010 = vrot.slane %v1896, %v2009
        %v2011 = vlaneseq
        %v2012 = vshrl.u32 %v2011, 7
        %v2013 = vsub.s32 2, %v2012
        %v2014 = vrot.slane %v1897, %v2013
        %v2015 = vlaneseq
        %v2016 = vshrl.u32 %v2015, 7
        %v2017 = vsub.s32 2, %v2016
        %v2018 = vrot.slane %v1898, %v2017
        %v2019 = vmul.f32 %v1990, %v805
        %v2020 = vmul.f32 %v1994, %v805
        %v2021 = vmul.f32 %v1998, %v805
        %v2022 = vmul.f32 %v2002, %v805
        %v2023 = vmul.f32 %v2006, %v805
        %v2024 = vmul.f32 %v2010, %v805
        %v2025 = vmul.f32 %v2014, %v805
        %v2026 = vmul.f32 %v2018, %v805
        %v2027 = vadd.f32 %v1979, %v2019
        %v2028 = vadd.f32 %v1980, %v2020
        %v2029 = vadd.f32 %v1981, %v2021
        %v2030 = vadd.f32 %v1982, %v2022
        %v2031 = vadd.f32 %v1983, %v2023
        %v2032 = vadd.f32 %v1984, %v2024
        %v2033 = vadd.f32 %v1985, %v2025
        %v2034 = vadd.f32 %v1986, %v2026
        %v2035 = vlaneseq
        %v2036 = vshrl.u32 %v2035, 7
        %v2037 = vsub.s32 3, %v2036
        %v2038 = vrot.slane %v1891, %v2037
        %v2039 = vlaneseq
        %v2040 = vshrl.u32 %v2039, 7
        %v2041 = vsub.s32 3, %v2040
        %v2042 = vrot.slane %v1892, %v2041
        %v2043 = vlaneseq
        %v2044 = vshrl.u32 %v2043, 7
        %v2045 = vsub.s32 3, %v2044
        %v2046 = vrot.slane %v1893, %v2045
        %v2047 = vlaneseq
        %v2048 = vshrl.u32 %v2047, 7
        %v2049 = vsub.s32 3, %v2048
        %v2050 = vrot.slane %v1894, %v2049
        %v2051 = vlaneseq
        %v2052 = vshrl.u32 %v2051, 7
        %v2053 = vsub.s32 3, %v2052
        %v2054 = vrot.slane %v1895, %v2053
        %v2055 = vlaneseq
        %v2056 = vshrl.u32 %v2055, 7
        %v2057 = vsub.s32 3, %v2056
        %v2058 = vrot.slane %v1896, %v2057
        %v2059 = vlaneseq
        %v2060 = vshrl.u32 %v2059, 7
        %v2061 = vsub.s32 3, %v2060
        %v2062 = vrot.slane %v1897, %v2061
        %v2063 = vlaneseq
        %v2064 = vshrl.u32 %v2063, 7
        %v2065 = vsub.s32 3, %v2064
        %v2066 = vrot.slane %v1898, %v2065
        %v2067 = vmul.f32 %v2038, %v808
        %v2068 = vmul.f32 %v2042, %v808
        %v2069 = vmul.f32 %v2046, %v808
        %v2070 = vmul.f32 %v2050, %v808
        %v2071 = vmul.f32 %v2054, %v808
        %v2072 = vmul.f32 %v2058, %v808
        %v2073 = vmul.f32 %v2062, %v808
        %v2074 = vmul.f32 %v2066, %v808
        %v2075 = vadd.f32 %v2027, %v2067
        %v2076 = vadd.f32 %v2028, %v2068
        %v2077 = vadd.f32 %v2029, %v2069
        %v2078 = vadd.f32 %v2030, %v2070
        %v2079 = vadd.f32 %v2031, %v2071
        %v2080 = vadd.f32 %v2032, %v2072
        %v2081 = vadd.f32 %v2033, %v2073
        %v2082 = vadd.f32 %v2034, %v2074
        %v2083 = vlaneseq
        %v2084 = vshrl.u32 %v2083, 7
        %v2085 = vsub.s32 4, %v2084
        %v2086 = vrot.slane %v1891, %v2085
        %v2087 = vlaneseq
        %v2088 = vshrl.u32 %v2087, 7
        %v2089 = vsub.s32 4, %v2088
        %v2090 = vrot.slane %v1892, %v2089
        %v2091 = vlaneseq
        %v2092 = vshrl.u32 %v2091, 7
        %v2093 = vsub.s32 4, %v2092
        %v2094 = vrot.slane %v1893, %v2093
        %v2095 = vlaneseq
        %v2096 = vshrl.u32 %v2095, 7
        %v2097 = vsub.s32 4, %v2096
        %v2098 = vrot.slane %v1894, %v2097
        %v2099 = vlaneseq
        %v2100 = vshrl.u32 %v2099, 7
        %v2101 = vsub.s32 4, %v2100
        %v2102 = vrot.slane %v1895, %v2101
        %v2103 = vlaneseq
        %v2104 = vshrl.u32 %v2103, 7
        %v2105 = vsub.s32 4, %v2104
        %v2106 = vrot.slane %v1896, %v2105
        %v2107 = vlaneseq
        %v2108 = vshrl.u32 %v2107, 7
        %v2109 = vsub.s32 4, %v2108
        %v2110 = vrot.slane %v1897, %v2109
        %v2111 = vlaneseq
        %v2112 = vshrl.u32 %v2111, 7
        %v2113 = vsub.s32 4, %v2112
        %v2114 = vrot.slane %v1898, %v2113
        %v2115 = vmul.f32 %v2086, %v813
        %v2116 = vmul.f32 %v2090, %v813
        %v2117 = vmul.f32 %v2094, %v813
        %v2118 = vmul.f32 %v2098, %v813
        %v2119 = vmul.f32 %v2102, %v813
        %v2120 = vmul.f32 %v2106, %v813
        %v2121 = vmul.f32 %v2110, %v813
        %v2122 = vmul.f32 %v2114, %v813
        %v2123 = vadd.f32 %v2075, %v2115
        %v2124 = vadd.f32 %v2076, %v2116
        %v2125 = vadd.f32 %v2077, %v2117
        %v2126 = vadd.f32 %v2078, %v2118
        %v2127 = vadd.f32 %v2079, %v2119
        %v2128 = vadd.f32 %v2080, %v2120
        %v2129 = vadd.f32 %v2081, %v2121
        %v2130 = vadd.f32 %v2082, %v2122
        %v2131 = vlaneseq
        %v2132 = vshrl.u32 %v2131, 7
        %v2133 = vsub.s32 5, %v2132
        %v2134 = vrot.slane %v1891, %v2133
        %v2135 = vlaneseq
        %v2136 = vshrl.u32 %v2135, 7
        %v2137 = vsub.s32 5, %v2136
        %v2138 = vrot.slane %v1892, %v2137
        %v2139 = vlaneseq
        %v2140 = vshrl.u32 %v2139, 7
        %v2141 = vsub.s32 5, %v2140
        %v2142 = vrot.slane %v1893, %v2141
        %v2143 = vlaneseq
        %v2144 = vshrl.u32 %v2143, 7
        %v2145 = vsub.s32 5, %v2144
        %v2146 = vrot.slane %v1894, %v2145
        %v2147 = vlaneseq
        %v2148 = vshrl.u32 %v2147, 7
        %v2149 = vsub.s32 5, %v2148
        %v2150 = vrot.slane %v1895, %v2149
        %v2151 = vlaneseq
        %v2152 = vshrl.u32 %v2151, 7
        %v2153 = vsub.s32 5, %v2152
        %v2154 = vrot.slane %v1896, %v2153
        %v2155 = vlaneseq
        %v2156 = vshrl.u32 %v2155, 7
        %v2157 = vsub.s32 5, %v2156
        %v2158 = vrot.slane %v1897, %v2157
        %v2159 = vlaneseq
        %v2160 = vshrl.u32 %v2159, 7
        %v2161 = vsub.s32 5, %v2160
        %v2162 = vrot.slane %v1898, %v2161
        %v2163 = vmul.f32 %v2134, %v816
        %v2164 = vmul.f32 %v2138, %v816
        %v2165 = vmul.f32 %v2142, %v816
        %v2166 = vmul.f32 %v2146, %v816
        %v2167 = vmul.f32 %v2150, %v816
        %v2168 = vmul.f32 %v2154, %v816
        %v2169 = vmul.f32 %v2158, %v816
        %v2170 = vmul.f32 %v2162, %v816
        %v2171 = vadd.f32 %v2123, %v2163
        %v2172 = vadd.f32 %v2124, %v2164
        %v2173 = vadd.f32 %v2125, %v2165
        %v2174 = vadd.f32 %v2126, %v2166
        %v2175 = vadd.f32 %v2127, %v2167
        %v2176 = vadd.f32 %v2128, %v2168
        %v2177 = vadd.f32 %v2129, %v2169
        %v2178 = vadd.f32 %v2130, %v2170
        %v2179 = vlaneseq
        %v2180 = vshrl.u32 %v2179, 7
        %v2181 = vsub.s32 6, %v2180
        %v2182 = vrot.slane %v1891, %v2181
        %v2183 = vlaneseq
        %v2184 = vshrl.u32 %v2183, 7
        %v2185 = vsub.s32 6, %v2184
        %v2186 = vrot.slane %v1892, %v2185
        %v2187 = vlaneseq
        %v2188 = vshrl.u32 %v2187, 7
        %v2189 = vsub.s32 6, %v2188
        %v2190 = vrot.slane %v1893, %v2189
        %v2191 = vlaneseq
        %v2192 = vshrl.u32 %v2191, 7
        %v2193 = vsub.s32 6, %v2192
        %v2194 = vrot.slane %v1894, %v2193
        %v2195 = vlaneseq
        %v2196 = vshrl.u32 %v2195, 7
        %v2197 = vsub.s32 6, %v2196
        %v2198 = vrot.slane %v1895, %v2197
        %v2199 = vlaneseq
        %v2200 = vshrl.u32 %v2199, 7
        %v2201 = vsub.s32 6, %v2200
        %v2202 = vrot.slane %v1896, %v2201
        %v2203 = vlaneseq
        %v2204 = vshrl.u32 %v2203, 7
        %v2205 = vsub.s32 6, %v2204
        %v2206 = vrot.slane %v1897, %v2205
        %v2207 = vlaneseq
        %v2208 = vshrl.u32 %v2207, 7
        %v2209 = vsub.s32 6, %v2208
        %v2210 = vrot.slane %v1898, %v2209
        %v2211 = vmul.f32 %v2182, %v821
        %v2212 = vmul.f32 %v2186, %v821
        %v2213 = vmul.f32 %v2190, %v821
        %v2214 = vmul.f32 %v2194, %v821
        %v2215 = vmul.f32 %v2198, %v821
        %v2216 = vmul.f32 %v2202, %v821
        %v2217 = vmul.f32 %v2206, %v821
        %v2218 = vmul.f32 %v2210, %v821
        %v2219 = vadd.f32 %v2171, %v2211
        %v2220 = vadd.f32 %v2172, %v2212
        %v2221 = vadd.f32 %v2173, %v2213
        %v2222 = vadd.f32 %v2174, %v2214
        %v2223 = vadd.f32 %v2175, %v2215
        %v2224 = vadd.f32 %v2176, %v2216
        %v2225 = vadd.f32 %v2177, %v2217
        %v2226 = vadd.f32 %v2178, %v2218
        %v2227 = vlaneseq
        %v2228 = vshrl.u32 %v2227, 7
        %v2229 = vsub.s32 7, %v2228
        %v2230 = vrot.slane %v1891, %v2229
        %v2231 = vlaneseq
        %v2232 = vshrl.u32 %v2231, 7
        %v2233 = vsub.s32 7, %v2232
        %v2234 = vrot.slane %v1892, %v2233
        %v2235 = vlaneseq
        %v2236 = vshrl.u32 %v2235, 7
        %v2237 = vsub.s32 7, %v2236
        %v2238 = vrot.slane %v1893, %v2237
        %v2239 = vlaneseq
        %v2240 = vshrl.u32 %v2239, 7
        %v2241 = vsub.s32 7, %v2240
        %v2242 = vrot.slane %v1894, %v2241
        %v2243 = vlaneseq
        %v2244 = vshrl.u32 %v2243, 7
        %v2245 = vsub.s32 7, %v2244
        %v2246 = vrot.slane %v1895, %v2245
        %v2247 = vlaneseq
        %v2248 = vshrl.u32 %v2247, 7
        %v2249 = vsub.s32 7, %v2248
        %v2250 = vrot.slane %v1896, %v2249
        %v2251 = vlaneseq
        %v2252 = vshrl.u32 %v2251, 7
        %v2253 = vsub.s32 7, %v2252
        %v2254 = vrot.slane %v1897, %v2253
        %v2255 = vlaneseq
        %v2256 = vshrl.u32 %v2255, 7
        %v2257 = vsub.s32 7, %v2256
        %v2258 = vrot.slane %v1898, %v2257
        %v2259 = vmul.f32 %v2230, %v824
        %v2260 = vmul.f32 %v2234, %v824
        %v2261 = vmul.f32 %v2238, %v824
        %v2262 = vmul.f32 %v2242, %v824
        %v2263 = vmul.f32 %v2246, %v824
        %v2264 = vmul.f32 %v2250, %v824
        %v2265 = vmul.f32 %v2254, %v824
        %v2266 = vmul.f32 %v2258, %v824
        %v2267 = vadd.f32 %v2219, %v2259
        %v2268 = vadd.f32 %v2220, %v2260
        %v2269 = vadd.f32 %v2221, %v2261
        %v2270 = vadd.f32 %v2222, %v2262
        %v2271 = vadd.f32 %v2223, %v2263
        %v2272 = vadd.f32 %v2224, %v2264
        %v2273 = vadd.f32 %v2225, %v2265
        %v2274 = vadd.f32 %v2226, %v2266
        %v2276 = vcombine.high %v701, %v701
        %v2278 = vunpack.c.l.s4 1966171168
        %v2279 = vunpack.c.0.s8 %v2278
        %v2280 = vlaneseq
        %v2281 = vshrl.u32 %v2280, 7
        %v2282 = vsub.s32 %v2279, %v2281
        %v2283 = vrot.slane %v701, %v2282
        %v2285 = vunpack.c.l.s4 1966171168
        %v2286 = vunpack.c.0.s8 %v2285
        %v2287 = vlaneseq
        %v2288 = vshrl.u32 %v2287, 7
        %v2289 = vsub.s32 %v2286, %v2288
        %v2290 = vrot.slane %v2276, %v2289
        %v2291 = vcombine.high %v2283, %v2283
        %v2292 = vcombine.high %v2290, %v2290
        %v2294 = vunpack.c.l.s4 1966171168
        %v2295 = vunpack.c.0.s8 %v2294
        %v2296 = vlaneseq
        %v2297 = vshrl.u32 %v2296, 7
        %v2298 = vsub.s32 %v2295, %v2297
        %v2299 = vrot.slane %v2283, %v2298
        %v2301 = vunpack.c.l.s4 1966171168
        %v2302 = vunpack.c.0.s8 %v2301
        %v2303 = vlaneseq
        %v2304 = vshrl.u32 %v2303, 7
        %v2305 = vsub.s32 %v2302, %v2304
        %v2306 = vrot.slane %v2290, %v2305
        %v2308 = vunpack.c.l.s4 1966171168
        %v2309 = vunpack.c.0.s8 %v2308
        %v2310 = vlaneseq
        %v2311 = vshrl.u32 %v2310, 7
        %v2312 = vsub.s32 %v2309, %v2311
        %v2313 = vrot.slane %v2291, %v2312
        %v2315 = vunpack.c.l.s4 1966171168
        %v2316 = vunpack.c.0.s8 %v2315
        %v2317 = vlaneseq
        %v2318 = vshrl.u32 %v2317, 7
        %v2319 = vsub.s32 %v2316, %v2318
        %v2320 = vrot.slane %v2292, %v2319
        %v2321 = vcombine.high %v2299, %v2299
        %v2322 = vcombine.high %v2306, %v2306
        %v2323 = vcombine.high %v2313, %v2313
        %v2324 = vcombine.high %v2320, %v2320
        %v2325 = vlaneseq
        %v2326 = vshrl.u32 %v2325, 7
        %v2327 = vsub.s32 0, %v2326
        %v2328 = vrot.slane %v2299, %v2327
        %v2329 = vlaneseq
        %v2330 = vshrl.u32 %v2329, 7
        %v2331 = vsub.s32 0, %v2330
        %v2332 = vrot.slane %v2313, %v2331
        %v2333 = vlaneseq
        %v2334 = vshrl.u32 %v2333, 7
        %v2335 = vsub.s32 0, %v2334
        %v2336 = vrot.slane %v2321, %v2335
        %v2337 = vlaneseq
        %v2338 = vshrl.u32 %v2337, 7
        %v2339 = vsub.s32 0, %v2338
        %v2340 = vrot.slane %v2323, %v2339
        %v2341 = vlaneseq
        %v2342 = vshrl.u32 %v2341, 7
        %v2343 = vsub.s32 0, %v2342
        %v2344 = vrot.slane %v2306, %v2343
        %v2345 = vlaneseq
        %v2346 = vshrl.u32 %v2345, 7
        %v2347 = vsub.s32 0, %v2346
        %v2348 = vrot.slane %v2320, %v2347
        %v2349 = vlaneseq
        %v2350 = vshrl.u32 %v2349, 7
        %v2351 = vsub.s32 0, %v2350
        %v2352 = vrot.slane %v2322, %v2351
        %v2353 = vlaneseq
        %v2354 = vshrl.u32 %v2353, 7
        %v2355 = vsub.s32 0, %v2354
        %v2356 = vrot.slane %v2324, %v2355
        %v2365 = vmul.f32 %v2328, %v765
        %v2366 = vmul.f32 %v2332, %v765
        %v2367 = vmul.f32 %v2336, %v765
        %v2368 = vmul.f32 %v2340, %v765
        %v2369 = vmul.f32 %v2344, %v765
        %v2370 = vmul.f32 %v2348, %v765
        %v2371 = vmul.f32 %v2352, %v765
        %v2372 = vmul.f32 %v2356, %v765
        %v2374 = vcombine.high %v704, %v704
        %v2376 = vunpack.c.l.s4 1966171168
        %v2377 = vunpack.c.0.s8 %v2376
        %v2378 = vlaneseq
        %v2379 = vshrl.u32 %v2378, 7
        %v2380 = vsub.s32 %v2377, %v2379
        %v2381 = vrot.slane %v704, %v2380
        %v2383 = vunpack.c.l.s4 1966171168
        %v2384 = vunpack.c.0.s8 %v2383
        %v2385 = vlaneseq
        %v2386 = vshrl.u32 %v2385, 7
        %v2387 = vsub.s32 %v2384, %v2386
        %v2388 = vrot.slane %v2374, %v2387
        %v2389 = vcombine.high %v2381, %v2381
        %v2390 = vcombine.high %v2388, %v2388
        %v2392 = vunpack.c.l.s4 1966171168
        %v2393 = vunpack.c.0.s8 %v2392
        %v2394 = vlaneseq
        %v2395 = vshrl.u32 %v2394, 7
        %v2396 = vsub.s32 %v2393, %v2395
        %v2397 = vrot.slane %v2381, %v2396
        %v2399 = vunpack.c.l.s4 1966171168
        %v2400 = vunpack.c.0.s8 %v2399
        %v2401 = vlaneseq
        %v2402 = vshrl.u32 %v2401, 7
        %v2403 = vsub.s32 %v2400, %v2402
        %v2404 = vrot.slane %v2388, %v2403
        %v2406 = vunpack.c.l.s4 1966171168
        %v2407 = vunpack.c.0.s8 %v2406
        %v2408 = vlaneseq
        %v2409 = vshrl.u32 %v2408, 7
        %v2410 = vsub.s32 %v2407, %v2409
        %v2411 = vrot.slane %v2389, %v2410
        %v2413 = vunpack.c.l.s4 1966171168
        %v2414 = vunpack.c.0.s8 %v2413
        %v2415 = vlaneseq
        %v2416 = vshrl.u32 %v2415, 7
        %v2417 = vsub.s32 %v2414, %v2416
        %v2418 = vrot.slane %v2390, %v2417
        %v2419 = vcombine.high %v2397, %v2397
        %v2420 = vcombine.high %v2404, %v2404
        %v2421 = vcombine.high %v2411, %v2411
        %v2422 = vcombine.high %v2418, %v2418
        %v2423 = vlaneseq
        %v2424 = vshrl.u32 %v2423, 7
        %v2425 = vsub.s32 0, %v2424
        %v2426 = vrot.slane %v2397, %v2425
        %v2427 = vlaneseq
        %v2428 = vshrl.u32 %v2427, 7
        %v2429 = vsub.s32 0, %v2428
        %v2430 = vrot.slane %v2411, %v2429
        %v2431 = vlaneseq
        %v2432 = vshrl.u32 %v2431, 7
        %v2433 = vsub.s32 0, %v2432
        %v2434 = vrot.slane %v2419, %v2433
        %v2435 = vlaneseq
        %v2436 = vshrl.u32 %v2435, 7
        %v2437 = vsub.s32 0, %v2436
        %v2438 = vrot.slane %v2421, %v2437
        %v2439 = vlaneseq
        %v2440 = vshrl.u32 %v2439, 7
        %v2441 = vsub.s32 0, %v2440
        %v2442 = vrot.slane %v2404, %v2441
        %v2443 = vlaneseq
        %v2444 = vshrl.u32 %v2443, 7
        %v2445 = vsub.s32 0, %v2444
        %v2446 = vrot.slane %v2418, %v2445
        %v2447 = vlaneseq
        %v2448 = vshrl.u32 %v2447, 7
        %v2449 = vsub.s32 0, %v2448
        %v2450 = vrot.slane %v2420, %v2449
        %v2451 = vlaneseq
        %v2452 = vshrl.u32 %v2451, 7
        %v2453 = vsub.s32 0, %v2452
        %v2454 = vrot.slane %v2422, %v2453
        %v2463 = vmul.f32 %v2426, %v768
        %v2464 = vmul.f32 %v2430, %v768
        %v2465 = vmul.f32 %v2434, %v768
        %v2466 = vmul.f32 %v2438, %v768
        %v2467 = vmul.f32 %v2442, %v768
        %v2468 = vmul.f32 %v2446, %v768
        %v2469 = vmul.f32 %v2450, %v768
        %v2470 = vmul.f32 %v2454, %v768
        %v2471 = vadd.f32 %v2365, %v2463
        %v2472 = vadd.f32 %v2366, %v2464
        %v2473 = vadd.f32 %v2367, %v2465
        %v2474 = vadd.f32 %v2368, %v2466
        %v2475 = vadd.f32 %v2369, %v2467
        %v2476 = vadd.f32 %v2370, %v2468
        %v2477 = vadd.f32 %v2371, %v2469
        %v2478 = vadd.f32 %v2372, %v2470
        %v2480 = vcombine.high %v709, %v709
        %v2482 = vunpack.c.l.s4 1966171168
        %v2483 = vunpack.c.0.s8 %v2482
        %v2484 = vlaneseq
        %v2485 = vshrl.u32 %v2484, 7
        %v2486 = vsub.s32 %v2483, %v2485
        %v2487 = vrot.slane %v709, %v2486
        %v2489 = vunpack.c.l.s4 1966171168
        %v2490 = vunpack.c.0.s8 %v2489
        %v2491 = vlaneseq
        %v2492 = vshrl.u32 %v2491, 7
        %v2493 = vsub.s32 %v2490, %v2492
        %v2494 = vrot.slane %v2480, %v2493
        %v2495 = vcombine.high %v2487, %v2487
        %v2496 = vcombine.high %v2494, %v2494
        %v2498 = vunpack.c.l.s4 1966171168
        %v2499 = vunpack.c.0.s8 %v2498
        %v2500 = vlaneseq
        %v2501 = vshrl.u32 %v2500, 7
        %v2502 = vsub.s32 %v2499, %v2501
        %v2503 = vrot.slane %v2487, %v2502
        %v2505 = vunpack.c.l.s4 1966171168
        %v2506 = vunpack.c.0.s8 %v2505
        %v2507 = vlaneseq
        %v2508 = vshrl.u32 %v2507, 7
        %v2509 = vsub.s32 %v2506, %v2508
        %v2510 = vrot.slane %v2494, %v2509
        %v2512 = vunpack.c.l.s4 1966171168
        %v2513 = vunpack.c.0.s8 %v2512
        %v2514 = vlaneseq
        %v2515 = vshrl.u32 %v2514, 7
        %v2516 = vsub.s32 %v2513, %v2515
        %v2517 = vrot.slane %v2495, %v2516
        %v2519 = vunpack.c.l.s4 1966171168
        %v2520 = vunpack.c.0.s8 %v2519
        %v2521 = vlaneseq
        %v2522 = vshrl.u32 %v2521, 7
        %v2523 = vsub.s32 %v2520, %v2522
        %v2524 = vrot.slane %v2496, %v2523
        %v2525 = vcombine.high %v2503, %v2503
        %v2526 = vcombine.high %v2510, %v2510
        %v2527 = vcombine.high %v2517, %v2517
        %v2528 = vcombine.high %v2524, %v2524
        %v2529 = vlaneseq
        %v2530 = vshrl.u32 %v2529, 7
        %v2531 = vsub.s32 0, %v2530
        %v2532 = vrot.slane %v2503, %v2531
        %v2533 = vlaneseq
        %v2534 = vshrl.u32 %v2533, 7
        %v2535 = vsub.s32 0, %v2534
        %v2536 = vrot.slane %v2517, %v2535
        %v2537 = vlaneseq
        %v2538 = vshrl.u32 %v2537, 7
        %v2539 = vsub.s32 0, %v2538
        %v2540 = vrot.slane %v2525, %v2539
        %v2541 = vlaneseq
        %v2542 = vshrl.u32 %v2541, 7
        %v2543 = vsub.s32 0, %v2542
        %v2544 = vrot.slane %v2527, %v2543
        %v2545 = vlaneseq
        %v2546 = vshrl.u32 %v2545, 7
        %v2547 = vsub.s32 0, %v2546
        %v2548 = vrot.slane %v2510, %v2547
        %v2549 = vlaneseq
        %v2550 = vshrl.u32 %v2549, 7
        %v2551 = vsub.s32 0, %v2550
        %v2552 = vrot.slane %v2524, %v2551
        %v2553 = vlaneseq
        %v2554 = vshrl.u32 %v2553, 7
        %v2555 = vsub.s32 0, %v2554
        %v2556 = vrot.slane %v2526, %v2555
        %v2557 = vlaneseq
        %v2558 = vshrl.u32 %v2557, 7
        %v2559 = vsub.s32 0, %v2558
        %v2560 = vrot.slane %v2528, %v2559
        %v2569 = vmul.f32 %v2532, %v773
        %v2570 = vmul.f32 %v2536, %v773
        %v2571 = vmul.f32 %v2540, %v773
        %v2572 = vmul.f32 %v2544, %v773
        %v2573 = vmul.f32 %v2548, %v773
        %v2574 = vmul.f32 %v2552, %v773
        %v2575 = vmul.f32 %v2556, %v773
        %v2576 = vmul.f32 %v2560, %v773
        %v2577 = vadd.f32 %v2471, %v2569
        %v2578 = vadd.f32 %v2472, %v2570
        %v2579 = vadd.f32 %v2473, %v2571
        %v2580 = vadd.f32 %v2474, %v2572
        %v2581 = vadd.f32 %v2475, %v2573
        %v2582 = vadd.f32 %v2476, %v2574
        %v2583 = vadd.f32 %v2477, %v2575
        %v2584 = vadd.f32 %v2478, %v2576
        %v2586 = vcombine.high %v712, %v712
        %v2588 = vunpack.c.l.s4 1966171168
        %v2589 = vunpack.c.0.s8 %v2588
        %v2590 = vlaneseq
        %v2591 = vshrl.u32 %v2590, 7
        %v2592 = vsub.s32 %v2589, %v2591
        %v2593 = vrot.slane %v712, %v2592
        %v2595 = vunpack.c.l.s4 1966171168
        %v2596 = vunpack.c.0.s8 %v2595
        %v2597 = vlaneseq
        %v2598 = vshrl.u32 %v2597, 7
        %v2599 = vsub.s32 %v2596, %v2598
        %v2600 = vrot.slane %v2586, %v2599
        %v2601 = vcombine.high %v2593, %v2593
        %v2602 = vcombine.high %v2600, %v2600
        %v2604 = vunpack.c.l.s4 1966171168
        %v2605 = vunpack.c.0.s8 %v2604
        %v2606 = vlaneseq
        %v2607 = vshrl.u32 %v2606, 7
        %v2608 = vsub.s32 %v2605, %v2607
        %v2609 = vrot.slane %v2593, %v2608
        %v2611 = vunpack.c.l.s4 1966171168
        %v2612 = vunpack.c.0.s8 %v2611
        %v2613 = vlaneseq
        %v2614 = vshrl.u32 %v2613, 7
        %v2615 = vsub.s32 %v2612, %v2614
        %v2616 = vrot.slane %v2600, %v2615
        %v2618 = vunpack.c.l.s4 1966171168
        %v2619 = vunpack.c.0.s8 %v2618
        %v2620 = vlaneseq
        %v2621 = vshrl.u32 %v2620, 7
        %v2622 = vsub.s32 %v2619, %v2621
        %v2623 = vrot.slane %v2601, %v2622
        %v2625 = vunpack.c.l.s4 1966171168
        %v2626 = vunpack.c.0.s8 %v2625
        %v2627 = vlaneseq
        %v2628 = vshrl.u32 %v2627, 7
        %v2629 = vsub.s32 %v2626, %v2628
        %v2630 = vrot.slane %v2602, %v2629
        %v2631 = vcombine.high %v2609, %v2609
        %v2632 = vcombine.high %v2616, %v2616
        %v2633 = vcombine.high %v2623, %v2623
        %v2634 = vcombine.high %v2630, %v2630
        %v2635 = vlaneseq
        %v2636 = vshrl.u32 %v2635, 7
        %v2637 = vsub.s32 0, %v2636
        %v2638 = vrot.slane %v2609, %v2637
        %v2639 = vlaneseq
        %v2640 = vshrl.u32 %v2639, 7
        %v2641 = vsub.s32 0, %v2640
        %v2642 = vrot.slane %v2623, %v2641
        %v2643 = vlaneseq
        %v2644 = vshrl.u32 %v2643, 7
        %v2645 = vsub.s32 0, %v2644
        %v2646 = vrot.slane %v2631, %v2645
        %v2647 = vlaneseq
        %v2648 = vshrl.u32 %v2647, 7
        %v2649 = vsub.s32 0, %v2648
        %v2650 = vrot.slane %v2633, %v2649
        %v2651 = vlaneseq
        %v2652 = vshrl.u32 %v2651, 7
        %v2653 = vsub.s32 0, %v2652
        %v2654 = vrot.slane %v2616, %v2653
        %v2655 = vlaneseq
        %v2656 = vshrl.u32 %v2655, 7
        %v2657 = vsub.s32 0, %v2656
        %v2658 = vrot.slane %v2630, %v2657
        %v2659 = vlaneseq
        %v2660 = vshrl.u32 %v2659, 7
        %v2661 = vsub.s32 0, %v2660
        %v2662 = vrot.slane %v2632, %v2661
        %v2663 = vlaneseq
        %v2664 = vshrl.u32 %v2663, 7
        %v2665 = vsub.s32 0, %v2664
        %v2666 = vrot.slane %v2634, %v2665
        %v2675 = vmul.f32 %v2638, %v776
        %v2676 = vmul.f32 %v2642, %v776
        %v2677 = vmul.f32 %v2646, %v776
        %v2678 = vmul.f32 %v2650, %v776
        %v2679 = vmul.f32 %v2654, %v776
        %v2680 = vmul.f32 %v2658, %v776
        %v2681 = vmul.f32 %v2662, %v776
        %v2682 = vmul.f32 %v2666, %v776
        %v2683 = vadd.f32 %v2577, %v2675
        %v2684 = vadd.f32 %v2578, %v2676
        %v2685 = vadd.f32 %v2579, %v2677
        %v2686 = vadd.f32 %v2580, %v2678
        %v2687 = vadd.f32 %v2581, %v2679
        %v2688 = vadd.f32 %v2582, %v2680
        %v2689 = vadd.f32 %v2583, %v2681
        %v2690 = vadd.f32 %v2584, %v2682
        %v2692 = vcombine.high %v717, %v717
        %v2694 = vunpack.c.l.s4 1966171168
        %v2695 = vunpack.c.0.s8 %v2694
        %v2696 = vlaneseq
        %v2697 = vshrl.u32 %v2696, 7
        %v2698 = vsub.s32 %v2695, %v2697
        %v2699 = vrot.slane %v717, %v2698
        %v2701 = vunpack.c.l.s4 1966171168
        %v2702 = vunpack.c.0.s8 %v2701
        %v2703 = vlaneseq
        %v2704 = vshrl.u32 %v2703, 7
        %v2705 = vsub.s32 %v2702, %v2704
        %v2706 = vrot.slane %v2692, %v2705
        %v2707 = vcombine.high %v2699, %v2699
        %v2708 = vcombine.high %v2706, %v2706
        %v2710 = vunpack.c.l.s4 1966171168
        %v2711 = vunpack.c.0.s8 %v2710
        %v2712 = vlaneseq
        %v2713 = vshrl.u32 %v2712, 7
        %v2714 = vsub.s32 %v2711, %v2713
        %v2715 = vrot.slane %v2699, %v2714
        %v2717 = vunpack.c.l.s4 1966171168
        %v2718 = vunpack.c.0.s8 %v2717
        %v2719 = vlaneseq
        %v2720 = vshrl.u32 %v2719, 7
        %v2721 = vsub.s32 %v2718, %v2720
        %v2722 = vrot.slane %v2706, %v2721
        %v2724 = vunpack.c.l.s4 1966171168
        %v2725 = vunpack.c.0.s8 %v2724
        %v2726 = vlaneseq
        %v2727 = vshrl.u32 %v2726, 7
        %v2728 = vsub.s32 %v2725, %v2727
        %v2729 = vrot.slane %v2707, %v2728
        %v2731 = vunpack.c.l.s4 1966171168
        %v2732 = vunpack.c.0.s8 %v2731
        %v2733 = vlaneseq
        %v2734 = vshrl.u32 %v2733, 7
        %v2735 = vsub.s32 %v2732, %v2734
        %v2736 = vrot.slane %v2708, %v2735
        %v2737 = vcombine.high %v2715, %v2715
        %v2738 = vcombine.high %v2722, %v2722
        %v2739 = vcombine.high %v2729, %v2729
        %v2740 = vcombine.high %v2736, %v2736
        %v2741 = vlaneseq
        %v2742 = vshrl.u32 %v2741, 7
        %v2743 = vsub.s32 0, %v2742
        %v2744 = vrot.slane %v2715, %v2743
        %v2745 = vlaneseq
        %v2746 = vshrl.u32 %v2745, 7
        %v2747 = vsub.s32 0, %v2746
        %v2748 = vrot.slane %v2729, %v2747
        %v2749 = vlaneseq
        %v2750 = vshrl.u32 %v2749, 7
        %v2751 = vsub.s32 0, %v2750
        %v2752 = vrot.slane %v2737, %v2751
        %v2753 = vlaneseq
        %v2754 = vshrl.u32 %v2753, 7
        %v2755 = vsub.s32 0, %v2754
        %v2756 = vrot.slane %v2739, %v2755
        %v2757 = vlaneseq
        %v2758 = vshrl.u32 %v2757, 7
        %v2759 = vsub.s32 0, %v2758
        %v2760 = vrot.slane %v2722, %v2759
        %v2761 = vlaneseq
        %v2762 = vshrl.u32 %v2761, 7
        %v2763 = vsub.s32 0, %v2762
        %v2764 = vrot.slane %v2736, %v2763
        %v2765 = vlaneseq
        %v2766 = vshrl.u32 %v2765, 7
        %v2767 = vsub.s32 0, %v2766
        %v2768 = vrot.slane %v2738, %v2767
        %v2769 = vlaneseq
        %v2770 = vshrl.u32 %v2769, 7
        %v2771 = vsub.s32 0, %v2770
        %v2772 = vrot.slane %v2740, %v2771
        %v2781 = vmul.f32 %v2744, %v781
        %v2782 = vmul.f32 %v2748, %v781
        %v2783 = vmul.f32 %v2752, %v781
        %v2784 = vmul.f32 %v2756, %v781
        %v2785 = vmul.f32 %v2760, %v781
        %v2786 = vmul.f32 %v2764, %v781
        %v2787 = vmul.f32 %v2768, %v781
        %v2788 = vmul.f32 %v2772, %v781
        %v2789 = vadd.f32 %v2683, %v2781
        %v2790 = vadd.f32 %v2684, %v2782
        %v2791 = vadd.f32 %v2685, %v2783
        %v2792 = vadd.f32 %v2686, %v2784
        %v2793 = vadd.f32 %v2687, %v2785
        %v2794 = vadd.f32 %v2688, %v2786
        %v2795 = vadd.f32 %v2689, %v2787
        %v2796 = vadd.f32 %v2690, %v2788
        %v2798 = vcombine.high %v720, %v720
        %v2800 = vunpack.c.l.s4 1966171168
        %v2801 = vunpack.c.0.s8 %v2800
        %v2802 = vlaneseq
        %v2803 = vshrl.u32 %v2802, 7
        %v2804 = vsub.s32 %v2801, %v2803
        %v2805 = vrot.slane %v720, %v2804
        %v2807 = vunpack.c.l.s4 1966171168
        %v2808 = vunpack.c.0.s8 %v2807
        %v2809 = vlaneseq
        %v2810 = vshrl.u32 %v2809, 7
        %v2811 = vsub.s32 %v2808, %v2810
        %v2812 = vrot.slane %v2798, %v2811
        %v2813 = vcombine.high %v2805, %v2805
        %v2814 = vcombine.high %v2812, %v2812
        %v2816 = vunpack.c.l.s4 1966171168
        %v2817 = vunpack.c.0.s8 %v2816
        %v2818 = vlaneseq
        %v2819 = vshrl.u32 %v2818, 7
        %v2820 = vsub.s32 %v2817, %v2819
        %v2821 = vrot.slane %v2805, %v2820
        %v2823 = vunpack.c.l.s4 1966171168
        %v2824 = vunpack.c.0.s8 %v2823
        %v2825 = vlaneseq
        %v2826 = vshrl.u32 %v2825, 7
        %v2827 = vsub.s32 %v2824, %v2826
        %v2828 = vrot.slane %v2812, %v2827
        %v2830 = vunpack.c.l.s4 1966171168
        %v2831 = vunpack.c.0.s8 %v2830
        %v2832 = vlaneseq
        %v2833 = vshrl.u32 %v2832, 7
        %v2834 = vsub.s32 %v2831, %v2833
        %v2835 = vrot.slane %v2813, %v2834
        %v2837 = vunpack.c.l.s4 1966171168
        %v2838 = vunpack.c.0.s8 %v2837
        %v2839 = vlaneseq
        %v2840 = vshrl.u32 %v2839, 7
        %v2841 = vsub.s32 %v2838, %v2840
        %v2842 = vrot.slane %v2814, %v2841
        %v2843 = vcombine.high %v2821, %v2821
        %v2844 = vcombine.high %v2828, %v2828
        %v2845 = vcombine.high %v2835, %v2835
        %v2846 = vcombine.high %v2842, %v2842
        %v2847 = vlaneseq
        %v2848 = vshrl.u32 %v2847, 7
        %v2849 = vsub.s32 0, %v2848
        %v2850 = vrot.slane %v2821, %v2849
        %v2851 = vlaneseq
        %v2852 = vshrl.u32 %v2851, 7
        %v2853 = vsub.s32 0, %v2852
        %v2854 = vrot.slane %v2835, %v2853
        %v2855 = vlaneseq
        %v2856 = vshrl.u32 %v2855, 7
        %v2857 = vsub.s32 0, %v2856
        %v2858 = vrot.slane %v2843, %v2857
        %v2859 = vlaneseq
        %v2860 = vshrl.u32 %v2859, 7
        %v2861 = vsub.s32 0, %v2860
        %v2862 = vrot.slane %v2845, %v2861
        %v2863 = vlaneseq
        %v2864 = vshrl.u32 %v2863, 7
        %v2865 = vsub.s32 0, %v2864
        %v2866 = vrot.slane %v2828, %v2865
        %v2867 = vlaneseq
        %v2868 = vshrl.u32 %v2867, 7
        %v2869 = vsub.s32 0, %v2868
        %v2870 = vrot.slane %v2842, %v2869
        %v2871 = vlaneseq
        %v2872 = vshrl.u32 %v2871, 7
        %v2873 = vsub.s32 0, %v2872
        %v2874 = vrot.slane %v2844, %v2873
        %v2875 = vlaneseq
        %v2876 = vshrl.u32 %v2875, 7
        %v2877 = vsub.s32 0, %v2876
        %v2878 = vrot.slane %v2846, %v2877
        %v2887 = vmul.f32 %v2850, %v784
        %v2888 = vmul.f32 %v2854, %v784
        %v2889 = vmul.f32 %v2858, %v784
        %v2890 = vmul.f32 %v2862, %v784
        %v2891 = vmul.f32 %v2866, %v784
        %v2892 = vmul.f32 %v2870, %v784
        %v2893 = vmul.f32 %v2874, %v784
        %v2894 = vmul.f32 %v2878, %v784
        %v2895 = vadd.f32 %v2789, %v2887
        %v2896 = vadd.f32 %v2790, %v2888
        %v2897 = vadd.f32 %v2791, %v2889
        %v2898 = vadd.f32 %v2792, %v2890
        %v2899 = vadd.f32 %v2793, %v2891
        %v2900 = vadd.f32 %v2794, %v2892
        %v2901 = vadd.f32 %v2795, %v2893
        %v2902 = vadd.f32 %v2796, %v2894
        %v2904 = vcombine.high %v725, %v725
        %v2906 = vunpack.c.l.s4 1966171168
        %v2907 = vunpack.c.0.s8 %v2906
        %v2908 = vlaneseq
        %v2909 = vshrl.u32 %v2908, 7
        %v2910 = vsub.s32 %v2907, %v2909
        %v2911 = vrot.slane %v725, %v2910
        %v2913 = vunpack.c.l.s4 1966171168
        %v2914 = vunpack.c.0.s8 %v2913
        %v2915 = vlaneseq
        %v2916 = vshrl.u32 %v2915, 7
        %v2917 = vsub.s32 %v2914, %v2916
        %v2918 = vrot.slane %v2904, %v2917
        %v2919 = vcombine.high %v2911, %v2911
        %v2920 = vcombine.high %v2918, %v2918
        %v2922 = vunpack.c.l.s4 1966171168
        %v2923 = vunpack.c.0.s8 %v2922
        %v2924 = vlaneseq
        %v2925 = vshrl.u32 %v2924, 7
        %v2926 = vsub.s32 %v2923, %v2925
        %v2927 = vrot.slane %v2911, %v2926
        %v2929 = vunpack.c.l.s4 1966171168
        %v2930 = vunpack.c.0.s8 %v2929
        %v2931 = vlaneseq
        %v2932 = vshrl.u32 %v2931, 7
        %v2933 = vsub.s32 %v2930, %v2932
        %v2934 = vrot.slane %v2918, %v2933
        %v2936 = vunpack.c.l.s4 1966171168
        %v2937 = vunpack.c.0.s8 %v2936
        %v2938 = vlaneseq
        %v2939 = vshrl.u32 %v2938, 7
        %v2940 = vsub.s32 %v2937, %v2939
        %v2941 = vrot.slane %v2919, %v2940
        %v2943 = vunpack.c.l.s4 1966171168
        %v2944 = vunpack.c.0.s8 %v2943
        %v2945 = vlaneseq
        %v2946 = vshrl.u32 %v2945, 7
        %v2947 = vsub.s32 %v2944, %v2946
        %v2948 = vrot.slane %v2920, %v2947
        %v2949 = vcombine.high %v2927, %v2927
        %v2950 = vcombine.high %v2934, %v2934
        %v2951 = vcombine.high %v2941, %v2941
        %v2952 = vcombine.high %v2948, %v2948
        %v2953 = vlaneseq
        %v2954 = vshrl.u32 %v2953, 7
        %v2955 = vsub.s32 0, %v2954
        %v2956 = vrot.slane %v2927, %v2955
        %v2957 = vlaneseq
        %v2958 = vshrl.u32 %v2957, 7
        %v2959 = vsub.s32 0, %v2958
        %v2960 = vrot.slane %v2941, %v2959
        %v2961 = vlaneseq
        %v2962 = vshrl.u32 %v2961, 7
        %v2963 = vsub.s32 0, %v2962
        %v2964 = vrot.slane %v2949, %v2963
        %v2965 = vlaneseq
        %v2966 = vshrl.u32 %v2965, 7
        %v2967 = vsub.s32 0, %v2966
        %v2968 = vrot.slane %v2951, %v2967
        %v2969 = vlaneseq
        %v2970 = vshrl.u32 %v2969, 7
        %v2971 = vsub.s32 0, %v2970
        %v2972 = vrot.slane %v2934, %v2971
        %v2973 = vlaneseq
        %v2974 = vshrl.u32 %v2973, 7
        %v2975 = vsub.s32 0, %v2974
        %v2976 = vrot.slane %v2948, %v2975
        %v2977 = vlaneseq
        %v2978 = vshrl.u32 %v2977, 7
        %v2979 = vsub.s32 0, %v2978
        %v2980 = vrot.slane %v2950, %v2979
        %v2981 = vlaneseq
        %v2982 = vshrl.u32 %v2981, 7
        %v2983 = vsub.s32 0, %v2982
        %v2984 = vrot.slane %v2952, %v2983
        %v2993 = vmul.f32 %v2956, %v789
        %v2994 = vmul.f32 %v2960, %v789
        %v2995 = vmul.f32 %v2964, %v789
        %v2996 = vmul.f32 %v2968, %v789
        %v2997 = vmul.f32 %v2972, %v789
        %v2998 = vmul.f32 %v2976, %v789
        %v2999 = vmul.f32 %v2980, %v789
        %v3000 = vmul.f32 %v2984, %v789
        %v3001 = vadd.f32 %v2895, %v2993
        %v3002 = vadd.f32 %v2896, %v2994
        %v3003 = vadd.f32 %v2897, %v2995
        %v3004 = vadd.f32 %v2898, %v2996
        %v3005 = vadd.f32 %v2899, %v2997
        %v3006 = vadd.f32 %v2900, %v2998
        %v3007 = vadd.f32 %v2901, %v2999
        %v3008 = vadd.f32 %v2902, %v3000
        %v3010 = vcombine.high %v728, %v728
        %v3012 = vunpack.c.l.s4 1966171168
        %v3013 = vunpack.c.0.s8 %v3012
        %v3014 = vlaneseq
        %v3015 = vshrl.u32 %v3014, 7
        %v3016 = vsub.s32 %v3013, %v3015
        %v3017 = vrot.slane %v728, %v3016
        %v3019 = vunpack.c.l.s4 1966171168
        %v3020 = vunpack.c.0.s8 %v3019
        %v3021 = vlaneseq
        %v3022 = vshrl.u32 %v3021, 7
        %v3023 = vsub.s32 %v3020, %v3022
        %v3024 = vrot.slane %v3010, %v3023
        %v3025 = vcombine.high %v3017, %v3017
        %v3026 = vcombine.high %v3024, %v3024
        %v3028 = vunpack.c.l.s4 1966171168
        %v3029 = vunpack.c.0.s8 %v3028
        %v3030 = vlaneseq
        %v3031 = vshrl.u32 %v3030, 7
        %v3032 = vsub.s32 %v3029, %v3031
        %v3033 = vrot.slane %v3017, %v3032
        %v3035 = vunpack.c.l.s4 1966171168
        %v3036 = vunpack.c.0.s8 %v3035
        %v3037 = vlaneseq
        %v3038 = vshrl.u32 %v3037, 7
        %v3039 = vsub.s32 %v3036, %v3038
        %v3040 = vrot.slane %v3024, %v3039
        %v3042 = vunpack.c.l.s4 1966171168
        %v3043 = vunpack.c.0.s8 %v3042
        %v3044 = vlaneseq
        %v3045 = vshrl.u32 %v3044, 7
        %v3046 = vsub.s32 %v3043, %v3045
        %v3047 = vrot.slane %v3025, %v3046
        %v3049 = vunpack.c.l.s4 1966171168
        %v3050 = vunpack.c.0.s8 %v3049
        %v3051 = vlaneseq
        %v3052 = vshrl.u32 %v3051, 7
        %v3053 = vsub.s32 %v3050, %v3052
        %v3054 = vrot.slane %v3026, %v3053
        %v3055 = vcombine.high %v3033, %v3033
        %v3056 = vcombine.high %v3040, %v3040
        %v3057 = vcombine.high %v3047, %v3047
        %v3058 = vcombine.high %v3054, %v3054
        %v3059 = vlaneseq
        %v3060 = vshrl.u32 %v3059, 7
        %v3061 = vsub.s32 0, %v3060
        %v3062 = vrot.slane %v3033, %v3061
        %v3063 = vlaneseq
        %v3064 = vshrl.u32 %v3063, 7
        %v3065 = vsub.s32 0, %v3064
        %v3066 = vrot.slane %v3047, %v3065
        %v3067 = vlaneseq
        %v3068 = vshrl.u32 %v3067, 7
        %v3069 = vsub.s32 0, %v3068
        %v3070 = vrot.slane %v3055, %v3069
        %v3071 = vlaneseq
        %v3072 = vshrl.u32 %v3071, 7
        %v3073 = vsub.s32 0, %v3072
        %v3074 = vrot.slane %v3057, %v3073
        %v3075 = vlaneseq
        %v3076 = vshrl.u32 %v3075, 7
        %v3077 = vsub.s32 0, %v3076
        %v3078 = vrot.slane %v3040, %v3077
        %v3079 = vlaneseq
        %v3080 = vshrl.u32 %v3079, 7
        %v3081 = vsub.s32 0, %v3080
        %v3082 = vrot.slane %v3054, %v3081
        %v3083 = vlaneseq
        %v3084 = vshrl.u32 %v3083, 7
        %v3085 = vsub.s32 0, %v3084
        %v3086 = vrot.slane %v3056, %v3085
        %v3087 = vlaneseq
        %v3088 = vshrl.u32 %v3087, 7
        %v3089 = vsub.s32 0, %v3088
        %v3090 = vrot.slane %v3058, %v3089
        %v3099 = vmul.f32 %v3062, %v792
        %v3100 = vmul.f32 %v3066, %v792
        %v3101 = vmul.f32 %v3070, %v792
        %v3102 = vmul.f32 %v3074, %v792
        %v3103 = vmul.f32 %v3078, %v792
        %v3104 = vmul.f32 %v3082, %v792
        %v3105 = vmul.f32 %v3086, %v792
        %v3106 = vmul.f32 %v3090, %v792
        %v3107 = vadd.f32 %v3001, %v3099
        %v3108 = vadd.f32 %v3002, %v3100
        %v3109 = vadd.f32 %v3003, %v3101
        %v3110 = vadd.f32 %v3004, %v3102
        %v3111 = vadd.f32 %v3005, %v3103
        %v3112 = vadd.f32 %v3006, %v3104
        %v3113 = vadd.f32 %v3007, %v3105
        %v3114 = vadd.f32 %v3008, %v3106
        %v3115 = vrot.slane %v3107, 4
        %v3116 = vmax.f32 %v3107, %v3115
        %v3117 = vrot.slane %v3116, 2
        %v3118 = vmax.f32 %v3116, %v3117
        %v3119 = vrot.slane %v3118, 1
        %v3120 = vmax.f32 %v3118, %v3119
        %v3121 = vrot.slane %v3108, 4
        %v3122 = vmax.f32 %v3108, %v3121
        %v3123 = vrot.slane %v3122, 2
        %v3124 = vmax.f32 %v3122, %v3123
        %v3125 = vrot.slane %v3124, 1
        %v3126 = vmax.f32 %v3124, %v3125
        %v3127 = vrot.slane %v3109, 4
        %v3128 = vmax.f32 %v3109, %v3127
        %v3129 = vrot.slane %v3128, 2
        %v3130 = vmax.f32 %v3128, %v3129
        %v3131 = vrot.slane %v3130, 1
        %v3132 = vmax.f32 %v3130, %v3131
        %v3133 = vrot.slane %v3110, 4
        %v3134 = vmax.f32 %v3110, %v3133
        %v3135 = vrot.slane %v3134, 2
        %v3136 = vmax.f32 %v3134, %v3135
        %v3137 = vrot.slane %v3136, 1
        %v3138 = vmax.f32 %v3136, %v3137
        %v3139 = vrot.slane %v3111, 4
        %v3140 = vmax.f32 %v3111, %v3139
        %v3141 = vrot.slane %v3140, 2
        %v3142 = vmax.f32 %v3140, %v3141
        %v3143 = vrot.slane %v3142, 1
        %v3144 = vmax.f32 %v3142, %v3143
        %v3145 = vrot.slane %v3112, 4
        %v3146 = vmax.f32 %v3112, %v3145
        %v3147 = vrot.slane %v3146, 2
        %v3148 = vmax.f32 %v3146, %v3147
        %v3149 = vrot.slane %v3148, 1
        %v3150 = vmax.f32 %v3148, %v3149
        %v3151 = vrot.slane %v3113, 4
        %v3152 = vmax.f32 %v3113, %v3151
        %v3153 = vrot.slane %v3152, 2
        %v3154 = vmax.f32 %v3152, %v3153
        %v3155 = vrot.slane %v3154, 1
        %v3156 = vmax.f32 %v3154, %v3155
        %v3157 = vrot.slane %v3114, 4
        %v3158 = vmax.f32 %v3114, %v3157
        %v3159 = vrot.slane %v3158, 2
        %v3160 = vmax.f32 %v3158, %v3159
        %v3161 = vrot.slane %v3160, 1
        %v3162 = vmax.f32 %v3160, %v3161
        %v3163 = vsub.f32 %v3107, %v3120
        %v3164 = vsub.f32 %v3108, %v3126
        %v3165 = vsub.f32 %v3109, %v3132
        %v3166 = vsub.f32 %v3110, %v3138
        %v3167 = vsub.f32 %v3111, %v3144
        %v3168 = vsub.f32 %v3112, %v3150
        %v3169 = vsub.f32 %v3113, %v3156
        %v3170 = vsub.f32 %v3114, %v3162
        %v3171 = vmul.f32 %v3163, 1.442695
        %v3172 = vpow.pop %v3171
        %v3173 = vmul.f32 %v3164, 1.442695
        %v3174 = vpow.pop %v3173
        %v3175 = vmul.f32 %v3165, 1.442695
        %v3176 = vpow.pop %v3175
        %v3177 = vmul.f32 %v3166, 1.442695
        %v3178 = vpow.pop %v3177
        %v3179 = vmul.f32 %v3167, 1.442695
        %v3180 = vpow.pop %v3179
        %v3181 = vmul.f32 %v3168, 1.442695
        %v3182 = vpow.pop %v3181
        %v3183 = vmul.f32 %v3169, 1.442695
        %v3184 = vpow.pop %v3183
        %v3185 = vmul.f32 %v3170, 1.442695
        %v3186 = vpow.pop %v3185
        %v3187 = vrot.slane %v3172, 4
        %v3188 = vadd.f32 %v3172, %v3187
        %v3189 = vrot.slane %v3188, 2
        %v3190 = vadd.f32 %v3188, %v3189
        %v3191 = vrot.slane %v3190, 1
        %v3192 = vadd.f32 %v3190, %v3191
        %v3193 = vrot.slane %v3174, 4
        %v3194 = vadd.f32 %v3174, %v3193
        %v3195 = vrot.slane %v3194, 2
        %v3196 = vadd.f32 %v3194, %v3195
        %v3197 = vrot.slane %v3196, 1
        %v3198 = vadd.f32 %v3196, %v3197
        %v3199 = vrot.slane %v3176, 4
        %v3200 = vadd.f32 %v3176, %v3199
        %v3201 = vrot.slane %v3200, 2
        %v3202 = vadd.f32 %v3200, %v3201
        %v3203 = vrot.slane %v3202, 1
        %v3204 = vadd.f32 %v3202, %v3203
        %v3205 = vrot.slane %v3178, 4
        %v3206 = vadd.f32 %v3178, %v3205
        %v3207 = vrot.slane %v3206, 2
        %v3208 = vadd.f32 %v3206, %v3207
        %v3209 = vrot.slane %v3208, 1
        %v3210 = vadd.f32 %v3208, %v3209
        %v3211 = vrot.slane %v3180, 4
        %v3212 = vadd.f32 %v3180, %v3211
        %v3213 = vrot.slane %v3212, 2
        %v3214 = vadd.f32 %v3212, %v3213
        %v3215 = vrot.slane %v3214, 1
        %v3216 = vadd.f32 %v3214, %v3215
        %v3217 = vrot.slane %v3182, 4
        %v3218 = vadd.f32 %v3182, %v3217
        %v3219 = vrot.slane %v3218, 2
        %v3220 = vadd.f32 %v3218, %v3219
        %v3221 = vrot.slane %v3220, 1
        %v3222 = vadd.f32 %v3220, %v3221
        %v3223 = vrot.slane %v3184, 4
        %v3224 = vadd.f32 %v3184, %v3223
        %v3225 = vrot.slane %v3224, 2
        %v3226 = vadd.f32 %v3224, %v3225
        %v3227 = vrot.slane %v3226, 1
        %v3228 = vadd.f32 %v3226, %v3227
        %v3229 = vrot.slane %v3186, 4
        %v3230 = vadd.f32 %v3186, %v3229
        %v3231 = vrot.slane %v3230, 2
        %v3232 = vadd.f32 %v3230, %v3231
        %v3233 = vrot.slane %v3232, 1
        %v3234 = vadd.f32 %v3232, %v3233
        %v3235 = vrcp.pop %v3192
        %v3236 = vrcp.pop %v3198
        %v3237 = vrcp.pop %v3204
        %v3238 = vrcp.pop %v3210
        %v3239 = vrcp.pop %v3216
        %v3240 = vrcp.pop %v3222
        %v3241 = vrcp.pop %v3228
        %v3242 = vrcp.pop %v3234
        %v3243 = vmul.f32 %v3172, %v3235
        %v3244 = vmul.f32 %v3174, %v3236
        %v3245 = vmul.f32 %v3176, %v3237
        %v3246 = vmul.f32 %v3178, %v3238
        %v3247 = vmul.f32 %v3180, %v3239
        %v3248 = vmul.f32 %v3182, %v3240
        %v3249 = vmul.f32 %v3184, %v3241
        %v3250 = vmul.f32 %v3186, %v3242
        %v3251 = vlaneseq
        %v3252 = vshrl.u32 %v3251, 7
        %v3253 = vsub.s32 0, %v3252
        %v3254 = vrot.slane %v3243, %v3253
        %v3255 = vlaneseq
        %v3256 = vshrl.u32 %v3255, 7
        %v3257 = vsub.s32 0, %v3256
        %v3258 = vrot.slane %v3244, %v3257
        %v3259 = vlaneseq
        %v3260 = vshrl.u32 %v3259, 7
        %v3261 = vsub.s32 0, %v3260
        %v3262 = vrot.slane %v3245, %v3261
        %v3263 = vlaneseq
        %v3264 = vshrl.u32 %v3263, 7
        %v3265 = vsub.s32 0, %v3264
        %v3266 = vrot.slane %v3246, %v3265
        %v3267 = vlaneseq
        %v3268 = vshrl.u32 %v3267, 7
        %v3269 = vsub.s32 0, %v3268
        %v3270 = vrot.slane %v3247, %v3269
        %v3271 = vlaneseq
        %v3272 = vshrl.u32 %v3271, 7
        %v3273 = vsub.s32 0, %v3272
        %v3274 = vrot.slane %v3248, %v3273
        %v3275 = vlaneseq
        %v3276 = vshrl.u32 %v3275, 7
        %v3277 = vsub.s32 0, %v3276
        %v3278 = vrot.slane %v3249, %v3277
        %v3279 = vlaneseq
        %v3280 = vshrl.u32 %v3279, 7
        %v3281 = vsub.s32 0, %v3280
        %v3282 = vrot.slane %v3250, %v3281
        %v3283 = vmul.f32 %v3254, %v829
        %v3284 = vmul.f32 %v3258, %v829
        %v3285 = vmul.f32 %v3262, %v829
        %v3286 = vmul.f32 %v3266, %v829
        %v3287 = vmul.f32 %v3270, %v829
        %v3288 = vmul.f32 %v3274, %v829
        %v3289 = vmul.f32 %v3278, %v829
        %v3290 = vmul.f32 %v3282, %v829
        %v3291 = vlaneseq
        %v3292 = vshrl.u32 %v3291, 7
        %v3293 = vsub.s32 1, %v3292
        %v3294 = vrot.slane %v3243, %v3293
        %v3295 = vlaneseq
        %v3296 = vshrl.u32 %v3295, 7
        %v3297 = vsub.s32 1, %v3296
        %v3298 = vrot.slane %v3244, %v3297
        %v3299 = vlaneseq
        %v3300 = vshrl.u32 %v3299, 7
        %v3301 = vsub.s32 1, %v3300
        %v3302 = vrot.slane %v3245, %v3301
        %v3303 = vlaneseq
        %v3304 = vshrl.u32 %v3303, 7
        %v3305 = vsub.s32 1, %v3304
        %v3306 = vrot.slane %v3246, %v3305
        %v3307 = vlaneseq
        %v3308 = vshrl.u32 %v3307, 7
        %v3309 = vsub.s32 1, %v3308
        %v3310 = vrot.slane %v3247, %v3309
        %v3311 = vlaneseq
        %v3312 = vshrl.u32 %v3311, 7
        %v3313 = vsub.s32 1, %v3312
        %v3314 = vrot.slane %v3248, %v3313
        %v3315 = vlaneseq
        %v3316 = vshrl.u32 %v3315, 7
        %v3317 = vsub.s32 1, %v3316
        %v3318 = vrot.slane %v3249, %v3317
        %v3319 = vlaneseq
        %v3320 = vshrl.u32 %v3319, 7
        %v3321 = vsub.s32 1, %v3320
        %v3322 = vrot.slane %v3250, %v3321
        %v3323 = vmul.f32 %v3294, %v832
        %v3324 = vmul.f32 %v3298, %v832
        %v3325 = vmul.f32 %v3302, %v832
        %v3326 = vmul.f32 %v3306, %v832
        %v3327 = vmul.f32 %v3310, %v832
        %v3328 = vmul.f32 %v3314, %v832
        %v3329 = vmul.f32 %v3318, %v832
        %v3330 = vmul.f32 %v3322, %v832
        %v3331 = vadd.f32 %v3283, %v3323
        %v3332 = vadd.f32 %v3284, %v3324
        %v3333 = vadd.f32 %v3285, %v3325
        %v3334 = vadd.f32 %v3286, %v3326
        %v3335 = vadd.f32 %v3287, %v3327
        %v3336 = vadd.f32 %v3288, %v3328
        %v3337 = vadd.f32 %v3289, %v3329
        %v3338 = vadd.f32 %v3290, %v3330
        %v3339 = vlaneseq
        %v3340 = vshrl.u32 %v3339, 7
        %v3341 = vsub.s32 2, %v3340
        %v3342 = vrot.slane %v3243, %v3341
        %v3343 = vlaneseq
        %v3344 = vshrl.u32 %v3343, 7
        %v3345 = vsub.s32 2, %v3344
        %v3346 = vrot.slane %v3244, %v3345
        %v3347 = vlaneseq
        %v3348 = vshrl.u32 %v3347, 7
        %v3349 = vsub.s32 2, %v3348
        %v3350 = vrot.slane %v3245, %v3349
        %v3351 = vlaneseq
        %v3352 = vshrl.u32 %v3351, 7
        %v3353 = vsub.s32 2, %v3352
        %v3354 = vrot.slane %v3246, %v3353
        %v3355 = vlaneseq
        %v3356 = vshrl.u32 %v3355, 7
        %v3357 = vsub.s32 2, %v3356
        %v3358 = vrot.slane %v3247, %v3357
        %v3359 = vlaneseq
        %v3360 = vshrl.u32 %v3359, 7
        %v3361 = vsub.s32 2, %v3360
        %v3362 = vrot.slane %v3248, %v3361
        %v3363 = vlaneseq
        %v3364 = vshrl.u32 %v3363, 7
        %v3365 = vsub.s32 2, %v3364
        %v3366 = vrot.slane %v3249, %v3365
        %v3367 = vlaneseq
        %v3368 = vshrl.u32 %v3367, 7
        %v3369 = vsub.s32 2, %v3368
        %v3370 = vrot.slane %v3250, %v3369
        %v3371 = vmul.f32 %v3342, %v837
        %v3372 = vmul.f32 %v3346, %v837
        %v3373 = vmul.f32 %v3350, %v837
        %v3374 = vmul.f32 %v3354, %v837
        %v3375 = vmul.f32 %v3358, %v837
        %v3376 = vmul.f32 %v3362, %v837
        %v3377 = vmul.f32 %v3366, %v837
        %v3378 = vmul.f32 %v3370, %v837
        %v3379 = vadd.f32 %v3331, %v3371
        %v3380 = vadd.f32 %v3332, %v3372
        %v3381 = vadd.f32 %v3333, %v3373
        %v3382 = vadd.f32 %v3334, %v3374
        %v3383 = vadd.f32 %v3335, %v3375
        %v3384 = vadd.f32 %v3336, %v3376
        %v3385 = vadd.f32 %v3337, %v3377
        %v3386 = vadd.f32 %v3338, %v3378
        %v3387 = vlaneseq
        %v3388 = vshrl.u32 %v3387, 7
        %v3389 = vsub.s32 3, %v3388
        %v3390 = vrot.slane %v3243, %v3389
        %v3391 = vlaneseq
        %v3392 = vshrl.u32 %v3391, 7
        %v3393 = vsub.s32 3, %v3392
        %v3394 = vrot.slane %v3244, %v3393
        %v3395 = vlaneseq
        %v3396 = vshrl.u32 %v3395, 7
        %v3397 = vsub.s32 3, %v3396
        %v3398 = vrot.slane %v3245, %v3397
        %v3399 = vlaneseq
        %v3400 = vshrl.u32 %v3399, 7
        %v3401 = vsub.s32 3, %v3400
        %v3402 = vrot.slane %v3246, %v3401
        %v3403 = vlaneseq
        %v3404 = vshrl.u32 %v3403, 7
        %v3405 = vsub.s32 3, %v3404
        %v3406 = vrot.slane %v3247, %v3405
        %v3407 = vlaneseq
        %v3408 = vshrl.u32 %v3407, 7
        %v3409 = vsub.s32 3, %v3408
        %v3410 = vrot.slane %v3248, %v3409
        %v3411 = vlaneseq
        %v3412 = vshrl.u32 %v3411, 7
        %v3413 = vsub.s32 3, %v3412
        %v3414 = vrot.slane %v3249, %v3413
        %v3415 = vlaneseq
        %v3416 = vshrl.u32 %v3415, 7
        %v3417 = vsub.s32 3, %v3416
        %v3418 = vrot.slane %v3250, %v3417
        %v3419 = vmul.f32 %v3390, %v840
        %v3420 = vmul.f32 %v3394, %v840
        %v3421 = vmul.f32 %v3398, %v840
        %v3422 = vmul.f32 %v3402, %v840
        %v3423 = vmul.f32 %v3406, %v840
        %v3424 = vmul.f32 %v3410, %v840
        %v3425 = vmul.f32 %v3414, %v840
        %v3426 = vmul.f32 %v3418, %v840
        %v3427 = vadd.f32 %v3379, %v3419
        %v3428 = vadd.f32 %v3380, %v3420
        %v3429 = vadd.f32 %v3381, %v3421
        %v3430 = vadd.f32 %v3382, %v3422
        %v3431 = vadd.f32 %v3383, %v3423
        %v3432 = vadd.f32 %v3384, %v3424
        %v3433 = vadd.f32 %v3385, %v3425
        %v3434 = vadd.f32 %v3386, %v3426
        %v3435 = vlaneseq
        %v3436 = vshrl.u32 %v3435, 7
        %v3437 = vsub.s32 4, %v3436
        %v3438 = vrot.slane %v3243, %v3437
        %v3439 = vlaneseq
        %v3440 = vshrl.u32 %v3439, 7
        %v3441 = vsub.s32 4, %v3440
        %v3442 = vrot.slane %v3244, %v3441
        %v3443 = vlaneseq
        %v3444 = vshrl.u32 %v3443, 7
        %v3445 = vsub.s32 4, %v3444
        %v3446 = vrot.slane %v3245, %v3445
        %v3447 = vlaneseq
        %v3448 = vshrl.u32 %v3447, 7
        %v3449 = vsub.s32 4, %v3448
        %v3450 = vrot.slane %v3246, %v3449
        %v3451 = vlaneseq
        %v3452 = vshrl.u32 %v3451, 7
        %v3453 = vsub.s32 4, %v3452
        %v3454 = vrot.slane %v3247, %v3453
        %v3455 = vlaneseq
        %v3456 = vshrl.u32 %v3455, 7
        %v3457 = vsub.s32 4, %v3456
        %v3458 = vrot.slane %v3248, %v3457
        %v3459 = vlaneseq
        %v3460 = vshrl.u32 %v3459, 7
        %v3461 = vsub.s32 4, %v3460
        %v3462 = vrot.slane %v3249, %v3461
        %v3463 = vlaneseq
        %v3464 = vshrl.u32 %v3463, 7
        %v3465 = vsub.s32 4, %v3464
        %v3466 = vrot.slane %v3250, %v3465
        %v3467 = vmul.f32 %v3438, %v845
        %v3468 = vmul.f32 %v3442, %v845
        %v3469 = vmul.f32 %v3446, %v845
        %v3470 = vmul.f32 %v3450, %v845
        %v3471 = vmul.f32 %v3454, %v845
        %v3472 = vmul.f32 %v3458, %v845
        %v3473 = vmul.f32 %v3462, %v845
        %v3474 = vmul.f32 %v3466, %v845
        %v3475 = vadd.f32 %v3427, %v3467
        %v3476 = vadd.f32 %v3428, %v3468
        %v3477 = vadd.f32 %v3429, %v3469
        %v3478 = vadd.f32 %v3430, %v3470
        %v3479 = vadd.f32 %v3431, %v3471
        %v3480 = vadd.f32 %v3432, %v3472
        %v3481 = vadd.f32 %v3433, %v3473
        %v3482 = vadd.f32 %v3434, %v3474
        %v3483 = vlaneseq
        %v3484 = vshrl.u32 %v3483, 7
        %v3485 = vsub.s32 5, %v3484
        %v3486 = vrot.slane %v3243, %v3485
        %v3487 = vlaneseq
        %v3488 = vshrl.u32 %v3487, 7
        %v3489 = vsub.s32 5, %v3488
        %v3490 = vrot.slane %v3244, %v3489
        %v3491 = vlaneseq
        %v3492 = vshrl.u32 %v3491, 7
        %v3493 = vsub.s32 5, %v3492
        %v3494 = vrot.slane %v3245, %v3493
        %v3495 = vlaneseq
        %v3496 = vshrl.u32 %v3495, 7
        %v3497 = vsub.s32 5, %v3496
        %v3498 = vrot.slane %v3246, %v3497
        %v3499 = vlaneseq
        %v3500 = vshrl.u32 %v3499, 7
        %v3501 = vsub.s32 5, %v3500
        %v3502 = vrot.slane %v3247, %v3501
        %v3503 = vlaneseq
        %v3504 = vshrl.u32 %v3503, 7
        %v3505 = vsub.s32 5, %v3504
        %v3506 = vrot.slane %v3248, %v3505
        %v3507 = vlaneseq
        %v3508 = vshrl.u32 %v3507, 7
        %v3509 = vsub.s32 5, %v3508
        %v3510 = vrot.slane %v3249, %v3509
        %v3511 = vlaneseq
        %v3512 = vshrl.u32 %v3511, 7
        %v3513 = vsub.s32 5, %v3512
        %v3514 = vrot.slane %v3250, %v3513
        %v3515 = vmul.f32 %v3486, %v848
        %v3516 = vmul.f32 %v3490, %v848
        %v3517 = vmul.f32 %v3494, %v848
        %v3518 = vmul.f32 %v3498, %v848
        %v3519 = vmul.f32 %v3502, %v848
        %v3520 = vmul.f32 %v3506, %v848
        %v3521 = vmul.f32 %v3510, %v848
        %v3522 = vmul.f32 %v3514, %v848
        %v3523 = vadd.f32 %v3475, %v3515
        %v3524 = vadd.f32 %v3476, %v3516
        %v3525 = vadd.f32 %v3477, %v3517
        %v3526 = vadd.f32 %v3478, %v3518
        %v3527 = vadd.f32 %v3479, %v3519
        %v3528 = vadd.f32 %v3480, %v3520
        %v3529 = vadd.f32 %v3481, %v3521
        %v3530 = vadd.f32 %v3482, %v3522
        %v3531 = vlaneseq
        %v3532 = vshrl.u32 %v3531, 7
        %v3533 = vsub.s32 6, %v3532
        %v3534 = vrot.slane %v3243, %v3533
        %v3535 = vlaneseq
        %v3536 = vshrl.u32 %v3535, 7
        %v3537 = vsub.s32 6, %v3536
        %v3538 = vrot.slane %v3244, %v3537
        %v3539 = vlaneseq
        %v3540 = vshrl.u32 %v3539, 7
        %v3541 = vsub.s32 6, %v3540
        %v3542 = vrot.slane %v3245, %v3541
        %v3543 = vlaneseq
        %v3544 = vshrl.u32 %v3543, 7
        %v3545 = vsub.s32 6, %v3544
        %v3546 = vrot.slane %v3246, %v3545
        %v3547 = vlaneseq
        %v3548 = vshrl.u32 %v3547, 7
        %v3549 = vsub.s32 6, %v3548
        %v3550 = vrot.slane %v3247, %v3549
        %v3551 = vlaneseq
        %v3552 = vshrl.u32 %v3551, 7
        %v3553 = vsub.s32 6, %v3552
        %v3554 = vrot.slane %v3248, %v3553
        %v3555 = vlaneseq
        %v3556 = vshrl.u32 %v3555, 7
        %v3557 = vsub.s32 6, %v3556
        %v3558 = vrot.slane %v3249, %v3557
        %v3559 = vlaneseq
        %v3560 = vshrl.u32 %v3559, 7
        %v3561 = vsub.s32 6, %v3560
        %v3562 = vrot.slane %v3250, %v3561
        %v3563 = vmul.f32 %v3534, %v853
        %v3564 = vmul.f32 %v3538, %v853
        %v3565 = vmul.f32 %v3542, %v853
        %v3566 = vmul.f32 %v3546, %v853
        %v3567 = vmul.f32 %v3550, %v853
        %v3568 = vmul.f32 %v3554, %v853
        %v3569 = vmul.f32 %v3558, %v853
        %v3570 = vmul.f32 %v3562, %v853
        %v3571 = vadd.f32 %v3523, %v3563
        %v3572 = vadd.f32 %v3524, %v3564
        %v3573 = vadd.f32 %v3525, %v3565
        %v3574 = vadd.f32 %v3526, %v3566
        %v3575 = vadd.f32 %v3527, %v3567
        %v3576 = vadd.f32 %v3528, %v3568
        %v3577 = vadd.f32 %v3529, %v3569
        %v3578 = vadd.f32 %v3530, %v3570
        %v3579 = vlaneseq
        %v3580 = vshrl.u32 %v3579, 7
        %v3581 = vsub.s32 7, %v3580
        %v3582 = vrot.slane %v3243, %v3581
        %v3583 = vlaneseq
        %v3584 = vshrl.u32 %v3583, 7
        %v3585 = vsub.s32 7, %v3584
        %v3586 = vrot.slane %v3244, %v3585
        %v3587 = vlaneseq
        %v3588 = vshrl.u32 %v3587, 7
        %v3589 = vsub.s32 7, %v3588
        %v3590 = vrot.slane %v3245, %v3589
        %v3591 = vlaneseq
        %v3592 = vshrl.u32 %v3591, 7
        %v3593 = vsub.s32 7, %v3592
        %v3594 = vrot.slane %v3246, %v3593
        %v3595 = vlaneseq
        %v3596 = vshrl.u32 %v3595, 7
        %v3597 = vsub.s32 7, %v3596
        %v3598 = vrot.slane %v3247, %v3597
        %v3599 = vlaneseq
        %v3600 = vshrl.u32 %v3599, 7
        %v3601 = vsub.s32 7, %v3600
        %v3602 = vrot.slane %v3248, %v3601
        %v3603 = vlaneseq
        %v3604 = vshrl.u32 %v3603, 7
        %v3605 = vsub.s32 7, %v3604
        %v3606 = vrot.slane %v3249, %v3605
        %v3607 = vlaneseq
        %v3608 = vshrl.u32 %v3607, 7
        %v3609 = vsub.s32 7, %v3608
        %v3610 = vrot.slane %v3250, %v3609
        %v3611 = vmul.f32 %v3582, %v856
        %v3612 = vmul.f32 %v3586, %v856
        %v3613 = vmul.f32 %v3590, %v856
        %v3614 = vmul.f32 %v3594, %v856
        %v3615 = vmul.f32 %v3598, %v856
        %v3616 = vmul.f32 %v3602, %v856
        %v3617 = vmul.f32 %v3606, %v856
        %v3618 = vmul.f32 %v3610, %v856
        %v3619 = vadd.f32 %v3571, %v3611
        %v3620 = vadd.f32 %v3572, %v3612
        %v3621 = vadd.f32 %v3573, %v3613
        %v3622 = vadd.f32 %v3574, %v3614
        %v3623 = vadd.f32 %v3575, %v3615
        %v3624 = vadd.f32 %v3576, %v3616
        %v3625 = vadd.f32 %v3577, %v3617
        %v3626 = vadd.f32 %v3578, %v3618
        %v3627 = vadd.f32 %v2267, %v861
        %v3628 = vadd.f32 %v3619, %v864
        %v3629 = vadd.f32 %v2268, %v869
        %v3630 = vadd.f32 %v3620, %v872
        %v3631 = vadd.f32 %v2269, %v877
        %v3632 = vadd.f32 %v3621, %v880
        %v3633 = vadd.f32 %v2270, %v885
        %v3634 = vadd.f32 %v3622, %v888
        %v3635 = vadd.f32 %v2271, %v893
        %v3636 = vadd.f32 %v3623, %v896
        %v3637 = vadd.f32 %v2272, %v901
        %v3638 = vadd.f32 %v3624, %v904
        %v3639 = vadd.f32 %v2273, %v909
        %v3640 = vadd.f32 %v3625, %v912
        %v3641 = vadd.f32 %v2274, %v917
        %v3642 = vadd.f32 %v3626, %v920
        %v3643 = vmax.f32 %v3627, 0.0
        %v3644 = vmax.f32 %v3628, 0.0
        %v3645 = vmax.f32 %v3629, 0.0
        %v3646 = vmax.f32 %v3630, 0.0
        %v3647 = vmax.f32 %v3631, 0.0
        %v3648 = vmax.f32 %v3632, 0.0
        %v3649 = vmax.f32 %v3633, 0.0
        %v3650 = vmax.f32 %v3634, 0.0
        %v3651 = vmax.f32 %v3635, 0.0
        %v3652 = vmax.f32 %v3636, 0.0
        %v3653 = vmax.f32 %v3637, 0.0
        %v3654 = vmax.f32 %v3638, 0.0
        %v3655 = vmax.f32 %v3639, 0.0
        %v3656 = vmax.f32 %v3640, 0.0
        %v3657 = vmax.f32 %v3641, 0.0
        %v3658 = vmax.f32 %v3642, 0.0
        %v3659 = vpack.c.bf16 %v3644, %v3643
        %v3660 = vpack.c.bf16 %v3646, %v3645
        %v3661 = vpack.c.bf16 %v3648, %v3647
        %v3662 = vpack.c.bf16 %v3650, %v3649
        %v3663 = vpack.c.bf16 %v3652, %v3651
        %v3664 = vpack.c.bf16 %v3654, %v3653
        %v3665 = vpack.c.bf16 %v3656, %v3655
        %v3666 = vpack.c.bf16 %v3658, %v3657
        %v3667 = vld [vmem:[#allocation8] sm:$0xf]
        %v3668 = vld [vmem:[#allocation8 + $0x4] sm:$0xf]
        %v3669 = vld [vmem:[#allocation8 + $0x8] sm:$0xf]
        %v3670 = vld [vmem:[#allocation8 + $0xc] sm:$0xf]
        %v3671 = vld [vmem:[#allocation8 + $0x10] sm:$0xf]
        %v3672 = vld [vmem:[#allocation8 + $0x14] sm:$0xf]
        %v3673 = vld [vmem:[#allocation8 + $0x18] sm:$0xf]
        %v3674 = vld [vmem:[#allocation8 + $0x1c] sm:$0xf]
        %v3675 = vld [vmem:[#allocation8 + $0x20] sm:$0xf]
        %v3676 = vld [vmem:[#allocation8 + $0x24] sm:$0xf]
        %v3677 = vld [vmem:[#allocation8 + $0x28] sm:$0xf]
        %v3678 = vld [vmem:[#allocation8 + $0x2c] sm:$0xf]
        %v3679 = vld [vmem:[#allocation8 + $0x30] sm:$0xf]
        %v3680 = vld [vmem:[#allocation8 + $0x34] sm:$0xf]
        %v3681 = vld [vmem:[#allocation8 + $0x38] sm:$0xf]
        %v3682 = vld [vmem:[#allocation8 + $0x3c] sm:$0xf]
        %v3683 = vld [vmem:[#allocation8 + $0x40] sm:$0xf]
        %v3684 = vld [vmem:[#allocation8 + $0x44] sm:$0xf]
        %v3685 = vld [vmem:[#allocation8 + $0x48] sm:$0xf]
        %v3686 = vld [vmem:[#allocation8 + $0x4c] sm:$0xf]
        %v3687 = vld [vmem:[#allocation8 + $0x50] sm:$0xf]
        %v3688 = vld [vmem:[#allocation8 + $0x54] sm:$0xf]
        %v3689 = vld [vmem:[#allocation8 + $0x58] sm:$0xf]
        %v3690 = vld [vmem:[#allocation8 + $0x5c] sm:$0xf]
        %v3691 = vld [vmem:[#allocation8 + $0x60] sm:$0xf]
        %v3692 = vld [vmem:[#allocation8 + $0x64] sm:$0xf]
        %v3693 = vld [vmem:[#allocation8 + $0x68] sm:$0xf]
        %v3694 = vld [vmem:[#allocation8 + $0x6c] sm:$0xf]
        %v3695 = vld [vmem:[#allocation8 + $0x70] sm:$0xf]
        %v3696 = vld [vmem:[#allocation8 + $0x74] sm:$0xf]
        %v3697 = vld [vmem:[#allocation8 + $0x78] sm:$0xf]
        %v3698 = vld [vmem:[#allocation8 + $0x7c] sm:$0xf]
        %v3699 = vld [vmem:[#allocation8 + $0x80] sm:$0xf]
        %v3700 = vld [vmem:[#allocation8 + $0x84] sm:$0xf]
        %v3701 = vld [vmem:[#allocation8 + $0x88] sm:$0xf]
        %v3702 = vld [vmem:[#allocation8 + $0x8c] sm:$0xf]
        %v3703 = vld [vmem:[#allocation8 + $0x90] sm:$0xf]
        %v3704 = vld [vmem:[#allocation8 + $0x94] sm:$0xf]
        %v3705 = vld [vmem:[#allocation8 + $0x98] sm:$0xf]
        %v3706 = vld [vmem:[#allocation8 + $0x9c] sm:$0xf]
        %v3707 = vld [vmem:[#allocation8 + $0xa0] sm:$0xf]
        %v3708 = vld [vmem:[#allocation8 + $0xa4] sm:$0xf]
        %v3709 = vld [vmem:[#allocation8 + $0xa8] sm:$0xf]
        %v3710 = vld [vmem:[#allocation8 + $0xac] sm:$0xf]
        %v3711 = vld [vmem:[#allocation8 + $0xb0] sm:$0xf]
        %v3712 = vld [vmem:[#allocation8 + $0xb4] sm:$0xf]
        %v3713 = vld [vmem:[#allocation8 + $0xb8] sm:$0xf]
        %v3714 = vld [vmem:[#allocation8 + $0xbc] sm:$0xf]
        %v3715 = vld [vmem:[#allocation8 + $0xc0] sm:$0xf]
        %v3716 = vld [vmem:[#allocation8 + $0xc4] sm:$0xf]
        %v3717 = vld [vmem:[#allocation8 + $0xc8] sm:$0xf]
        %v3718 = vld [vmem:[#allocation8 + $0xcc] sm:$0xf]
        %v3719 = vld [vmem:[#allocation8 + $0xd0] sm:$0xf]
        %v3720 = vld [vmem:[#allocation8 + $0xd4] sm:$0xf]
        %v3721 = vld [vmem:[#allocation8 + $0xd8] sm:$0xf]
        %v3722 = vld [vmem:[#allocation8 + $0xdc] sm:$0xf]
        %v3723 = vld [vmem:[#allocation8 + $0xe0] sm:$0xf]
        %v3724 = vld [vmem:[#allocation8 + $0xe4] sm:$0xf]
        %v3725 = vld [vmem:[#allocation8 + $0xe8] sm:$0xf]
        %v3726 = vld [vmem:[#allocation8 + $0xec] sm:$0xf]
        %v3727 = vld [vmem:[#allocation8 + $0xf0] sm:$0xf]
        %v3728 = vld [vmem:[#allocation8 + $0xf4] sm:$0xf]
        %v3729 = vld [vmem:[#allocation8 + $0xf8] sm:$0xf]
        %v3730 = vld [vmem:[#allocation8 + $0xfc] sm:$0xf]
        %v3795 = vunpack.c.l.b16 %v3667
        %v3796 = vunpack.c.l.b16 %v3668
        %v3797 = vunpack.c.l.b16 %v3669
        %v3798 = vunpack.c.l.b16 %v3670
        %v3799 = vunpack.c.l.b16 %v3671
        %v3800 = vunpack.c.l.b16 %v3672
        %v3801 = vunpack.c.l.b16 %v3673
        %v3802 = vunpack.c.l.b16 %v3674
        %v3803 = vunpack.c.l.b16 %v3675
        %v3804 = vunpack.c.l.b16 %v3676
        %v3805 = vunpack.c.l.b16 %v3677
        %v3806 = vunpack.c.l.b16 %v3678
        %v3807 = vunpack.c.l.b16 %v3679
        %v3808 = vunpack.c.l.b16 %v3680
        %v3809 = vunpack.c.l.b16 %v3681
        %v3810 = vunpack.c.l.b16 %v3682
        %v3811 = vunpack.c.l.b16 %v3683
        %v3812 = vunpack.c.l.b16 %v3684
        %v3813 = vunpack.c.l.b16 %v3685
        %v3814 = vunpack.c.l.b16 %v3686
        %v3815 = vunpack.c.l.b16 %v3687
        %v3816 = vunpack.c.l.b16 %v3688
        %v3817 = vunpack.c.l.b16 %v3689
        %v3818 = vunpack.c.l.b16 %v3690
        %v3819 = vunpack.c.l.b16 %v3691
        %v3820 = vunpack.c.l.b16 %v3692
        %v3821 = vunpack.c.l.b16 %v3693
        %v3822 = vunpack.c.l.b16 %v3694
        %v3823 = vunpack.c.l.b16 %v3695
        %v3824 = vunpack.c.l.b16 %v3696
        %v3825 = vunpack.c.l.b16 %v3697
        %v3826 = vunpack.c.l.b16 %v3698
        %v3827 = vunpack.c.l.b16 %v3699
        %v3828 = vunpack.c.l.b16 %v3700
        %v3829 = vunpack.c.l.b16 %v3701
        %v3830 = vunpack.c.l.b16 %v3702
        %v3831 = vunpack.c.l.b16 %v3703
        %v3832 = vunpack.c.l.b16 %v3704
        %v3833 = vunpack.c.l.b16 %v3705
        %v3834 = vunpack.c.l.b16 %v3706
        %v3835 = vunpack.c.l.b16 %v3707
        %v3836 = vunpack.c.l.b16 %v3708
        %v3837 = vunpack.c.l.b16 %v3709
        %v3838 = vunpack.c.l.b16 %v3710
        %v3839 = vunpack.c.l.b16 %v3711
        %v3840 = vunpack.c.l.b16 %v3712
        %v3841 = vunpack.c.l.b16 %v3713
        %v3842 = vunpack.c.l.b16 %v3714
        %v3843 = vunpack.c.l.b16 %v3715
        %v3844 = vunpack.c.l.b16 %v3716
        %v3845 = vunpack.c.l.b16 %v3717
        %v3846 = vunpack.c.l.b16 %v3718
        %v3847 = vunpack.c.l.b16 %v3719
        %v3848 = vunpack.c.l.b16 %v3720
        %v3849 = vunpack.c.l.b16 %v3721
        %v3850 = vunpack.c.l.b16 %v3722
        %v3851 = vunpack.c.l.b16 %v3723
        %v3852 = vunpack.c.l.b16 %v3724
        %v3853 = vunpack.c.l.b16 %v3725
        %v3854 = vunpack.c.l.b16 %v3726
        %v3855 = vunpack.c.l.b16 %v3727
        %v3856 = vunpack.c.l.b16 %v3728
        %v3857 = vunpack.c.l.b16 %v3729
        %v3858 = vunpack.c.l.b16 %v3730
        %v3859 = vpack.c.b16 %v3796, %v3795
        %v3860 = vpack.c.b16 %v3798, %v3797
        %v3861 = vpack.c.b16 %v3800, %v3799
        %v3862 = vpack.c.b16 %v3802, %v3801
        %v3863 = vpack.c.b16 %v3804, %v3803
        %v3864 = vpack.c.b16 %v3806, %v3805
        %v3865 = vpack.c.b16 %v3808, %v3807
        %v3866 = vpack.c.b16 %v3810, %v3809
        %v3867 = vpack.c.b16 %v3812, %v3811
        %v3868 = vpack.c.b16 %v3814, %v3813
        %v3869 = vpack.c.b16 %v3816, %v3815
        %v3870 = vpack.c.b16 %v3818, %v3817
        %v3871 = vpack.c.b16 %v3820, %v3819
        %v3872 = vpack.c.b16 %v3822, %v3821
        %v3873 = vpack.c.b16 %v3824, %v3823
        %v3874 = vpack.c.b16 %v3826, %v3825
        %v3875 = vpack.c.b16 %v3828, %v3827
        %v3876 = vpack.c.b16 %v3830, %v3829
        %v3877 = vpack.c.b16 %v3832, %v3831
        %v3878 = vpack.c.b16 %v3834, %v3833
        %v3879 = vpack.c.b16 %v3836, %v3835
        %v3880 = vpack.c.b16 %v3838, %v3837
        %v3881 = vpack.c.b16 %v3840, %v3839
        %v3882 = vpack.c.b16 %v3842, %v3841
        %v3883 = vpack.c.b16 %v3844, %v3843
        %v3884 = vpack.c.b16 %v3846, %v3845
        %v3885 = vpack.c.b16 %v3848, %v3847
        %v3886 = vpack.c.b16 %v3850, %v3849
        %v3887 = vpack.c.b16 %v3852, %v3851
        %v3888 = vpack.c.b16 %v3854, %v3853
        %v3889 = vpack.c.b16 %v3856, %v3855
        %v3890 = vpack.c.b16 %v3858, %v3857
        %3923 = vmatprep.subr.bf16.mxu0 0
        %3924 = vmatpush1.bf16.msra.mxu0 %v3666
        %3925 = vmatprep.subr.bf16.mxu0 0
        %3926 = vmatpush1.bf16.msra.mxu0 %v3665
        %3927 = vmatprep.subr.bf16.mxu0 0
        %3928 = vmatpush1.bf16.msra.mxu0 %v3664
        %3929 = vmatprep.subr.bf16.mxu0 0
        %3930 = vmatpush1.bf16.msra.mxu0 %v3663
        %3931 = vmatprep.subr.bf16.mxu0 0
        %3932 = vmatpush1.bf16.msra.mxu0 %v3662
        %3933 = vmatprep.subr.bf16.mxu0 0
        %3934 = vmatpush1.bf16.msra.mxu0 %v3661
        %3935 = vmatprep.subr.bf16.mxu0 0
        %3936 = vmatpush1.bf16.msra.mxu0 %v3660
        %3937 = vmatprep.subr.bf16.mxu0 0
        %3938 = vmatpush1.bf16.msra.mxu0 %v3659
        %3939 = vmatprep.subr.bf16.mxu0 0
        %3940 = vmatpush2.bf16.msra.mxu0 0
        %3941 = vmatprep.subr.bf16.mxu0 0
        %3942 = vmatpush2.bf16.msra.mxu0 0
        %3943 = vmatprep.subr.bf16.mxu0 0
        %3944 = vmatpush2.bf16.msra.mxu0 0
        %3945 = vmatprep.subr.bf16.mxu0 0
        %3946 = vmatpush2.bf16.msra.mxu0 0
        %3947 = vmatprep.subr.bf16.mxu0 0
        %3948 = vmatpush2.bf16.msra.mxu0 0
        %3949 = vmatprep.subr.bf16.mxu0 0
        %3950 = vmatpush2.bf16.msra.mxu0 0
        %3951 = vmatprep.subr.bf16.mxu0 0
        %3952 = vmatpush2.bf16.msra.mxu0 0
        %3953 = vmatprep.subr.bf16.mxu0 0
        %3954 = vmatpush2.bf16.msra.mxu0 0
        %3955 = vmatprep.mubr.bf16.mxu0 0
        %3956 = vmatmul.mubr.bf16.gmra.mxu0 %v3859
        %v3957 = vpop.f32.mrf.mxu0
        %v3958 = vadd.f32 0.0, %v3957
        %v3959 = vpop.f32.mrf.mxu0
        %v3960 = vpop.f32.mrf.mxu0
        %v3961 = vadd.f32 0.0, %v3960
        %v3962 = vpop.f32.mrf.mxu0
        %3963 = vmatprep.mubr.bf16.mxu0 0
        %3964 = vmatmul.mubr.bf16.gmra.mxu0 %v3860
        %v3965 = vpop.f32.mrf.mxu0
        %v3966 = vadd.f32 0.0, %v3965
        %v3967 = vpop.f32.mrf.mxu0
        %v3968 = vpop.f32.mrf.mxu0
        %v3969 = vadd.f32 0.0, %v3968
        %v3970 = vpop.f32.mrf.mxu0
        %3971 = vmatprep.mubr.bf16.mxu0 0
        %3972 = vmatmul.mubr.bf16.gmra.mxu0 %v3861
        %v3973 = vpop.f32.mrf.mxu0
        %v3974 = vadd.f32 0.0, %v3973
        %v3975 = vpop.f32.mrf.mxu0
        %v3976 = vpop.f32.mrf.mxu0
        %v3977 = vadd.f32 0.0, %v3976
        %v3978 = vpop.f32.mrf.mxu0
        %3979 = vmatprep.mubr.bf16.mxu0 0
        %3980 = vmatmul.mubr.bf16.gmra.mxu0 %v3862
        %v3981 = vpop.f32.mrf.mxu0
        %v3982 = vadd.f32 0.0, %v3981
        %v3983 = vpop.f32.mrf.mxu0
        %v3984 = vpop.f32.mrf.mxu0
        %v3985 = vadd.f32 0.0, %v3984
        %v3986 = vpop.f32.mrf.mxu0
        %3987 = vmatprep.mubr.bf16.mxu0 0
        %3988 = vmatmul.mubr.bf16.gmra.mxu0 %v3863
        %v3989 = vpop.f32.mrf.mxu0
        %v3990 = vadd.f32 0.0, %v3989
        %v3991 = vpop.f32.mrf.mxu0
        %v3992 = vpop.f32.mrf.mxu0
        %v3993 = vadd.f32 0.0, %v3992
        %v3994 = vpop.f32.mrf.mxu0
        %3995 = vmatprep.mubr.bf16.mxu0 0
        %3996 = vmatmul.mubr.bf16.gmra.mxu0 %v3864
        %v3997 = vpop.f32.mrf.mxu0
        %v3998 = vadd.f32 0.0, %v3997
        %v3999 = vpop.f32.mrf.mxu0
        %v4000 = vpop.f32.mrf.mxu0
        %v4001 = vadd.f32 0.0, %v4000
        %v4002 = vpop.f32.mrf.mxu0
        %4003 = vmatprep.mubr.bf16.mxu0 0
        %4004 = vmatmul.mubr.bf16.gmra.mxu0 %v3865
        %v4005 = vpop.f32.mrf.mxu0
        %v4006 = vadd.f32 0.0, %v4005
        %v4007 = vpop.f32.mrf.mxu0
        %v4008 = vpop.f32.mrf.mxu0
        %v4009 = vadd.f32 0.0, %v4008
        %v4010 = vpop.f32.mrf.mxu0
        %4011 = vmatprep.mubr.bf16.mxu0 0
        %4012 = vmatmul.mubr.bf16.gmra.mxu0 %v3866
        %v4013 = vpop.f32.mrf.mxu0
        %v4014 = vadd.f32 0.0, %v4013
        %v4015 = vpop.f32.mrf.mxu0
        %v4016 = vpop.f32.mrf.mxu0
        %v4017 = vadd.f32 0.0, %v4016
        %v4018 = vpop.f32.mrf.mxu0
        %4019 = vmatprep.mubr.bf16.mxu0 0
        %4020 = vmatmul.mubr.bf16.gmra.mxu0 %v3867
        %v4021 = vpop.f32.mrf.mxu0
        %v4022 = vadd.f32 0.0, %v4021
        %v4023 = vpop.f32.mrf.mxu0
        %v4024 = vpop.f32.mrf.mxu0
        %v4025 = vadd.f32 0.0, %v4024
        %v4026 = vpop.f32.mrf.mxu0
        %4027 = vmatprep.mubr.bf16.mxu0 0
        %4028 = vmatmul.mubr.bf16.gmra.mxu0 %v3868
        %v4029 = vpop.f32.mrf.mxu0
        %v4030 = vadd.f32 0.0, %v4029
        %v4031 = vpop.f32.mrf.mxu0
        %v4032 = vpop.f32.mrf.mxu0
        %v4033 = vadd.f32 0.0, %v4032
        %v4034 = vpop.f32.mrf.mxu0
        %4035 = vmatprep.mubr.bf16.mxu0 0
        %4036 = vmatmul.mubr.bf16.gmra.mxu0 %v3869
        %v4037 = vpop.f32.mrf.mxu0
        %v4038 = vadd.f32 0.0, %v4037
        %v4039 = vpop.f32.mrf.mxu0
        %v4040 = vpop.f32.mrf.mxu0
        %v4041 = vadd.f32 0.0, %v4040
        %v4042 = vpop.f32.mrf.mxu0
        %4043 = vmatprep.mubr.bf16.mxu0 0
        %4044 = vmatmul.mubr.bf16.gmra.mxu0 %v3870
        %v4045 = vpop.f32.mrf.mxu0
        %v4046 = vadd.f32 0.0, %v4045
        %v4047 = vpop.f32.mrf.mxu0
        %v4048 = vpop.f32.mrf.mxu0
        %v4049 = vadd.f32 0.0, %v4048
        %v4050 = vpop.f32.mrf.mxu0
        %4051 = vmatprep.mubr.bf16.mxu0 0
        %4052 = vmatmul.mubr.bf16.gmra.mxu0 %v3871
        %v4053 = vpop.f32.mrf.mxu0
        %v4054 = vadd.f32 0.0, %v4053
        %v4055 = vpop.f32.mrf.mxu0
        %v4056 = vpop.f32.mrf.mxu0
        %v4057 = vadd.f32 0.0, %v4056
        %v4058 = vpop.f32.mrf.mxu0
        %4059 = vmatprep.mubr.bf16.mxu0 0
        %4060 = vmatmul.mubr.bf16.gmra.mxu0 %v3872
        %v4061 = vpop.f32.mrf.mxu0
        %v4062 = vadd.f32 0.0, %v4061
        %v4063 = vpop.f32.mrf.mxu0
        %v4064 = vpop.f32.mrf.mxu0
        %v4065 = vadd.f32 0.0, %v4064
        %v4066 = vpop.f32.mrf.mxu0
        %4067 = vmatprep.mubr.bf16.mxu0 0
        %4068 = vmatmul.mubr.bf16.gmra.mxu0 %v3873
        %v4069 = vpop.f32.mrf.mxu0
        %v4070 = vadd.f32 0.0, %v4069
        %v4071 = vpop.f32.mrf.mxu0
        %v4072 = vpop.f32.mrf.mxu0
        %v4073 = vadd.f32 0.0, %v4072
        %v4074 = vpop.f32.mrf.mxu0
        %4075 = vmatprep.mubr.bf16.mxu0 0
        %4076 = vmatmul.mubr.bf16.gmra.mxu0 %v3874
        %v4077 = vpop.f32.mrf.mxu0
        %v4078 = vadd.f32 0.0, %v4077
        %v4079 = vpop.f32.mrf.mxu0
        %v4080 = vpop.f32.mrf.mxu0
        %v4081 = vadd.f32 0.0, %v4080
        %v4082 = vpop.f32.mrf.mxu0
        %4083 = vmatprep.mubr.bf16.mxu0 0
        %4084 = vmatmul.mubr.bf16.gmra.mxu0 %v3875
        %v4085 = vpop.f32.mrf.mxu0
        %v4086 = vadd.f32 0.0, %v4085
        %v4087 = vpop.f32.mrf.mxu0
        %v4088 = vpop.f32.mrf.mxu0
        %v4089 = vadd.f32 0.0, %v4088
        %v4090 = vpop.f32.mrf.mxu0
        %4091 = vmatprep.mubr.bf16.mxu0 0
        %4092 = vmatmul.mubr.bf16.gmra.mxu0 %v3876
        %v4093 = vpop.f32.mrf.mxu0
        %v4094 = vadd.f32 0.0, %v4093
        %v4095 = vpop.f32.mrf.mxu0
        %v4096 = vpop.f32.mrf.mxu0
        %v4097 = vadd.f32 0.0, %v4096
        %v4098 = vpop.f32.mrf.mxu0
        %4099 = vmatprep.mubr.bf16.mxu0 0
        %4100 = vmatmul.mubr.bf16.gmra.mxu0 %v3877
        %v4101 = vpop.f32.mrf.mxu0
        %v4102 = vadd.f32 0.0, %v4101
        %v4103 = vpop.f32.mrf.mxu0
        %v4104 = vpop.f32.mrf.mxu0
        %v4105 = vadd.f32 0.0, %v4104
        %v4106 = vpop.f32.mrf.mxu0
        %4107 = vmatprep.mubr.bf16.mxu0 0
        %4108 = vmatmul.mubr.bf16.gmra.mxu0 %v3878
        %v4109 = vpop.f32.mrf.mxu0
        %v4110 = vadd.f32 0.0, %v4109
        %v4111 = vpop.f32.mrf.mxu0
        %v4112 = vpop.f32.mrf.mxu0
        %v4113 = vadd.f32 0.0, %v4112
        %v4114 = vpop.f32.mrf.mxu0
        %4115 = vmatprep.mubr.bf16.mxu0 0
        %4116 = vmatmul.mubr.bf16.gmra.mxu0 %v3879
        %v4117 = vpop.f32.mrf.mxu0
        %v4118 = vadd.f32 0.0, %v4117
        %v4119 = vpop.f32.mrf.mxu0
        %v4120 = vpop.f32.mrf.mxu0
        %v4121 = vadd.f32 0.0, %v4120
        %v4122 = vpop.f32.mrf.mxu0
        %4123 = vmatprep.mubr.bf16.mxu0 0
        %4124 = vmatmul.mubr.bf16.gmra.mxu0 %v3880
        %v4125 = vpop.f32.mrf.mxu0
        %v4126 = vadd.f32 0.0, %v4125
        %v4127 = vpop.f32.mrf.mxu0
        %v4128 = vpop.f32.mrf.mxu0
        %v4129 = vadd.f32 0.0, %v4128
        %v4130 = vpop.f32.mrf.mxu0
        %4131 = vmatprep.mubr.bf16.mxu0 0
        %4132 = vmatmul.mubr.bf16.gmra.mxu0 %v3881
        %v4133 = vpop.f32.mrf.mxu0
        %v4134 = vadd.f32 0.0, %v4133
        %v4135 = vpop.f32.mrf.mxu0
        %v4136 = vpop.f32.mrf.mxu0
        %v4137 = vadd.f32 0.0, %v4136
        %v4138 = vpop.f32.mrf.mxu0
        %4139 = vmatprep.mubr.bf16.mxu0 0
        %4140 = vmatmul.mubr.bf16.gmra.mxu0 %v3882
        %v4141 = vpop.f32.mrf.mxu0
        %v4142 = vadd.f32 0.0, %v4141
        %v4143 = vpop.f32.mrf.mxu0
        %v4144 = vpop.f32.mrf.mxu0
        %v4145 = vadd.f32 0.0, %v4144
        %v4146 = vpop.f32.mrf.mxu0
        %4147 = vmatprep.mubr.bf16.mxu0 0
        %4148 = vmatmul.mubr.bf16.gmra.mxu0 %v3883
        %v4149 = vpop.f32.mrf.mxu0
        %v4150 = vadd.f32 0.0, %v4149
        %v4151 = vpop.f32.mrf.mxu0
        %v4152 = vpop.f32.mrf.mxu0
        %v4153 = vadd.f32 0.0, %v4152
        %v4154 = vpop.f32.mrf.mxu0
        %4155 = vmatprep.mubr.bf16.mxu0 0
        %4156 = vmatmul.mubr.bf16.gmra.mxu0 %v3884
        %v4157 = vpop.f32.mrf.mxu0
        %v4158 = vadd.f32 0.0, %v4157
        %v4159 = vpop.f32.mrf.mxu0
        %v4160 = vpop.f32.mrf.mxu0
        %v4161 = vadd.f32 0.0, %v4160
        %v4162 = vpop.f32.mrf.mxu0
        %4163 = vmatprep.mubr.bf16.mxu0 0
        %4164 = vmatmul.mubr.bf16.gmra.mxu0 %v3885
        %v4165 = vpop.f32.mrf.mxu0
        %v4166 = vadd.f32 0.0, %v4165
        %v4167 = vpop.f32.mrf.mxu0
        %v4168 = vpop.f32.mrf.mxu0
        %v4169 = vadd.f32 0.0, %v4168
        %v4170 = vpop.f32.mrf.mxu0
        %4171 = vmatprep.mubr.bf16.mxu0 0
        %4172 = vmatmul.mubr.bf16.gmra.mxu0 %v3886
        %v4173 = vpop.f32.mrf.mxu0
        %v4174 = vadd.f32 0.0, %v4173
        %v4175 = vpop.f32.mrf.mxu0
        %v4176 = vpop.f32.mrf.mxu0
        %v4177 = vadd.f32 0.0, %v4176
        %v4178 = vpop.f32.mrf.mxu0
        %4179 = vmatprep.mubr.bf16.mxu0 0
        %4180 = vmatmul.mubr.bf16.gmra.mxu0 %v3887
        %v4181 = vpop.f32.mrf.mxu0
        %v4182 = vadd.f32 0.0, %v4181
        %v4183 = vpop.f32.mrf.mxu0
        %v4184 = vpop.f32.mrf.mxu0
        %v4185 = vadd.f32 0.0, %v4184
        %v4186 = vpop.f32.mrf.mxu0
        %4187 = vmatprep.mubr.bf16.mxu0 0
        %4188 = vmatmul.mubr.bf16.gmra.mxu0 %v3888
        %v4189 = vpop.f32.mrf.mxu0
        %v4190 = vadd.f32 0.0, %v4189
        %v4191 = vpop.f32.mrf.mxu0
        %v4192 = vpop.f32.mrf.mxu0
        %v4193 = vadd.f32 0.0, %v4192
        %v4194 = vpop.f32.mrf.mxu0
        %4195 = vmatprep.mubr.bf16.mxu0 0
        %4196 = vmatmul.mubr.bf16.gmra.mxu0 %v3889
        %v4197 = vpop.f32.mrf.mxu0
        %v4198 = vadd.f32 0.0, %v4197
        %v4199 = vpop.f32.mrf.mxu0
        %v4200 = vpop.f32.mrf.mxu0
        %v4201 = vadd.f32 0.0, %v4200
        %v4202 = vpop.f32.mrf.mxu0
        %4203 = vmatprep.mubr.bf16.mxu0 0
        %4204 = vmatmul.mubr.bf16.gmra.mxu0 %v3890
        %v4205 = vpop.f32.mrf.mxu0
        %v4206 = vadd.f32 0.0, %v4205
        %v4207 = vpop.f32.mrf.mxu0
        %v4208 = vpop.f32.mrf.mxu0
        %v4209 = vadd.f32 0.0, %v4208
        %v4210 = vpop.f32.mrf.mxu0
        %4211 = vdwg.mxu0
        %v4213 = vcombine.high %v3958, %v3958
        %v4215 = vunpack.c.l.s4 1966171168
        %v4216 = vunpack.c.0.s8 %v4215
        %v4217 = vlaneseq
        %v4218 = vshrl.u32 %v4217, 7
        %v4219 = vsub.s32 %v4216, %v4218
        %v4220 = vrot.slane %v3958, %v4219
        %v4222 = vunpack.c.l.s4 1966171168
        %v4223 = vunpack.c.0.s8 %v4222
        %v4224 = vlaneseq
        %v4225 = vshrl.u32 %v4224, 7
        %v4226 = vsub.s32 %v4223, %v4225
        %v4227 = vrot.slane %v4213, %v4226
        %v4228 = vcombine.high %v4220, %v4220
        %v4229 = vcombine.high %v4227, %v4227
        %v4231 = vunpack.c.l.s4 1966171168
        %v4232 = vunpack.c.0.s8 %v4231
        %v4233 = vlaneseq
        %v4234 = vshrl.u32 %v4233, 7
        %v4235 = vsub.s32 %v4232, %v4234
        %v4236 = vrot.slane %v4220, %v4235
        %v4238 = vunpack.c.l.s4 1966171168
        %v4239 = vunpack.c.0.s8 %v4238
        %v4240 = vlaneseq
        %v4241 = vshrl.u32 %v4240, 7
        %v4242 = vsub.s32 %v4239, %v4241
        %v4243 = vrot.slane %v4227, %v4242
        %v4245 = vunpack.c.l.s4 1966171168
        %v4246 = vunpack.c.0.s8 %v4245
        %v4247 = vlaneseq
        %v4248 = vshrl.u32 %v4247, 7
        %v4249 = vsub.s32 %v4246, %v4248
        %v4250 = vrot.slane %v4228, %v4249
        %v4252 = vunpack.c.l.s4 1966171168
        %v4253 = vunpack.c.0.s8 %v4252
        %v4254 = vlaneseq
        %v4255 = vshrl.u32 %v4254, 7
        %v4256 = vsub.s32 %v4253, %v4255
        %v4257 = vrot.slane %v4229, %v4256
        %v4258 = vcombine.high %v4236, %v4236
        %v4259 = vcombine.high %v4243, %v4243
        %v4260 = vcombine.high %v4250, %v4250
        %v4261 = vcombine.high %v4257, %v4257
        %v4262 = vlaneseq
        %v4263 = vshrl.u32 %v4262, 7
        %v4264 = vsub.s32 0, %v4263
        %v4265 = vrot.slane %v4236, %v4264
        %v4266 = vlaneseq
        %v4267 = vshrl.u32 %v4266, 7
        %v4268 = vsub.s32 0, %v4267
        %v4269 = vrot.slane %v4250, %v4268
        %v4270 = vlaneseq
        %v4271 = vshrl.u32 %v4270, 7
        %v4272 = vsub.s32 0, %v4271
        %v4273 = vrot.slane %v4258, %v4272
        %v4274 = vlaneseq
        %v4275 = vshrl.u32 %v4274, 7
        %v4276 = vsub.s32 0, %v4275
        %v4277 = vrot.slane %v4260, %v4276
        %v4278 = vlaneseq
        %v4279 = vshrl.u32 %v4278, 7
        %v4280 = vsub.s32 0, %v4279
        %v4281 = vrot.slane %v4243, %v4280
        %v4282 = vlaneseq
        %v4283 = vshrl.u32 %v4282, 7
        %v4284 = vsub.s32 0, %v4283
        %v4285 = vrot.slane %v4257, %v4284
        %v4286 = vlaneseq
        %v4287 = vshrl.u32 %v4286, 7
        %v4288 = vsub.s32 0, %v4287
        %v4289 = vrot.slane %v4259, %v4288
        %v4290 = vlaneseq
        %v4291 = vshrl.u32 %v4290, 7
        %v4292 = vsub.s32 0, %v4291
        %v4293 = vrot.slane %v4261, %v4292
        %v4302 = vmul.f32 %v4265, %v4022
        %v4303 = vmul.f32 %v4269, %v4022
        %v4304 = vmul.f32 %v4273, %v4022
        %v4305 = vmul.f32 %v4277, %v4022
        %v4306 = vmul.f32 %v4281, %v4022
        %v4307 = vmul.f32 %v4285, %v4022
        %v4308 = vmul.f32 %v4289, %v4022
        %v4309 = vmul.f32 %v4293, %v4022
        %v4311 = vcombine.high %v3961, %v3961
        %v4313 = vunpack.c.l.s4 1966171168
        %v4314 = vunpack.c.0.s8 %v4313
        %v4315 = vlaneseq
        %v4316 = vshrl.u32 %v4315, 7
        %v4317 = vsub.s32 %v4314, %v4316
        %v4318 = vrot.slane %v3961, %v4317
        %v4320 = vunpack.c.l.s4 1966171168
        %v4321 = vunpack.c.0.s8 %v4320
        %v4322 = vlaneseq
        %v4323 = vshrl.u32 %v4322, 7
        %v4324 = vsub.s32 %v4321, %v4323
        %v4325 = vrot.slane %v4311, %v4324
        %v4326 = vcombine.high %v4318, %v4318
        %v4327 = vcombine.high %v4325, %v4325
        %v4329 = vunpack.c.l.s4 1966171168
        %v4330 = vunpack.c.0.s8 %v4329
        %v4331 = vlaneseq
        %v4332 = vshrl.u32 %v4331, 7
        %v4333 = vsub.s32 %v4330, %v4332
        %v4334 = vrot.slane %v4318, %v4333
        %v4336 = vunpack.c.l.s4 1966171168
        %v4337 = vunpack.c.0.s8 %v4336
        %v4338 = vlaneseq
        %v4339 = vshrl.u32 %v4338, 7
        %v4340 = vsub.s32 %v4337, %v4339
        %v4341 = vrot.slane %v4325, %v4340
        %v4343 = vunpack.c.l.s4 1966171168
        %v4344 = vunpack.c.0.s8 %v4343
        %v4345 = vlaneseq
        %v4346 = vshrl.u32 %v4345, 7
        %v4347 = vsub.s32 %v4344, %v4346
        %v4348 = vrot.slane %v4326, %v4347
        %v4350 = vunpack.c.l.s4 1966171168
        %v4351 = vunpack.c.0.s8 %v4350
        %v4352 = vlaneseq
        %v4353 = vshrl.u32 %v4352, 7
        %v4354 = vsub.s32 %v4351, %v4353
        %v4355 = vrot.slane %v4327, %v4354
        %v4356 = vcombine.high %v4334, %v4334
        %v4357 = vcombine.high %v4341, %v4341
        %v4358 = vcombine.high %v4348, %v4348
        %v4359 = vcombine.high %v4355, %v4355
        %v4360 = vlaneseq
        %v4361 = vshrl.u32 %v4360, 7
        %v4362 = vsub.s32 0, %v4361
        %v4363 = vrot.slane %v4334, %v4362
        %v4364 = vlaneseq
        %v4365 = vshrl.u32 %v4364, 7
        %v4366 = vsub.s32 0, %v4365
        %v4367 = vrot.slane %v4348, %v4366
        %v4368 = vlaneseq
        %v4369 = vshrl.u32 %v4368, 7
        %v4370 = vsub.s32 0, %v4369
        %v4371 = vrot.slane %v4356, %v4370
        %v4372 = vlaneseq
        %v4373 = vshrl.u32 %v4372, 7
        %v4374 = vsub.s32 0, %v4373
        %v4375 = vrot.slane %v4358, %v4374
        %v4376 = vlaneseq
        %v4377 = vshrl.u32 %v4376, 7
        %v4378 = vsub.s32 0, %v4377
        %v4379 = vrot.slane %v4341, %v4378
        %v4380 = vlaneseq
        %v4381 = vshrl.u32 %v4380, 7
        %v4382 = vsub.s32 0, %v4381
        %v4383 = vrot.slane %v4355, %v4382
        %v4384 = vlaneseq
        %v4385 = vshrl.u32 %v4384, 7
        %v4386 = vsub.s32 0, %v4385
        %v4387 = vrot.slane %v4357, %v4386
        %v4388 = vlaneseq
        %v4389 = vshrl.u32 %v4388, 7
        %v4390 = vsub.s32 0, %v4389
        %v4391 = vrot.slane %v4359, %v4390
        %v4400 = vmul.f32 %v4363, %v4025
        %v4401 = vmul.f32 %v4367, %v4025
        %v4402 = vmul.f32 %v4371, %v4025
        %v4403 = vmul.f32 %v4375, %v4025
        %v4404 = vmul.f32 %v4379, %v4025
        %v4405 = vmul.f32 %v4383, %v4025
        %v4406 = vmul.f32 %v4387, %v4025
        %v4407 = vmul.f32 %v4391, %v4025
        %v4408 = vadd.f32 %v4302, %v4400
        %v4409 = vadd.f32 %v4303, %v4401
        %v4410 = vadd.f32 %v4304, %v4402
        %v4411 = vadd.f32 %v4305, %v4403
        %v4412 = vadd.f32 %v4306, %v4404
        %v4413 = vadd.f32 %v4307, %v4405
        %v4414 = vadd.f32 %v4308, %v4406
        %v4415 = vadd.f32 %v4309, %v4407
        %v4417 = vcombine.high %v3966, %v3966
        %v4419 = vunpack.c.l.s4 1966171168
        %v4420 = vunpack.c.0.s8 %v4419
        %v4421 = vlaneseq
        %v4422 = vshrl.u32 %v4421, 7
        %v4423 = vsub.s32 %v4420, %v4422
        %v4424 = vrot.slane %v3966, %v4423
        %v4426 = vunpack.c.l.s4 1966171168
        %v4427 = vunpack.c.0.s8 %v4426
        %v4428 = vlaneseq
        %v4429 = vshrl.u32 %v4428, 7
        %v4430 = vsub.s32 %v4427, %v4429
        %v4431 = vrot.slane %v4417, %v4430
        %v4432 = vcombine.high %v4424, %v4424
        %v4433 = vcombine.high %v4431, %v4431
        %v4435 = vunpack.c.l.s4 1966171168
        %v4436 = vunpack.c.0.s8 %v4435
        %v4437 = vlaneseq
        %v4438 = vshrl.u32 %v4437, 7
        %v4439 = vsub.s32 %v4436, %v4438
        %v4440 = vrot.slane %v4424, %v4439
        %v4442 = vunpack.c.l.s4 1966171168
        %v4443 = vunpack.c.0.s8 %v4442
        %v4444 = vlaneseq
        %v4445 = vshrl.u32 %v4444, 7
        %v4446 = vsub.s32 %v4443, %v4445
        %v4447 = vrot.slane %v4431, %v4446
        %v4449 = vunpack.c.l.s4 1966171168
        %v4450 = vunpack.c.0.s8 %v4449
        %v4451 = vlaneseq
        %v4452 = vshrl.u32 %v4451, 7
        %v4453 = vsub.s32 %v4450, %v4452
        %v4454 = vrot.slane %v4432, %v4453
        %v4456 = vunpack.c.l.s4 1966171168
        %v4457 = vunpack.c.0.s8 %v4456
        %v4458 = vlaneseq
        %v4459 = vshrl.u32 %v4458, 7
        %v4460 = vsub.s32 %v4457, %v4459
        %v4461 = vrot.slane %v4433, %v4460
        %v4462 = vcombine.high %v4440, %v4440
        %v4463 = vcombine.high %v4447, %v4447
        %v4464 = vcombine.high %v4454, %v4454
        %v4465 = vcombine.high %v4461, %v4461
        %v4466 = vlaneseq
        %v4467 = vshrl.u32 %v4466, 7
        %v4468 = vsub.s32 0, %v4467
        %v4469 = vrot.slane %v4440, %v4468
        %v4470 = vlaneseq
        %v4471 = vshrl.u32 %v4470, 7
        %v4472 = vsub.s32 0, %v4471
        %v4473 = vrot.slane %v4454, %v4472
        %v4474 = vlaneseq
        %v4475 = vshrl.u32 %v4474, 7
        %v4476 = vsub.s32 0, %v4475
        %v4477 = vrot.slane %v4462, %v4476
        %v4478 = vlaneseq
        %v4479 = vshrl.u32 %v4478, 7
        %v4480 = vsub.s32 0, %v4479
        %v4481 = vrot.slane %v4464, %v4480
        %v4482 = vlaneseq
        %v4483 = vshrl.u32 %v4482, 7
        %v4484 = vsub.s32 0, %v4483
        %v4485 = vrot.slane %v4447, %v4484
        %v4486 = vlaneseq
        %v4487 = vshrl.u32 %v4486, 7
        %v4488 = vsub.s32 0, %v4487
        %v4489 = vrot.slane %v4461, %v4488
        %v4490 = vlaneseq
        %v4491 = vshrl.u32 %v4490, 7
        %v4492 = vsub.s32 0, %v4491
        %v4493 = vrot.slane %v4463, %v4492
        %v4494 = vlaneseq
        %v4495 = vshrl.u32 %v4494, 7
        %v4496 = vsub.s32 0, %v4495
        %v4497 = vrot.slane %v4465, %v4496
        %v4506 = vmul.f32 %v4469, %v4030
        %v4507 = vmul.f32 %v4473, %v4030
        %v4508 = vmul.f32 %v4477, %v4030
        %v4509 = vmul.f32 %v4481, %v4030
        %v4510 = vmul.f32 %v4485, %v4030
        %v4511 = vmul.f32 %v4489, %v4030
        %v4512 = vmul.f32 %v4493, %v4030
        %v4513 = vmul.f32 %v4497, %v4030
        %v4514 = vadd.f32 %v4408, %v4506
        %v4515 = vadd.f32 %v4409, %v4507
        %v4516 = vadd.f32 %v4410, %v4508
        %v4517 = vadd.f32 %v4411, %v4509
        %v4518 = vadd.f32 %v4412, %v4510
        %v4519 = vadd.f32 %v4413, %v4511
        %v4520 = vadd.f32 %v4414, %v4512
        %v4521 = vadd.f32 %v4415, %v4513
        %v4523 = vcombine.high %v3969, %v3969
        %v4525 = vunpack.c.l.s4 1966171168
        %v4526 = vunpack.c.0.s8 %v4525
        %v4527 = vlaneseq
        %v4528 = vshrl.u32 %v4527, 7
        %v4529 = vsub.s32 %v4526, %v4528
        %v4530 = vrot.slane %v3969, %v4529
        %v4532 = vunpack.c.l.s4 1966171168
        %v4533 = vunpack.c.0.s8 %v4532
        %v4534 = vlaneseq
        %v4535 = vshrl.u32 %v4534, 7
        %v4536 = vsub.s32 %v4533, %v4535
        %v4537 = vrot.slane %v4523, %v4536
        %v4538 = vcombine.high %v4530, %v4530
        %v4539 = vcombine.high %v4537, %v4537
        %v4541 = vunpack.c.l.s4 1966171168
        %v4542 = vunpack.c.0.s8 %v4541
        %v4543 = vlaneseq
        %v4544 = vshrl.u32 %v4543, 7
        %v4545 = vsub.s32 %v4542, %v4544
        %v4546 = vrot.slane %v4530, %v4545
        %v4548 = vunpack.c.l.s4 1966171168
        %v4549 = vunpack.c.0.s8 %v4548
        %v4550 = vlaneseq
        %v4551 = vshrl.u32 %v4550, 7
        %v4552 = vsub.s32 %v4549, %v4551
        %v4553 = vrot.slane %v4537, %v4552
        %v4555 = vunpack.c.l.s4 1966171168
        %v4556 = vunpack.c.0.s8 %v4555
        %v4557 = vlaneseq
        %v4558 = vshrl.u32 %v4557, 7
        %v4559 = vsub.s32 %v4556, %v4558
        %v4560 = vrot.slane %v4538, %v4559
        %v4562 = vunpack.c.l.s4 1966171168
        %v4563 = vunpack.c.0.s8 %v4562
        %v4564 = vlaneseq
        %v4565 = vshrl.u32 %v4564, 7
        %v4566 = vsub.s32 %v4563, %v4565
        %v4567 = vrot.slane %v4539, %v4566
        %v4568 = vcombine.high %v4546, %v4546
        %v4569 = vcombine.high %v4553, %v4553
        %v4570 = vcombine.high %v4560, %v4560
        %v4571 = vcombine.high %v4567, %v4567
        %v4572 = vlaneseq
        %v4573 = vshrl.u32 %v4572, 7
        %v4574 = vsub.s32 0, %v4573
        %v4575 = vrot.slane %v4546, %v4574
        %v4576 = vlaneseq
        %v4577 = vshrl.u32 %v4576, 7
        %v4578 = vsub.s32 0, %v4577
        %v4579 = vrot.slane %v4560, %v4578
        %v4580 = vlaneseq
        %v4581 = vshrl.u32 %v4580, 7
        %v4582 = vsub.s32 0, %v4581
        %v4583 = vrot.slane %v4568, %v4582
        %v4584 = vlaneseq
        %v4585 = vshrl.u32 %v4584, 7
        %v4586 = vsub.s32 0, %v4585
        %v4587 = vrot.slane %v4570, %v4586
        %v4588 = vlaneseq
        %v4589 = vshrl.u32 %v4588, 7
        %v4590 = vsub.s32 0, %v4589
        %v4591 = vrot.slane %v4553, %v4590
        %v4592 = vlaneseq
        %v4593 = vshrl.u32 %v4592, 7
        %v4594 = vsub.s32 0, %v4593
        %v4595 = vrot.slane %v4567, %v4594
        %v4596 = vlaneseq
        %v4597 = vshrl.u32 %v4596, 7
        %v4598 = vsub.s32 0, %v4597
        %v4599 = vrot.slane %v4569, %v4598
        %v4600 = vlaneseq
        %v4601 = vshrl.u32 %v4600, 7
        %v4602 = vsub.s32 0, %v4601
        %v4603 = vrot.slane %v4571, %v4602
        %v4612 = vmul.f32 %v4575, %v4033
        %v4613 = vmul.f32 %v4579, %v4033
        %v4614 = vmul.f32 %v4583, %v4033
        %v4615 = vmul.f32 %v4587, %v4033
        %v4616 = vmul.f32 %v4591, %v4033
        %v4617 = vmul.f32 %v4595, %v4033
        %v4618 = vmul.f32 %v4599, %v4033
        %v4619 = vmul.f32 %v4603, %v4033
        %v4620 = vadd.f32 %v4514, %v4612
        %v4621 = vadd.f32 %v4515, %v4613
        %v4622 = vadd.f32 %v4516, %v4614
        %v4623 = vadd.f32 %v4517, %v4615
        %v4624 = vadd.f32 %v4518, %v4616
        %v4625 = vadd.f32 %v4519, %v4617
        %v4626 = vadd.f32 %v4520, %v4618
        %v4627 = vadd.f32 %v4521, %v4619
        %v4629 = vcombine.high %v3974, %v3974
        %v4631 = vunpack.c.l.s4 1966171168
        %v4632 = vunpack.c.0.s8 %v4631
        %v4633 = vlaneseq
        %v4634 = vshrl.u32 %v4633, 7
        %v4635 = vsub.s32 %v4632, %v4634
        %v4636 = vrot.slane %v3974, %v4635
        %v4638 = vunpack.c.l.s4 1966171168
        %v4639 = vunpack.c.0.s8 %v4638
        %v4640 = vlaneseq
        %v4641 = vshrl.u32 %v4640, 7
        %v4642 = vsub.s32 %v4639, %v4641
        %v4643 = vrot.slane %v4629, %v4642
        %v4644 = vcombine.high %v4636, %v4636
        %v4645 = vcombine.high %v4643, %v4643
        %v4647 = vunpack.c.l.s4 1966171168
        %v4648 = vunpack.c.0.s8 %v4647
        %v4649 = vlaneseq
        %v4650 = vshrl.u32 %v4649, 7
        %v4651 = vsub.s32 %v4648, %v4650
        %v4652 = vrot.slane %v4636, %v4651
        %v4654 = vunpack.c.l.s4 1966171168
        %v4655 = vunpack.c.0.s8 %v4654
        %v4656 = vlaneseq
        %v4657 = vshrl.u32 %v4656, 7
        %v4658 = vsub.s32 %v4655, %v4657
        %v4659 = vrot.slane %v4643, %v4658
        %v4661 = vunpack.c.l.s4 1966171168
        %v4662 = vunpack.c.0.s8 %v4661
        %v4663 = vlaneseq
        %v4664 = vshrl.u32 %v4663, 7
        %v4665 = vsub.s32 %v4662, %v4664
        %v4666 = vrot.slane %v4644, %v4665
        %v4668 = vunpack.c.l.s4 1966171168
        %v4669 = vunpack.c.0.s8 %v4668
        %v4670 = vlaneseq
        %v4671 = vshrl.u32 %v4670, 7
        %v4672 = vsub.s32 %v4669, %v4671
        %v4673 = vrot.slane %v4645, %v4672
        %v4674 = vcombine.high %v4652, %v4652
        %v4675 = vcombine.high %v4659, %v4659
        %v4676 = vcombine.high %v4666, %v4666
        %v4677 = vcombine.high %v4673, %v4673
        %v4678 = vlaneseq
        %v4679 = vshrl.u32 %v4678, 7
        %v4680 = vsub.s32 0, %v4679
        %v4681 = vrot.slane %v4652, %v4680
        %v4682 = vlaneseq
        %v4683 = vshrl.u32 %v4682, 7
        %v4684 = vsub.s32 0, %v4683
        %v4685 = vrot.slane %v4666, %v4684
        %v4686 = vlaneseq
        %v4687 = vshrl.u32 %v4686, 7
        %v4688 = vsub.s32 0, %v4687
        %v4689 = vrot.slane %v4674, %v4688
        %v4690 = vlaneseq
        %v4691 = vshrl.u32 %v4690, 7
        %v4692 = vsub.s32 0, %v4691
        %v4693 = vrot.slane %v4676, %v4692
        %v4694 = vlaneseq
        %v4695 = vshrl.u32 %v4694, 7
        %v4696 = vsub.s32 0, %v4695
        %v4697 = vrot.slane %v4659, %v4696
        %v4698 = vlaneseq
        %v4699 = vshrl.u32 %v4698, 7
        %v4700 = vsub.s32 0, %v4699
        %v4701 = vrot.slane %v4673, %v4700
        %v4702 = vlaneseq
        %v4703 = vshrl.u32 %v4702, 7
        %v4704 = vsub.s32 0, %v4703
        %v4705 = vrot.slane %v4675, %v4704
        %v4706 = vlaneseq
        %v4707 = vshrl.u32 %v4706, 7
        %v4708 = vsub.s32 0, %v4707
        %v4709 = vrot.slane %v4677, %v4708
        %v4718 = vmul.f32 %v4681, %v4038
        %v4719 = vmul.f32 %v4685, %v4038
        %v4720 = vmul.f32 %v4689, %v4038
        %v4721 = vmul.f32 %v4693, %v4038
        %v4722 = vmul.f32 %v4697, %v4038
        %v4723 = vmul.f32 %v4701, %v4038
        %v4724 = vmul.f32 %v4705, %v4038
        %v4725 = vmul.f32 %v4709, %v4038
        %v4726 = vadd.f32 %v4620, %v4718
        %v4727 = vadd.f32 %v4621, %v4719
        %v4728 = vadd.f32 %v4622, %v4720
        %v4729 = vadd.f32 %v4623, %v4721
        %v4730 = vadd.f32 %v4624, %v4722
        %v4731 = vadd.f32 %v4625, %v4723
        %v4732 = vadd.f32 %v4626, %v4724
        %v4733 = vadd.f32 %v4627, %v4725
        %v4735 = vcombine.high %v3977, %v3977
        %v4737 = vunpack.c.l.s4 1966171168
        %v4738 = vunpack.c.0.s8 %v4737
        %v4739 = vlaneseq
        %v4740 = vshrl.u32 %v4739, 7
        %v4741 = vsub.s32 %v4738, %v4740
        %v4742 = vrot.slane %v3977, %v4741
        %v4744 = vunpack.c.l.s4 1966171168
        %v4745 = vunpack.c.0.s8 %v4744
        %v4746 = vlaneseq
        %v4747 = vshrl.u32 %v4746, 7
        %v4748 = vsub.s32 %v4745, %v4747
        %v4749 = vrot.slane %v4735, %v4748
        %v4750 = vcombine.high %v4742, %v4742
        %v4751 = vcombine.high %v4749, %v4749
        %v4753 = vunpack.c.l.s4 1966171168
        %v4754 = vunpack.c.0.s8 %v4753
        %v4755 = vlaneseq
        %v4756 = vshrl.u32 %v4755, 7
        %v4757 = vsub.s32 %v4754, %v4756
        %v4758 = vrot.slane %v4742, %v4757
        %v4760 = vunpack.c.l.s4 1966171168
        %v4761 = vunpack.c.0.s8 %v4760
        %v4762 = vlaneseq
        %v4763 = vshrl.u32 %v4762, 7
        %v4764 = vsub.s32 %v4761, %v4763
        %v4765 = vrot.slane %v4749, %v4764
        %v4767 = vunpack.c.l.s4 1966171168
        %v4768 = vunpack.c.0.s8 %v4767
        %v4769 = vlaneseq
        %v4770 = vshrl.u32 %v4769, 7
        %v4771 = vsub.s32 %v4768, %v4770
        %v4772 = vrot.slane %v4750, %v4771
        %v4774 = vunpack.c.l.s4 1966171168
        %v4775 = vunpack.c.0.s8 %v4774
        %v4776 = vlaneseq
        %v4777 = vshrl.u32 %v4776, 7
        %v4778 = vsub.s32 %v4775, %v4777
        %v4779 = vrot.slane %v4751, %v4778
        %v4780 = vcombine.high %v4758, %v4758
        %v4781 = vcombine.high %v4765, %v4765
        %v4782 = vcombine.high %v4772, %v4772
        %v4783 = vcombine.high %v4779, %v4779
        %v4784 = vlaneseq
        %v4785 = vshrl.u32 %v4784, 7
        %v4786 = vsub.s32 0, %v4785
        %v4787 = vrot.slane %v4758, %v4786
        %v4788 = vlaneseq
        %v4789 = vshrl.u32 %v4788, 7
        %v4790 = vsub.s32 0, %v4789
        %v4791 = vrot.slane %v4772, %v4790
        %v4792 = vlaneseq
        %v4793 = vshrl.u32 %v4792, 7
        %v4794 = vsub.s32 0, %v4793
        %v4795 = vrot.slane %v4780, %v4794
        %v4796 = vlaneseq
        %v4797 = vshrl.u32 %v4796, 7
        %v4798 = vsub.s32 0, %v4797
        %v4799 = vrot.slane %v4782, %v4798
        %v4800 = vlaneseq
        %v4801 = vshrl.u32 %v4800, 7
        %v4802 = vsub.s32 0, %v4801
        %v4803 = vrot.slane %v4765, %v4802
        %v4804 = vlaneseq
        %v4805 = vshrl.u32 %v4804, 7
        %v4806 = vsub.s32 0, %v4805
        %v4807 = vrot.slane %v4779, %v4806
        %v4808 = vlaneseq
        %v4809 = vshrl.u32 %v4808, 7
        %v4810 = vsub.s32 0, %v4809
        %v4811 = vrot.slane %v4781, %v4810
        %v4812 = vlaneseq
        %v4813 = vshrl.u32 %v4812, 7
        %v4814 = vsub.s32 0, %v4813
        %v4815 = vrot.slane %v4783, %v4814
        %v4824 = vmul.f32 %v4787, %v4041
        %v4825 = vmul.f32 %v4791, %v4041
        %v4826 = vmul.f32 %v4795, %v4041
        %v4827 = vmul.f32 %v4799, %v4041
        %v4828 = vmul.f32 %v4803, %v4041
        %v4829 = vmul.f32 %v4807, %v4041
        %v4830 = vmul.f32 %v4811, %v4041
        %v4831 = vmul.f32 %v4815, %v4041
        %v4832 = vadd.f32 %v4726, %v4824
        %v4833 = vadd.f32 %v4727, %v4825
        %v4834 = vadd.f32 %v4728, %v4826
        %v4835 = vadd.f32 %v4729, %v4827
        %v4836 = vadd.f32 %v4730, %v4828
        %v4837 = vadd.f32 %v4731, %v4829
        %v4838 = vadd.f32 %v4732, %v4830
        %v4839 = vadd.f32 %v4733, %v4831
        %v4841 = vcombine.high %v3982, %v3982
        %v4843 = vunpack.c.l.s4 1966171168
        %v4844 = vunpack.c.0.s8 %v4843
        %v4845 = vlaneseq
        %v4846 = vshrl.u32 %v4845, 7
        %v4847 = vsub.s32 %v4844, %v4846
        %v4848 = vrot.slane %v3982, %v4847
        %v4850 = vunpack.c.l.s4 1966171168
        %v4851 = vunpack.c.0.s8 %v4850
        %v4852 = vlaneseq
        %v4853 = vshrl.u32 %v4852, 7
        %v4854 = vsub.s32 %v4851, %v4853
        %v4855 = vrot.slane %v4841, %v4854
        %v4856 = vcombine.high %v4848, %v4848
        %v4857 = vcombine.high %v4855, %v4855
        %v4859 = vunpack.c.l.s4 1966171168
        %v4860 = vunpack.c.0.s8 %v4859
        %v4861 = vlaneseq
        %v4862 = vshrl.u32 %v4861, 7
        %v4863 = vsub.s32 %v4860, %v4862
        %v4864 = vrot.slane %v4848, %v4863
        %v4866 = vunpack.c.l.s4 1966171168
        %v4867 = vunpack.c.0.s8 %v4866
        %v4868 = vlaneseq
        %v4869 = vshrl.u32 %v4868, 7
        %v4870 = vsub.s32 %v4867, %v4869
        %v4871 = vrot.slane %v4855, %v4870
        %v4873 = vunpack.c.l.s4 1966171168
        %v4874 = vunpack.c.0.s8 %v4873
        %v4875 = vlaneseq
        %v4876 = vshrl.u32 %v4875, 7
        %v4877 = vsub.s32 %v4874, %v4876
        %v4878 = vrot.slane %v4856, %v4877
        %v4880 = vunpack.c.l.s4 1966171168
        %v4881 = vunpack.c.0.s8 %v4880
        %v4882 = vlaneseq
        %v4883 = vshrl.u32 %v4882, 7
        %v4884 = vsub.s32 %v4881, %v4883
        %v4885 = vrot.slane %v4857, %v4884
        %v4886 = vcombine.high %v4864, %v4864
        %v4887 = vcombine.high %v4871, %v4871
        %v4888 = vcombine.high %v4878, %v4878
        %v4889 = vcombine.high %v4885, %v4885
        %v4890 = vlaneseq
        %v4891 = vshrl.u32 %v4890, 7
        %v4892 = vsub.s32 0, %v4891
        %v4893 = vrot.slane %v4864, %v4892
        %v4894 = vlaneseq
        %v4895 = vshrl.u32 %v4894, 7
        %v4896 = vsub.s32 0, %v4895
        %v4897 = vrot.slane %v4878, %v4896
        %v4898 = vlaneseq
        %v4899 = vshrl.u32 %v4898, 7
        %v4900 = vsub.s32 0, %v4899
        %v4901 = vrot.slane %v4886, %v4900
        %v4902 = vlaneseq
        %v4903 = vshrl.u32 %v4902, 7
        %v4904 = vsub.s32 0, %v4903
        %v4905 = vrot.slane %v4888, %v4904
        %v4906 = vlaneseq
        %v4907 = vshrl.u32 %v4906, 7
        %v4908 = vsub.s32 0, %v4907
        %v4909 = vrot.slane %v4871, %v4908
        %v4910 = vlaneseq
        %v4911 = vshrl.u32 %v4910, 7
        %v4912 = vsub.s32 0, %v4911
        %v4913 = vrot.slane %v4885, %v4912
        %v4914 = vlaneseq
        %v4915 = vshrl.u32 %v4914, 7
        %v4916 = vsub.s32 0, %v4915
        %v4917 = vrot.slane %v4887, %v4916
        %v4918 = vlaneseq
        %v4919 = vshrl.u32 %v4918, 7
        %v4920 = vsub.s32 0, %v4919
        %v4921 = vrot.slane %v4889, %v4920
        %v4930 = vmul.f32 %v4893, %v4046
        %v4931 = vmul.f32 %v4897, %v4046
        %v4932 = vmul.f32 %v4901, %v4046
        %v4933 = vmul.f32 %v4905, %v4046
        %v4934 = vmul.f32 %v4909, %v4046
        %v4935 = vmul.f32 %v4913, %v4046
        %v4936 = vmul.f32 %v4917, %v4046
        %v4937 = vmul.f32 %v4921, %v4046
        %v4938 = vadd.f32 %v4832, %v4930
        %v4939 = vadd.f32 %v4833, %v4931
        %v4940 = vadd.f32 %v4834, %v4932
        %v4941 = vadd.f32 %v4835, %v4933
        %v4942 = vadd.f32 %v4836, %v4934
        %v4943 = vadd.f32 %v4837, %v4935
        %v4944 = vadd.f32 %v4838, %v4936
        %v4945 = vadd.f32 %v4839, %v4937
        %v4947 = vcombine.high %v3985, %v3985
        %v4949 = vunpack.c.l.s4 1966171168
        %v4950 = vunpack.c.0.s8 %v4949
        %v4951 = vlaneseq
        %v4952 = vshrl.u32 %v4951, 7
        %v4953 = vsub.s32 %v4950, %v4952
        %v4954 = vrot.slane %v3985, %v4953
        %v4956 = vunpack.c.l.s4 1966171168
        %v4957 = vunpack.c.0.s8 %v4956
        %v4958 = vlaneseq
        %v4959 = vshrl.u32 %v4958, 7
        %v4960 = vsub.s32 %v4957, %v4959
        %v4961 = vrot.slane %v4947, %v4960
        %v4962 = vcombine.high %v4954, %v4954
        %v4963 = vcombine.high %v4961, %v4961
        %v4965 = vunpack.c.l.s4 1966171168
        %v4966 = vunpack.c.0.s8 %v4965
        %v4967 = vlaneseq
        %v4968 = vshrl.u32 %v4967, 7
        %v4969 = vsub.s32 %v4966, %v4968
        %v4970 = vrot.slane %v4954, %v4969
        %v4972 = vunpack.c.l.s4 1966171168
        %v4973 = vunpack.c.0.s8 %v4972
        %v4974 = vlaneseq
        %v4975 = vshrl.u32 %v4974, 7
        %v4976 = vsub.s32 %v4973, %v4975
        %v4977 = vrot.slane %v4961, %v4976
        %v4979 = vunpack.c.l.s4 1966171168
        %v4980 = vunpack.c.0.s8 %v4979
        %v4981 = vlaneseq
        %v4982 = vshrl.u32 %v4981, 7
        %v4983 = vsub.s32 %v4980, %v4982
        %v4984 = vrot.slane %v4962, %v4983
        %v4986 = vunpack.c.l.s4 1966171168
        %v4987 = vunpack.c.0.s8 %v4986
        %v4988 = vlaneseq
        %v4989 = vshrl.u32 %v4988, 7
        %v4990 = vsub.s32 %v4987, %v4989
        %v4991 = vrot.slane %v4963, %v4990
        %v4992 = vcombine.high %v4970, %v4970
        %v4993 = vcombine.high %v4977, %v4977
        %v4994 = vcombine.high %v4984, %v4984
        %v4995 = vcombine.high %v4991, %v4991
        %v4996 = vlaneseq
        %v4997 = vshrl.u32 %v4996, 7
        %v4998 = vsub.s32 0, %v4997
        %v4999 = vrot.slane %v4970, %v4998
        %v5000 = vlaneseq
        %v5001 = vshrl.u32 %v5000, 7
        %v5002 = vsub.s32 0, %v5001
        %v5003 = vrot.slane %v4984, %v5002
        %v5004 = vlaneseq
        %v5005 = vshrl.u32 %v5004, 7
        %v5006 = vsub.s32 0, %v5005
        %v5007 = vrot.slane %v4992, %v5006
        %v5008 = vlaneseq
        %v5009 = vshrl.u32 %v5008, 7
        %v5010 = vsub.s32 0, %v5009
        %v5011 = vrot.slane %v4994, %v5010
        %v5012 = vlaneseq
        %v5013 = vshrl.u32 %v5012, 7
        %v5014 = vsub.s32 0, %v5013
        %v5015 = vrot.slane %v4977, %v5014
        %v5016 = vlaneseq
        %v5017 = vshrl.u32 %v5016, 7
        %v5018 = vsub.s32 0, %v5017
        %v5019 = vrot.slane %v4991, %v5018
        %v5020 = vlaneseq
        %v5021 = vshrl.u32 %v5020, 7
        %v5022 = vsub.s32 0, %v5021
        %v5023 = vrot.slane %v4993, %v5022
        %v5024 = vlaneseq
        %v5025 = vshrl.u32 %v5024, 7
        %v5026 = vsub.s32 0, %v5025
        %v5027 = vrot.slane %v4995, %v5026
        %v5036 = vmul.f32 %v4999, %v4049
        %v5037 = vmul.f32 %v5003, %v4049
        %v5038 = vmul.f32 %v5007, %v4049
        %v5039 = vmul.f32 %v5011, %v4049
        %v5040 = vmul.f32 %v5015, %v4049
        %v5041 = vmul.f32 %v5019, %v4049
        %v5042 = vmul.f32 %v5023, %v4049
        %v5043 = vmul.f32 %v5027, %v4049
        %v5044 = vadd.f32 %v4938, %v5036
        %v5045 = vadd.f32 %v4939, %v5037
        %v5046 = vadd.f32 %v4940, %v5038
        %v5047 = vadd.f32 %v4941, %v5039
        %v5048 = vadd.f32 %v4942, %v5040
        %v5049 = vadd.f32 %v4943, %v5041
        %v5050 = vadd.f32 %v4944, %v5042
        %v5051 = vadd.f32 %v4945, %v5043
        %v5052 = vrot.slane %v5044, 4
        %v5053 = vmax.f32 %v5044, %v5052
        %v5054 = vrot.slane %v5053, 2
        %v5055 = vmax.f32 %v5053, %v5054
        %v5056 = vrot.slane %v5055, 1
        %v5057 = vmax.f32 %v5055, %v5056
        %v5058 = vrot.slane %v5045, 4
        %v5059 = vmax.f32 %v5045, %v5058
        %v5060 = vrot.slane %v5059, 2
        %v5061 = vmax.f32 %v5059, %v5060
        %v5062 = vrot.slane %v5061, 1
        %v5063 = vmax.f32 %v5061, %v5062
        %v5064 = vrot.slane %v5046, 4
        %v5065 = vmax.f32 %v5046, %v5064
        %v5066 = vrot.slane %v5065, 2
        %v5067 = vmax.f32 %v5065, %v5066
        %v5068 = vrot.slane %v5067, 1
        %v5069 = vmax.f32 %v5067, %v5068
        %v5070 = vrot.slane %v5047, 4
        %v5071 = vmax.f32 %v5047, %v5070
        %v5072 = vrot.slane %v5071, 2
        %v5073 = vmax.f32 %v5071, %v5072
        %v5074 = vrot.slane %v5073, 1
        %v5075 = vmax.f32 %v5073, %v5074
        %v5076 = vrot.slane %v5048, 4
        %v5077 = vmax.f32 %v5048, %v5076
        %v5078 = vrot.slane %v5077, 2
        %v5079 = vmax.f32 %v5077, %v5078
        %v5080 = vrot.slane %v5079, 1
        %v5081 = vmax.f32 %v5079, %v5080
        %v5082 = vrot.slane %v5049, 4
        %v5083 = vmax.f32 %v5049, %v5082
        %v5084 = vrot.slane %v5083, 2
        %v5085 = vmax.f32 %v5083, %v5084
        %v5086 = vrot.slane %v5085, 1
        %v5087 = vmax.f32 %v5085, %v5086
        %v5088 = vrot.slane %v5050, 4
        %v5089 = vmax.f32 %v5050, %v5088
        %v5090 = vrot.slane %v5089, 2
        %v5091 = vmax.f32 %v5089, %v5090
        %v5092 = vrot.slane %v5091, 1
        %v5093 = vmax.f32 %v5091, %v5092
        %v5094 = vrot.slane %v5051, 4
        %v5095 = vmax.f32 %v5051, %v5094
        %v5096 = vrot.slane %v5095, 2
        %v5097 = vmax.f32 %v5095, %v5096
        %v5098 = vrot.slane %v5097, 1
        %v5099 = vmax.f32 %v5097, %v5098
        %v5100 = vsub.f32 %v5044, %v5057
        %v5101 = vsub.f32 %v5045, %v5063
        %v5102 = vsub.f32 %v5046, %v5069
        %v5103 = vsub.f32 %v5047, %v5075
        %v5104 = vsub.f32 %v5048, %v5081
        %v5105 = vsub.f32 %v5049, %v5087
        %v5106 = vsub.f32 %v5050, %v5093
        %v5107 = vsub.f32 %v5051, %v5099
        %v5108 = vmul.f32 %v5100, 1.442695
        %v5109 = vpow.pop %v5108
        %v5110 = vmul.f32 %v5101, 1.442695
        %v5111 = vpow.pop %v5110
        %v5112 = vmul.f32 %v5102, 1.442695
        %v5113 = vpow.pop %v5112
        %v5114 = vmul.f32 %v5103, 1.442695
        %v5115 = vpow.pop %v5114
        %v5116 = vmul.f32 %v5104, 1.442695
        %v5117 = vpow.pop %v5116
        %v5118 = vmul.f32 %v5105, 1.442695
        %v5119 = vpow.pop %v5118
        %v5120 = vmul.f32 %v5106, 1.442695
        %v5121 = vpow.pop %v5120
        %v5122 = vmul.f32 %v5107, 1.442695
        %v5123 = vpow.pop %v5122
        %v5124 = vrot.slane %v5109, 4
        %v5125 = vadd.f32 %v5109, %v5124
        %v5126 = vrot.slane %v5125, 2
        %v5127 = vadd.f32 %v5125, %v5126
        %v5128 = vrot.slane %v5127, 1
        %v5129 = vadd.f32 %v5127, %v5128
        %v5130 = vrot.slane %v5111, 4
        %v5131 = vadd.f32 %v5111, %v5130
        %v5132 = vrot.slane %v5131, 2
        %v5133 = vadd.f32 %v5131, %v5132
        %v5134 = vrot.slane %v5133, 1
        %v5135 = vadd.f32 %v5133, %v5134
        %v5136 = vrot.slane %v5113, 4
        %v5137 = vadd.f32 %v5113, %v5136
        %v5138 = vrot.slane %v5137, 2
        %v5139 = vadd.f32 %v5137, %v5138
        %v5140 = vrot.slane %v5139, 1
        %v5141 = vadd.f32 %v5139, %v5140
        %v5142 = vrot.slane %v5115, 4
        %v5143 = vadd.f32 %v5115, %v5142
        %v5144 = vrot.slane %v5143, 2
        %v5145 = vadd.f32 %v5143, %v5144
        %v5146 = vrot.slane %v5145, 1
        %v5147 = vadd.f32 %v5145, %v5146
        %v5148 = vrot.slane %v5117, 4
        %v5149 = vadd.f32 %v5117, %v5148
        %v5150 = vrot.slane %v5149, 2
        %v5151 = vadd.f32 %v5149, %v5150
        %v5152 = vrot.slane %v5151, 1
        %v5153 = vadd.f32 %v5151, %v5152
        %v5154 = vrot.slane %v5119, 4
        %v5155 = vadd.f32 %v5119, %v5154
        %v5156 = vrot.slane %v5155, 2
        %v5157 = vadd.f32 %v5155, %v5156
        %v5158 = vrot.slane %v5157, 1
        %v5159 = vadd.f32 %v5157, %v5158
        %v5160 = vrot.slane %v5121, 4
        %v5161 = vadd.f32 %v5121, %v5160
        %v5162 = vrot.slane %v5161, 2
        %v5163 = vadd.f32 %v5161, %v5162
        %v5164 = vrot.slane %v5163, 1
        %v5165 = vadd.f32 %v5163, %v5164
        %v5166 = vrot.slane %v5123, 4
        %v5167 = vadd.f32 %v5123, %v5166
        %v5168 = vrot.slane %v5167, 2
        %v5169 = vadd.f32 %v5167, %v5168
        %v5170 = vrot.slane %v5169, 1
        %v5171 = vadd.f32 %v5169, %v5170
        %v5172 = vrcp.pop %v5129
        %v5173 = vrcp.pop %v5135
        %v5174 = vrcp.pop %v5141
        %v5175 = vrcp.pop %v5147
        %v5176 = vrcp.pop %v5153
        %v5177 = vrcp.pop %v5159
        %v5178 = vrcp.pop %v5165
        %v5179 = vrcp.pop %v5171
        %v5180 = vmul.f32 %v5109, %v5172
        %v5181 = vmul.f32 %v5111, %v5173
        %v5182 = vmul.f32 %v5113, %v5174
        %v5183 = vmul.f32 %v5115, %v5175
        %v5184 = vmul.f32 %v5117, %v5176
        %v5185 = vmul.f32 %v5119, %v5177
        %v5186 = vmul.f32 %v5121, %v5178
        %v5187 = vmul.f32 %v5123, %v5179
        %v5188 = vlaneseq
        %v5189 = vshrl.u32 %v5188, 7
        %v5190 = vsub.s32 0, %v5189
        %v5191 = vrot.slane %v5180, %v5190
        %v5192 = vlaneseq
        %v5193 = vshrl.u32 %v5192, 7
        %v5194 = vsub.s32 0, %v5193
        %v5195 = vrot.slane %v5181, %v5194
        %v5196 = vlaneseq
        %v5197 = vshrl.u32 %v5196, 7
        %v5198 = vsub.s32 0, %v5197
        %v5199 = vrot.slane %v5182, %v5198
        %v5200 = vlaneseq
        %v5201 = vshrl.u32 %v5200, 7
        %v5202 = vsub.s32 0, %v5201
        %v5203 = vrot.slane %v5183, %v5202
        %v5204 = vlaneseq
        %v5205 = vshrl.u32 %v5204, 7
        %v5206 = vsub.s32 0, %v5205
        %v5207 = vrot.slane %v5184, %v5206
        %v5208 = vlaneseq
        %v5209 = vshrl.u32 %v5208, 7
        %v5210 = vsub.s32 0, %v5209
        %v5211 = vrot.slane %v5185, %v5210
        %v5212 = vlaneseq
        %v5213 = vshrl.u32 %v5212, 7
        %v5214 = vsub.s32 0, %v5213
        %v5215 = vrot.slane %v5186, %v5214
        %v5216 = vlaneseq
        %v5217 = vshrl.u32 %v5216, 7
        %v5218 = vsub.s32 0, %v5217
        %v5219 = vrot.slane %v5187, %v5218
        %v5220 = vmul.f32 %v5191, %v4086
        %v5221 = vmul.f32 %v5195, %v4086
        %v5222 = vmul.f32 %v5199, %v4086
        %v5223 = vmul.f32 %v5203, %v4086
        %v5224 = vmul.f32 %v5207, %v4086
        %v5225 = vmul.f32 %v5211, %v4086
        %v5226 = vmul.f32 %v5215, %v4086
        %v5227 = vmul.f32 %v5219, %v4086
        %v5228 = vlaneseq
        %v5229 = vshrl.u32 %v5228, 7
        %v5230 = vsub.s32 1, %v5229
        %v5231 = vrot.slane %v5180, %v5230
        %v5232 = vlaneseq
        %v5233 = vshrl.u32 %v5232, 7
        %v5234 = vsub.s32 1, %v5233
        %v5235 = vrot.slane %v5181, %v5234
        %v5236 = vlaneseq
        %v5237 = vshrl.u32 %v5236, 7
        %v5238 = vsub.s32 1, %v5237
        %v5239 = vrot.slane %v5182, %v5238
        %v5240 = vlaneseq
        %v5241 = vshrl.u32 %v5240, 7
        %v5242 = vsub.s32 1, %v5241
        %v5243 = vrot.slane %v5183, %v5242
        %v5244 = vlaneseq
        %v5245 = vshrl.u32 %v5244, 7
        %v5246 = vsub.s32 1, %v5245
        %v5247 = vrot.slane %v5184, %v5246
        %v5248 = vlaneseq
        %v5249 = vshrl.u32 %v5248, 7
        %v5250 = vsub.s32 1, %v5249
        %v5251 = vrot.slane %v5185, %v5250
        %v5252 = vlaneseq
        %v5253 = vshrl.u32 %v5252, 7
        %v5254 = vsub.s32 1, %v5253
        %v5255 = vrot.slane %v5186, %v5254
        %v5256 = vlaneseq
        %v5257 = vshrl.u32 %v5256, 7
        %v5258 = vsub.s32 1, %v5257
        %v5259 = vrot.slane %v5187, %v5258
        %v5260 = vmul.f32 %v5231, %v4089
        %v5261 = vmul.f32 %v5235, %v4089
        %v5262 = vmul.f32 %v5239, %v4089
        %v5263 = vmul.f32 %v5243, %v4089
        %v5264 = vmul.f32 %v5247, %v4089
        %v5265 = vmul.f32 %v5251, %v4089
        %v5266 = vmul.f32 %v5255, %v4089
        %v5267 = vmul.f32 %v5259, %v4089
        %v5268 = vadd.f32 %v5220, %v5260
        %v5269 = vadd.f32 %v5221, %v5261
        %v5270 = vadd.f32 %v5222, %v5262
        %v5271 = vadd.f32 %v5223, %v5263
        %v5272 = vadd.f32 %v5224, %v5264
        %v5273 = vadd.f32 %v5225, %v5265
        %v5274 = vadd.f32 %v5226, %v5266
        %v5275 = vadd.f32 %v5227, %v5267
        %v5276 = vlaneseq
        %v5277 = vshrl.u32 %v5276, 7
        %v5278 = vsub.s32 2, %v5277
        %v5279 = vrot.slane %v5180, %v5278
        %v5280 = vlaneseq
        %v5281 = vshrl.u32 %v5280, 7
        %v5282 = vsub.s32 2, %v5281
        %v5283 = vrot.slane %v5181, %v5282
        %v5284 = vlaneseq
        %v5285 = vshrl.u32 %v5284, 7
        %v5286 = vsub.s32 2, %v5285
        %v5287 = vrot.slane %v5182, %v5286
        %v5288 = vlaneseq
        %v5289 = vshrl.u32 %v5288, 7
        %v5290 = vsub.s32 2, %v5289
        %v5291 = vrot.slane %v5183, %v5290
        %v5292 = vlaneseq
        %v5293 = vshrl.u32 %v5292, 7
        %v5294 = vsub.s32 2, %v5293
        %v5295 = vrot.slane %v5184, %v5294
        %v5296 = vlaneseq
        %v5297 = vshrl.u32 %v5296, 7
        %v5298 = vsub.s32 2, %v5297
        %v5299 = vrot.slane %v5185, %v5298
        %v5300 = vlaneseq
        %v5301 = vshrl.u32 %v5300, 7
        %v5302 = vsub.s32 2, %v5301
        %v5303 = vrot.slane %v5186, %v5302
        %v5304 = vlaneseq
        %v5305 = vshrl.u32 %v5304, 7
        %v5306 = vsub.s32 2, %v5305
        %v5307 = vrot.slane %v5187, %v5306
        %v5308 = vmul.f32 %v5279, %v4094
        %v5309 = vmul.f32 %v5283, %v4094
        %v5310 = vmul.f32 %v5287, %v4094
        %v5311 = vmul.f32 %v5291, %v4094
        %v5312 = vmul.f32 %v5295, %v4094
        %v5313 = vmul.f32 %v5299, %v4094
        %v5314 = vmul.f32 %v5303, %v4094
        %v5315 = vmul.f32 %v5307, %v4094
        %v5316 = vadd.f32 %v5268, %v5308
        %v5317 = vadd.f32 %v5269, %v5309
        %v5318 = vadd.f32 %v5270, %v5310
        %v5319 = vadd.f32 %v5271, %v5311
        %v5320 = vadd.f32 %v5272, %v5312
        %v5321 = vadd.f32 %v5273, %v5313
        %v5322 = vadd.f32 %v5274, %v5314
        %v5323 = vadd.f32 %v5275, %v5315
        %v5324 = vlaneseq
        %v5325 = vshrl.u32 %v5324, 7
        %v5326 = vsub.s32 3, %v5325
        %v5327 = vrot.slane %v5180, %v5326
        %v5328 = vlaneseq
        %v5329 = vshrl.u32 %v5328, 7
        %v5330 = vsub.s32 3, %v5329
        %v5331 = vrot.slane %v5181, %v5330
        %v5332 = vlaneseq
        %v5333 = vshrl.u32 %v5332, 7
        %v5334 = vsub.s32 3, %v5333
        %v5335 = vrot.slane %v5182, %v5334
        %v5336 = vlaneseq
        %v5337 = vshrl.u32 %v5336, 7
        %v5338 = vsub.s32 3, %v5337
        %v5339 = vrot.slane %v5183, %v5338
        %v5340 = vlaneseq
        %v5341 = vshrl.u32 %v5340, 7
        %v5342 = vsub.s32 3, %v5341
        %v5343 = vrot.slane %v5184, %v5342
        %v5344 = vlaneseq
        %v5345 = vshrl.u32 %v5344, 7
        %v5346 = vsub.s32 3, %v5345
        %v5347 = vrot.slane %v5185, %v5346
        %v5348 = vlaneseq
        %v5349 = vshrl.u32 %v5348, 7
        %v5350 = vsub.s32 3, %v5349
        %v5351 = vrot.slane %v5186, %v5350
        %v5352 = vlaneseq
        %v5353 = vshrl.u32 %v5352, 7
        %v5354 = vsub.s32 3, %v5353
        %v5355 = vrot.slane %v5187, %v5354
        %v5356 = vmul.f32 %v5327, %v4097
        %v5357 = vmul.f32 %v5331, %v4097
        %v5358 = vmul.f32 %v5335, %v4097
        %v5359 = vmul.f32 %v5339, %v4097
        %v5360 = vmul.f32 %v5343, %v4097
        %v5361 = vmul.f32 %v5347, %v4097
        %v5362 = vmul.f32 %v5351, %v4097
        %v5363 = vmul.f32 %v5355, %v4097
        %v5364 = vadd.f32 %v5316, %v5356
        %v5365 = vadd.f32 %v5317, %v5357
        %v5366 = vadd.f32 %v5318, %v5358
        %v5367 = vadd.f32 %v5319, %v5359
        %v5368 = vadd.f32 %v5320, %v5360
        %v5369 = vadd.f32 %v5321, %v5361
        %v5370 = vadd.f32 %v5322, %v5362
        %v5371 = vadd.f32 %v5323, %v5363
        %v5372 = vlaneseq
        %v5373 = vshrl.u32 %v5372, 7
        %v5374 = vsub.s32 4, %v5373
        %v5375 = vrot.slane %v5180, %v5374
        %v5376 = vlaneseq
        %v5377 = vshrl.u32 %v5376, 7
        %v5378 = vsub.s32 4, %v5377
        %v5379 = vrot.slane %v5181, %v5378
        %v5380 = vlaneseq
        %v5381 = vshrl.u32 %v5380, 7
        %v5382 = vsub.s32 4, %v5381
        %v5383 = vrot.slane %v5182, %v5382
        %v5384 = vlaneseq
        %v5385 = vshrl.u32 %v5384, 7
        %v5386 = vsub.s32 4, %v5385
        %v5387 = vrot.slane %v5183, %v5386
        %v5388 = vlaneseq
        %v5389 = vshrl.u32 %v5388, 7
        %v5390 = vsub.s32 4, %v5389
        %v5391 = vrot.slane %v5184, %v5390
        %v5392 = vlaneseq
        %v5393 = vshrl.u32 %v5392, 7
        %v5394 = vsub.s32 4, %v5393
        %v5395 = vrot.slane %v5185, %v5394
        %v5396 = vlaneseq
        %v5397 = vshrl.u32 %v5396, 7
        %v5398 = vsub.s32 4, %v5397
        %v5399 = vrot.slane %v5186, %v5398
        %v5400 = vlaneseq
        %v5401 = vshrl.u32 %v5400, 7
        %v5402 = vsub.s32 4, %v5401
        %v5403 = vrot.slane %v5187, %v5402
        %v5404 = vmul.f32 %v5375, %v4102
        %v5405 = vmul.f32 %v5379, %v4102
        %v5406 = vmul.f32 %v5383, %v4102
        %v5407 = vmul.f32 %v5387, %v4102
        %v5408 = vmul.f32 %v5391, %v4102
        %v5409 = vmul.f32 %v5395, %v4102
        %v5410 = vmul.f32 %v5399, %v4102
        %v5411 = vmul.f32 %v5403, %v4102
        %v5412 = vadd.f32 %v5364, %v5404
        %v5413 = vadd.f32 %v5365, %v5405
        %v5414 = vadd.f32 %v5366, %v5406
        %v5415 = vadd.f32 %v5367, %v5407
        %v5416 = vadd.f32 %v5368, %v5408
        %v5417 = vadd.f32 %v5369, %v5409
        %v5418 = vadd.f32 %v5370, %v5410
        %v5419 = vadd.f32 %v5371, %v5411
        %v5420 = vlaneseq
        %v5421 = vshrl.u32 %v5420, 7
        %v5422 = vsub.s32 5, %v5421
        %v5423 = vrot.slane %v5180, %v5422
        %v5424 = vlaneseq
        %v5425 = vshrl.u32 %v5424, 7
        %v5426 = vsub.s32 5, %v5425
        %v5427 = vrot.slane %v5181, %v5426
        %v5428 = vlaneseq
        %v5429 = vshrl.u32 %v5428, 7
        %v5430 = vsub.s32 5, %v5429
        %v5431 = vrot.slane %v5182, %v5430
        %v5432 = vlaneseq
        %v5433 = vshrl.u32 %v5432, 7
        %v5434 = vsub.s32 5, %v5433
        %v5435 = vrot.slane %v5183, %v5434
        %v5436 = vlaneseq
        %v5437 = vshrl.u32 %v5436, 7
        %v5438 = vsub.s32 5, %v5437
        %v5439 = vrot.slane %v5184, %v5438
        %v5440 = vlaneseq
        %v5441 = vshrl.u32 %v5440, 7
        %v5442 = vsub.s32 5, %v5441
        %v5443 = vrot.slane %v5185, %v5442
        %v5444 = vlaneseq
        %v5445 = vshrl.u32 %v5444, 7
        %v5446 = vsub.s32 5, %v5445
        %v5447 = vrot.slane %v5186, %v5446
        %v5448 = vlaneseq
        %v5449 = vshrl.u32 %v5448, 7
        %v5450 = vsub.s32 5, %v5449
        %v5451 = vrot.slane %v5187, %v5450
        %v5452 = vmul.f32 %v5423, %v4105
        %v5453 = vmul.f32 %v5427, %v4105
        %v5454 = vmul.f32 %v5431, %v4105
        %v5455 = vmul.f32 %v5435, %v4105
        %v5456 = vmul.f32 %v5439, %v4105
        %v5457 = vmul.f32 %v5443, %v4105
        %v5458 = vmul.f32 %v5447, %v4105
        %v5459 = vmul.f32 %v5451, %v4105
        %v5460 = vadd.f32 %v5412, %v5452
        %v5461 = vadd.f32 %v5413, %v5453
        %v5462 = vadd.f32 %v5414, %v5454
        %v5463 = vadd.f32 %v5415, %v5455
        %v5464 = vadd.f32 %v5416, %v5456
        %v5465 = vadd.f32 %v5417, %v5457
        %v5466 = vadd.f32 %v5418, %v5458
        %v5467 = vadd.f32 %v5419, %v5459
        %v5468 = vlaneseq
        %v5469 = vshrl.u32 %v5468, 7
        %v5470 = vsub.s32 6, %v5469
        %v5471 = vrot.slane %v5180, %v5470
        %v5472 = vlaneseq
        %v5473 = vshrl.u32 %v5472, 7
        %v5474 = vsub.s32 6, %v5473
        %v5475 = vrot.slane %v5181, %v5474
        %v5476 = vlaneseq
        %v5477 = vshrl.u32 %v5476, 7
        %v5478 = vsub.s32 6, %v5477
        %v5479 = vrot.slane %v5182, %v5478
        %v5480 = vlaneseq
        %v5481 = vshrl.u32 %v5480, 7
        %v5482 = vsub.s32 6, %v5481
        %v5483 = vrot.slane %v5183, %v5482
        %v5484 = vlaneseq
        %v5485 = vshrl.u32 %v5484, 7
        %v5486 = vsub.s32 6, %v5485
        %v5487 = vrot.slane %v5184, %v5486
        %v5488 = vlaneseq
        %v5489 = vshrl.u32 %v5488, 7
        %v5490 = vsub.s32 6, %v5489
        %v5491 = vrot.slane %v5185, %v5490
        %v5492 = vlaneseq
        %v5493 = vshrl.u32 %v5492, 7
        %v5494 = vsub.s32 6, %v5493
        %v5495 = vrot.slane %v5186, %v5494
        %v5496 = vlaneseq
        %v5497 = vshrl.u32 %v5496, 7
        %v5498 = vsub.s32 6, %v5497
        %v5499 = vrot.slane %v5187, %v5498
        %v5500 = vmul.f32 %v5471, %v4110
        %v5501 = vmul.f32 %v5475, %v4110
        %v5502 = vmul.f32 %v5479, %v4110
        %v5503 = vmul.f32 %v5483, %v4110
        %v5504 = vmul.f32 %v5487, %v4110
        %v5505 = vmul.f32 %v5491, %v4110
        %v5506 = vmul.f32 %v5495, %v4110
        %v5507 = vmul.f32 %v5499, %v4110
        %v5508 = vadd.f32 %v5460, %v5500
        %v5509 = vadd.f32 %v5461, %v5501
        %v5510 = vadd.f32 %v5462, %v5502
        %v5511 = vadd.f32 %v5463, %v5503
        %v5512 = vadd.f32 %v5464, %v5504
        %v5513 = vadd.f32 %v5465, %v5505
        %v5514 = vadd.f32 %v5466, %v5506
        %v5515 = vadd.f32 %v5467, %v5507
        %v5516 = vlaneseq
        %v5517 = vshrl.u32 %v5516, 7
        %v5518 = vsub.s32 7, %v5517
        %v5519 = vrot.slane %v5180, %v5518
        %v5520 = vlaneseq
        %v5521 = vshrl.u32 %v5520, 7
        %v5522 = vsub.s32 7, %v5521
        %v5523 = vrot.slane %v5181, %v5522
        %v5524 = vlaneseq
        %v5525 = vshrl.u32 %v5524, 7
        %v5526 = vsub.s32 7, %v5525
        %v5527 = vrot.slane %v5182, %v5526
        %v5528 = vlaneseq
        %v5529 = vshrl.u32 %v5528, 7
        %v5530 = vsub.s32 7, %v5529
        %v5531 = vrot.slane %v5183, %v5530
        %v5532 = vlaneseq
        %v5533 = vshrl.u32 %v5532, 7
        %v5534 = vsub.s32 7, %v5533
        %v5535 = vrot.slane %v5184, %v5534
        %v5536 = vlaneseq
        %v5537 = vshrl.u32 %v5536, 7
        %v5538 = vsub.s32 7, %v5537
        %v5539 = vrot.slane %v5185, %v5538
        %v5540 = vlaneseq
        %v5541 = vshrl.u32 %v5540, 7
        %v5542 = vsub.s32 7, %v5541
        %v5543 = vrot.slane %v5186, %v5542
        %v5544 = vlaneseq
        %v5545 = vshrl.u32 %v5544, 7
        %v5546 = vsub.s32 7, %v5545
        %v5547 = vrot.slane %v5187, %v5546
        %v5548 = vmul.f32 %v5519, %v4113
        %v5549 = vmul.f32 %v5523, %v4113
        %v5550 = vmul.f32 %v5527, %v4113
        %v5551 = vmul.f32 %v5531, %v4113
        %v5552 = vmul.f32 %v5535, %v4113
        %v5553 = vmul.f32 %v5539, %v4113
        %v5554 = vmul.f32 %v5543, %v4113
        %v5555 = vmul.f32 %v5547, %v4113
        %v5556 = vadd.f32 %v5508, %v5548
        %v5557 = vadd.f32 %v5509, %v5549
        %v5558 = vadd.f32 %v5510, %v5550
        %v5559 = vadd.f32 %v5511, %v5551
        %v5560 = vadd.f32 %v5512, %v5552
        %v5561 = vadd.f32 %v5513, %v5553
        %v5562 = vadd.f32 %v5514, %v5554
        %v5563 = vadd.f32 %v5515, %v5555
        %v5565 = vcombine.high %v3990, %v3990
        %v5567 = vunpack.c.l.s4 1966171168
        %v5568 = vunpack.c.0.s8 %v5567
        %v5569 = vlaneseq
        %v5570 = vshrl.u32 %v5569, 7
        %v5571 = vsub.s32 %v5568, %v5570
        %v5572 = vrot.slane %v3990, %v5571
        %v5574 = vunpack.c.l.s4 1966171168
        %v5575 = vunpack.c.0.s8 %v5574
        %v5576 = vlaneseq
        %v5577 = vshrl.u32 %v5576, 7
        %v5578 = vsub.s32 %v5575, %v5577
        %v5579 = vrot.slane %v5565, %v5578
        %v5580 = vcombine.high %v5572, %v5572
        %v5581 = vcombine.high %v5579, %v5579
        %v5583 = vunpack.c.l.s4 1966171168
        %v5584 = vunpack.c.0.s8 %v5583
        %v5585 = vlaneseq
        %v5586 = vshrl.u32 %v5585, 7
        %v5587 = vsub.s32 %v5584, %v5586
        %v5588 = vrot.slane %v5572, %v5587
        %v5590 = vunpack.c.l.s4 1966171168
        %v5591 = vunpack.c.0.s8 %v5590
        %v5592 = vlaneseq
        %v5593 = vshrl.u32 %v5592, 7
        %v5594 = vsub.s32 %v5591, %v5593
        %v5595 = vrot.slane %v5579, %v5594
        %v5597 = vunpack.c.l.s4 1966171168
        %v5598 = vunpack.c.0.s8 %v5597
        %v5599 = vlaneseq
        %v5600 = vshrl.u32 %v5599, 7
        %v5601 = vsub.s32 %v5598, %v5600
        %v5602 = vrot.slane %v5580, %v5601
        %v5604 = vunpack.c.l.s4 1966171168
        %v5605 = vunpack.c.0.s8 %v5604
        %v5606 = vlaneseq
        %v5607 = vshrl.u32 %v5606, 7
        %v5608 = vsub.s32 %v5605, %v5607
        %v5609 = vrot.slane %v5581, %v5608
        %v5610 = vcombine.high %v5588, %v5588
        %v5611 = vcombine.high %v5595, %v5595
        %v5612 = vcombine.high %v5602, %v5602
        %v5613 = vcombine.high %v5609, %v5609
        %v5614 = vlaneseq
        %v5615 = vshrl.u32 %v5614, 7
        %v5616 = vsub.s32 0, %v5615
        %v5617 = vrot.slane %v5588, %v5616
        %v5618 = vlaneseq
        %v5619 = vshrl.u32 %v5618, 7
        %v5620 = vsub.s32 0, %v5619
        %v5621 = vrot.slane %v5602, %v5620
        %v5622 = vlaneseq
        %v5623 = vshrl.u32 %v5622, 7
        %v5624 = vsub.s32 0, %v5623
        %v5625 = vrot.slane %v5610, %v5624
        %v5626 = vlaneseq
        %v5627 = vshrl.u32 %v5626, 7
        %v5628 = vsub.s32 0, %v5627
        %v5629 = vrot.slane %v5612, %v5628
        %v5630 = vlaneseq
        %v5631 = vshrl.u32 %v5630, 7
        %v5632 = vsub.s32 0, %v5631
        %v5633 = vrot.slane %v5595, %v5632
        %v5634 = vlaneseq
        %v5635 = vshrl.u32 %v5634, 7
        %v5636 = vsub.s32 0, %v5635
        %v5637 = vrot.slane %v5609, %v5636
        %v5638 = vlaneseq
        %v5639 = vshrl.u32 %v5638, 7
        %v5640 = vsub.s32 0, %v5639
        %v5641 = vrot.slane %v5611, %v5640
        %v5642 = vlaneseq
        %v5643 = vshrl.u32 %v5642, 7
        %v5644 = vsub.s32 0, %v5643
        %v5645 = vrot.slane %v5613, %v5644
        %v5654 = vmul.f32 %v5617, %v4054
        %v5655 = vmul.f32 %v5621, %v4054
        %v5656 = vmul.f32 %v5625, %v4054
        %v5657 = vmul.f32 %v5629, %v4054
        %v5658 = vmul.f32 %v5633, %v4054
        %v5659 = vmul.f32 %v5637, %v4054
        %v5660 = vmul.f32 %v5641, %v4054
        %v5661 = vmul.f32 %v5645, %v4054
        %v5663 = vcombine.high %v3993, %v3993
        %v5665 = vunpack.c.l.s4 1966171168
        %v5666 = vunpack.c.0.s8 %v5665
        %v5667 = vlaneseq
        %v5668 = vshrl.u32 %v5667, 7
        %v5669 = vsub.s32 %v5666, %v5668
        %v5670 = vrot.slane %v3993, %v5669
        %v5672 = vunpack.c.l.s4 1966171168
        %v5673 = vunpack.c.0.s8 %v5672
        %v5674 = vlaneseq
        %v5675 = vshrl.u32 %v5674, 7
        %v5676 = vsub.s32 %v5673, %v5675
        %v5677 = vrot.slane %v5663, %v5676
        %v5678 = vcombine.high %v5670, %v5670
        %v5679 = vcombine.high %v5677, %v5677
        %v5681 = vunpack.c.l.s4 1966171168
        %v5682 = vunpack.c.0.s8 %v5681
        %v5683 = vlaneseq
        %v5684 = vshrl.u32 %v5683, 7
        %v5685 = vsub.s32 %v5682, %v5684
        %v5686 = vrot.slane %v5670, %v5685
        %v5688 = vunpack.c.l.s4 1966171168
        %v5689 = vunpack.c.0.s8 %v5688
        %v5690 = vlaneseq
        %v5691 = vshrl.u32 %v5690, 7
        %v5692 = vsub.s32 %v5689, %v5691
        %v5693 = vrot.slane %v5677, %v5692
        %v5695 = vunpack.c.l.s4 1966171168
        %v5696 = vunpack.c.0.s8 %v5695
        %v5697 = vlaneseq
        %v5698 = vshrl.u32 %v5697, 7
        %v5699 = vsub.s32 %v5696, %v5698
        %v5700 = vrot.slane %v5678, %v5699
        %v5702 = vunpack.c.l.s4 1966171168
        %v5703 = vunpack.c.0.s8 %v5702
        %v5704 = vlaneseq
        %v5705 = vshrl.u32 %v5704, 7
        %v5706 = vsub.s32 %v5703, %v5705
        %v5707 = vrot.slane %v5679, %v5706
        %v5708 = vcombine.high %v5686, %v5686
        %v5709 = vcombine.high %v5693, %v5693
        %v5710 = vcombine.high %v5700, %v5700
        %v5711 = vcombine.high %v5707, %v5707
        %v5712 = vlaneseq
        %v5713 = vshrl.u32 %v5712, 7
        %v5714 = vsub.s32 0, %v5713
        %v5715 = vrot.slane %v5686, %v5714
        %v5716 = vlaneseq
        %v5717 = vshrl.u32 %v5716, 7
        %v5718 = vsub.s32 0, %v5717
        %v5719 = vrot.slane %v5700, %v5718
        %v5720 = vlaneseq
        %v5721 = vshrl.u32 %v5720, 7
        %v5722 = vsub.s32 0, %v5721
        %v5723 = vrot.slane %v5708, %v5722
        %v5724 = vlaneseq
        %v5725 = vshrl.u32 %v5724, 7
        %v5726 = vsub.s32 0, %v5725
        %v5727 = vrot.slane %v5710, %v5726
        %v5728 = vlaneseq
        %v5729 = vshrl.u32 %v5728, 7
        %v5730 = vsub.s32 0, %v5729
        %v5731 = vrot.slane %v5693, %v5730
        %v5732 = vlaneseq
        %v5733 = vshrl.u32 %v5732, 7
        %v5734 = vsub.s32 0, %v5733
        %v5735 = vrot.slane %v5707, %v5734
        %v5736 = vlaneseq
        %v5737 = vshrl.u32 %v5736, 7
        %v5738 = vsub.s32 0, %v5737
        %v5739 = vrot.slane %v5709, %v5738
        %v5740 = vlaneseq
        %v5741 = vshrl.u32 %v5740, 7
        %v5742 = vsub.s32 0, %v5741
        %v5743 = vrot.slane %v5711, %v5742
        %v5752 = vmul.f32 %v5715, %v4057
        %v5753 = vmul.f32 %v5719, %v4057
        %v5754 = vmul.f32 %v5723, %v4057
        %v5755 = vmul.f32 %v5727, %v4057
        %v5756 = vmul.f32 %v5731, %v4057
        %v5757 = vmul.f32 %v5735, %v4057
        %v5758 = vmul.f32 %v5739, %v4057
        %v5759 = vmul.f32 %v5743, %v4057
        %v5760 = vadd.f32 %v5654, %v5752
        %v5761 = vadd.f32 %v5655, %v5753
        %v5762 = vadd.f32 %v5656, %v5754
        %v5763 = vadd.f32 %v5657, %v5755
        %v5764 = vadd.f32 %v5658, %v5756
        %v5765 = vadd.f32 %v5659, %v5757
        %v5766 = vadd.f32 %v5660, %v5758
        %v5767 = vadd.f32 %v5661, %v5759
        %v5769 = vcombine.high %v3998, %v3998
        %v5771 = vunpack.c.l.s4 1966171168
        %v5772 = vunpack.c.0.s8 %v5771
        %v5773 = vlaneseq
        %v5774 = vshrl.u32 %v5773, 7
        %v5775 = vsub.s32 %v5772, %v5774
        %v5776 = vrot.slane %v3998, %v5775
        %v5778 = vunpack.c.l.s4 1966171168
        %v5779 = vunpack.c.0.s8 %v5778
        %v5780 = vlaneseq
        %v5781 = vshrl.u32 %v5780, 7
        %v5782 = vsub.s32 %v5779, %v5781
        %v5783 = vrot.slane %v5769, %v5782
        %v5784 = vcombine.high %v5776, %v5776
        %v5785 = vcombine.high %v5783, %v5783
        %v5787 = vunpack.c.l.s4 1966171168
        %v5788 = vunpack.c.0.s8 %v5787
        %v5789 = vlaneseq
        %v5790 = vshrl.u32 %v5789, 7
        %v5791 = vsub.s32 %v5788, %v5790
        %v5792 = vrot.slane %v5776, %v5791
        %v5794 = vunpack.c.l.s4 1966171168
        %v5795 = vunpack.c.0.s8 %v5794
        %v5796 = vlaneseq
        %v5797 = vshrl.u32 %v5796, 7
        %v5798 = vsub.s32 %v5795, %v5797
        %v5799 = vrot.slane %v5783, %v5798
        %v5801 = vunpack.c.l.s4 1966171168
        %v5802 = vunpack.c.0.s8 %v5801
        %v5803 = vlaneseq
        %v5804 = vshrl.u32 %v5803, 7
        %v5805 = vsub.s32 %v5802, %v5804
        %v5806 = vrot.slane %v5784, %v5805
        %v5808 = vunpack.c.l.s4 1966171168
        %v5809 = vunpack.c.0.s8 %v5808
        %v5810 = vlaneseq
        %v5811 = vshrl.u32 %v5810, 7
        %v5812 = vsub.s32 %v5809, %v5811
        %v5813 = vrot.slane %v5785, %v5812
        %v5814 = vcombine.high %v5792, %v5792
        %v5815 = vcombine.high %v5799, %v5799
        %v5816 = vcombine.high %v5806, %v5806
        %v5817 = vcombine.high %v5813, %v5813
        %v5818 = vlaneseq
        %v5819 = vshrl.u32 %v5818, 7
        %v5820 = vsub.s32 0, %v5819
        %v5821 = vrot.slane %v5792, %v5820
        %v5822 = vlaneseq
        %v5823 = vshrl.u32 %v5822, 7
        %v5824 = vsub.s32 0, %v5823
        %v5825 = vrot.slane %v5806, %v5824
        %v5826 = vlaneseq
        %v5827 = vshrl.u32 %v5826, 7
        %v5828 = vsub.s32 0, %v5827
        %v5829 = vrot.slane %v5814, %v5828
        %v5830 = vlaneseq
        %v5831 = vshrl.u32 %v5830, 7
        %v5832 = vsub.s32 0, %v5831
        %v5833 = vrot.slane %v5816, %v5832
        %v5834 = vlaneseq
        %v5835 = vshrl.u32 %v5834, 7
        %v5836 = vsub.s32 0, %v5835
        %v5837 = vrot.slane %v5799, %v5836
        %v5838 = vlaneseq
        %v5839 = vshrl.u32 %v5838, 7
        %v5840 = vsub.s32 0, %v5839
        %v5841 = vrot.slane %v5813, %v5840
        %v5842 = vlaneseq
        %v5843 = vshrl.u32 %v5842, 7
        %v5844 = vsub.s32 0, %v5843
        %v5845 = vrot.slane %v5815, %v5844
        %v5846 = vlaneseq
        %v5847 = vshrl.u32 %v5846, 7
        %v5848 = vsub.s32 0, %v5847
        %v5849 = vrot.slane %v5817, %v5848
        %v5858 = vmul.f32 %v5821, %v4062
        %v5859 = vmul.f32 %v5825, %v4062
        %v5860 = vmul.f32 %v5829, %v4062
        %v5861 = vmul.f32 %v5833, %v4062
        %v5862 = vmul.f32 %v5837, %v4062
        %v5863 = vmul.f32 %v5841, %v4062
        %v5864 = vmul.f32 %v5845, %v4062
        %v5865 = vmul.f32 %v5849, %v4062
        %v5866 = vadd.f32 %v5760, %v5858
        %v5867 = vadd.f32 %v5761, %v5859
        %v5868 = vadd.f32 %v5762, %v5860
        %v5869 = vadd.f32 %v5763, %v5861
        %v5870 = vadd.f32 %v5764, %v5862
        %v5871 = vadd.f32 %v5765, %v5863
        %v5872 = vadd.f32 %v5766, %v5864
        %v5873 = vadd.f32 %v5767, %v5865
        %v5875 = vcombine.high %v4001, %v4001
        %v5877 = vunpack.c.l.s4 1966171168
        %v5878 = vunpack.c.0.s8 %v5877
        %v5879 = vlaneseq
        %v5880 = vshrl.u32 %v5879, 7
        %v5881 = vsub.s32 %v5878, %v5880
        %v5882 = vrot.slane %v4001, %v5881
        %v5884 = vunpack.c.l.s4 1966171168
        %v5885 = vunpack.c.0.s8 %v5884
        %v5886 = vlaneseq
        %v5887 = vshrl.u32 %v5886, 7
        %v5888 = vsub.s32 %v5885, %v5887
        %v5889 = vrot.slane %v5875, %v5888
        %v5890 = vcombine.high %v5882, %v5882
        %v5891 = vcombine.high %v5889, %v5889
        %v5893 = vunpack.c.l.s4 1966171168
        %v5894 = vunpack.c.0.s8 %v5893
        %v5895 = vlaneseq
        %v5896 = vshrl.u32 %v5895, 7
        %v5897 = vsub.s32 %v5894, %v5896
        %v5898 = vrot.slane %v5882, %v5897
        %v5900 = vunpack.c.l.s4 1966171168
        %v5901 = vunpack.c.0.s8 %v5900
        %v5902 = vlaneseq
        %v5903 = vshrl.u32 %v5902, 7
        %v5904 = vsub.s32 %v5901, %v5903
        %v5905 = vrot.slane %v5889, %v5904
        %v5907 = vunpack.c.l.s4 1966171168
        %v5908 = vunpack.c.0.s8 %v5907
        %v5909 = vlaneseq
        %v5910 = vshrl.u32 %v5909, 7
        %v5911 = vsub.s32 %v5908, %v5910
        %v5912 = vrot.slane %v5890, %v5911
        %v5914 = vunpack.c.l.s4 1966171168
        %v5915 = vunpack.c.0.s8 %v5914
        %v5916 = vlaneseq
        %v5917 = vshrl.u32 %v5916, 7
        %v5918 = vsub.s32 %v5915, %v5917
        %v5919 = vrot.slane %v5891, %v5918
        %v5920 = vcombine.high %v5898, %v5898
        %v5921 = vcombine.high %v5905, %v5905
        %v5922 = vcombine.high %v5912, %v5912
        %v5923 = vcombine.high %v5919, %v5919
        %v5924 = vlaneseq
        %v5925 = vshrl.u32 %v5924, 7
        %v5926 = vsub.s32 0, %v5925
        %v5927 = vrot.slane %v5898, %v5926
        %v5928 = vlaneseq
        %v5929 = vshrl.u32 %v5928, 7
        %v5930 = vsub.s32 0, %v5929
        %v5931 = vrot.slane %v5912, %v5930
        %v5932 = vlaneseq
        %v5933 = vshrl.u32 %v5932, 7
        %v5934 = vsub.s32 0, %v5933
        %v5935 = vrot.slane %v5920, %v5934
        %v5936 = vlaneseq
        %v5937 = vshrl.u32 %v5936, 7
        %v5938 = vsub.s32 0, %v5937
        %v5939 = vrot.slane %v5922, %v5938
        %v5940 = vlaneseq
        %v5941 = vshrl.u32 %v5940, 7
        %v5942 = vsub.s32 0, %v5941
        %v5943 = vrot.slane %v5905, %v5942
        %v5944 = vlaneseq
        %v5945 = vshrl.u32 %v5944, 7
        %v5946 = vsub.s32 0, %v5945
        %v5947 = vrot.slane %v5919, %v5946
        %v5948 = vlaneseq
        %v5949 = vshrl.u32 %v5948, 7
        %v5950 = vsub.s32 0, %v5949
        %v5951 = vrot.slane %v5921, %v5950
        %v5952 = vlaneseq
        %v5953 = vshrl.u32 %v5952, 7
        %v5954 = vsub.s32 0, %v5953
        %v5955 = vrot.slane %v5923, %v5954
        %v5964 = vmul.f32 %v5927, %v4065
        %v5965 = vmul.f32 %v5931, %v4065
        %v5966 = vmul.f32 %v5935, %v4065
        %v5967 = vmul.f32 %v5939, %v4065
        %v5968 = vmul.f32 %v5943, %v4065
        %v5969 = vmul.f32 %v5947, %v4065
        %v5970 = vmul.f32 %v5951, %v4065
        %v5971 = vmul.f32 %v5955, %v4065
        %v5972 = vadd.f32 %v5866, %v5964
        %v5973 = vadd.f32 %v5867, %v5965
        %v5974 = vadd.f32 %v5868, %v5966
        %v5975 = vadd.f32 %v5869, %v5967
        %v5976 = vadd.f32 %v5870, %v5968
        %v5977 = vadd.f32 %v5871, %v5969
        %v5978 = vadd.f32 %v5872, %v5970
        %v5979 = vadd.f32 %v5873, %v5971
        %v5981 = vcombine.high %v4006, %v4006
        %v5983 = vunpack.c.l.s4 1966171168
        %v5984 = vunpack.c.0.s8 %v5983
        %v5985 = vlaneseq
        %v5986 = vshrl.u32 %v5985, 7
        %v5987 = vsub.s32 %v5984, %v5986
        %v5988 = vrot.slane %v4006, %v5987
        %v5990 = vunpack.c.l.s4 1966171168
        %v5991 = vunpack.c.0.s8 %v5990
        %v5992 = vlaneseq
        %v5993 = vshrl.u32 %v5992, 7
        %v5994 = vsub.s32 %v5991, %v5993
        %v5995 = vrot.slane %v5981, %v5994
        %v5996 = vcombine.high %v5988, %v5988
        %v5997 = vcombine.high %v5995, %v5995
        %v5999 = vunpack.c.l.s4 1966171168
        %v6000 = vunpack.c.0.s8 %v5999
        %v6001 = vlaneseq
        %v6002 = vshrl.u32 %v6001, 7
        %v6003 = vsub.s32 %v6000, %v6002
        %v6004 = vrot.slane %v5988, %v6003
        %v6006 = vunpack.c.l.s4 1966171168
        %v6007 = vunpack.c.0.s8 %v6006
        %v6008 = vlaneseq
        %v6009 = vshrl.u32 %v6008, 7
        %v6010 = vsub.s32 %v6007, %v6009
        %v6011 = vrot.slane %v5995, %v6010
        %v6013 = vunpack.c.l.s4 1966171168
        %v6014 = vunpack.c.0.s8 %v6013
        %v6015 = vlaneseq
        %v6016 = vshrl.u32 %v6015, 7
        %v6017 = vsub.s32 %v6014, %v6016
        %v6018 = vrot.slane %v5996, %v6017
        %v6020 = vunpack.c.l.s4 1966171168
        %v6021 = vunpack.c.0.s8 %v6020
        %v6022 = vlaneseq
        %v6023 = vshrl.u32 %v6022, 7
        %v6024 = vsub.s32 %v6021, %v6023
        %v6025 = vrot.slane %v5997, %v6024
        %v6026 = vcombine.high %v6004, %v6004
        %v6027 = vcombine.high %v6011, %v6011
        %v6028 = vcombine.high %v6018, %v6018
        %v6029 = vcombine.high %v6025, %v6025
        %v6030 = vlaneseq
        %v6031 = vshrl.u32 %v6030, 7
        %v6032 = vsub.s32 0, %v6031
        %v6033 = vrot.slane %v6004, %v6032
        %v6034 = vlaneseq
        %v6035 = vshrl.u32 %v6034, 7
        %v6036 = vsub.s32 0, %v6035
        %v6037 = vrot.slane %v6018, %v6036
        %v6038 = vlaneseq
        %v6039 = vshrl.u32 %v6038, 7
        %v6040 = vsub.s32 0, %v6039
        %v6041 = vrot.slane %v6026, %v6040
        %v6042 = vlaneseq
        %v6043 = vshrl.u32 %v6042, 7
        %v6044 = vsub.s32 0, %v6043
        %v6045 = vrot.slane %v6028, %v6044
        %v6046 = vlaneseq
        %v6047 = vshrl.u32 %v6046, 7
        %v6048 = vsub.s32 0, %v6047
        %v6049 = vrot.slane %v6011, %v6048
        %v6050 = vlaneseq
        %v6051 = vshrl.u32 %v6050, 7
        %v6052 = vsub.s32 0, %v6051
        %v6053 = vrot.slane %v6025, %v6052
        %v6054 = vlaneseq
        %v6055 = vshrl.u32 %v6054, 7
        %v6056 = vsub.s32 0, %v6055
        %v6057 = vrot.slane %v6027, %v6056
        %v6058 = vlaneseq
        %v6059 = vshrl.u32 %v6058, 7
        %v6060 = vsub.s32 0, %v6059
        %v6061 = vrot.slane %v6029, %v6060
        %v6070 = vmul.f32 %v6033, %v4070
        %v6071 = vmul.f32 %v6037, %v4070
        %v6072 = vmul.f32 %v6041, %v4070
        %v6073 = vmul.f32 %v6045, %v4070
        %v6074 = vmul.f32 %v6049, %v4070
        %v6075 = vmul.f32 %v6053, %v4070
        %v6076 = vmul.f32 %v6057, %v4070
        %v6077 = vmul.f32 %v6061, %v4070
        %v6078 = vadd.f32 %v5972, %v6070
        %v6079 = vadd.f32 %v5973, %v6071
        %v6080 = vadd.f32 %v5974, %v6072
        %v6081 = vadd.f32 %v5975, %v6073
        %v6082 = vadd.f32 %v5976, %v6074
        %v6083 = vadd.f32 %v5977, %v6075
        %v6084 = vadd.f32 %v5978, %v6076
        %v6085 = vadd.f32 %v5979, %v6077
        %v6087 = vcombine.high %v4009, %v4009
        %v6089 = vunpack.c.l.s4 1966171168
        %v6090 = vunpack.c.0.s8 %v6089
        %v6091 = vlaneseq
        %v6092 = vshrl.u32 %v6091, 7
        %v6093 = vsub.s32 %v6090, %v6092
        %v6094 = vrot.slane %v4009, %v6093
        %v6096 = vunpack.c.l.s4 1966171168
        %v6097 = vunpack.c.0.s8 %v6096
        %v6098 = vlaneseq
        %v6099 = vshrl.u32 %v6098, 7
        %v6100 = vsub.s32 %v6097, %v6099
        %v6101 = vrot.slane %v6087, %v6100
        %v6102 = vcombine.high %v6094, %v6094
        %v6103 = vcombine.high %v6101, %v6101
        %v6105 = vunpack.c.l.s4 1966171168
        %v6106 = vunpack.c.0.s8 %v6105
        %v6107 = vlaneseq
        %v6108 = vshrl.u32 %v6107, 7
        %v6109 = vsub.s32 %v6106, %v6108
        %v6110 = vrot.slane %v6094, %v6109
        %v6112 = vunpack.c.l.s4 1966171168
        %v6113 = vunpack.c.0.s8 %v6112
        %v6114 = vlaneseq
        %v6115 = vshrl.u32 %v6114, 7
        %v6116 = vsub.s32 %v6113, %v6115
        %v6117 = vrot.slane %v6101, %v6116
        %v6119 = vunpack.c.l.s4 1966171168
        %v6120 = vunpack.c.0.s8 %v6119
        %v6121 = vlaneseq
        %v6122 = vshrl.u32 %v6121, 7
        %v6123 = vsub.s32 %v6120, %v6122
        %v6124 = vrot.slane %v6102, %v6123
        %v6126 = vunpack.c.l.s4 1966171168
        %v6127 = vunpack.c.0.s8 %v6126
        %v6128 = vlaneseq
        %v6129 = vshrl.u32 %v6128, 7
        %v6130 = vsub.s32 %v6127, %v6129
        %v6131 = vrot.slane %v6103, %v6130
        %v6132 = vcombine.high %v6110, %v6110
        %v6133 = vcombine.high %v6117, %v6117
        %v6134 = vcombine.high %v6124, %v6124
        %v6135 = vcombine.high %v6131, %v6131
        %v6136 = vlaneseq
        %v6137 = vshrl.u32 %v6136, 7
        %v6138 = vsub.s32 0, %v6137
        %v6139 = vrot.slane %v6110, %v6138
        %v6140 = vlaneseq
        %v6141 = vshrl.u32 %v6140, 7
        %v6142 = vsub.s32 0, %v6141
        %v6143 = vrot.slane %v6124, %v6142
        %v6144 = vlaneseq
        %v6145 = vshrl.u32 %v6144, 7
        %v6146 = vsub.s32 0, %v6145
        %v6147 = vrot.slane %v6132, %v6146
        %v6148 = vlaneseq
        %v6149 = vshrl.u32 %v6148, 7
        %v6150 = vsub.s32 0, %v6149
        %v6151 = vrot.slane %v6134, %v6150
        %v6152 = vlaneseq
        %v6153 = vshrl.u32 %v6152, 7
        %v6154 = vsub.s32 0, %v6153
        %v6155 = vrot.slane %v6117, %v6154
        %v6156 = vlaneseq
        %v6157 = vshrl.u32 %v6156, 7
        %v6158 = vsub.s32 0, %v6157
        %v6159 = vrot.slane %v6131, %v6158
        %v6160 = vlaneseq
        %v6161 = vshrl.u32 %v6160, 7
        %v6162 = vsub.s32 0, %v6161
        %v6163 = vrot.slane %v6133, %v6162
        %v6164 = vlaneseq
        %v6165 = vshrl.u32 %v6164, 7
        %v6166 = vsub.s32 0, %v6165
        %v6167 = vrot.slane %v6135, %v6166
        %v6176 = vmul.f32 %v6139, %v4073
        %v6177 = vmul.f32 %v6143, %v4073
        %v6178 = vmul.f32 %v6147, %v4073
        %v6179 = vmul.f32 %v6151, %v4073
        %v6180 = vmul.f32 %v6155, %v4073
        %v6181 = vmul.f32 %v6159, %v4073
        %v6182 = vmul.f32 %v6163, %v4073
        %v6183 = vmul.f32 %v6167, %v4073
        %v6184 = vadd.f32 %v6078, %v6176
        %v6185 = vadd.f32 %v6079, %v6177
        %v6186 = vadd.f32 %v6080, %v6178
        %v6187 = vadd.f32 %v6081, %v6179
        %v6188 = vadd.f32 %v6082, %v6180
        %v6189 = vadd.f32 %v6083, %v6181
        %v6190 = vadd.f32 %v6084, %v6182
        %v6191 = vadd.f32 %v6085, %v6183
        %v6193 = vcombine.high %v4014, %v4014
        %v6195 = vunpack.c.l.s4 1966171168
        %v6196 = vunpack.c.0.s8 %v6195
        %v6197 = vlaneseq
        %v6198 = vshrl.u32 %v6197, 7
        %v6199 = vsub.s32 %v6196, %v6198
        %v6200 = vrot.slane %v4014, %v6199
        %v6202 = vunpack.c.l.s4 1966171168
        %v6203 = vunpack.c.0.s8 %v6202
        %v6204 = vlaneseq
        %v6205 = vshrl.u32 %v6204, 7
        %v6206 = vsub.s32 %v6203, %v6205
        %v6207 = vrot.slane %v6193, %v6206
        %v6208 = vcombine.high %v6200, %v6200
        %v6209 = vcombine.high %v6207, %v6207
        %v6211 = vunpack.c.l.s4 1966171168
        %v6212 = vunpack.c.0.s8 %v6211
        %v6213 = vlaneseq
        %v6214 = vshrl.u32 %v6213, 7
        %v6215 = vsub.s32 %v6212, %v6214
        %v6216 = vrot.slane %v6200, %v6215
        %v6218 = vunpack.c.l.s4 1966171168
        %v6219 = vunpack.c.0.s8 %v6218
        %v6220 = vlaneseq
        %v6221 = vshrl.u32 %v6220, 7
        %v6222 = vsub.s32 %v6219, %v6221
        %v6223 = vrot.slane %v6207, %v6222
        %v6225 = vunpack.c.l.s4 1966171168
        %v6226 = vunpack.c.0.s8 %v6225
        %v6227 = vlaneseq
        %v6228 = vshrl.u32 %v6227, 7
        %v6229 = vsub.s32 %v6226, %v6228
        %v6230 = vrot.slane %v6208, %v6229
        %v6232 = vunpack.c.l.s4 1966171168
        %v6233 = vunpack.c.0.s8 %v6232
        %v6234 = vlaneseq
        %v6235 = vshrl.u32 %v6234, 7
        %v6236 = vsub.s32 %v6233, %v6235
        %v6237 = vrot.slane %v6209, %v6236
        %v6238 = vcombine.high %v6216, %v6216
        %v6239 = vcombine.high %v6223, %v6223
        %v6240 = vcombine.high %v6230, %v6230
        %v6241 = vcombine.high %v6237, %v6237
        %v6242 = vlaneseq
        %v6243 = vshrl.u32 %v6242, 7
        %v6244 = vsub.s32 0, %v6243
        %v6245 = vrot.slane %v6216, %v6244
        %v6246 = vlaneseq
        %v6247 = vshrl.u32 %v6246, 7
        %v6248 = vsub.s32 0, %v6247
        %v6249 = vrot.slane %v6230, %v6248
        %v6250 = vlaneseq
        %v6251 = vshrl.u32 %v6250, 7
        %v6252 = vsub.s32 0, %v6251
        %v6253 = vrot.slane %v6238, %v6252
        %v6254 = vlaneseq
        %v6255 = vshrl.u32 %v6254, 7
        %v6256 = vsub.s32 0, %v6255
        %v6257 = vrot.slane %v6240, %v6256
        %v6258 = vlaneseq
        %v6259 = vshrl.u32 %v6258, 7
        %v6260 = vsub.s32 0, %v6259
        %v6261 = vrot.slane %v6223, %v6260
        %v6262 = vlaneseq
        %v6263 = vshrl.u32 %v6262, 7
        %v6264 = vsub.s32 0, %v6263
        %v6265 = vrot.slane %v6237, %v6264
        %v6266 = vlaneseq
        %v6267 = vshrl.u32 %v6266, 7
        %v6268 = vsub.s32 0, %v6267
        %v6269 = vrot.slane %v6239, %v6268
        %v6270 = vlaneseq
        %v6271 = vshrl.u32 %v6270, 7
        %v6272 = vsub.s32 0, %v6271
        %v6273 = vrot.slane %v6241, %v6272
        %v6282 = vmul.f32 %v6245, %v4078
        %v6283 = vmul.f32 %v6249, %v4078
        %v6284 = vmul.f32 %v6253, %v4078
        %v6285 = vmul.f32 %v6257, %v4078
        %v6286 = vmul.f32 %v6261, %v4078
        %v6287 = vmul.f32 %v6265, %v4078
        %v6288 = vmul.f32 %v6269, %v4078
        %v6289 = vmul.f32 %v6273, %v4078
        %v6290 = vadd.f32 %v6184, %v6282
        %v6291 = vadd.f32 %v6185, %v6283
        %v6292 = vadd.f32 %v6186, %v6284
        %v6293 = vadd.f32 %v6187, %v6285
        %v6294 = vadd.f32 %v6188, %v6286
        %v6295 = vadd.f32 %v6189, %v6287
        %v6296 = vadd.f32 %v6190, %v6288
        %v6297 = vadd.f32 %v6191, %v6289
        %v6299 = vcombine.high %v4017, %v4017
        %v6301 = vunpack.c.l.s4 1966171168
        %v6302 = vunpack.c.0.s8 %v6301
        %v6303 = vlaneseq
        %v6304 = vshrl.u32 %v6303, 7
        %v6305 = vsub.s32 %v6302, %v6304
        %v6306 = vrot.slane %v4017, %v6305
        %v6308 = vunpack.c.l.s4 1966171168
        %v6309 = vunpack.c.0.s8 %v6308
        %v6310 = vlaneseq
        %v6311 = vshrl.u32 %v6310, 7
        %v6312 = vsub.s32 %v6309, %v6311
        %v6313 = vrot.slane %v6299, %v6312
        %v6314 = vcombine.high %v6306, %v6306
        %v6315 = vcombine.high %v6313, %v6313
        %v6317 = vunpack.c.l.s4 1966171168
        %v6318 = vunpack.c.0.s8 %v6317
        %v6319 = vlaneseq
        %v6320 = vshrl.u32 %v6319, 7
        %v6321 = vsub.s32 %v6318, %v6320
        %v6322 = vrot.slane %v6306, %v6321
        %v6324 = vunpack.c.l.s4 1966171168
        %v6325 = vunpack.c.0.s8 %v6324
        %v6326 = vlaneseq
        %v6327 = vshrl.u32 %v6326, 7
        %v6328 = vsub.s32 %v6325, %v6327
        %v6329 = vrot.slane %v6313, %v6328
        %v6331 = vunpack.c.l.s4 1966171168
        %v6332 = vunpack.c.0.s8 %v6331
        %v6333 = vlaneseq
        %v6334 = vshrl.u32 %v6333, 7
        %v6335 = vsub.s32 %v6332, %v6334
        %v6336 = vrot.slane %v6314, %v6335
        %v6338 = vunpack.c.l.s4 1966171168
        %v6339 = vunpack.c.0.s8 %v6338
        %v6340 = vlaneseq
        %v6341 = vshrl.u32 %v6340, 7
        %v6342 = vsub.s32 %v6339, %v6341
        %v6343 = vrot.slane %v6315, %v6342
        %v6344 = vcombine.high %v6322, %v6322
        %v6345 = vcombine.high %v6329, %v6329
        %v6346 = vcombine.high %v6336, %v6336
        %v6347 = vcombine.high %v6343, %v6343
        %v6348 = vlaneseq
        %v6349 = vshrl.u32 %v6348, 7
        %v6350 = vsub.s32 0, %v6349
        %v6351 = vrot.slane %v6322, %v6350
        %v6352 = vlaneseq
        %v6353 = vshrl.u32 %v6352, 7
        %v6354 = vsub.s32 0, %v6353
        %v6355 = vrot.slane %v6336, %v6354
        %v6356 = vlaneseq
        %v6357 = vshrl.u32 %v6356, 7
        %v6358 = vsub.s32 0, %v6357
        %v6359 = vrot.slane %v6344, %v6358
        %v6360 = vlaneseq
        %v6361 = vshrl.u32 %v6360, 7
        %v6362 = vsub.s32 0, %v6361
        %v6363 = vrot.slane %v6346, %v6362
        %v6364 = vlaneseq
        %v6365 = vshrl.u32 %v6364, 7
        %v6366 = vsub.s32 0, %v6365
        %v6367 = vrot.slane %v6329, %v6366
        %v6368 = vlaneseq
        %v6369 = vshrl.u32 %v6368, 7
        %v6370 = vsub.s32 0, %v6369
        %v6371 = vrot.slane %v6343, %v6370
        %v6372 = vlaneseq
        %v6373 = vshrl.u32 %v6372, 7
        %v6374 = vsub.s32 0, %v6373
        %v6375 = vrot.slane %v6345, %v6374
        %v6376 = vlaneseq
        %v6377 = vshrl.u32 %v6376, 7
        %v6378 = vsub.s32 0, %v6377
        %v6379 = vrot.slane %v6347, %v6378
        %v6388 = vmul.f32 %v6351, %v4081
        %v6389 = vmul.f32 %v6355, %v4081
        %v6390 = vmul.f32 %v6359, %v4081
        %v6391 = vmul.f32 %v6363, %v4081
        %v6392 = vmul.f32 %v6367, %v4081
        %v6393 = vmul.f32 %v6371, %v4081
        %v6394 = vmul.f32 %v6375, %v4081
        %v6395 = vmul.f32 %v6379, %v4081
        %v6396 = vadd.f32 %v6290, %v6388
        %v6397 = vadd.f32 %v6291, %v6389
        %v6398 = vadd.f32 %v6292, %v6390
        %v6399 = vadd.f32 %v6293, %v6391
        %v6400 = vadd.f32 %v6294, %v6392
        %v6401 = vadd.f32 %v6295, %v6393
        %v6402 = vadd.f32 %v6296, %v6394
        %v6403 = vadd.f32 %v6297, %v6395
        %v6404 = vrot.slane %v6396, 4
        %v6405 = vmax.f32 %v6396, %v6404
        %v6406 = vrot.slane %v6405, 2
        %v6407 = vmax.f32 %v6405, %v6406
        %v6408 = vrot.slane %v6407, 1
        %v6409 = vmax.f32 %v6407, %v6408
        %v6410 = vrot.slane %v6397, 4
        %v6411 = vmax.f32 %v6397, %v6410
        %v6412 = vrot.slane %v6411, 2
        %v6413 = vmax.f32 %v6411, %v6412
        %v6414 = vrot.slane %v6413, 1
        %v6415 = vmax.f32 %v6413, %v6414
        %v6416 = vrot.slane %v6398, 4
        %v6417 = vmax.f32 %v6398, %v6416
        %v6418 = vrot.slane %v6417, 2
        %v6419 = vmax.f32 %v6417, %v6418
        %v6420 = vrot.slane %v6419, 1
        %v6421 = vmax.f32 %v6419, %v6420
        %v6422 = vrot.slane %v6399, 4
        %v6423 = vmax.f32 %v6399, %v6422
        %v6424 = vrot.slane %v6423, 2
        %v6425 = vmax.f32 %v6423, %v6424
        %v6426 = vrot.slane %v6425, 1
        %v6427 = vmax.f32 %v6425, %v6426
        %v6428 = vrot.slane %v6400, 4
        %v6429 = vmax.f32 %v6400, %v6428
        %v6430 = vrot.slane %v6429, 2
        %v6431 = vmax.f32 %v6429, %v6430
        %v6432 = vrot.slane %v6431, 1
        %v6433 = vmax.f32 %v6431, %v6432
        %v6434 = vrot.slane %v6401, 4
        %v6435 = vmax.f32 %v6401, %v6434
        %v6436 = vrot.slane %v6435, 2
        %v6437 = vmax.f32 %v6435, %v6436
        %v6438 = vrot.slane %v6437, 1
        %v6439 = vmax.f32 %v6437, %v6438
        %v6440 = vrot.slane %v6402, 4
        %v6441 = vmax.f32 %v6402, %v6440
        %v6442 = vrot.slane %v6441, 2
        %v6443 = vmax.f32 %v6441, %v6442
        %v6444 = vrot.slane %v6443, 1
        %v6445 = vmax.f32 %v6443, %v6444
        %v6446 = vrot.slane %v6403, 4
        %v6447 = vmax.f32 %v6403, %v6446
        %v6448 = vrot.slane %v6447, 2
        %v6449 = vmax.f32 %v6447, %v6448
        %v6450 = vrot.slane %v6449, 1
        %v6451 = vmax.f32 %v6449, %v6450
        %v6452 = vsub.f32 %v6396, %v6409
        %v6453 = vsub.f32 %v6397, %v6415
        %v6454 = vsub.f32 %v6398, %v6421
        %v6455 = vsub.f32 %v6399, %v6427
        %v6456 = vsub.f32 %v6400, %v6433
        %v6457 = vsub.f32 %v6401, %v6439
        %v6458 = vsub.f32 %v6402, %v6445
        %v6459 = vsub.f32 %v6403, %v6451
        %v6460 = vmul.f32 %v6452, 1.442695
        %v6461 = vpow.pop %v6460
        %v6462 = vmul.f32 %v6453, 1.442695
        %v6463 = vpow.pop %v6462
        %v6464 = vmul.f32 %v6454, 1.442695
        %v6465 = vpow.pop %v6464
        %v6466 = vmul.f32 %v6455, 1.442695
        %v6467 = vpow.pop %v6466
        %v6468 = vmul.f32 %v6456, 1.442695
        %v6469 = vpow.pop %v6468
        %v6470 = vmul.f32 %v6457, 1.442695
        %v6471 = vpow.pop %v6470
        %v6472 = vmul.f32 %v6458, 1.442695
        %v6473 = vpow.pop %v6472
        %v6474 = vmul.f32 %v6459, 1.442695
        %v6475 = vpow.pop %v6474
        %v6476 = vrot.slane %v6461, 4
        %v6477 = vadd.f32 %v6461, %v6476
        %v6478 = vrot.slane %v6477, 2
        %v6479 = vadd.f32 %v6477, %v6478
        %v6480 = vrot.slane %v6479, 1
        %v6481 = vadd.f32 %v6479, %v6480
        %v6482 = vrot.slane %v6463, 4
        %v6483 = vadd.f32 %v6463, %v6482
        %v6484 = vrot.slane %v6483, 2
        %v6485 = vadd.f32 %v6483, %v6484
        %v6486 = vrot.slane %v6485, 1
        %v6487 = vadd.f32 %v6485, %v6486
        %v6488 = vrot.slane %v6465, 4
        %v6489 = vadd.f32 %v6465, %v6488
        %v6490 = vrot.slane %v6489, 2
        %v6491 = vadd.f32 %v6489, %v6490
        %v6492 = vrot.slane %v6491, 1
        %v6493 = vadd.f32 %v6491, %v6492
        %v6494 = vrot.slane %v6467, 4
        %v6495 = vadd.f32 %v6467, %v6494
        %v6496 = vrot.slane %v6495, 2
        %v6497 = vadd.f32 %v6495, %v6496
        %v6498 = vrot.slane %v6497, 1
        %v6499 = vadd.f32 %v6497, %v6498
        %v6500 = vrot.slane %v6469, 4
        %v6501 = vadd.f32 %v6469, %v6500
        %v6502 = vrot.slane %v6501, 2
        %v6503 = vadd.f32 %v6501, %v6502
        %v6504 = vrot.slane %v6503, 1
        %v6505 = vadd.f32 %v6503, %v6504
        %v6506 = vrot.slane %v6471, 4
        %v6507 = vadd.f32 %v6471, %v6506
        %v6508 = vrot.slane %v6507, 2
        %v6509 = vadd.f32 %v6507, %v6508
        %v6510 = vrot.slane %v6509, 1
        %v6511 = vadd.f32 %v6509, %v6510
        %v6512 = vrot.slane %v6473, 4
        %v6513 = vadd.f32 %v6473, %v6512
        %v6514 = vrot.slane %v6513, 2
        %v6515 = vadd.f32 %v6513, %v6514
        %v6516 = vrot.slane %v6515, 1
        %v6517 = vadd.f32 %v6515, %v6516
        %v6518 = vrot.slane %v6475, 4
        %v6519 = vadd.f32 %v6475, %v6518
        %v6520 = vrot.slane %v6519, 2
        %v6521 = vadd.f32 %v6519, %v6520
        %v6522 = vrot.slane %v6521, 1
        %v6523 = vadd.f32 %v6521, %v6522
        %v6524 = vrcp.pop %v6481
        %v6525 = vrcp.pop %v6487
        %v6526 = vrcp.pop %v6493
        %v6527 = vrcp.pop %v6499
        %v6528 = vrcp.pop %v6505
        %v6529 = vrcp.pop %v6511
        %v6530 = vrcp.pop %v6517
        %v6531 = vrcp.pop %v6523
        %v6532 = vmul.f32 %v6461, %v6524
        %v6533 = vmul.f32 %v6463, %v6525
        %v6534 = vmul.f32 %v6465, %v6526
        %v6535 = vmul.f32 %v6467, %v6527
        %v6536 = vmul.f32 %v6469, %v6528
        %v6537 = vmul.f32 %v6471, %v6529
        %v6538 = vmul.f32 %v6473, %v6530
        %v6539 = vmul.f32 %v6475, %v6531
        %v6540 = vlaneseq
        %v6541 = vshrl.u32 %v6540, 7
        %v6542 = vsub.s32 0, %v6541
        %v6543 = vrot.slane %v6532, %v6542
        %v6544 = vlaneseq
        %v6545 = vshrl.u32 %v6544, 7
        %v6546 = vsub.s32 0, %v6545
        %v6547 = vrot.slane %v6533, %v6546
        %v6548 = vlaneseq
        %v6549 = vshrl.u32 %v6548, 7
        %v6550 = vsub.s32 0, %v6549
        %v6551 = vrot.slane %v6534, %v6550
        %v6552 = vlaneseq
        %v6553 = vshrl.u32 %v6552, 7
        %v6554 = vsub.s32 0, %v6553
        %v6555 = vrot.slane %v6535, %v6554
        %v6556 = vlaneseq
        %v6557 = vshrl.u32 %v6556, 7
        %v6558 = vsub.s32 0, %v6557
        %v6559 = vrot.slane %v6536, %v6558
        %v6560 = vlaneseq
        %v6561 = vshrl.u32 %v6560, 7
        %v6562 = vsub.s32 0, %v6561
        %v6563 = vrot.slane %v6537, %v6562
        %v6564 = vlaneseq
        %v6565 = vshrl.u32 %v6564, 7
        %v6566 = vsub.s32 0, %v6565
        %v6567 = vrot.slane %v6538, %v6566
        %v6568 = vlaneseq
        %v6569 = vshrl.u32 %v6568, 7
        %v6570 = vsub.s32 0, %v6569
        %v6571 = vrot.slane %v6539, %v6570
        %v6572 = vmul.f32 %v6543, %v4118
        %v6573 = vmul.f32 %v6547, %v4118
        %v6574 = vmul.f32 %v6551, %v4118
        %v6575 = vmul.f32 %v6555, %v4118
        %v6576 = vmul.f32 %v6559, %v4118
        %v6577 = vmul.f32 %v6563, %v4118
        %v6578 = vmul.f32 %v6567, %v4118
        %v6579 = vmul.f32 %v6571, %v4118
        %v6580 = vlaneseq
        %v6581 = vshrl.u32 %v6580, 7
        %v6582 = vsub.s32 1, %v6581
        %v6583 = vrot.slane %v6532, %v6582
        %v6584 = vlaneseq
        %v6585 = vshrl.u32 %v6584, 7
        %v6586 = vsub.s32 1, %v6585
        %v6587 = vrot.slane %v6533, %v6586
        %v6588 = vlaneseq
        %v6589 = vshrl.u32 %v6588, 7
        %v6590 = vsub.s32 1, %v6589
        %v6591 = vrot.slane %v6534, %v6590
        %v6592 = vlaneseq
        %v6593 = vshrl.u32 %v6592, 7
        %v6594 = vsub.s32 1, %v6593
        %v6595 = vrot.slane %v6535, %v6594
        %v6596 = vlaneseq
        %v6597 = vshrl.u32 %v6596, 7
        %v6598 = vsub.s32 1, %v6597
        %v6599 = vrot.slane %v6536, %v6598
        %v6600 = vlaneseq
        %v6601 = vshrl.u32 %v6600, 7
        %v6602 = vsub.s32 1, %v6601
        %v6603 = vrot.slane %v6537, %v6602
        %v6604 = vlaneseq
        %v6605 = vshrl.u32 %v6604, 7
        %v6606 = vsub.s32 1, %v6605
        %v6607 = vrot.slane %v6538, %v6606
        %v6608 = vlaneseq
        %v6609 = vshrl.u32 %v6608, 7
        %v6610 = vsub.s32 1, %v6609
        %v6611 = vrot.slane %v6539, %v6610
        %v6612 = vmul.f32 %v6583, %v4121
        %v6613 = vmul.f32 %v6587, %v4121
        %v6614 = vmul.f32 %v6591, %v4121
        %v6615 = vmul.f32 %v6595, %v4121
        %v6616 = vmul.f32 %v6599, %v4121
        %v6617 = vmul.f32 %v6603, %v4121
        %v6618 = vmul.f32 %v6607, %v4121
        %v6619 = vmul.f32 %v6611, %v4121
        %v6620 = vadd.f32 %v6572, %v6612
        %v6621 = vadd.f32 %v6573, %v6613
        %v6622 = vadd.f32 %v6574, %v6614
        %v6623 = vadd.f32 %v6575, %v6615
        %v6624 = vadd.f32 %v6576, %v6616
        %v6625 = vadd.f32 %v6577, %v6617
        %v6626 = vadd.f32 %v6578, %v6618
        %v6627 = vadd.f32 %v6579, %v6619
        %v6628 = vlaneseq
        %v6629 = vshrl.u32 %v6628, 7
        %v6630 = vsub.s32 2, %v6629
        %v6631 = vrot.slane %v6532, %v6630
        %v6632 = vlaneseq
        %v6633 = vshrl.u32 %v6632, 7
        %v6634 = vsub.s32 2, %v6633
        %v6635 = vrot.slane %v6533, %v6634
        %v6636 = vlaneseq
        %v6637 = vshrl.u32 %v6636, 7
        %v6638 = vsub.s32 2, %v6637
        %v6639 = vrot.slane %v6534, %v6638
        %v6640 = vlaneseq
        %v6641 = vshrl.u32 %v6640, 7
        %v6642 = vsub.s32 2, %v6641
        %v6643 = vrot.slane %v6535, %v6642
        %v6644 = vlaneseq
        %v6645 = vshrl.u32 %v6644, 7
        %v6646 = vsub.s32 2, %v6645
        %v6647 = vrot.slane %v6536, %v6646
        %v6648 = vlaneseq
        %v6649 = vshrl.u32 %v6648, 7
        %v6650 = vsub.s32 2, %v6649
        %v6651 = vrot.slane %v6537, %v6650
        %v6652 = vlaneseq
        %v6653 = vshrl.u32 %v6652, 7
        %v6654 = vsub.s32 2, %v6653
        %v6655 = vrot.slane %v6538, %v6654
        %v6656 = vlaneseq
        %v6657 = vshrl.u32 %v6656, 7
        %v6658 = vsub.s32 2, %v6657
        %v6659 = vrot.slane %v6539, %v6658
        %v6660 = vmul.f32 %v6631, %v4126
        %v6661 = vmul.f32 %v6635, %v4126
        %v6662 = vmul.f32 %v6639, %v4126
        %v6663 = vmul.f32 %v6643, %v4126
        %v6664 = vmul.f32 %v6647, %v4126
        %v6665 = vmul.f32 %v6651, %v4126
        %v6666 = vmul.f32 %v6655, %v4126
        %v6667 = vmul.f32 %v6659, %v4126
        %v6668 = vadd.f32 %v6620, %v6660
        %v6669 = vadd.f32 %v6621, %v6661
        %v6670 = vadd.f32 %v6622, %v6662
        %v6671 = vadd.f32 %v6623, %v6663
        %v6672 = vadd.f32 %v6624, %v6664
        %v6673 = vadd.f32 %v6625, %v6665
        %v6674 = vadd.f32 %v6626, %v6666
        %v6675 = vadd.f32 %v6627, %v6667
        %v6676 = vlaneseq
        %v6677 = vshrl.u32 %v6676, 7
        %v6678 = vsub.s32 3, %v6677
        %v6679 = vrot.slane %v6532, %v6678
        %v6680 = vlaneseq
        %v6681 = vshrl.u32 %v6680, 7
        %v6682 = vsub.s32 3, %v6681
        %v6683 = vrot.slane %v6533, %v6682
        %v6684 = vlaneseq
        %v6685 = vshrl.u32 %v6684, 7
        %v6686 = vsub.s32 3, %v6685
        %v6687 = vrot.slane %v6534, %v6686
        %v6688 = vlaneseq
        %v6689 = vshrl.u32 %v6688, 7
        %v6690 = vsub.s32 3, %v6689
        %v6691 = vrot.slane %v6535, %v6690
        %v6692 = vlaneseq
        %v6693 = vshrl.u32 %v6692, 7
        %v6694 = vsub.s32 3, %v6693
        %v6695 = vrot.slane %v6536, %v6694
        %v6696 = vlaneseq
        %v6697 = vshrl.u32 %v6696, 7
        %v6698 = vsub.s32 3, %v6697
        %v6699 = vrot.slane %v6537, %v6698
        %v6700 = vlaneseq
        %v6701 = vshrl.u32 %v6700, 7
        %v6702 = vsub.s32 3, %v6701
        %v6703 = vrot.slane %v6538, %v6702
        %v6704 = vlaneseq
        %v6705 = vshrl.u32 %v6704, 7
        %v6706 = vsub.s32 3, %v6705
        %v6707 = vrot.slane %v6539, %v6706
        %v6708 = vmul.f32 %v6679, %v4129
        %v6709 = vmul.f32 %v6683, %v4129
        %v6710 = vmul.f32 %v6687, %v4129
        %v6711 = vmul.f32 %v6691, %v4129
        %v6712 = vmul.f32 %v6695, %v4129
        %v6713 = vmul.f32 %v6699, %v4129
        %v6714 = vmul.f32 %v6703, %v4129
        %v6715 = vmul.f32 %v6707, %v4129
        %v6716 = vadd.f32 %v6668, %v6708
        %v6717 = vadd.f32 %v6669, %v6709
        %v6718 = vadd.f32 %v6670, %v6710
        %v6719 = vadd.f32 %v6671, %v6711
        %v6720 = vadd.f32 %v6672, %v6712
        %v6721 = vadd.f32 %v6673, %v6713
        %v6722 = vadd.f32 %v6674, %v6714
        %v6723 = vadd.f32 %v6675, %v6715
        %v6724 = vlaneseq
        %v6725 = vshrl.u32 %v6724, 7
        %v6726 = vsub.s32 4, %v6725
        %v6727 = vrot.slane %v6532, %v6726
        %v6728 = vlaneseq
        %v6729 = vshrl.u32 %v6728, 7
        %v6730 = vsub.s32 4, %v6729
        %v6731 = vrot.slane %v6533, %v6730
        %v6732 = vlaneseq
        %v6733 = vshrl.u32 %v6732, 7
        %v6734 = vsub.s32 4, %v6733
        %v6735 = vrot.slane %v6534, %v6734
        %v6736 = vlaneseq
        %v6737 = vshrl.u32 %v6736, 7
        %v6738 = vsub.s32 4, %v6737
        %v6739 = vrot.slane %v6535, %v6738
        %v6740 = vlaneseq
        %v6741 = vshrl.u32 %v6740, 7
        %v6742 = vsub.s32 4, %v6741
        %v6743 = vrot.slane %v6536, %v6742
        %v6744 = vlaneseq
        %v6745 = vshrl.u32 %v6744, 7
        %v6746 = vsub.s32 4, %v6745
        %v6747 = vrot.slane %v6537, %v6746
        %v6748 = vlaneseq
        %v6749 = vshrl.u32 %v6748, 7
        %v6750 = vsub.s32 4, %v6749
        %v6751 = vrot.slane %v6538, %v6750
        %v6752 = vlaneseq
        %v6753 = vshrl.u32 %v6752, 7
        %v6754 = vsub.s32 4, %v6753
        %v6755 = vrot.slane %v6539, %v6754
        %v6756 = vmul.f32 %v6727, %v4134
        %v6757 = vmul.f32 %v6731, %v4134
        %v6758 = vmul.f32 %v6735, %v4134
        %v6759 = vmul.f32 %v6739, %v4134
        %v6760 = vmul.f32 %v6743, %v4134
        %v6761 = vmul.f32 %v6747, %v4134
        %v6762 = vmul.f32 %v6751, %v4134
        %v6763 = vmul.f32 %v6755, %v4134
        %v6764 = vadd.f32 %v6716, %v6756
        %v6765 = vadd.f32 %v6717, %v6757
        %v6766 = vadd.f32 %v6718, %v6758
        %v6767 = vadd.f32 %v6719, %v6759
        %v6768 = vadd.f32 %v6720, %v6760
        %v6769 = vadd.f32 %v6721, %v6761
        %v6770 = vadd.f32 %v6722, %v6762
        %v6771 = vadd.f32 %v6723, %v6763
        %v6772 = vlaneseq
        %v6773 = vshrl.u32 %v6772, 7
        %v6774 = vsub.s32 5, %v6773
        %v6775 = vrot.slane %v6532, %v6774
        %v6776 = vlaneseq
        %v6777 = vshrl.u32 %v6776, 7
        %v6778 = vsub.s32 5, %v6777
        %v6779 = vrot.slane %v6533, %v6778
        %v6780 = vlaneseq
        %v6781 = vshrl.u32 %v6780, 7
        %v6782 = vsub.s32 5, %v6781
        %v6783 = vrot.slane %v6534, %v6782
        %v6784 = vlaneseq
        %v6785 = vshrl.u32 %v6784, 7
        %v6786 = vsub.s32 5, %v6785
        %v6787 = vrot.slane %v6535, %v6786
        %v6788 = vlaneseq
        %v6789 = vshrl.u32 %v6788, 7
        %v6790 = vsub.s32 5, %v6789
        %v6791 = vrot.slane %v6536, %v6790
        %v6792 = vlaneseq
        %v6793 = vshrl.u32 %v6792, 7
        %v6794 = vsub.s32 5, %v6793
        %v6795 = vrot.slane %v6537, %v6794
        %v6796 = vlaneseq
        %v6797 = vshrl.u32 %v6796, 7
        %v6798 = vsub.s32 5, %v6797
        %v6799 = vrot.slane %v6538, %v6798
        %v6800 = vlaneseq
        %v6801 = vshrl.u32 %v6800, 7
        %v6802 = vsub.s32 5, %v6801
        %v6803 = vrot.slane %v6539, %v6802
        %v6804 = vmul.f32 %v6775, %v4137
        %v6805 = vmul.f32 %v6779, %v4137
        %v6806 = vmul.f32 %v6783, %v4137
        %v6807 = vmul.f32 %v6787, %v4137
        %v6808 = vmul.f32 %v6791, %v4137
        %v6809 = vmul.f32 %v6795, %v4137
        %v6810 = vmul.f32 %v6799, %v4137
        %v6811 = vmul.f32 %v6803, %v4137
        %v6812 = vadd.f32 %v6764, %v6804
        %v6813 = vadd.f32 %v6765, %v6805
        %v6814 = vadd.f32 %v6766, %v6806
        %v6815 = vadd.f32 %v6767, %v6807
        %v6816 = vadd.f32 %v6768, %v6808
        %v6817 = vadd.f32 %v6769, %v6809
        %v6818 = vadd.f32 %v6770, %v6810
        %v6819 = vadd.f32 %v6771, %v6811
        %v6820 = vlaneseq
        %v6821 = vshrl.u32 %v6820, 7
        %v6822 = vsub.s32 6, %v6821
        %v6823 = vrot.slane %v6532, %v6822
        %v6824 = vlaneseq
        %v6825 = vshrl.u32 %v6824, 7
        %v6826 = vsub.s32 6, %v6825
        %v6827 = vrot.slane %v6533, %v6826
        %v6828 = vlaneseq
        %v6829 = vshrl.u32 %v6828, 7
        %v6830 = vsub.s32 6, %v6829
        %v6831 = vrot.slane %v6534, %v6830
        %v6832 = vlaneseq
        %v6833 = vshrl.u32 %v6832, 7
        %v6834 = vsub.s32 6, %v6833
        %v6835 = vrot.slane %v6535, %v6834
        %v6836 = vlaneseq
        %v6837 = vshrl.u32 %v6836, 7
        %v6838 = vsub.s32 6, %v6837
        %v6839 = vrot.slane %v6536, %v6838
        %v6840 = vlaneseq
        %v6841 = vshrl.u32 %v6840, 7
        %v6842 = vsub.s32 6, %v6841
        %v6843 = vrot.slane %v6537, %v6842
        %v6844 = vlaneseq
        %v6845 = vshrl.u32 %v6844, 7
        %v6846 = vsub.s32 6, %v6845
        %v6847 = vrot.slane %v6538, %v6846
        %v6848 = vlaneseq
        %v6849 = vshrl.u32 %v6848, 7
        %v6850 = vsub.s32 6, %v6849
        %v6851 = vrot.slane %v6539, %v6850
        %v6852 = vmul.f32 %v6823, %v4142
        %v6853 = vmul.f32 %v6827, %v4142
        %v6854 = vmul.f32 %v6831, %v4142
        %v6855 = vmul.f32 %v6835, %v4142
        %v6856 = vmul.f32 %v6839, %v4142
        %v6857 = vmul.f32 %v6843, %v4142
        %v6858 = vmul.f32 %v6847, %v4142
        %v6859 = vmul.f32 %v6851, %v4142
        %v6860 = vadd.f32 %v6812, %v6852
        %v6861 = vadd.f32 %v6813, %v6853
        %v6862 = vadd.f32 %v6814, %v6854
        %v6863 = vadd.f32 %v6815, %v6855
        %v6864 = vadd.f32 %v6816, %v6856
        %v6865 = vadd.f32 %v6817, %v6857
        %v6866 = vadd.f32 %v6818, %v6858
        %v6867 = vadd.f32 %v6819, %v6859
        %v6868 = vlaneseq
        %v6869 = vshrl.u32 %v6868, 7
        %v6870 = vsub.s32 7, %v6869
        %v6871 = vrot.slane %v6532, %v6870
        %v6872 = vlaneseq
        %v6873 = vshrl.u32 %v6872, 7
        %v6874 = vsub.s32 7, %v6873
        %v6875 = vrot.slane %v6533, %v6874
        %v6876 = vlaneseq
        %v6877 = vshrl.u32 %v6876, 7
        %v6878 = vsub.s32 7, %v6877
        %v6879 = vrot.slane %v6534, %v6878
        %v6880 = vlaneseq
        %v6881 = vshrl.u32 %v6880, 7
        %v6882 = vsub.s32 7, %v6881
        %v6883 = vrot.slane %v6535, %v6882
        %v6884 = vlaneseq
        %v6885 = vshrl.u32 %v6884, 7
        %v6886 = vsub.s32 7, %v6885
        %v6887 = vrot.slane %v6536, %v6886
        %v6888 = vlaneseq
        %v6889 = vshrl.u32 %v6888, 7
        %v6890 = vsub.s32 7, %v6889
        %v6891 = vrot.slane %v6537, %v6890
        %v6892 = vlaneseq
        %v6893 = vshrl.u32 %v6892, 7
        %v6894 = vsub.s32 7, %v6893
        %v6895 = vrot.slane %v6538, %v6894
        %v6896 = vlaneseq
        %v6897 = vshrl.u32 %v6896, 7
        %v6898 = vsub.s32 7, %v6897
        %v6899 = vrot.slane %v6539, %v6898
        %v6900 = vmul.f32 %v6871, %v4145
        %v6901 = vmul.f32 %v6875, %v4145
        %v6902 = vmul.f32 %v6879, %v4145
        %v6903 = vmul.f32 %v6883, %v4145
        %v6904 = vmul.f32 %v6887, %v4145
        %v6905 = vmul.f32 %v6891, %v4145
        %v6906 = vmul.f32 %v6895, %v4145
        %v6907 = vmul.f32 %v6899, %v4145
        %v6908 = vadd.f32 %v6860, %v6900
        %v6909 = vadd.f32 %v6861, %v6901
        %v6910 = vadd.f32 %v6862, %v6902
        %v6911 = vadd.f32 %v6863, %v6903
        %v6912 = vadd.f32 %v6864, %v6904
        %v6913 = vadd.f32 %v6865, %v6905
        %v6914 = vadd.f32 %v6866, %v6906
        %v6915 = vadd.f32 %v6867, %v6907
        %v6916 = vadd.f32 %v5556, %v4150
        %v6917 = vadd.f32 %v6908, %v4153
        %v6918 = vadd.f32 %v5557, %v4158
        %v6919 = vadd.f32 %v6909, %v4161
        %v6920 = vadd.f32 %v5558, %v4166
        %v6921 = vadd.f32 %v6910, %v4169
        %v6922 = vadd.f32 %v5559, %v4174
        %v6923 = vadd.f32 %v6911, %v4177
        %v6924 = vadd.f32 %v5560, %v4182
        %v6925 = vadd.f32 %v6912, %v4185
        %v6926 = vadd.f32 %v5561, %v4190
        %v6927 = vadd.f32 %v6913, %v4193
        %v6928 = vadd.f32 %v5562, %v4198
        %v6929 = vadd.f32 %v6914, %v4201
        %v6930 = vadd.f32 %v5563, %v4206
        %v6931 = vadd.f32 %v6915, %v4209
        %v6932 = vmax.f32 %v6916, 0.0
        %v6933 = vmax.f32 %v6917, 0.0
        %v6934 = vmax.f32 %v6918, 0.0
        %v6935 = vmax.f32 %v6919, 0.0
        %v6936 = vmax.f32 %v6920, 0.0
        %v6937 = vmax.f32 %v6921, 0.0
        %v6938 = vmax.f32 %v6922, 0.0
        %v6939 = vmax.f32 %v6923, 0.0
        %v6940 = vmax.f32 %v6924, 0.0
        %v6941 = vmax.f32 %v6925, 0.0
        %v6942 = vmax.f32 %v6926, 0.0
        %v6943 = vmax.f32 %v6927, 0.0
        %v6944 = vmax.f32 %v6928, 0.0
        %v6945 = vmax.f32 %v6929, 0.0
        %v6946 = vmax.f32 %v6930, 0.0
        %v6947 = vmax.f32 %v6931, 0.0
        %v6948 = vpack.c.bf16 %v6933, %v6932
        %v6949 = vpack.c.bf16 %v6935, %v6934
        %v6950 = vpack.c.bf16 %v6937, %v6936
        %v6951 = vpack.c.bf16 %v6939, %v6938
        %v6952 = vpack.c.bf16 %v6941, %v6940
        %v6953 = vpack.c.bf16 %v6943, %v6942
        %v6954 = vpack.c.bf16 %v6945, %v6944
        %v6955 = vpack.c.bf16 %v6947, %v6946
        %v6956 = vld [vmem:[#allocation9] sm:$0xf]
        %v6957 = vld [vmem:[#allocation9 + $0x4] sm:$0xf]
        %v6958 = vld [vmem:[#allocation9 + $0x8] sm:$0xf]
        %v6959 = vld [vmem:[#allocation9 + $0xc] sm:$0xf]
        %v6960 = vld [vmem:[#allocation9 + $0x10] sm:$0xf]
        %v6961 = vld [vmem:[#allocation9 + $0x14] sm:$0xf]
        %v6962 = vld [vmem:[#allocation9 + $0x18] sm:$0xf]
        %v6963 = vld [vmem:[#allocation9 + $0x1c] sm:$0xf]
        %v6964 = vld [vmem:[#allocation9 + $0x20] sm:$0xf]
        %v6965 = vld [vmem:[#allocation9 + $0x24] sm:$0xf]
        %v6966 = vld [vmem:[#allocation9 + $0x28] sm:$0xf]
        %v6967 = vld [vmem:[#allocation9 + $0x2c] sm:$0xf]
        %v6968 = vld [vmem:[#allocation9 + $0x30] sm:$0xf]
        %v6969 = vld [vmem:[#allocation9 + $0x34] sm:$0xf]
        %v6970 = vld [vmem:[#allocation9 + $0x38] sm:$0xf]
        %v6971 = vld [vmem:[#allocation9 + $0x3c] sm:$0xf]
        %v6972 = vld [vmem:[#allocation9 + $0x40] sm:$0xf]
        %v6973 = vld [vmem:[#allocation9 + $0x44] sm:$0xf]
        %v6974 = vld [vmem:[#allocation9 + $0x48] sm:$0xf]
        %v6975 = vld [vmem:[#allocation9 + $0x4c] sm:$0xf]
        %v6976 = vld [vmem:[#allocation9 + $0x50] sm:$0xf]
        %v6977 = vld [vmem:[#allocation9 + $0x54] sm:$0xf]
        %v6978 = vld [vmem:[#allocation9 + $0x58] sm:$0xf]
        %v6979 = vld [vmem:[#allocation9 + $0x5c] sm:$0xf]
        %v6980 = vld [vmem:[#allocation9 + $0x60] sm:$0xf]
        %v6981 = vld [vmem:[#allocation9 + $0x64] sm:$0xf]
        %v6982 = vld [vmem:[#allocation9 + $0x68] sm:$0xf]
        %v6983 = vld [vmem:[#allocation9 + $0x6c] sm:$0xf]
        %v6984 = vld [vmem:[#allocation9 + $0x70] sm:$0xf]
        %v6985 = vld [vmem:[#allocation9 + $0x74] sm:$0xf]
        %v6986 = vld [vmem:[#allocation9 + $0x78] sm:$0xf]
        %v6987 = vld [vmem:[#allocation9 + $0x7c] sm:$0xf]
        %v6988 = vld [vmem:[#allocation9 + $0x80] sm:$0xf]
        %v6989 = vld [vmem:[#allocation9 + $0x84] sm:$0xf]
        %v6990 = vld [vmem:[#allocation9 + $0x88] sm:$0xf]
        %v6991 = vld [vmem:[#allocation9 + $0x8c] sm:$0xf]
        %v6992 = vld [vmem:[#allocation9 + $0x90] sm:$0xf]
        %v6993 = vld [vmem:[#allocation9 + $0x94] sm:$0xf]
        %v6994 = vld [vmem:[#allocation9 + $0x98] sm:$0xf]
        %v6995 = vld [vmem:[#allocation9 + $0x9c] sm:$0xf]
        %v6996 = vld [vmem:[#allocation9 + $0xa0] sm:$0xf]
        %v6997 = vld [vmem:[#allocation9 + $0xa4] sm:$0xf]
        %v6998 = vld [vmem:[#allocation9 + $0xa8] sm:$0xf]
        %v6999 = vld [vmem:[#allocation9 + $0xac] sm:$0xf]
        %v7000 = vld [vmem:[#allocation9 + $0xb0] sm:$0xf]
        %v7001 = vld [vmem:[#allocation9 + $0xb4] sm:$0xf]
        %v7002 = vld [vmem:[#allocation9 + $0xb8] sm:$0xf]
        %v7003 = vld [vmem:[#allocation9 + $0xbc] sm:$0xf]
        %v7004 = vld [vmem:[#allocation9 + $0xc0] sm:$0xf]
        %v7005 = vld [vmem:[#allocation9 + $0xc4] sm:$0xf]
        %v7006 = vld [vmem:[#allocation9 + $0xc8] sm:$0xf]
        %v7007 = vld [vmem:[#allocation9 + $0xcc] sm:$0xf]
        %v7008 = vld [vmem:[#allocation9 + $0xd0] sm:$0xf]
        %v7009 = vld [vmem:[#allocation9 + $0xd4] sm:$0xf]
        %v7010 = vld [vmem:[#allocation9 + $0xd8] sm:$0xf]
        %v7011 = vld [vmem:[#allocation9 + $0xdc] sm:$0xf]
        %v7012 = vld [vmem:[#allocation9 + $0xe0] sm:$0xf]
        %v7013 = vld [vmem:[#allocation9 + $0xe4] sm:$0xf]
        %v7014 = vld [vmem:[#allocation9 + $0xe8] sm:$0xf]
        %v7015 = vld [vmem:[#allocation9 + $0xec] sm:$0xf]
        %v7016 = vld [vmem:[#allocation9 + $0xf0] sm:$0xf]
        %v7017 = vld [vmem:[#allocation9 + $0xf4] sm:$0xf]
        %v7018 = vld [vmem:[#allocation9 + $0xf8] sm:$0xf]
        %v7019 = vld [vmem:[#allocation9 + $0xfc] sm:$0xf]
        %v7084 = vunpack.c.l.b16 %v6956
        %v7085 = vunpack.c.l.b16 %v6957
        %v7086 = vunpack.c.l.b16 %v6958
        %v7087 = vunpack.c.l.b16 %v6959
        %v7088 = vunpack.c.l.b16 %v6960
        %v7089 = vunpack.c.l.b16 %v6961
        %v7090 = vunpack.c.l.b16 %v6962
        %v7091 = vunpack.c.l.b16 %v6963
        %v7092 = vunpack.c.l.b16 %v6964
        %v7093 = vunpack.c.l.b16 %v6965
        %v7094 = vunpack.c.l.b16 %v6966
        %v7095 = vunpack.c.l.b16 %v6967
        %v7096 = vunpack.c.l.b16 %v6968
        %v7097 = vunpack.c.l.b16 %v6969
        %v7098 = vunpack.c.l.b16 %v6970
        %v7099 = vunpack.c.l.b16 %v6971
        %v7100 = vunpack.c.l.b16 %v6972
        %v7101 = vunpack.c.l.b16 %v6973
        %v7102 = vunpack.c.l.b16 %v6974
        %v7103 = vunpack.c.l.b16 %v6975
        %v7104 = vunpack.c.l.b16 %v6976
        %v7105 = vunpack.c.l.b16 %v6977
        %v7106 = vunpack.c.l.b16 %v6978
        %v7107 = vunpack.c.l.b16 %v6979
        %v7108 = vunpack.c.l.b16 %v6980
        %v7109 = vunpack.c.l.b16 %v6981
        %v7110 = vunpack.c.l.b16 %v6982
        %v7111 = vunpack.c.l.b16 %v6983
        %v7112 = vunpack.c.l.b16 %v6984
        %v7113 = vunpack.c.l.b16 %v6985
        %v7114 = vunpack.c.l.b16 %v6986
        %v7115 = vunpack.c.l.b16 %v6987
        %v7116 = vunpack.c.l.b16 %v6988
        %v7117 = vunpack.c.l.b16 %v6989
        %v7118 = vunpack.c.l.b16 %v6990
        %v7119 = vunpack.c.l.b16 %v6991
        %v7120 = vunpack.c.l.b16 %v6992
        %v7121 = vunpack.c.l.b16 %v6993
        %v7122 = vunpack.c.l.b16 %v6994
        %v7123 = vunpack.c.l.b16 %v6995
        %v7124 = vunpack.c.l.b16 %v6996
        %v7125 = vunpack.c.l.b16 %v6997
        %v7126 = vunpack.c.l.b16 %v6998
        %v7127 = vunpack.c.l.b16 %v6999
        %v7128 = vunpack.c.l.b16 %v7000
        %v7129 = vunpack.c.l.b16 %v7001
        %v7130 = vunpack.c.l.b16 %v7002
        %v7131 = vunpack.c.l.b16 %v7003
        %v7132 = vunpack.c.l.b16 %v7004
        %v7133 = vunpack.c.l.b16 %v7005
        %v7134 = vunpack.c.l.b16 %v7006
        %v7135 = vunpack.c.l.b16 %v7007
        %v7136 = vunpack.c.l.b16 %v7008
        %v7137 = vunpack.c.l.b16 %v7009
        %v7138 = vunpack.c.l.b16 %v7010
        %v7139 = vunpack.c.l.b16 %v7011
        %v7140 = vunpack.c.l.b16 %v7012
        %v7141 = vunpack.c.l.b16 %v7013
        %v7142 = vunpack.c.l.b16 %v7014
        %v7143 = vunpack.c.l.b16 %v7015
        %v7144 = vunpack.c.l.b16 %v7016
        %v7145 = vunpack.c.l.b16 %v7017
        %v7146 = vunpack.c.l.b16 %v7018
        %v7147 = vunpack.c.l.b16 %v7019
        %v7148 = vpack.c.b16 %v7085, %v7084
        %v7149 = vpack.c.b16 %v7087, %v7086
        %v7150 = vpack.c.b16 %v7089, %v7088
        %v7151 = vpack.c.b16 %v7091, %v7090
        %v7152 = vpack.c.b16 %v7093, %v7092
        %v7153 = vpack.c.b16 %v7095, %v7094
        %v7154 = vpack.c.b16 %v7097, %v7096
        %v7155 = vpack.c.b16 %v7099, %v7098
        %v7156 = vpack.c.b16 %v7101, %v7100
        %v7157 = vpack.c.b16 %v7103, %v7102
        %v7158 = vpack.c.b16 %v7105, %v7104
        %v7159 = vpack.c.b16 %v7107, %v7106
        %v7160 = vpack.c.b16 %v7109, %v7108
        %v7161 = vpack.c.b16 %v7111, %v7110
        %v7162 = vpack.c.b16 %v7113, %v7112
        %v7163 = vpack.c.b16 %v7115, %v7114
        %v7164 = vpack.c.b16 %v7117, %v7116
        %v7165 = vpack.c.b16 %v7119, %v7118
        %v7166 = vpack.c.b16 %v7121, %v7120
        %v7167 = vpack.c.b16 %v7123, %v7122
        %v7168 = vpack.c.b16 %v7125, %v7124
        %v7169 = vpack.c.b16 %v7127, %v7126
        %v7170 = vpack.c.b16 %v7129, %v7128
        %v7171 = vpack.c.b16 %v7131, %v7130
        %v7172 = vpack.c.b16 %v7133, %v7132
        %v7173 = vpack.c.b16 %v7135, %v7134
        %v7174 = vpack.c.b16 %v7137, %v7136
        %v7175 = vpack.c.b16 %v7139, %v7138
        %v7176 = vpack.c.b16 %v7141, %v7140
        %v7177 = vpack.c.b16 %v7143, %v7142
        %v7178 = vpack.c.b16 %v7145, %v7144
        %v7179 = vpack.c.b16 %v7147, %v7146
        %7212 = vmatprep.subr.bf16.mxu0 0
        %7213 = vmatpush1.bf16.msra.mxu0 %v6955
        %7214 = vmatprep.subr.bf16.mxu0 0
        %7215 = vmatpush1.bf16.msra.mxu0 %v6954
        %7216 = vmatprep.subr.bf16.mxu0 0
        %7217 = vmatpush1.bf16.msra.mxu0 %v6953
        %7218 = vmatprep.subr.bf16.mxu0 0
        %7219 = vmatpush1.bf16.msra.mxu0 %v6952
        %7220 = vmatprep.subr.bf16.mxu0 0
        %7221 = vmatpush1.bf16.msra.mxu0 %v6951
        %7222 = vmatprep.subr.bf16.mxu0 0
        %7223 = vmatpush1.bf16.msra.mxu0 %v6950
        %7224 = vmatprep.subr.bf16.mxu0 0
        %7225 = vmatpush1.bf16.msra.mxu0 %v6949
        %7226 = vmatprep.subr.bf16.mxu0 0
        %7227 = vmatpush1.bf16.msra.mxu0 %v6948
        %7228 = vmatprep.subr.bf16.mxu0 0
        %7229 = vmatpush2.bf16.msra.mxu0 0
        %7230 = vmatprep.subr.bf16.mxu0 0
        %7231 = vmatpush2.bf16.msra.mxu0 0
        %7232 = vmatprep.subr.bf16.mxu0 0
        %7233 = vmatpush2.bf16.msra.mxu0 0
        %7234 = vmatprep.subr.bf16.mxu0 0
        %7235 = vmatpush2.bf16.msra.mxu0 0
        %7236 = vmatprep.subr.bf16.mxu0 0
        %7237 = vmatpush2.bf16.msra.mxu0 0
        %7238 = vmatprep.subr.bf16.mxu0 0
        %7239 = vmatpush2.bf16.msra.mxu0 0
        %7240 = vmatprep.subr.bf16.mxu0 0
        %7241 = vmatpush2.bf16.msra.mxu0 0
        %7242 = vmatprep.subr.bf16.mxu0 0
        %7243 = vmatpush2.bf16.msra.mxu0 0
        %7244 = vmatprep.mubr.bf16.mxu0 0
        %7245 = vmatmul.mubr.bf16.gmra.mxu0 %v7148
        %v7246 = vpop.f32.mrf.mxu0
        %v7247 = vadd.f32 0.0, %v7246
        %v7248 = vpop.f32.mrf.mxu0
        %v7249 = vpop.f32.mrf.mxu0
        %v7250 = vadd.f32 0.0, %v7249
        %v7251 = vpop.f32.mrf.mxu0
        %7252 = vmatprep.mubr.bf16.mxu0 0
        %7253 = vmatmul.mubr.bf16.gmra.mxu0 %v7149
        %v7254 = vpop.f32.mrf.mxu0
        %v7255 = vadd.f32 0.0, %v7254
        %v7256 = vpop.f32.mrf.mxu0
        %v7257 = vpop.f32.mrf.mxu0
        %v7258 = vadd.f32 0.0, %v7257
        %v7259 = vpop.f32.mrf.mxu0
        %7260 = vmatprep.mubr.bf16.mxu0 0
        %7261 = vmatmul.mubr.bf16.gmra.mxu0 %v7150
        %v7262 = vpop.f32.mrf.mxu0
        %v7263 = vadd.f32 0.0, %v7262
        %v7264 = vpop.f32.mrf.mxu0
        %v7265 = vpop.f32.mrf.mxu0
        %v7266 = vadd.f32 0.0, %v7265
        %v7267 = vpop.f32.mrf.mxu0
        %7268 = vmatprep.mubr.bf16.mxu0 0
        %7269 = vmatmul.mubr.bf16.gmra.mxu0 %v7151
        %v7270 = vpop.f32.mrf.mxu0
        %v7271 = vadd.f32 0.0, %v7270
        %v7272 = vpop.f32.mrf.mxu0
        %v7273 = vpop.f32.mrf.mxu0
        %v7274 = vadd.f32 0.0, %v7273
        %v7275 = vpop.f32.mrf.mxu0
        %7276 = vmatprep.mubr.bf16.mxu0 0
        %7277 = vmatmul.mubr.bf16.gmra.mxu0 %v7152
        %v7278 = vpop.f32.mrf.mxu0
        %v7279 = vadd.f32 0.0, %v7278
        %v7280 = vpop.f32.mrf.mxu0
        %v7281 = vpop.f32.mrf.mxu0
        %v7282 = vadd.f32 0.0, %v7281
        %v7283 = vpop.f32.mrf.mxu0
        %7284 = vmatprep.mubr.bf16.mxu0 0
        %7285 = vmatmul.mubr.bf16.gmra.mxu0 %v7153
        %v7286 = vpop.f32.mrf.mxu0
        %v7287 = vadd.f32 0.0, %v7286
        %v7288 = vpop.f32.mrf.mxu0
        %v7289 = vpop.f32.mrf.mxu0
        %v7290 = vadd.f32 0.0, %v7289
        %v7291 = vpop.f32.mrf.mxu0
        %7292 = vmatprep.mubr.bf16.mxu0 0
        %7293 = vmatmul.mubr.bf16.gmra.mxu0 %v7154
        %v7294 = vpop.f32.mrf.mxu0
        %v7295 = vadd.f32 0.0, %v7294
        %v7296 = vpop.f32.mrf.mxu0
        %v7297 = vpop.f32.mrf.mxu0
        %v7298 = vadd.f32 0.0, %v7297
        %v7299 = vpop.f32.mrf.mxu0
        %7300 = vmatprep.mubr.bf16.mxu0 0
        %7301 = vmatmul.mubr.bf16.gmra.mxu0 %v7155
        %v7302 = vpop.f32.mrf.mxu0
        %v7303 = vadd.f32 0.0, %v7302
        %v7304 = vpop.f32.mrf.mxu0
        %v7305 = vpop.f32.mrf.mxu0
        %v7306 = vadd.f32 0.0, %v7305
        %v7307 = vpop.f32.mrf.mxu0
        %7308 = vmatprep.mubr.bf16.mxu0 0
        %7309 = vmatmul.mubr.bf16.gmra.mxu0 %v7156
        %v7310 = vpop.f32.mrf.mxu0
        %v7311 = vadd.f32 0.0, %v7310
        %v7312 = vpop.f32.mrf.mxu0
        %v7313 = vpop.f32.mrf.mxu0
        %v7314 = vadd.f32 0.0, %v7313
        %v7315 = vpop.f32.mrf.mxu0
        %7316 = vmatprep.mubr.bf16.mxu0 0
        %7317 = vmatmul.mubr.bf16.gmra.mxu0 %v7157
        %v7318 = vpop.f32.mrf.mxu0
        %v7319 = vadd.f32 0.0, %v7318
        %v7320 = vpop.f32.mrf.mxu0
        %v7321 = vpop.f32.mrf.mxu0
        %v7322 = vadd.f32 0.0, %v7321
        %v7323 = vpop.f32.mrf.mxu0
        %7324 = vmatprep.mubr.bf16.mxu0 0
        %7325 = vmatmul.mubr.bf16.gmra.mxu0 %v7158
        %v7326 = vpop.f32.mrf.mxu0
        %v7327 = vadd.f32 0.0, %v7326
        %v7328 = vpop.f32.mrf.mxu0
        %v7329 = vpop.f32.mrf.mxu0
        %v7330 = vadd.f32 0.0, %v7329
        %v7331 = vpop.f32.mrf.mxu0
        %7332 = vmatprep.mubr.bf16.mxu0 0
        %7333 = vmatmul.mubr.bf16.gmra.mxu0 %v7159
        %v7334 = vpop.f32.mrf.mxu0
        %v7335 = vadd.f32 0.0, %v7334
        %v7336 = vpop.f32.mrf.mxu0
        %v7337 = vpop.f32.mrf.mxu0
        %v7338 = vadd.f32 0.0, %v7337
        %v7339 = vpop.f32.mrf.mxu0
        %7340 = vmatprep.mubr.bf16.mxu0 0
        %7341 = vmatmul.mubr.bf16.gmra.mxu0 %v7160
        %v7342 = vpop.f32.mrf.mxu0
        %v7343 = vadd.f32 0.0, %v7342
        %v7344 = vpop.f32.mrf.mxu0
        %v7345 = vpop.f32.mrf.mxu0
        %v7346 = vadd.f32 0.0, %v7345
        %v7347 = vpop.f32.mrf.mxu0
        %7348 = vmatprep.mubr.bf16.mxu0 0
        %7349 = vmatmul.mubr.bf16.gmra.mxu0 %v7161
        %v7350 = vpop.f32.mrf.mxu0
        %v7351 = vadd.f32 0.0, %v7350
        %v7352 = vpop.f32.mrf.mxu0
        %v7353 = vpop.f32.mrf.mxu0
        %v7354 = vadd.f32 0.0, %v7353
        %v7355 = vpop.f32.mrf.mxu0
        %7356 = vmatprep.mubr.bf16.mxu0 0
        %7357 = vmatmul.mubr.bf16.gmra.mxu0 %v7162
        %v7358 = vpop.f32.mrf.mxu0
        %v7359 = vadd.f32 0.0, %v7358
        %v7360 = vpop.f32.mrf.mxu0
        %v7361 = vpop.f32.mrf.mxu0
        %v7362 = vadd.f32 0.0, %v7361
        %v7363 = vpop.f32.mrf.mxu0
        %7364 = vmatprep.mubr.bf16.mxu0 0
        %7365 = vmatmul.mubr.bf16.gmra.mxu0 %v7163
        %v7366 = vpop.f32.mrf.mxu0
        %v7367 = vadd.f32 0.0, %v7366
        %v7368 = vpop.f32.mrf.mxu0
        %v7369 = vpop.f32.mrf.mxu0
        %v7370 = vadd.f32 0.0, %v7369
        %v7371 = vpop.f32.mrf.mxu0
        %7372 = vmatprep.mubr.bf16.mxu0 0
        %7373 = vmatmul.mubr.bf16.gmra.mxu0 %v7164
        %v7374 = vpop.f32.mrf.mxu0
        %v7375 = vadd.f32 0.0, %v7374
        %v7376 = vpop.f32.mrf.mxu0
        %v7377 = vpop.f32.mrf.mxu0
        %v7378 = vadd.f32 0.0, %v7377
        %v7379 = vpop.f32.mrf.mxu0
        %7380 = vmatprep.mubr.bf16.mxu0 0
        %7381 = vmatmul.mubr.bf16.gmra.mxu0 %v7165
        %v7382 = vpop.f32.mrf.mxu0
        %v7383 = vadd.f32 0.0, %v7382
        %v7384 = vpop.f32.mrf.mxu0
        %v7385 = vpop.f32.mrf.mxu0
        %v7386 = vadd.f32 0.0, %v7385
        %v7387 = vpop.f32.mrf.mxu0
        %7388 = vmatprep.mubr.bf16.mxu0 0
        %7389 = vmatmul.mubr.bf16.gmra.mxu0 %v7166
        %v7390 = vpop.f32.mrf.mxu0
        %v7391 = vadd.f32 0.0, %v7390
        %v7392 = vpop.f32.mrf.mxu0
        %v7393 = vpop.f32.mrf.mxu0
        %v7394 = vadd.f32 0.0, %v7393
        %v7395 = vpop.f32.mrf.mxu0
        %7396 = vmatprep.mubr.bf16.mxu0 0
        %7397 = vmatmul.mubr.bf16.gmra.mxu0 %v7167
        %v7398 = vpop.f32.mrf.mxu0
        %v7399 = vadd.f32 0.0, %v7398
        %v7400 = vpop.f32.mrf.mxu0
        %v7401 = vpop.f32.mrf.mxu0
        %v7402 = vadd.f32 0.0, %v7401
        %v7403 = vpop.f32.mrf.mxu0
        %7404 = vmatprep.mubr.bf16.mxu0 0
        %7405 = vmatmul.mubr.bf16.gmra.mxu0 %v7168
        %v7406 = vpop.f32.mrf.mxu0
        %v7407 = vadd.f32 0.0, %v7406
        %v7408 = vpop.f32.mrf.mxu0
        %v7409 = vpop.f32.mrf.mxu0
        %v7410 = vadd.f32 0.0, %v7409
        %v7411 = vpop.f32.mrf.mxu0
        %7412 = vmatprep.mubr.bf16.mxu0 0
        %7413 = vmatmul.mubr.bf16.gmra.mxu0 %v7169
        %v7414 = vpop.f32.mrf.mxu0
        %v7415 = vadd.f32 0.0, %v7414
        %v7416 = vpop.f32.mrf.mxu0
        %v7417 = vpop.f32.mrf.mxu0
        %v7418 = vadd.f32 0.0, %v7417
        %v7419 = vpop.f32.mrf.mxu0
        %7420 = vmatprep.mubr.bf16.mxu0 0
        %7421 = vmatmul.mubr.bf16.gmra.mxu0 %v7170
        %v7422 = vpop.f32.mrf.mxu0
        %v7423 = vadd.f32 0.0, %v7422
        %v7424 = vpop.f32.mrf.mxu0
        %v7425 = vpop.f32.mrf.mxu0
        %v7426 = vadd.f32 0.0, %v7425
        %v7427 = vpop.f32.mrf.mxu0
        %7428 = vmatprep.mubr.bf16.mxu0 0
        %7429 = vmatmul.mubr.bf16.gmra.mxu0 %v7171
        %v7430 = vpop.f32.mrf.mxu0
        %v7431 = vadd.f32 0.0, %v7430
        %v7432 = vpop.f32.mrf.mxu0
        %v7433 = vpop.f32.mrf.mxu0
        %v7434 = vadd.f32 0.0, %v7433
        %v7435 = vpop.f32.mrf.mxu0
        %7436 = vmatprep.mubr.bf16.mxu0 0
        %7437 = vmatmul.mubr.bf16.gmra.mxu0 %v7172
        %v7438 = vpop.f32.mrf.mxu0
        %v7439 = vadd.f32 0.0, %v7438
        %v7440 = vpop.f32.mrf.mxu0
        %v7441 = vpop.f32.mrf.mxu0
        %v7442 = vadd.f32 0.0, %v7441
        %v7443 = vpop.f32.mrf.mxu0
        %7444 = vmatprep.mubr.bf16.mxu0 0
        %7445 = vmatmul.mubr.bf16.gmra.mxu0 %v7173
        %v7446 = vpop.f32.mrf.mxu0
        %v7447 = vadd.f32 0.0, %v7446
        %v7448 = vpop.f32.mrf.mxu0
        %v7449 = vpop.f32.mrf.mxu0
        %v7450 = vadd.f32 0.0, %v7449
        %v7451 = vpop.f32.mrf.mxu0
        %7452 = vmatprep.mubr.bf16.mxu0 0
        %7453 = vmatmul.mubr.bf16.gmra.mxu0 %v7174
        %v7454 = vpop.f32.mrf.mxu0
        %v7455 = vadd.f32 0.0, %v7454
        %v7456 = vpop.f32.mrf.mxu0
        %v7457 = vpop.f32.mrf.mxu0
        %v7458 = vadd.f32 0.0, %v7457
        %v7459 = vpop.f32.mrf.mxu0
        %7460 = vmatprep.mubr.bf16.mxu0 0
        %7461 = vmatmul.mubr.bf16.gmra.mxu0 %v7175
        %v7462 = vpop.f32.mrf.mxu0
        %v7463 = vadd.f32 0.0, %v7462
        %v7464 = vpop.f32.mrf.mxu0
        %v7465 = vpop.f32.mrf.mxu0
        %v7466 = vadd.f32 0.0, %v7465
        %v7467 = vpop.f32.mrf.mxu0
        %7468 = vmatprep.mubr.bf16.mxu0 0
        %7469 = vmatmul.mubr.bf16.gmra.mxu0 %v7176
        %v7470 = vpop.f32.mrf.mxu0
        %v7471 = vadd.f32 0.0, %v7470
        %v7472 = vpop.f32.mrf.mxu0
        %v7473 = vpop.f32.mrf.mxu0
        %v7474 = vadd.f32 0.0, %v7473
        %v7475 = vpop.f32.mrf.mxu0
        %7476 = vmatprep.mubr.bf16.mxu0 0
        %7477 = vmatmul.mubr.bf16.gmra.mxu0 %v7177
        %v7478 = vpop.f32.mrf.mxu0
        %v7479 = vadd.f32 0.0, %v7478
        %v7480 = vpop.f32.mrf.mxu0
        %v7481 = vpop.f32.mrf.mxu0
        %v7482 = vadd.f32 0.0, %v7481
        %v7483 = vpop.f32.mrf.mxu0
        %7484 = vmatprep.mubr.bf16.mxu0 0
        %7485 = vmatmul.mubr.bf16.gmra.mxu0 %v7178
        %v7486 = vpop.f32.mrf.mxu0
        %v7487 = vadd.f32 0.0, %v7486
        %v7488 = vpop.f32.mrf.mxu0
        %v7489 = vpop.f32.mrf.mxu0
        %v7490 = vadd.f32 0.0, %v7489
        %v7491 = vpop.f32.mrf.mxu0
        %7492 = vmatprep.mubr.bf16.mxu0 0
        %7493 = vmatmul.mubr.bf16.gmra.mxu0 %v7179
        %v7494 = vpop.f32.mrf.mxu0
        %v7495 = vadd.f32 0.0, %v7494
        %v7496 = vpop.f32.mrf.mxu0
        %v7497 = vpop.f32.mrf.mxu0
        %v7498 = vadd.f32 0.0, %v7497
        %v7499 = vpop.f32.mrf.mxu0
        %7500 = vdwg.mxu0
        %v7502 = vcombine.high %v7247, %v7247
        %v7504 = vunpack.c.l.s4 1966171168
        %v7505 = vunpack.c.0.s8 %v7504
        %v7506 = vlaneseq
        %v7507 = vshrl.u32 %v7506, 7
        %v7508 = vsub.s32 %v7505, %v7507
        %v7509 = vrot.slane %v7247, %v7508
        %v7511 = vunpack.c.l.s4 1966171168
        %v7512 = vunpack.c.0.s8 %v7511
        %v7513 = vlaneseq
        %v7514 = vshrl.u32 %v7513, 7
        %v7515 = vsub.s32 %v7512, %v7514
        %v7516 = vrot.slane %v7502, %v7515
        %v7517 = vcombine.high %v7509, %v7509
        %v7518 = vcombine.high %v7516, %v7516
        %v7520 = vunpack.c.l.s4 1966171168
        %v7521 = vunpack.c.0.s8 %v7520
        %v7522 = vlaneseq
        %v7523 = vshrl.u32 %v7522, 7
        %v7524 = vsub.s32 %v7521, %v7523
        %v7525 = vrot.slane %v7509, %v7524
        %v7527 = vunpack.c.l.s4 1966171168
        %v7528 = vunpack.c.0.s8 %v7527
        %v7529 = vlaneseq
        %v7530 = vshrl.u32 %v7529, 7
        %v7531 = vsub.s32 %v7528, %v7530
        %v7532 = vrot.slane %v7516, %v7531
        %v7534 = vunpack.c.l.s4 1966171168
        %v7535 = vunpack.c.0.s8 %v7534
        %v7536 = vlaneseq
        %v7537 = vshrl.u32 %v7536, 7
        %v7538 = vsub.s32 %v7535, %v7537
        %v7539 = vrot.slane %v7517, %v7538
        %v7541 = vunpack.c.l.s4 1966171168
        %v7542 = vunpack.c.0.s8 %v7541
        %v7543 = vlaneseq
        %v7544 = vshrl.u32 %v7543, 7
        %v7545 = vsub.s32 %v7542, %v7544
        %v7546 = vrot.slane %v7518, %v7545
        %v7547 = vcombine.high %v7525, %v7525
        %v7548 = vcombine.high %v7532, %v7532
        %v7549 = vcombine.high %v7539, %v7539
        %v7550 = vcombine.high %v7546, %v7546
        %v7551 = vlaneseq
        %v7552 = vshrl.u32 %v7551, 7
        %v7553 = vsub.s32 0, %v7552
        %v7554 = vrot.slane %v7525, %v7553
        %v7555 = vlaneseq
        %v7556 = vshrl.u32 %v7555, 7
        %v7557 = vsub.s32 0, %v7556
        %v7558 = vrot.slane %v7539, %v7557
        %v7559 = vlaneseq
        %v7560 = vshrl.u32 %v7559, 7
        %v7561 = vsub.s32 0, %v7560
        %v7562 = vrot.slane %v7547, %v7561
        %v7563 = vlaneseq
        %v7564 = vshrl.u32 %v7563, 7
        %v7565 = vsub.s32 0, %v7564
        %v7566 = vrot.slane %v7549, %v7565
        %v7567 = vlaneseq
        %v7568 = vshrl.u32 %v7567, 7
        %v7569 = vsub.s32 0, %v7568
        %v7570 = vrot.slane %v7532, %v7569
        %v7571 = vlaneseq
        %v7572 = vshrl.u32 %v7571, 7
        %v7573 = vsub.s32 0, %v7572
        %v7574 = vrot.slane %v7546, %v7573
        %v7575 = vlaneseq
        %v7576 = vshrl.u32 %v7575, 7
        %v7577 = vsub.s32 0, %v7576
        %v7578 = vrot.slane %v7548, %v7577
        %v7579 = vlaneseq
        %v7580 = vshrl.u32 %v7579, 7
        %v7581 = vsub.s32 0, %v7580
        %v7582 = vrot.slane %v7550, %v7581
        %v7591 = vmul.f32 %v7554, %v7311
        %v7592 = vmul.f32 %v7558, %v7311
        %v7593 = vmul.f32 %v7562, %v7311
        %v7594 = vmul.f32 %v7566, %v7311
        %v7595 = vmul.f32 %v7570, %v7311
        %v7596 = vmul.f32 %v7574, %v7311
        %v7597 = vmul.f32 %v7578, %v7311
        %v7598 = vmul.f32 %v7582, %v7311
        %v7600 = vcombine.high %v7250, %v7250
        %v7602 = vunpack.c.l.s4 1966171168
        %v7603 = vunpack.c.0.s8 %v7602
        %v7604 = vlaneseq
        %v7605 = vshrl.u32 %v7604, 7
        %v7606 = vsub.s32 %v7603, %v7605
        %v7607 = vrot.slane %v7250, %v7606
        %v7609 = vunpack.c.l.s4 1966171168
        %v7610 = vunpack.c.0.s8 %v7609
        %v7611 = vlaneseq
        %v7612 = vshrl.u32 %v7611, 7
        %v7613 = vsub.s32 %v7610, %v7612
        %v7614 = vrot.slane %v7600, %v7613
        %v7615 = vcombine.high %v7607, %v7607
        %v7616 = vcombine.high %v7614, %v7614
        %v7618 = vunpack.c.l.s4 1966171168
        %v7619 = vunpack.c.0.s8 %v7618
        %v7620 = vlaneseq
        %v7621 = vshrl.u32 %v7620, 7
        %v7622 = vsub.s32 %v7619, %v7621
        %v7623 = vrot.slane %v7607, %v7622
        %v7625 = vunpack.c.l.s4 1966171168
        %v7626 = vunpack.c.0.s8 %v7625
        %v7627 = vlaneseq
        %v7628 = vshrl.u32 %v7627, 7
        %v7629 = vsub.s32 %v7626, %v7628
        %v7630 = vrot.slane %v7614, %v7629
        %v7632 = vunpack.c.l.s4 1966171168
        %v7633 = vunpack.c.0.s8 %v7632
        %v7634 = vlaneseq
        %v7635 = vshrl.u32 %v7634, 7
        %v7636 = vsub.s32 %v7633, %v7635
        %v7637 = vrot.slane %v7615, %v7636
        %v7639 = vunpack.c.l.s4 1966171168
        %v7640 = vunpack.c.0.s8 %v7639
        %v7641 = vlaneseq
        %v7642 = vshrl.u32 %v7641, 7
        %v7643 = vsub.s32 %v7640, %v7642
        %v7644 = vrot.slane %v7616, %v7643
        %v7645 = vcombine.high %v7623, %v7623
        %v7646 = vcombine.high %v7630, %v7630
        %v7647 = vcombine.high %v7637, %v7637
        %v7648 = vcombine.high %v7644, %v7644
        %v7649 = vlaneseq
        %v7650 = vshrl.u32 %v7649, 7
        %v7651 = vsub.s32 0, %v7650
        %v7652 = vrot.slane %v7623, %v7651
        %v7653 = vlaneseq
        %v7654 = vshrl.u32 %v7653, 7
        %v7655 = vsub.s32 0, %v7654
        %v7656 = vrot.slane %v7637, %v7655
        %v7657 = vlaneseq
        %v7658 = vshrl.u32 %v7657, 7
        %v7659 = vsub.s32 0, %v7658
        %v7660 = vrot.slane %v7645, %v7659
        %v7661 = vlaneseq
        %v7662 = vshrl.u32 %v7661, 7
        %v7663 = vsub.s32 0, %v7662
        %v7664 = vrot.slane %v7647, %v7663
        %v7665 = vlaneseq
        %v7666 = vshrl.u32 %v7665, 7
        %v7667 = vsub.s32 0, %v7666
        %v7668 = vrot.slane %v7630, %v7667
        %v7669 = vlaneseq
        %v7670 = vshrl.u32 %v7669, 7
        %v7671 = vsub.s32 0, %v7670
        %v7672 = vrot.slane %v7644, %v7671
        %v7673 = vlaneseq
        %v7674 = vshrl.u32 %v7673, 7
        %v7675 = vsub.s32 0, %v7674
        %v7676 = vrot.slane %v7646, %v7675
        %v7677 = vlaneseq
        %v7678 = vshrl.u32 %v7677, 7
        %v7679 = vsub.s32 0, %v7678
        %v7680 = vrot.slane %v7648, %v7679
        %v7689 = vmul.f32 %v7652, %v7314
        %v7690 = vmul.f32 %v7656, %v7314
        %v7691 = vmul.f32 %v7660, %v7314
        %v7692 = vmul.f32 %v7664, %v7314
        %v7693 = vmul.f32 %v7668, %v7314
        %v7694 = vmul.f32 %v7672, %v7314
        %v7695 = vmul.f32 %v7676, %v7314
        %v7696 = vmul.f32 %v7680, %v7314
        %v7697 = vadd.f32 %v7591, %v7689
        %v7698 = vadd.f32 %v7592, %v7690
        %v7699 = vadd.f32 %v7593, %v7691
        %v7700 = vadd.f32 %v7594, %v7692
        %v7701 = vadd.f32 %v7595, %v7693
        %v7702 = vadd.f32 %v7596, %v7694
        %v7703 = vadd.f32 %v7597, %v7695
        %v7704 = vadd.f32 %v7598, %v7696
        %v7706 = vcombine.high %v7255, %v7255
        %v7708 = vunpack.c.l.s4 1966171168
        %v7709 = vunpack.c.0.s8 %v7708
        %v7710 = vlaneseq
        %v7711 = vshrl.u32 %v7710, 7
        %v7712 = vsub.s32 %v7709, %v7711
        %v7713 = vrot.slane %v7255, %v7712
        %v7715 = vunpack.c.l.s4 1966171168
        %v7716 = vunpack.c.0.s8 %v7715
        %v7717 = vlaneseq
        %v7718 = vshrl.u32 %v7717, 7
        %v7719 = vsub.s32 %v7716, %v7718
        %v7720 = vrot.slane %v7706, %v7719
        %v7721 = vcombine.high %v7713, %v7713
        %v7722 = vcombine.high %v7720, %v7720
        %v7724 = vunpack.c.l.s4 1966171168
        %v7725 = vunpack.c.0.s8 %v7724
        %v7726 = vlaneseq
        %v7727 = vshrl.u32 %v7726, 7
        %v7728 = vsub.s32 %v7725, %v7727
        %v7729 = vrot.slane %v7713, %v7728
        %v7731 = vunpack.c.l.s4 1966171168
        %v7732 = vunpack.c.0.s8 %v7731
        %v7733 = vlaneseq
        %v7734 = vshrl.u32 %v7733, 7
        %v7735 = vsub.s32 %v7732, %v7734
        %v7736 = vrot.slane %v7720, %v7735
        %v7738 = vunpack.c.l.s4 1966171168
        %v7739 = vunpack.c.0.s8 %v7738
        %v7740 = vlaneseq
        %v7741 = vshrl.u32 %v7740, 7
        %v7742 = vsub.s32 %v7739, %v7741
        %v7743 = vrot.slane %v7721, %v7742
        %v7745 = vunpack.c.l.s4 1966171168
        %v7746 = vunpack.c.0.s8 %v7745
        %v7747 = vlaneseq
        %v7748 = vshrl.u32 %v7747, 7
        %v7749 = vsub.s32 %v7746, %v7748
        %v7750 = vrot.slane %v7722, %v7749
        %v7751 = vcombine.high %v7729, %v7729
        %v7752 = vcombine.high %v7736, %v7736
        %v7753 = vcombine.high %v7743, %v7743
        %v7754 = vcombine.high %v7750, %v7750
        %v7755 = vlaneseq
        %v7756 = vshrl.u32 %v7755, 7
        %v7757 = vsub.s32 0, %v7756
        %v7758 = vrot.slane %v7729, %v7757
        %v7759 = vlaneseq
        %v7760 = vshrl.u32 %v7759, 7
        %v7761 = vsub.s32 0, %v7760
        %v7762 = vrot.slane %v7743, %v7761
        %v7763 = vlaneseq
        %v7764 = vshrl.u32 %v7763, 7
        %v7765 = vsub.s32 0, %v7764
        %v7766 = vrot.slane %v7751, %v7765
        %v7767 = vlaneseq
        %v7768 = vshrl.u32 %v7767, 7
        %v7769 = vsub.s32 0, %v7768
        %v7770 = vrot.slane %v7753, %v7769
        %v7771 = vlaneseq
        %v7772 = vshrl.u32 %v7771, 7
        %v7773 = vsub.s32 0, %v7772
        %v7774 = vrot.slane %v7736, %v7773
        %v7775 = vlaneseq
        %v7776 = vshrl.u32 %v7775, 7
        %v7777 = vsub.s32 0, %v7776
        %v7778 = vrot.slane %v7750, %v7777
        %v7779 = vlaneseq
        %v7780 = vshrl.u32 %v7779, 7
        %v7781 = vsub.s32 0, %v7780
        %v7782 = vrot.slane %v7752, %v7781
        %v7783 = vlaneseq
        %v7784 = vshrl.u32 %v7783, 7
        %v7785 = vsub.s32 0, %v7784
        %v7786 = vrot.slane %v7754, %v7785
        %v7795 = vmul.f32 %v7758, %v7319
        %v7796 = vmul.f32 %v7762, %v7319
        %v7797 = vmul.f32 %v7766, %v7319
        %v7798 = vmul.f32 %v7770, %v7319
        %v7799 = vmul.f32 %v7774, %v7319
        %v7800 = vmul.f32 %v7778, %v7319
        %v7801 = vmul.f32 %v7782, %v7319
        %v7802 = vmul.f32 %v7786, %v7319
        %v7803 = vadd.f32 %v7697, %v7795
        %v7804 = vadd.f32 %v7698, %v7796
        %v7805 = vadd.f32 %v7699, %v7797
        %v7806 = vadd.f32 %v7700, %v7798
        %v7807 = vadd.f32 %v7701, %v7799
        %v7808 = vadd.f32 %v7702, %v7800
        %v7809 = vadd.f32 %v7703, %v7801
        %v7810 = vadd.f32 %v7704, %v7802
        %v7812 = vcombine.high %v7258, %v7258
        %v7814 = vunpack.c.l.s4 1966171168
        %v7815 = vunpack.c.0.s8 %v7814
        %v7816 = vlaneseq
        %v7817 = vshrl.u32 %v7816, 7
        %v7818 = vsub.s32 %v7815, %v7817
        %v7819 = vrot.slane %v7258, %v7818
        %v7821 = vunpack.c.l.s4 1966171168
        %v7822 = vunpack.c.0.s8 %v7821
        %v7823 = vlaneseq
        %v7824 = vshrl.u32 %v7823, 7
        %v7825 = vsub.s32 %v7822, %v7824
        %v7826 = vrot.slane %v7812, %v7825
        %v7827 = vcombine.high %v7819, %v7819
        %v7828 = vcombine.high %v7826, %v7826
        %v7830 = vunpack.c.l.s4 1966171168
        %v7831 = vunpack.c.0.s8 %v7830
        %v7832 = vlaneseq
        %v7833 = vshrl.u32 %v7832, 7
        %v7834 = vsub.s32 %v7831, %v7833
        %v7835 = vrot.slane %v7819, %v7834
        %v7837 = vunpack.c.l.s4 1966171168
        %v7838 = vunpack.c.0.s8 %v7837
        %v7839 = vlaneseq
        %v7840 = vshrl.u32 %v7839, 7
        %v7841 = vsub.s32 %v7838, %v7840
        %v7842 = vrot.slane %v7826, %v7841
        %v7844 = vunpack.c.l.s4 1966171168
        %v7845 = vunpack.c.0.s8 %v7844
        %v7846 = vlaneseq
        %v7847 = vshrl.u32 %v7846, 7
        %v7848 = vsub.s32 %v7845, %v7847
        %v7849 = vrot.slane %v7827, %v7848
        %v7851 = vunpack.c.l.s4 1966171168
        %v7852 = vunpack.c.0.s8 %v7851
        %v7853 = vlaneseq
        %v7854 = vshrl.u32 %v7853, 7
        %v7855 = vsub.s32 %v7852, %v7854
        %v7856 = vrot.slane %v7828, %v7855
        %v7857 = vcombine.high %v7835, %v7835
        %v7858 = vcombine.high %v7842, %v7842
        %v7859 = vcombine.high %v7849, %v7849
        %v7860 = vcombine.high %v7856, %v7856
        %v7861 = vlaneseq
        %v7862 = vshrl.u32 %v7861, 7
        %v7863 = vsub.s32 0, %v7862
        %v7864 = vrot.slane %v7835, %v7863
        %v7865 = vlaneseq
        %v7866 = vshrl.u32 %v7865, 7
        %v7867 = vsub.s32 0, %v7866
        %v7868 = vrot.slane %v7849, %v7867
        %v7869 = vlaneseq
        %v7870 = vshrl.u32 %v7869, 7
        %v7871 = vsub.s32 0, %v7870
        %v7872 = vrot.slane %v7857, %v7871
        %v7873 = vlaneseq
        %v7874 = vshrl.u32 %v7873, 7
        %v7875 = vsub.s32 0, %v7874
        %v7876 = vrot.slane %v7859, %v7875
        %v7877 = vlaneseq
        %v7878 = vshrl.u32 %v7877, 7
        %v7879 = vsub.s32 0, %v7878
        %v7880 = vrot.slane %v7842, %v7879
        %v7881 = vlaneseq
        %v7882 = vshrl.u32 %v7881, 7
        %v7883 = vsub.s32 0, %v7882
        %v7884 = vrot.slane %v7856, %v7883
        %v7885 = vlaneseq
        %v7886 = vshrl.u32 %v7885, 7
        %v7887 = vsub.s32 0, %v7886
        %v7888 = vrot.slane %v7858, %v7887
        %v7889 = vlaneseq
        %v7890 = vshrl.u32 %v7889, 7
        %v7891 = vsub.s32 0, %v7890
        %v7892 = vrot.slane %v7860, %v7891
        %v7901 = vmul.f32 %v7864, %v7322
        %v7902 = vmul.f32 %v7868, %v7322
        %v7903 = vmul.f32 %v7872, %v7322
        %v7904 = vmul.f32 %v7876, %v7322
        %v7905 = vmul.f32 %v7880, %v7322
        %v7906 = vmul.f32 %v7884, %v7322
        %v7907 = vmul.f32 %v7888, %v7322
        %v7908 = vmul.f32 %v7892, %v7322
        %v7909 = vadd.f32 %v7803, %v7901
        %v7910 = vadd.f32 %v7804, %v7902
        %v7911 = vadd.f32 %v7805, %v7903
        %v7912 = vadd.f32 %v7806, %v7904
        %v7913 = vadd.f32 %v7807, %v7905
        %v7914 = vadd.f32 %v7808, %v7906
        %v7915 = vadd.f32 %v7809, %v7907
        %v7916 = vadd.f32 %v7810, %v7908
        %v7918 = vcombine.high %v7263, %v7263
        %v7920 = vunpack.c.l.s4 1966171168
        %v7921 = vunpack.c.0.s8 %v7920
        %v7922 = vlaneseq
        %v7923 = vshrl.u32 %v7922, 7
        %v7924 = vsub.s32 %v7921, %v7923
        %v7925 = vrot.slane %v7263, %v7924
        %v7927 = vunpack.c.l.s4 1966171168
        %v7928 = vunpack.c.0.s8 %v7927
        %v7929 = vlaneseq
        %v7930 = vshrl.u32 %v7929, 7
        %v7931 = vsub.s32 %v7928, %v7930
        %v7932 = vrot.slane %v7918, %v7931
        %v7933 = vcombine.high %v7925, %v7925
        %v7934 = vcombine.high %v7932, %v7932
        %v7936 = vunpack.c.l.s4 1966171168
        %v7937 = vunpack.c.0.s8 %v7936
        %v7938 = vlaneseq
        %v7939 = vshrl.u32 %v7938, 7
        %v7940 = vsub.s32 %v7937, %v7939
        %v7941 = vrot.slane %v7925, %v7940
        %v7943 = vunpack.c.l.s4 1966171168
        %v7944 = vunpack.c.0.s8 %v7943
        %v7945 = vlaneseq
        %v7946 = vshrl.u32 %v7945, 7
        %v7947 = vsub.s32 %v7944, %v7946
        %v7948 = vrot.slane %v7932, %v7947
        %v7950 = vunpack.c.l.s4 1966171168
        %v7951 = vunpack.c.0.s8 %v7950
        %v7952 = vlaneseq
        %v7953 = vshrl.u32 %v7952, 7
        %v7954 = vsub.s32 %v7951, %v7953
        %v7955 = vrot.slane %v7933, %v7954
        %v7957 = vunpack.c.l.s4 1966171168
        %v7958 = vunpack.c.0.s8 %v7957
        %v7959 = vlaneseq
        %v7960 = vshrl.u32 %v7959, 7
        %v7961 = vsub.s32 %v7958, %v7960
        %v7962 = vrot.slane %v7934, %v7961
        %v7963 = vcombine.high %v7941, %v7941
        %v7964 = vcombine.high %v7948, %v7948
        %v7965 = vcombine.high %v7955, %v7955
        %v7966 = vcombine.high %v7962, %v7962
        %v7967 = vlaneseq
        %v7968 = vshrl.u32 %v7967, 7
        %v7969 = vsub.s32 0, %v7968
        %v7970 = vrot.slane %v7941, %v7969
        %v7971 = vlaneseq
        %v7972 = vshrl.u32 %v7971, 7
        %v7973 = vsub.s32 0, %v7972
        %v7974 = vrot.slane %v7955, %v7973
        %v7975 = vlaneseq
        %v7976 = vshrl.u32 %v7975, 7
        %v7977 = vsub.s32 0, %v7976
        %v7978 = vrot.slane %v7963, %v7977
        %v7979 = vlaneseq
        %v7980 = vshrl.u32 %v7979, 7
        %v7981 = vsub.s32 0, %v7980
        %v7982 = vrot.slane %v7965, %v7981
        %v7983 = vlaneseq
        %v7984 = vshrl.u32 %v7983, 7
        %v7985 = vsub.s32 0, %v7984
        %v7986 = vrot.slane %v7948, %v7985
        %v7987 = vlaneseq
        %v7988 = vshrl.u32 %v7987, 7
        %v7989 = vsub.s32 0, %v7988
        %v7990 = vrot.slane %v7962, %v7989
        %v7991 = vlaneseq
        %v7992 = vshrl.u32 %v7991, 7
        %v7993 = vsub.s32 0, %v7992
        %v7994 = vrot.slane %v7964, %v7993
        %v7995 = vlaneseq
        %v7996 = vshrl.u32 %v7995, 7
        %v7997 = vsub.s32 0, %v7996
        %v7998 = vrot.slane %v7966, %v7997
        %v8007 = vmul.f32 %v7970, %v7327
        %v8008 = vmul.f32 %v7974, %v7327
        %v8009 = vmul.f32 %v7978, %v7327
        %v8010 = vmul.f32 %v7982, %v7327
        %v8011 = vmul.f32 %v7986, %v7327
        %v8012 = vmul.f32 %v7990, %v7327
        %v8013 = vmul.f32 %v7994, %v7327
        %v8014 = vmul.f32 %v7998, %v7327
        %v8015 = vadd.f32 %v7909, %v8007
        %v8016 = vadd.f32 %v7910, %v8008
        %v8017 = vadd.f32 %v7911, %v8009
        %v8018 = vadd.f32 %v7912, %v8010
        %v8019 = vadd.f32 %v7913, %v8011
        %v8020 = vadd.f32 %v7914, %v8012
        %v8021 = vadd.f32 %v7915, %v8013
        %v8022 = vadd.f32 %v7916, %v8014
        %v8024 = vcombine.high %v7266, %v7266
        %v8026 = vunpack.c.l.s4 1966171168
        %v8027 = vunpack.c.0.s8 %v8026
        %v8028 = vlaneseq
        %v8029 = vshrl.u32 %v8028, 7
        %v8030 = vsub.s32 %v8027, %v8029
        %v8031 = vrot.slane %v7266, %v8030
        %v8033 = vunpack.c.l.s4 1966171168
        %v8034 = vunpack.c.0.s8 %v8033
        %v8035 = vlaneseq
        %v8036 = vshrl.u32 %v8035, 7
        %v8037 = vsub.s32 %v8034, %v8036
        %v8038 = vrot.slane %v8024, %v8037
        %v8039 = vcombine.high %v8031, %v8031
        %v8040 = vcombine.high %v8038, %v8038
        %v8042 = vunpack.c.l.s4 1966171168
        %v8043 = vunpack.c.0.s8 %v8042
        %v8044 = vlaneseq
        %v8045 = vshrl.u32 %v8044, 7
        %v8046 = vsub.s32 %v8043, %v8045
        %v8047 = vrot.slane %v8031, %v8046
        %v8049 = vunpack.c.l.s4 1966171168
        %v8050 = vunpack.c.0.s8 %v8049
        %v8051 = vlaneseq
        %v8052 = vshrl.u32 %v8051, 7
        %v8053 = vsub.s32 %v8050, %v8052
        %v8054 = vrot.slane %v8038, %v8053
        %v8056 = vunpack.c.l.s4 1966171168
        %v8057 = vunpack.c.0.s8 %v8056
        %v8058 = vlaneseq
        %v8059 = vshrl.u32 %v8058, 7
        %v8060 = vsub.s32 %v8057, %v8059
        %v8061 = vrot.slane %v8039, %v8060
        %v8063 = vunpack.c.l.s4 1966171168
        %v8064 = vunpack.c.0.s8 %v8063
        %v8065 = vlaneseq
        %v8066 = vshrl.u32 %v8065, 7
        %v8067 = vsub.s32 %v8064, %v8066
        %v8068 = vrot.slane %v8040, %v8067
        %v8069 = vcombine.high %v8047, %v8047
        %v8070 = vcombine.high %v8054, %v8054
        %v8071 = vcombine.high %v8061, %v8061
        %v8072 = vcombine.high %v8068, %v8068
        %v8073 = vlaneseq
        %v8074 = vshrl.u32 %v8073, 7
        %v8075 = vsub.s32 0, %v8074
        %v8076 = vrot.slane %v8047, %v8075
        %v8077 = vlaneseq
        %v8078 = vshrl.u32 %v8077, 7
        %v8079 = vsub.s32 0, %v8078
        %v8080 = vrot.slane %v8061, %v8079
        %v8081 = vlaneseq
        %v8082 = vshrl.u32 %v8081, 7
        %v8083 = vsub.s32 0, %v8082
        %v8084 = vrot.slane %v8069, %v8083
        %v8085 = vlaneseq
        %v8086 = vshrl.u32 %v8085, 7
        %v8087 = vsub.s32 0, %v8086
        %v8088 = vrot.slane %v8071, %v8087
        %v8089 = vlaneseq
        %v8090 = vshrl.u32 %v8089, 7
        %v8091 = vsub.s32 0, %v8090
        %v8092 = vrot.slane %v8054, %v8091
        %v8093 = vlaneseq
        %v8094 = vshrl.u32 %v8093, 7
        %v8095 = vsub.s32 0, %v8094
        %v8096 = vrot.slane %v8068, %v8095
        %v8097 = vlaneseq
        %v8098 = vshrl.u32 %v8097, 7
        %v8099 = vsub.s32 0, %v8098
        %v8100 = vrot.slane %v8070, %v8099
        %v8101 = vlaneseq
        %v8102 = vshrl.u32 %v8101, 7
        %v8103 = vsub.s32 0, %v8102
        %v8104 = vrot.slane %v8072, %v8103
        %v8113 = vmul.f32 %v8076, %v7330
        %v8114 = vmul.f32 %v8080, %v7330
        %v8115 = vmul.f32 %v8084, %v7330
        %v8116 = vmul.f32 %v8088, %v7330
        %v8117 = vmul.f32 %v8092, %v7330
        %v8118 = vmul.f32 %v8096, %v7330
        %v8119 = vmul.f32 %v8100, %v7330
        %v8120 = vmul.f32 %v8104, %v7330
        %v8121 = vadd.f32 %v8015, %v8113
        %v8122 = vadd.f32 %v8016, %v8114
        %v8123 = vadd.f32 %v8017, %v8115
        %v8124 = vadd.f32 %v8018, %v8116
        %v8125 = vadd.f32 %v8019, %v8117
        %v8126 = vadd.f32 %v8020, %v8118
        %v8127 = vadd.f32 %v8021, %v8119
        %v8128 = vadd.f32 %v8022, %v8120
        %v8130 = vcombine.high %v7271, %v7271
        %v8132 = vunpack.c.l.s4 1966171168
        %v8133 = vunpack.c.0.s8 %v8132
        %v8134 = vlaneseq
        %v8135 = vshrl.u32 %v8134, 7
        %v8136 = vsub.s32 %v8133, %v8135
        %v8137 = vrot.slane %v7271, %v8136
        %v8139 = vunpack.c.l.s4 1966171168
        %v8140 = vunpack.c.0.s8 %v8139
        %v8141 = vlaneseq
        %v8142 = vshrl.u32 %v8141, 7
        %v8143 = vsub.s32 %v8140, %v8142
        %v8144 = vrot.slane %v8130, %v8143
        %v8145 = vcombine.high %v8137, %v8137
        %v8146 = vcombine.high %v8144, %v8144
        %v8148 = vunpack.c.l.s4 1966171168
        %v8149 = vunpack.c.0.s8 %v8148
        %v8150 = vlaneseq
        %v8151 = vshrl.u32 %v8150, 7
        %v8152 = vsub.s32 %v8149, %v8151
        %v8153 = vrot.slane %v8137, %v8152
        %v8155 = vunpack.c.l.s4 1966171168
        %v8156 = vunpack.c.0.s8 %v8155
        %v8157 = vlaneseq
        %v8158 = vshrl.u32 %v8157, 7
        %v8159 = vsub.s32 %v8156, %v8158
        %v8160 = vrot.slane %v8144, %v8159
        %v8162 = vunpack.c.l.s4 1966171168
        %v8163 = vunpack.c.0.s8 %v8162
        %v8164 = vlaneseq
        %v8165 = vshrl.u32 %v8164, 7
        %v8166 = vsub.s32 %v8163, %v8165
        %v8167 = vrot.slane %v8145, %v8166
        %v8169 = vunpack.c.l.s4 1966171168
        %v8170 = vunpack.c.0.s8 %v8169
        %v8171 = vlaneseq
        %v8172 = vshrl.u32 %v8171, 7
        %v8173 = vsub.s32 %v8170, %v8172
        %v8174 = vrot.slane %v8146, %v8173
        %v8175 = vcombine.high %v8153, %v8153
        %v8176 = vcombine.high %v8160, %v8160
        %v8177 = vcombine.high %v8167, %v8167
        %v8178 = vcombine.high %v8174, %v8174
        %v8179 = vlaneseq
        %v8180 = vshrl.u32 %v8179, 7
        %v8181 = vsub.s32 0, %v8180
        %v8182 = vrot.slane %v8153, %v8181
        %v8183 = vlaneseq
        %v8184 = vshrl.u32 %v8183, 7
        %v8185 = vsub.s32 0, %v8184
        %v8186 = vrot.slane %v8167, %v8185
        %v8187 = vlaneseq
        %v8188 = vshrl.u32 %v8187, 7
        %v8189 = vsub.s32 0, %v8188
        %v8190 = vrot.slane %v8175, %v8189
        %v8191 = vlaneseq
        %v8192 = vshrl.u32 %v8191, 7
        %v8193 = vsub.s32 0, %v8192
        %v8194 = vrot.slane %v8177, %v8193
        %v8195 = vlaneseq
        %v8196 = vshrl.u32 %v8195, 7
        %v8197 = vsub.s32 0, %v8196
        %v8198 = vrot.slane %v8160, %v8197
        %v8199 = vlaneseq
        %v8200 = vshrl.u32 %v8199, 7
        %v8201 = vsub.s32 0, %v8200
        %v8202 = vrot.slane %v8174, %v8201
        %v8203 = vlaneseq
        %v8204 = vshrl.u32 %v8203, 7
        %v8205 = vsub.s32 0, %v8204
        %v8206 = vrot.slane %v8176, %v8205
        %v8207 = vlaneseq
        %v8208 = vshrl.u32 %v8207, 7
        %v8209 = vsub.s32 0, %v8208
        %v8210 = vrot.slane %v8178, %v8209
        %v8219 = vmul.f32 %v8182, %v7335
        %v8220 = vmul.f32 %v8186, %v7335
        %v8221 = vmul.f32 %v8190, %v7335
        %v8222 = vmul.f32 %v8194, %v7335
        %v8223 = vmul.f32 %v8198, %v7335
        %v8224 = vmul.f32 %v8202, %v7335
        %v8225 = vmul.f32 %v8206, %v7335
        %v8226 = vmul.f32 %v8210, %v7335
        %v8227 = vadd.f32 %v8121, %v8219
        %v8228 = vadd.f32 %v8122, %v8220
        %v8229 = vadd.f32 %v8123, %v8221
        %v8230 = vadd.f32 %v8124, %v8222
        %v8231 = vadd.f32 %v8125, %v8223
        %v8232 = vadd.f32 %v8126, %v8224
        %v8233 = vadd.f32 %v8127, %v8225
        %v8234 = vadd.f32 %v8128, %v8226
        %v8236 = vcombine.high %v7274, %v7274
        %v8238 = vunpack.c.l.s4 1966171168
        %v8239 = vunpack.c.0.s8 %v8238
        %v8240 = vlaneseq
        %v8241 = vshrl.u32 %v8240, 7
        %v8242 = vsub.s32 %v8239, %v8241
        %v8243 = vrot.slane %v7274, %v8242
        %v8245 = vunpack.c.l.s4 1966171168
        %v8246 = vunpack.c.0.s8 %v8245
        %v8247 = vlaneseq
        %v8248 = vshrl.u32 %v8247, 7
        %v8249 = vsub.s32 %v8246, %v8248
        %v8250 = vrot.slane %v8236, %v8249
        %v8251 = vcombine.high %v8243, %v8243
        %v8252 = vcombine.high %v8250, %v8250
        %v8254 = vunpack.c.l.s4 1966171168
        %v8255 = vunpack.c.0.s8 %v8254
        %v8256 = vlaneseq
        %v8257 = vshrl.u32 %v8256, 7
        %v8258 = vsub.s32 %v8255, %v8257
        %v8259 = vrot.slane %v8243, %v8258
        %v8261 = vunpack.c.l.s4 1966171168
        %v8262 = vunpack.c.0.s8 %v8261
        %v8263 = vlaneseq
        %v8264 = vshrl.u32 %v8263, 7
        %v8265 = vsub.s32 %v8262, %v8264
        %v8266 = vrot.slane %v8250, %v8265
        %v8268 = vunpack.c.l.s4 1966171168
        %v8269 = vunpack.c.0.s8 %v8268
        %v8270 = vlaneseq
        %v8271 = vshrl.u32 %v8270, 7
        %v8272 = vsub.s32 %v8269, %v8271
        %v8273 = vrot.slane %v8251, %v8272
        %v8275 = vunpack.c.l.s4 1966171168
        %v8276 = vunpack.c.0.s8 %v8275
        %v8277 = vlaneseq
        %v8278 = vshrl.u32 %v8277, 7
        %v8279 = vsub.s32 %v8276, %v8278
        %v8280 = vrot.slane %v8252, %v8279
        %v8281 = vcombine.high %v8259, %v8259
        %v8282 = vcombine.high %v8266, %v8266
        %v8283 = vcombine.high %v8273, %v8273
        %v8284 = vcombine.high %v8280, %v8280
        %v8285 = vlaneseq
        %v8286 = vshrl.u32 %v8285, 7
        %v8287 = vsub.s32 0, %v8286
        %v8288 = vrot.slane %v8259, %v8287
        %v8289 = vlaneseq
        %v8290 = vshrl.u32 %v8289, 7
        %v8291 = vsub.s32 0, %v8290
        %v8292 = vrot.slane %v8273, %v8291
        %v8293 = vlaneseq
        %v8294 = vshrl.u32 %v8293, 7
        %v8295 = vsub.s32 0, %v8294
        %v8296 = vrot.slane %v8281, %v8295
        %v8297 = vlaneseq
        %v8298 = vshrl.u32 %v8297, 7
        %v8299 = vsub.s32 0, %v8298
        %v8300 = vrot.slane %v8283, %v8299
        %v8301 = vlaneseq
        %v8302 = vshrl.u32 %v8301, 7
        %v8303 = vsub.s32 0, %v8302
        %v8304 = vrot.slane %v8266, %v8303
        %v8305 = vlaneseq
        %v8306 = vshrl.u32 %v8305, 7
        %v8307 = vsub.s32 0, %v8306
        %v8308 = vrot.slane %v8280, %v8307
        %v8309 = vlaneseq
        %v8310 = vshrl.u32 %v8309, 7
        %v8311 = vsub.s32 0, %v8310
        %v8312 = vrot.slane %v8282, %v8311
        %v8313 = vlaneseq
        %v8314 = vshrl.u32 %v8313, 7
        %v8315 = vsub.s32 0, %v8314
        %v8316 = vrot.slane %v8284, %v8315
        %v8325 = vmul.f32 %v8288, %v7338
        %v8326 = vmul.f32 %v8292, %v7338
        %v8327 = vmul.f32 %v8296, %v7338
        %v8328 = vmul.f32 %v8300, %v7338
        %v8329 = vmul.f32 %v8304, %v7338
        %v8330 = vmul.f32 %v8308, %v7338
        %v8331 = vmul.f32 %v8312, %v7338
        %v8332 = vmul.f32 %v8316, %v7338
        %v8333 = vadd.f32 %v8227, %v8325
        %v8334 = vadd.f32 %v8228, %v8326
        %v8335 = vadd.f32 %v8229, %v8327
        %v8336 = vadd.f32 %v8230, %v8328
        %v8337 = vadd.f32 %v8231, %v8329
        %v8338 = vadd.f32 %v8232, %v8330
        %v8339 = vadd.f32 %v8233, %v8331
        %v8340 = vadd.f32 %v8234, %v8332
        %v8341 = vrot.slane %v8333, 4
        %v8342 = vmax.f32 %v8333, %v8341
        %v8343 = vrot.slane %v8342, 2
        %v8344 = vmax.f32 %v8342, %v8343
        %v8345 = vrot.slane %v8344, 1
        %v8346 = vmax.f32 %v8344, %v8345
        %v8347 = vrot.slane %v8334, 4
        %v8348 = vmax.f32 %v8334, %v8347
        %v8349 = vrot.slane %v8348, 2
        %v8350 = vmax.f32 %v8348, %v8349
        %v8351 = vrot.slane %v8350, 1
        %v8352 = vmax.f32 %v8350, %v8351
        %v8353 = vrot.slane %v8335, 4
        %v8354 = vmax.f32 %v8335, %v8353
        %v8355 = vrot.slane %v8354, 2
        %v8356 = vmax.f32 %v8354, %v8355
        %v8357 = vrot.slane %v8356, 1
        %v8358 = vmax.f32 %v8356, %v8357
        %v8359 = vrot.slane %v8336, 4
        %v8360 = vmax.f32 %v8336, %v8359
        %v8361 = vrot.slane %v8360, 2
        %v8362 = vmax.f32 %v8360, %v8361
        %v8363 = vrot.slane %v8362, 1
        %v8364 = vmax.f32 %v8362, %v8363
        %v8365 = vrot.slane %v8337, 4
        %v8366 = vmax.f32 %v8337, %v8365
        %v8367 = vrot.slane %v8366, 2
        %v8368 = vmax.f32 %v8366, %v8367
        %v8369 = vrot.slane %v8368, 1
        %v8370 = vmax.f32 %v8368, %v8369
        %v8371 = vrot.slane %v8338, 4
        %v8372 = vmax.f32 %v8338, %v8371
        %v8373 = vrot.slane %v8372, 2
        %v8374 = vmax.f32 %v8372, %v8373
        %v8375 = vrot.slane %v8374, 1
        %v8376 = vmax.f32 %v8374, %v8375
        %v8377 = vrot.slane %v8339, 4
        %v8378 = vmax.f32 %v8339, %v8377
        %v8379 = vrot.slane %v8378, 2
        %v8380 = vmax.f32 %v8378, %v8379
        %v8381 = vrot.slane %v8380, 1
        %v8382 = vmax.f32 %v8380, %v8381
        %v8383 = vrot.slane %v8340, 4
        %v8384 = vmax.f32 %v8340, %v8383
        %v8385 = vrot.slane %v8384, 2
        %v8386 = vmax.f32 %v8384, %v8385
        %v8387 = vrot.slane %v8386, 1
        %v8388 = vmax.f32 %v8386, %v8387
        %v8389 = vsub.f32 %v8333, %v8346
        %v8390 = vsub.f32 %v8334, %v8352
        %v8391 = vsub.f32 %v8335, %v8358
        %v8392 = vsub.f32 %v8336, %v8364
        %v8393 = vsub.f32 %v8337, %v8370
        %v8394 = vsub.f32 %v8338, %v8376
        %v8395 = vsub.f32 %v8339, %v8382
        %v8396 = vsub.f32 %v8340, %v8388
        %v8397 = vmul.f32 %v8389, 1.442695
        %v8398 = vpow.pop %v8397
        %v8399 = vmul.f32 %v8390, 1.442695
        %v8400 = vpow.pop %v8399
        %v8401 = vmul.f32 %v8391, 1.442695
        %v8402 = vpow.pop %v8401
        %v8403 = vmul.f32 %v8392, 1.442695
        %v8404 = vpow.pop %v8403
        %v8405 = vmul.f32 %v8393, 1.442695
        %v8406 = vpow.pop %v8405
        %v8407 = vmul.f32 %v8394, 1.442695
        %v8408 = vpow.pop %v8407
        %v8409 = vmul.f32 %v8395, 1.442695
        %v8410 = vpow.pop %v8409
        %v8411 = vmul.f32 %v8396, 1.442695
        %v8412 = vpow.pop %v8411
        %v8413 = vrot.slane %v8398, 4
        %v8414 = vadd.f32 %v8398, %v8413
        %v8415 = vrot.slane %v8414, 2
        %v8416 = vadd.f32 %v8414, %v8415
        %v8417 = vrot.slane %v8416, 1
        %v8418 = vadd.f32 %v8416, %v8417
        %v8419 = vrot.slane %v8400, 4
        %v8420 = vadd.f32 %v8400, %v8419
        %v8421 = vrot.slane %v8420, 2
        %v8422 = vadd.f32 %v8420, %v8421
        %v8423 = vrot.slane %v8422, 1
        %v8424 = vadd.f32 %v8422, %v8423
        %v8425 = vrot.slane %v8402, 4
        %v8426 = vadd.f32 %v8402, %v8425
        %v8427 = vrot.slane %v8426, 2
        %v8428 = vadd.f32 %v8426, %v8427
        %v8429 = vrot.slane %v8428, 1
        %v8430 = vadd.f32 %v8428, %v8429
        %v8431 = vrot.slane %v8404, 4
        %v8432 = vadd.f32 %v8404, %v8431
        %v8433 = vrot.slane %v8432, 2
        %v8434 = vadd.f32 %v8432, %v8433
        %v8435 = vrot.slane %v8434, 1
        %v8436 = vadd.f32 %v8434, %v8435
        %v8437 = vrot.slane %v8406, 4
        %v8438 = vadd.f32 %v8406, %v8437
        %v8439 = vrot.slane %v8438, 2
        %v8440 = vadd.f32 %v8438, %v8439
        %v8441 = vrot.slane %v8440, 1
        %v8442 = vadd.f32 %v8440, %v8441
        %v8443 = vrot.slane %v8408, 4
        %v8444 = vadd.f32 %v8408, %v8443
        %v8445 = vrot.slane %v8444, 2
        %v8446 = vadd.f32 %v8444, %v8445
        %v8447 = vrot.slane %v8446, 1
        %v8448 = vadd.f32 %v8446, %v8447
        %v8449 = vrot.slane %v8410, 4
        %v8450 = vadd.f32 %v8410, %v8449
        %v8451 = vrot.slane %v8450, 2
        %v8452 = vadd.f32 %v8450, %v8451
        %v8453 = vrot.slane %v8452, 1
        %v8454 = vadd.f32 %v8452, %v8453
        %v8455 = vrot.slane %v8412, 4
        %v8456 = vadd.f32 %v8412, %v8455
        %v8457 = vrot.slane %v8456, 2
        %v8458 = vadd.f32 %v8456, %v8457
        %v8459 = vrot.slane %v8458, 1
        %v8460 = vadd.f32 %v8458, %v8459
        %v8461 = vrcp.pop %v8418
        %v8462 = vrcp.pop %v8424
        %v8463 = vrcp.pop %v8430
        %v8464 = vrcp.pop %v8436
        %v8465 = vrcp.pop %v8442
        %v8466 = vrcp.pop %v8448
        %v8467 = vrcp.pop %v8454
        %v8468 = vrcp.pop %v8460
        %v8469 = vmul.f32 %v8398, %v8461
        %v8470 = vmul.f32 %v8400, %v8462
        %v8471 = vmul.f32 %v8402, %v8463
        %v8472 = vmul.f32 %v8404, %v8464
        %v8473 = vmul.f32 %v8406, %v8465
        %v8474 = vmul.f32 %v8408, %v8466
        %v8475 = vmul.f32 %v8410, %v8467
        %v8476 = vmul.f32 %v8412, %v8468
        %v8477 = vlaneseq
        %v8478 = vshrl.u32 %v8477, 7
        %v8479 = vsub.s32 0, %v8478
        %v8480 = vrot.slane %v8469, %v8479
        %v8481 = vlaneseq
        %v8482 = vshrl.u32 %v8481, 7
        %v8483 = vsub.s32 0, %v8482
        %v8484 = vrot.slane %v8470, %v8483
        %v8485 = vlaneseq
        %v8486 = vshrl.u32 %v8485, 7
        %v8487 = vsub.s32 0, %v8486
        %v8488 = vrot.slane %v8471, %v8487
        %v8489 = vlaneseq
        %v8490 = vshrl.u32 %v8489, 7
        %v8491 = vsub.s32 0, %v8490
        %v8492 = vrot.slane %v8472, %v8491
        %v8493 = vlaneseq
        %v8494 = vshrl.u32 %v8493, 7
        %v8495 = vsub.s32 0, %v8494
        %v8496 = vrot.slane %v8473, %v8495
        %v8497 = vlaneseq
        %v8498 = vshrl.u32 %v8497, 7
        %v8499 = vsub.s32 0, %v8498
        %v8500 = vrot.slane %v8474, %v8499
        %v8501 = vlaneseq
        %v8502 = vshrl.u32 %v8501, 7
        %v8503 = vsub.s32 0, %v8502
        %v8504 = vrot.slane %v8475, %v8503
        %v8505 = vlaneseq
        %v8506 = vshrl.u32 %v8505, 7
        %v8507 = vsub.s32 0, %v8506
        %v8508 = vrot.slane %v8476, %v8507
        %v8509 = vmul.f32 %v8480, %v7375
        %v8510 = vmul.f32 %v8484, %v7375
        %v8511 = vmul.f32 %v8488, %v7375
        %v8512 = vmul.f32 %v8492, %v7375
        %v8513 = vmul.f32 %v8496, %v7375
        %v8514 = vmul.f32 %v8500, %v7375
        %v8515 = vmul.f32 %v8504, %v7375
        %v8516 = vmul.f32 %v8508, %v7375
        %v8517 = vlaneseq
        %v8518 = vshrl.u32 %v8517, 7
        %v8519 = vsub.s32 1, %v8518
        %v8520 = vrot.slane %v8469, %v8519
        %v8521 = vlaneseq
        %v8522 = vshrl.u32 %v8521, 7
        %v8523 = vsub.s32 1, %v8522
        %v8524 = vrot.slane %v8470, %v8523
        %v8525 = vlaneseq
        %v8526 = vshrl.u32 %v8525, 7
        %v8527 = vsub.s32 1, %v8526
        %v8528 = vrot.slane %v8471, %v8527
        %v8529 = vlaneseq
        %v8530 = vshrl.u32 %v8529, 7
        %v8531 = vsub.s32 1, %v8530
        %v8532 = vrot.slane %v8472, %v8531
        %v8533 = vlaneseq
        %v8534 = vshrl.u32 %v8533, 7
        %v8535 = vsub.s32 1, %v8534
        %v8536 = vrot.slane %v8473, %v8535
        %v8537 = vlaneseq
        %v8538 = vshrl.u32 %v8537, 7
        %v8539 = vsub.s32 1, %v8538
        %v8540 = vrot.slane %v8474, %v8539
        %v8541 = vlaneseq
        %v8542 = vshrl.u32 %v8541, 7
        %v8543 = vsub.s32 1, %v8542
        %v8544 = vrot.slane %v8475, %v8543
        %v8545 = vlaneseq
        %v8546 = vshrl.u32 %v8545, 7
        %v8547 = vsub.s32 1, %v8546
        %v8548 = vrot.slane %v8476, %v8547
        %v8549 = vmul.f32 %v8520, %v7378
        %v8550 = vmul.f32 %v8524, %v7378
        %v8551 = vmul.f32 %v8528, %v7378
        %v8552 = vmul.f32 %v8532, %v7378
        %v8553 = vmul.f32 %v8536, %v7378
        %v8554 = vmul.f32 %v8540, %v7378
        %v8555 = vmul.f32 %v8544, %v7378
        %v8556 = vmul.f32 %v8548, %v7378
        %v8557 = vadd.f32 %v8509, %v8549
        %v8558 = vadd.f32 %v8510, %v8550
        %v8559 = vadd.f32 %v8511, %v8551
        %v8560 = vadd.f32 %v8512, %v8552
        %v8561 = vadd.f32 %v8513, %v8553
        %v8562 = vadd.f32 %v8514, %v8554
        %v8563 = vadd.f32 %v8515, %v8555
        %v8564 = vadd.f32 %v8516, %v8556
        %v8565 = vlaneseq
        %v8566 = vshrl.u32 %v8565, 7
        %v8567 = vsub.s32 2, %v8566
        %v8568 = vrot.slane %v8469, %v8567
        %v8569 = vlaneseq
        %v8570 = vshrl.u32 %v8569, 7
        %v8571 = vsub.s32 2, %v8570
        %v8572 = vrot.slane %v8470, %v8571
        %v8573 = vlaneseq
        %v8574 = vshrl.u32 %v8573, 7
        %v8575 = vsub.s32 2, %v8574
        %v8576 = vrot.slane %v8471, %v8575
        %v8577 = vlaneseq
        %v8578 = vshrl.u32 %v8577, 7
        %v8579 = vsub.s32 2, %v8578
        %v8580 = vrot.slane %v8472, %v8579
        %v8581 = vlaneseq
        %v8582 = vshrl.u32 %v8581, 7
        %v8583 = vsub.s32 2, %v8582
        %v8584 = vrot.slane %v8473, %v8583
        %v8585 = vlaneseq
        %v8586 = vshrl.u32 %v8585, 7
        %v8587 = vsub.s32 2, %v8586
        %v8588 = vrot.slane %v8474, %v8587
        %v8589 = vlaneseq
        %v8590 = vshrl.u32 %v8589, 7
        %v8591 = vsub.s32 2, %v8590
        %v8592 = vrot.slane %v8475, %v8591
        %v8593 = vlaneseq
        %v8594 = vshrl.u32 %v8593, 7
        %v8595 = vsub.s32 2, %v8594
        %v8596 = vrot.slane %v8476, %v8595
        %v8597 = vmul.f32 %v8568, %v7383
        %v8598 = vmul.f32 %v8572, %v7383
        %v8599 = vmul.f32 %v8576, %v7383
        %v8600 = vmul.f32 %v8580, %v7383
        %v8601 = vmul.f32 %v8584, %v7383
        %v8602 = vmul.f32 %v8588, %v7383
        %v8603 = vmul.f32 %v8592, %v7383
        %v8604 = vmul.f32 %v8596, %v7383
        %v8605 = vadd.f32 %v8557, %v8597
        %v8606 = vadd.f32 %v8558, %v8598
        %v8607 = vadd.f32 %v8559, %v8599
        %v8608 = vadd.f32 %v8560, %v8600
        %v8609 = vadd.f32 %v8561, %v8601
        %v8610 = vadd.f32 %v8562, %v8602
        %v8611 = vadd.f32 %v8563, %v8603
        %v8612 = vadd.f32 %v8564, %v8604
        %v8613 = vlaneseq
        %v8614 = vshrl.u32 %v8613, 7
        %v8615 = vsub.s32 3, %v8614
        %v8616 = vrot.slane %v8469, %v8615
        %v8617 = vlaneseq
        %v8618 = vshrl.u32 %v8617, 7
        %v8619 = vsub.s32 3, %v8618
        %v8620 = vrot.slane %v8470, %v8619
        %v8621 = vlaneseq
        %v8622 = vshrl.u32 %v8621, 7
        %v8623 = vsub.s32 3, %v8622
        %v8624 = vrot.slane %v8471, %v8623
        %v8625 = vlaneseq
        %v8626 = vshrl.u32 %v8625, 7
        %v8627 = vsub.s32 3, %v8626
        %v8628 = vrot.slane %v8472, %v8627
        %v8629 = vlaneseq
        %v8630 = vshrl.u32 %v8629, 7
        %v8631 = vsub.s32 3, %v8630
        %v8632 = vrot.slane %v8473, %v8631
        %v8633 = vlaneseq
        %v8634 = vshrl.u32 %v8633, 7
        %v8635 = vsub.s32 3, %v8634
        %v8636 = vrot.slane %v8474, %v8635
        %v8637 = vlaneseq
        %v8638 = vshrl.u32 %v8637, 7
        %v8639 = vsub.s32 3, %v8638
        %v8640 = vrot.slane %v8475, %v8639
        %v8641 = vlaneseq
        %v8642 = vshrl.u32 %v8641, 7
        %v8643 = vsub.s32 3, %v8642
        %v8644 = vrot.slane %v8476, %v8643
        %v8645 = vmul.f32 %v8616, %v7386
        %v8646 = vmul.f32 %v8620, %v7386
        %v8647 = vmul.f32 %v8624, %v7386
        %v8648 = vmul.f32 %v8628, %v7386
        %v8649 = vmul.f32 %v8632, %v7386
        %v8650 = vmul.f32 %v8636, %v7386
        %v8651 = vmul.f32 %v8640, %v7386
        %v8652 = vmul.f32 %v8644, %v7386
        %v8653 = vadd.f32 %v8605, %v8645
        %v8654 = vadd.f32 %v8606, %v8646
        %v8655 = vadd.f32 %v8607, %v8647
        %v8656 = vadd.f32 %v8608, %v8648
        %v8657 = vadd.f32 %v8609, %v8649
        %v8658 = vadd.f32 %v8610, %v8650
        %v8659 = vadd.f32 %v8611, %v8651
        %v8660 = vadd.f32 %v8612, %v8652
        %v8661 = vlaneseq
        %v8662 = vshrl.u32 %v8661, 7
        %v8663 = vsub.s32 4, %v8662
        %v8664 = vrot.slane %v8469, %v8663
        %v8665 = vlaneseq
        %v8666 = vshrl.u32 %v8665, 7
        %v8667 = vsub.s32 4, %v8666
        %v8668 = vrot.slane %v8470, %v8667
        %v8669 = vlaneseq
        %v8670 = vshrl.u32 %v8669, 7
        %v8671 = vsub.s32 4, %v8670
        %v8672 = vrot.slane %v8471, %v8671
        %v8673 = vlaneseq
        %v8674 = vshrl.u32 %v8673, 7
        %v8675 = vsub.s32 4, %v8674
        %v8676 = vrot.slane %v8472, %v8675
        %v8677 = vlaneseq
        %v8678 = vshrl.u32 %v8677, 7
        %v8679 = vsub.s32 4, %v8678
        %v8680 = vrot.slane %v8473, %v8679
        %v8681 = vlaneseq
        %v8682 = vshrl.u32 %v8681, 7
        %v8683 = vsub.s32 4, %v8682
        %v8684 = vrot.slane %v8474, %v8683
        %v8685 = vlaneseq
        %v8686 = vshrl.u32 %v8685, 7
        %v8687 = vsub.s32 4, %v8686
        %v8688 = vrot.slane %v8475, %v8687
        %v8689 = vlaneseq
        %v8690 = vshrl.u32 %v8689, 7
        %v8691 = vsub.s32 4, %v8690
        %v8692 = vrot.slane %v8476, %v8691
        %v8693 = vmul.f32 %v8664, %v7391
        %v8694 = vmul.f32 %v8668, %v7391
        %v8695 = vmul.f32 %v8672, %v7391
        %v8696 = vmul.f32 %v8676, %v7391
        %v8697 = vmul.f32 %v8680, %v7391
        %v8698 = vmul.f32 %v8684, %v7391
        %v8699 = vmul.f32 %v8688, %v7391
        %v8700 = vmul.f32 %v8692, %v7391
        %v8701 = vadd.f32 %v8653, %v8693
        %v8702 = vadd.f32 %v8654, %v8694
        %v8703 = vadd.f32 %v8655, %v8695
        %v8704 = vadd.f32 %v8656, %v8696
        %v8705 = vadd.f32 %v8657, %v8697
        %v8706 = vadd.f32 %v8658, %v8698
        %v8707 = vadd.f32 %v8659, %v8699
        %v8708 = vadd.f32 %v8660, %v8700
        %v8709 = vlaneseq
        %v8710 = vshrl.u32 %v8709, 7
        %v8711 = vsub.s32 5, %v8710
        %v8712 = vrot.slane %v8469, %v8711
        %v8713 = vlaneseq
        %v8714 = vshrl.u32 %v8713, 7
        %v8715 = vsub.s32 5, %v8714
        %v8716 = vrot.slane %v8470, %v8715
        %v8717 = vlaneseq
        %v8718 = vshrl.u32 %v8717, 7
        %v8719 = vsub.s32 5, %v8718
        %v8720 = vrot.slane %v8471, %v8719
        %v8721 = vlaneseq
        %v8722 = vshrl.u32 %v8721, 7
        %v8723 = vsub.s32 5, %v8722
        %v8724 = vrot.slane %v8472, %v8723
        %v8725 = vlaneseq
        %v8726 = vshrl.u32 %v8725, 7
        %v8727 = vsub.s32 5, %v8726
        %v8728 = vrot.slane %v8473, %v8727
        %v8729 = vlaneseq
        %v8730 = vshrl.u32 %v8729, 7
        %v8731 = vsub.s32 5, %v8730
        %v8732 = vrot.slane %v8474, %v8731
        %v8733 = vlaneseq
        %v8734 = vshrl.u32 %v8733, 7
        %v8735 = vsub.s32 5, %v8734
        %v8736 = vrot.slane %v8475, %v8735
        %v8737 = vlaneseq
        %v8738 = vshrl.u32 %v8737, 7
        %v8739 = vsub.s32 5, %v8738
        %v8740 = vrot.slane %v8476, %v8739
        %v8741 = vmul.f32 %v8712, %v7394
        %v8742 = vmul.f32 %v8716, %v7394
        %v8743 = vmul.f32 %v8720, %v7394
        %v8744 = vmul.f32 %v8724, %v7394
        %v8745 = vmul.f32 %v8728, %v7394
        %v8746 = vmul.f32 %v8732, %v7394
        %v8747 = vmul.f32 %v8736, %v7394
        %v8748 = vmul.f32 %v8740, %v7394
        %v8749 = vadd.f32 %v8701, %v8741
        %v8750 = vadd.f32 %v8702, %v8742
        %v8751 = vadd.f32 %v8703, %v8743
        %v8752 = vadd.f32 %v8704, %v8744
        %v8753 = vadd.f32 %v8705, %v8745
        %v8754 = vadd.f32 %v8706, %v8746
        %v8755 = vadd.f32 %v8707, %v8747
        %v8756 = vadd.f32 %v8708, %v8748
        %v8757 = vlaneseq
        %v8758 = vshrl.u32 %v8757, 7
        %v8759 = vsub.s32 6, %v8758
        %v8760 = vrot.slane %v8469, %v8759
        %v8761 = vlaneseq
        %v8762 = vshrl.u32 %v8761, 7
        %v8763 = vsub.s32 6, %v8762
        %v8764 = vrot.slane %v8470, %v8763
        %v8765 = vlaneseq
        %v8766 = vshrl.u32 %v8765, 7
        %v8767 = vsub.s32 6, %v8766
        %v8768 = vrot.slane %v8471, %v8767
        %v8769 = vlaneseq
        %v8770 = vshrl.u32 %v8769, 7
        %v8771 = vsub.s32 6, %v8770
        %v8772 = vrot.slane %v8472, %v8771
        %v8773 = vlaneseq
        %v8774 = vshrl.u32 %v8773, 7
        %v8775 = vsub.s32 6, %v8774
        %v8776 = vrot.slane %v8473, %v8775
        %v8777 = vlaneseq
        %v8778 = vshrl.u32 %v8777, 7
        %v8779 = vsub.s32 6, %v8778
        %v8780 = vrot.slane %v8474, %v8779
        %v8781 = vlaneseq
        %v8782 = vshrl.u32 %v8781, 7
        %v8783 = vsub.s32 6, %v8782
        %v8784 = vrot.slane %v8475, %v8783
        %v8785 = vlaneseq
        %v8786 = vshrl.u32 %v8785, 7
        %v8787 = vsub.s32 6, %v8786
        %v8788 = vrot.slane %v8476, %v8787
        %v8789 = vmul.f32 %v8760, %v7399
        %v8790 = vmul.f32 %v8764, %v7399
        %v8791 = vmul.f32 %v8768, %v7399
        %v8792 = vmul.f32 %v8772, %v7399
        %v8793 = vmul.f32 %v8776, %v7399
        %v8794 = vmul.f32 %v8780, %v7399
        %v8795 = vmul.f32 %v8784, %v7399
        %v8796 = vmul.f32 %v8788, %v7399
        %v8797 = vadd.f32 %v8749, %v8789
        %v8798 = vadd.f32 %v8750, %v8790
        %v8799 = vadd.f32 %v8751, %v8791
        %v8800 = vadd.f32 %v8752, %v8792
        %v8801 = vadd.f32 %v8753, %v8793
        %v8802 = vadd.f32 %v8754, %v8794
        %v8803 = vadd.f32 %v8755, %v8795
        %v8804 = vadd.f32 %v8756, %v8796
        %v8805 = vlaneseq
        %v8806 = vshrl.u32 %v8805, 7
        %v8807 = vsub.s32 7, %v8806
        %v8808 = vrot.slane %v8469, %v8807
        %v8809 = vlaneseq
        %v8810 = vshrl.u32 %v8809, 7
        %v8811 = vsub.s32 7, %v8810
        %v8812 = vrot.slane %v8470, %v8811
        %v8813 = vlaneseq
        %v8814 = vshrl.u32 %v8813, 7
        %v8815 = vsub.s32 7, %v8814
        %v8816 = vrot.slane %v8471, %v8815
        %v8817 = vlaneseq
        %v8818 = vshrl.u32 %v8817, 7
        %v8819 = vsub.s32 7, %v8818
        %v8820 = vrot.slane %v8472, %v8819
        %v8821 = vlaneseq
        %v8822 = vshrl.u32 %v8821, 7
        %v8823 = vsub.s32 7, %v8822
        %v8824 = vrot.slane %v8473, %v8823
        %v8825 = vlaneseq
        %v8826 = vshrl.u32 %v8825, 7
        %v8827 = vsub.s32 7, %v8826
        %v8828 = vrot.slane %v8474, %v8827
        %v8829 = vlaneseq
        %v8830 = vshrl.u32 %v8829, 7
        %v8831 = vsub.s32 7, %v8830
        %v8832 = vrot.slane %v8475, %v8831
        %v8833 = vlaneseq
        %v8834 = vshrl.u32 %v8833, 7
        %v8835 = vsub.s32 7, %v8834
        %v8836 = vrot.slane %v8476, %v8835
        %v8837 = vmul.f32 %v8808, %v7402
        %v8838 = vmul.f32 %v8812, %v7402
        %v8839 = vmul.f32 %v8816, %v7402
        %v8840 = vmul.f32 %v8820, %v7402
        %v8841 = vmul.f32 %v8824, %v7402
        %v8842 = vmul.f32 %v8828, %v7402
        %v8843 = vmul.f32 %v8832, %v7402
        %v8844 = vmul.f32 %v8836, %v7402
        %v8845 = vadd.f32 %v8797, %v8837
        %v8846 = vadd.f32 %v8798, %v8838
        %v8847 = vadd.f32 %v8799, %v8839
        %v8848 = vadd.f32 %v8800, %v8840
        %v8849 = vadd.f32 %v8801, %v8841
        %v8850 = vadd.f32 %v8802, %v8842
        %v8851 = vadd.f32 %v8803, %v8843
        %v8852 = vadd.f32 %v8804, %v8844
        %v8854 = vcombine.high %v7279, %v7279
        %v8856 = vunpack.c.l.s4 1966171168
        %v8857 = vunpack.c.0.s8 %v8856
        %v8858 = vlaneseq
        %v8859 = vshrl.u32 %v8858, 7
        %v8860 = vsub.s32 %v8857, %v8859
        %v8861 = vrot.slane %v7279, %v8860
        %v8863 = vunpack.c.l.s4 1966171168
        %v8864 = vunpack.c.0.s8 %v8863
        %v8865 = vlaneseq
        %v8866 = vshrl.u32 %v8865, 7
        %v8867 = vsub.s32 %v8864, %v8866
        %v8868 = vrot.slane %v8854, %v8867
        %v8869 = vcombine.high %v8861, %v8861
        %v8870 = vcombine.high %v8868, %v8868
        %v8872 = vunpack.c.l.s4 1966171168
        %v8873 = vunpack.c.0.s8 %v8872
        %v8874 = vlaneseq
        %v8875 = vshrl.u32 %v8874, 7
        %v8876 = vsub.s32 %v8873, %v8875
        %v8877 = vrot.slane %v8861, %v8876
        %v8879 = vunpack.c.l.s4 1966171168
        %v8880 = vunpack.c.0.s8 %v8879
        %v8881 = vlaneseq
        %v8882 = vshrl.u32 %v8881, 7
        %v8883 = vsub.s32 %v8880, %v8882
        %v8884 = vrot.slane %v8868, %v8883
        %v8886 = vunpack.c.l.s4 1966171168
        %v8887 = vunpack.c.0.s8 %v8886
        %v8888 = vlaneseq
        %v8889 = vshrl.u32 %v8888, 7
        %v8890 = vsub.s32 %v8887, %v8889
        %v8891 = vrot.slane %v8869, %v8890
        %v8893 = vunpack.c.l.s4 1966171168
        %v8894 = vunpack.c.0.s8 %v8893
        %v8895 = vlaneseq
        %v8896 = vshrl.u32 %v8895, 7
        %v8897 = vsub.s32 %v8894, %v8896
        %v8898 = vrot.slane %v8870, %v8897
        %v8899 = vcombine.high %v8877, %v8877
        %v8900 = vcombine.high %v8884, %v8884
        %v8901 = vcombine.high %v8891, %v8891
        %v8902 = vcombine.high %v8898, %v8898
        %v8903 = vlaneseq
        %v8904 = vshrl.u32 %v8903, 7
        %v8905 = vsub.s32 0, %v8904
        %v8906 = vrot.slane %v8877, %v8905
        %v8907 = vlaneseq
        %v8908 = vshrl.u32 %v8907, 7
        %v8909 = vsub.s32 0, %v8908
        %v8910 = vrot.slane %v8891, %v8909
        %v8911 = vlaneseq
        %v8912 = vshrl.u32 %v8911, 7
        %v8913 = vsub.s32 0, %v8912
        %v8914 = vrot.slane %v8899, %v8913
        %v8915 = vlaneseq
        %v8916 = vshrl.u32 %v8915, 7
        %v8917 = vsub.s32 0, %v8916
        %v8918 = vrot.slane %v8901, %v8917
        %v8919 = vlaneseq
        %v8920 = vshrl.u32 %v8919, 7
        %v8921 = vsub.s32 0, %v8920
        %v8922 = vrot.slane %v8884, %v8921
        %v8923 = vlaneseq
        %v8924 = vshrl.u32 %v8923, 7
        %v8925 = vsub.s32 0, %v8924
        %v8926 = vrot.slane %v8898, %v8925
        %v8927 = vlaneseq
        %v8928 = vshrl.u32 %v8927, 7
        %v8929 = vsub.s32 0, %v8928
        %v8930 = vrot.slane %v8900, %v8929
        %v8931 = vlaneseq
        %v8932 = vshrl.u32 %v8931, 7
        %v8933 = vsub.s32 0, %v8932
        %v8934 = vrot.slane %v8902, %v8933
        %v8943 = vmul.f32 %v8906, %v7343
        %v8944 = vmul.f32 %v8910, %v7343
        %v8945 = vmul.f32 %v8914, %v7343
        %v8946 = vmul.f32 %v8918, %v7343
        %v8947 = vmul.f32 %v8922, %v7343
        %v8948 = vmul.f32 %v8926, %v7343
        %v8949 = vmul.f32 %v8930, %v7343
        %v8950 = vmul.f32 %v8934, %v7343
        %v8952 = vcombine.high %v7282, %v7282
        %v8954 = vunpack.c.l.s4 1966171168
        %v8955 = vunpack.c.0.s8 %v8954
        %v8956 = vlaneseq
        %v8957 = vshrl.u32 %v8956, 7
        %v8958 = vsub.s32 %v8955, %v8957
        %v8959 = vrot.slane %v7282, %v8958
        %v8961 = vunpack.c.l.s4 1966171168
        %v8962 = vunpack.c.0.s8 %v8961
        %v8963 = vlaneseq
        %v8964 = vshrl.u32 %v8963, 7
        %v8965 = vsub.s32 %v8962, %v8964
        %v8966 = vrot.slane %v8952, %v8965
        %v8967 = vcombine.high %v8959, %v8959
        %v8968 = vcombine.high %v8966, %v8966
        %v8970 = vunpack.c.l.s4 1966171168
        %v8971 = vunpack.c.0.s8 %v8970
        %v8972 = vlaneseq
        %v8973 = vshrl.u32 %v8972, 7
        %v8974 = vsub.s32 %v8971, %v8973
        %v8975 = vrot.slane %v8959, %v8974
        %v8977 = vunpack.c.l.s4 1966171168
        %v8978 = vunpack.c.0.s8 %v8977
        %v8979 = vlaneseq
        %v8980 = vshrl.u32 %v8979, 7
        %v8981 = vsub.s32 %v8978, %v8980
        %v8982 = vrot.slane %v8966, %v8981
        %v8984 = vunpack.c.l.s4 1966171168
        %v8985 = vunpack.c.0.s8 %v8984
        %v8986 = vlaneseq
        %v8987 = vshrl.u32 %v8986, 7
        %v8988 = vsub.s32 %v8985, %v8987
        %v8989 = vrot.slane %v8967, %v8988
        %v8991 = vunpack.c.l.s4 1966171168
        %v8992 = vunpack.c.0.s8 %v8991
        %v8993 = vlaneseq
        %v8994 = vshrl.u32 %v8993, 7
        %v8995 = vsub.s32 %v8992, %v8994
        %v8996 = vrot.slane %v8968, %v8995
        %v8997 = vcombine.high %v8975, %v8975
        %v8998 = vcombine.high %v8982, %v8982
        %v8999 = vcombine.high %v8989, %v8989
        %v9000 = vcombine.high %v8996, %v8996
        %v9001 = vlaneseq
        %v9002 = vshrl.u32 %v9001, 7
        %v9003 = vsub.s32 0, %v9002
        %v9004 = vrot.slane %v8975, %v9003
        %v9005 = vlaneseq
        %v9006 = vshrl.u32 %v9005, 7
        %v9007 = vsub.s32 0, %v9006
        %v9008 = vrot.slane %v8989, %v9007
        %v9009 = vlaneseq
        %v9010 = vshrl.u32 %v9009, 7
        %v9011 = vsub.s32 0, %v9010
        %v9012 = vrot.slane %v8997, %v9011
        %v9013 = vlaneseq
        %v9014 = vshrl.u32 %v9013, 7
        %v9015 = vsub.s32 0, %v9014
        %v9016 = vrot.slane %v8999, %v9015
        %v9017 = vlaneseq
        %v9018 = vshrl.u32 %v9017, 7
        %v9019 = vsub.s32 0, %v9018
        %v9020 = vrot.slane %v8982, %v9019
        %v9021 = vlaneseq
        %v9022 = vshrl.u32 %v9021, 7
        %v9023 = vsub.s32 0, %v9022
        %v9024 = vrot.slane %v8996, %v9023
        %v9025 = vlaneseq
        %v9026 = vshrl.u32 %v9025, 7
        %v9027 = vsub.s32 0, %v9026
        %v9028 = vrot.slane %v8998, %v9027
        %v9029 = vlaneseq
        %v9030 = vshrl.u32 %v9029, 7
        %v9031 = vsub.s32 0, %v9030
        %v9032 = vrot.slane %v9000, %v9031
        %v9041 = vmul.f32 %v9004, %v7346
        %v9042 = vmul.f32 %v9008, %v7346
        %v9043 = vmul.f32 %v9012, %v7346
        %v9044 = vmul.f32 %v9016, %v7346
        %v9045 = vmul.f32 %v9020, %v7346
        %v9046 = vmul.f32 %v9024, %v7346
        %v9047 = vmul.f32 %v9028, %v7346
        %v9048 = vmul.f32 %v9032, %v7346
        %v9049 = vadd.f32 %v8943, %v9041
        %v9050 = vadd.f32 %v8944, %v9042
        %v9051 = vadd.f32 %v8945, %v9043
        %v9052 = vadd.f32 %v8946, %v9044
        %v9053 = vadd.f32 %v8947, %v9045
        %v9054 = vadd.f32 %v8948, %v9046
        %v9055 = vadd.f32 %v8949, %v9047
        %v9056 = vadd.f32 %v8950, %v9048
        %v9058 = vcombine.high %v7287, %v7287
        %v9060 = vunpack.c.l.s4 1966171168
        %v9061 = vunpack.c.0.s8 %v9060
        %v9062 = vlaneseq
        %v9063 = vshrl.u32 %v9062, 7
        %v9064 = vsub.s32 %v9061, %v9063
        %v9065 = vrot.slane %v7287, %v9064
        %v9067 = vunpack.c.l.s4 1966171168
        %v9068 = vunpack.c.0.s8 %v9067
        %v9069 = vlaneseq
        %v9070 = vshrl.u32 %v9069, 7
        %v9071 = vsub.s32 %v9068, %v9070
        %v9072 = vrot.slane %v9058, %v9071
        %v9073 = vcombine.high %v9065, %v9065
        %v9074 = vcombine.high %v9072, %v9072
        %v9076 = vunpack.c.l.s4 1966171168
        %v9077 = vunpack.c.0.s8 %v9076
        %v9078 = vlaneseq
        %v9079 = vshrl.u32 %v9078, 7
        %v9080 = vsub.s32 %v9077, %v9079
        %v9081 = vrot.slane %v9065, %v9080
        %v9083 = vunpack.c.l.s4 1966171168
        %v9084 = vunpack.c.0.s8 %v9083
        %v9085 = vlaneseq
        %v9086 = vshrl.u32 %v9085, 7
        %v9087 = vsub.s32 %v9084, %v9086
        %v9088 = vrot.slane %v9072, %v9087
        %v9090 = vunpack.c.l.s4 1966171168
        %v9091 = vunpack.c.0.s8 %v9090
        %v9092 = vlaneseq
        %v9093 = vshrl.u32 %v9092, 7
        %v9094 = vsub.s32 %v9091, %v9093
        %v9095 = vrot.slane %v9073, %v9094
        %v9097 = vunpack.c.l.s4 1966171168
        %v9098 = vunpack.c.0.s8 %v9097
        %v9099 = vlaneseq
        %v9100 = vshrl.u32 %v9099, 7
        %v9101 = vsub.s32 %v9098, %v9100
        %v9102 = vrot.slane %v9074, %v9101
        %v9103 = vcombine.high %v9081, %v9081
        %v9104 = vcombine.high %v9088, %v9088
        %v9105 = vcombine.high %v9095, %v9095
        %v9106 = vcombine.high %v9102, %v9102
        %v9107 = vlaneseq
        %v9108 = vshrl.u32 %v9107, 7
        %v9109 = vsub.s32 0, %v9108
        %v9110 = vrot.slane %v9081, %v9109
        %v9111 = vlaneseq
        %v9112 = vshrl.u32 %v9111, 7
        %v9113 = vsub.s32 0, %v9112
        %v9114 = vrot.slane %v9095, %v9113
        %v9115 = vlaneseq
        %v9116 = vshrl.u32 %v9115, 7
        %v9117 = vsub.s32 0, %v9116
        %v9118 = vrot.slane %v9103, %v9117
        %v9119 = vlaneseq
        %v9120 = vshrl.u32 %v9119, 7
        %v9121 = vsub.s32 0, %v9120
        %v9122 = vrot.slane %v9105, %v9121
        %v9123 = vlaneseq
        %v9124 = vshrl.u32 %v9123, 7
        %v9125 = vsub.s32 0, %v9124
        %v9126 = vrot.slane %v9088, %v9125
        %v9127 = vlaneseq
        %v9128 = vshrl.u32 %v9127, 7
        %v9129 = vsub.s32 0, %v9128
        %v9130 = vrot.slane %v9102, %v9129
        %v9131 = vlaneseq
        %v9132 = vshrl.u32 %v9131, 7
        %v9133 = vsub.s32 0, %v9132
        %v9134 = vrot.slane %v9104, %v9133
        %v9135 = vlaneseq
        %v9136 = vshrl.u32 %v9135, 7
        %v9137 = vsub.s32 0, %v9136
        %v9138 = vrot.slane %v9106, %v9137
        %v9147 = vmul.f32 %v9110, %v7351
        %v9148 = vmul.f32 %v9114, %v7351
        %v9149 = vmul.f32 %v9118, %v7351
        %v9150 = vmul.f32 %v9122, %v7351
        %v9151 = vmul.f32 %v9126, %v7351
        %v9152 = vmul.f32 %v9130, %v7351
        %v9153 = vmul.f32 %v9134, %v7351
        %v9154 = vmul.f32 %v9138, %v7351
        %v9155 = vadd.f32 %v9049, %v9147
        %v9156 = vadd.f32 %v9050, %v9148
        %v9157 = vadd.f32 %v9051, %v9149
        %v9158 = vadd.f32 %v9052, %v9150
        %v9159 = vadd.f32 %v9053, %v9151
        %v9160 = vadd.f32 %v9054, %v9152
        %v9161 = vadd.f32 %v9055, %v9153
        %v9162 = vadd.f32 %v9056, %v9154
        %v9164 = vcombine.high %v7290, %v7290
        %v9166 = vunpack.c.l.s4 1966171168
        %v9167 = vunpack.c.0.s8 %v9166
        %v9168 = vlaneseq
        %v9169 = vshrl.u32 %v9168, 7
        %v9170 = vsub.s32 %v9167, %v9169
        %v9171 = vrot.slane %v7290, %v9170
        %v9173 = vunpack.c.l.s4 1966171168
        %v9174 = vunpack.c.0.s8 %v9173
        %v9175 = vlaneseq
        %v9176 = vshrl.u32 %v9175, 7
        %v9177 = vsub.s32 %v9174, %v9176
        %v9178 = vrot.slane %v9164, %v9177
        %v9179 = vcombine.high %v9171, %v9171
        %v9180 = vcombine.high %v9178, %v9178
        %v9182 = vunpack.c.l.s4 1966171168
        %v9183 = vunpack.c.0.s8 %v9182
        %v9184 = vlaneseq
        %v9185 = vshrl.u32 %v9184, 7
        %v9186 = vsub.s32 %v9183, %v9185
        %v9187 = vrot.slane %v9171, %v9186
        %v9189 = vunpack.c.l.s4 1966171168
        %v9190 = vunpack.c.0.s8 %v9189
        %v9191 = vlaneseq
        %v9192 = vshrl.u32 %v9191, 7
        %v9193 = vsub.s32 %v9190, %v9192
        %v9194 = vrot.slane %v9178, %v9193
        %v9196 = vunpack.c.l.s4 1966171168
        %v9197 = vunpack.c.0.s8 %v9196
        %v9198 = vlaneseq
        %v9199 = vshrl.u32 %v9198, 7
        %v9200 = vsub.s32 %v9197, %v9199
        %v9201 = vrot.slane %v9179, %v9200
        %v9203 = vunpack.c.l.s4 1966171168
        %v9204 = vunpack.c.0.s8 %v9203
        %v9205 = vlaneseq
        %v9206 = vshrl.u32 %v9205, 7
        %v9207 = vsub.s32 %v9204, %v9206
        %v9208 = vrot.slane %v9180, %v9207
        %v9209 = vcombine.high %v9187, %v9187
        %v9210 = vcombine.high %v9194, %v9194
        %v9211 = vcombine.high %v9201, %v9201
        %v9212 = vcombine.high %v9208, %v9208
        %v9213 = vlaneseq
        %v9214 = vshrl.u32 %v9213, 7
        %v9215 = vsub.s32 0, %v9214
        %v9216 = vrot.slane %v9187, %v9215
        %v9217 = vlaneseq
        %v9218 = vshrl.u32 %v9217, 7
        %v9219 = vsub.s32 0, %v9218
        %v9220 = vrot.slane %v9201, %v9219
        %v9221 = vlaneseq
        %v9222 = vshrl.u32 %v9221, 7
        %v9223 = vsub.s32 0, %v9222
        %v9224 = vrot.slane %v9209, %v9223
        %v9225 = vlaneseq
        %v9226 = vshrl.u32 %v9225, 7
        %v9227 = vsub.s32 0, %v9226
        %v9228 = vrot.slane %v9211, %v9227
        %v9229 = vlaneseq
        %v9230 = vshrl.u32 %v9229, 7
        %v9231 = vsub.s32 0, %v9230
        %v9232 = vrot.slane %v9194, %v9231
        %v9233 = vlaneseq
        %v9234 = vshrl.u32 %v9233, 7
        %v9235 = vsub.s32 0, %v9234
        %v9236 = vrot.slane %v9208, %v9235
        %v9237 = vlaneseq
        %v9238 = vshrl.u32 %v9237, 7
        %v9239 = vsub.s32 0, %v9238
        %v9240 = vrot.slane %v9210, %v9239
        %v9241 = vlaneseq
        %v9242 = vshrl.u32 %v9241, 7
        %v9243 = vsub.s32 0, %v9242
        %v9244 = vrot.slane %v9212, %v9243
        %v9253 = vmul.f32 %v9216, %v7354
        %v9254 = vmul.f32 %v9220, %v7354
        %v9255 = vmul.f32 %v9224, %v7354
        %v9256 = vmul.f32 %v9228, %v7354
        %v9257 = vmul.f32 %v9232, %v7354
        %v9258 = vmul.f32 %v9236, %v7354
        %v9259 = vmul.f32 %v9240, %v7354
        %v9260 = vmul.f32 %v9244, %v7354
        %v9261 = vadd.f32 %v9155, %v9253
        %v9262 = vadd.f32 %v9156, %v9254
        %v9263 = vadd.f32 %v9157, %v9255
        %v9264 = vadd.f32 %v9158, %v9256
        %v9265 = vadd.f32 %v9159, %v9257
        %v9266 = vadd.f32 %v9160, %v9258
        %v9267 = vadd.f32 %v9161, %v9259
        %v9268 = vadd.f32 %v9162, %v9260
        %v9270 = vcombine.high %v7295, %v7295
        %v9272 = vunpack.c.l.s4 1966171168
        %v9273 = vunpack.c.0.s8 %v9272
        %v9274 = vlaneseq
        %v9275 = vshrl.u32 %v9274, 7
        %v9276 = vsub.s32 %v9273, %v9275
        %v9277 = vrot.slane %v7295, %v9276
        %v9279 = vunpack.c.l.s4 1966171168
        %v9280 = vunpack.c.0.s8 %v9279
        %v9281 = vlaneseq
        %v9282 = vshrl.u32 %v9281, 7
        %v9283 = vsub.s32 %v9280, %v9282
        %v9284 = vrot.slane %v9270, %v9283
        %v9285 = vcombine.high %v9277, %v9277
        %v9286 = vcombine.high %v9284, %v9284
        %v9288 = vunpack.c.l.s4 1966171168
        %v9289 = vunpack.c.0.s8 %v9288
        %v9290 = vlaneseq
        %v9291 = vshrl.u32 %v9290, 7
        %v9292 = vsub.s32 %v9289, %v9291
        %v9293 = vrot.slane %v9277, %v9292
        %v9295 = vunpack.c.l.s4 1966171168
        %v9296 = vunpack.c.0.s8 %v9295
        %v9297 = vlaneseq
        %v9298 = vshrl.u32 %v9297, 7
        %v9299 = vsub.s32 %v9296, %v9298
        %v9300 = vrot.slane %v9284, %v9299
        %v9302 = vunpack.c.l.s4 1966171168
        %v9303 = vunpack.c.0.s8 %v9302
        %v9304 = vlaneseq
        %v9305 = vshrl.u32 %v9304, 7
        %v9306 = vsub.s32 %v9303, %v9305
        %v9307 = vrot.slane %v9285, %v9306
        %v9309 = vunpack.c.l.s4 1966171168
        %v9310 = vunpack.c.0.s8 %v9309
        %v9311 = vlaneseq
        %v9312 = vshrl.u32 %v9311, 7
        %v9313 = vsub.s32 %v9310, %v9312
        %v9314 = vrot.slane %v9286, %v9313
        %v9315 = vcombine.high %v9293, %v9293
        %v9316 = vcombine.high %v9300, %v9300
        %v9317 = vcombine.high %v9307, %v9307
        %v9318 = vcombine.high %v9314, %v9314
        %v9319 = vlaneseq
        %v9320 = vshrl.u32 %v9319, 7
        %v9321 = vsub.s32 0, %v9320
        %v9322 = vrot.slane %v9293, %v9321
        %v9323 = vlaneseq
        %v9324 = vshrl.u32 %v9323, 7
        %v9325 = vsub.s32 0, %v9324
        %v9326 = vrot.slane %v9307, %v9325
        %v9327 = vlaneseq
        %v9328 = vshrl.u32 %v9327, 7
        %v9329 = vsub.s32 0, %v9328
        %v9330 = vrot.slane %v9315, %v9329
        %v9331 = vlaneseq
        %v9332 = vshrl.u32 %v9331, 7
        %v9333 = vsub.s32 0, %v9332
        %v9334 = vrot.slane %v9317, %v9333
        %v9335 = vlaneseq
        %v9336 = vshrl.u32 %v9335, 7
        %v9337 = vsub.s32 0, %v9336
        %v9338 = vrot.slane %v9300, %v9337
        %v9339 = vlaneseq
        %v9340 = vshrl.u32 %v9339, 7
        %v9341 = vsub.s32 0, %v9340
        %v9342 = vrot.slane %v9314, %v9341
        %v9343 = vlaneseq
        %v9344 = vshrl.u32 %v9343, 7
        %v9345 = vsub.s32 0, %v9344
        %v9346 = vrot.slane %v9316, %v9345
        %v9347 = vlaneseq
        %v9348 = vshrl.u32 %v9347, 7
        %v9349 = vsub.s32 0, %v9348
        %v9350 = vrot.slane %v9318, %v9349
        %v9359 = vmul.f32 %v9322, %v7359
        %v9360 = vmul.f32 %v9326, %v7359
        %v9361 = vmul.f32 %v9330, %v7359
        %v9362 = vmul.f32 %v9334, %v7359
        %v9363 = vmul.f32 %v9338, %v7359
        %v9364 = vmul.f32 %v9342, %v7359
        %v9365 = vmul.f32 %v9346, %v7359
        %v9366 = vmul.f32 %v9350, %v7359
        %v9367 = vadd.f32 %v9261, %v9359
        %v9368 = vadd.f32 %v9262, %v9360
        %v9369 = vadd.f32 %v9263, %v9361
        %v9370 = vadd.f32 %v9264, %v9362
        %v9371 = vadd.f32 %v9265, %v9363
        %v9372 = vadd.f32 %v9266, %v9364
        %v9373 = vadd.f32 %v9267, %v9365
        %v9374 = vadd.f32 %v9268, %v9366
        %v9376 = vcombine.high %v7298, %v7298
        %v9378 = vunpack.c.l.s4 1966171168
        %v9379 = vunpack.c.0.s8 %v9378
        %v9380 = vlaneseq
        %v9381 = vshrl.u32 %v9380, 7
        %v9382 = vsub.s32 %v9379, %v9381
        %v9383 = vrot.slane %v7298, %v9382
        %v9385 = vunpack.c.l.s4 1966171168
        %v9386 = vunpack.c.0.s8 %v9385
        %v9387 = vlaneseq
        %v9388 = vshrl.u32 %v9387, 7
        %v9389 = vsub.s32 %v9386, %v9388
        %v9390 = vrot.slane %v9376, %v9389
        %v9391 = vcombine.high %v9383, %v9383
        %v9392 = vcombine.high %v9390, %v9390
        %v9394 = vunpack.c.l.s4 1966171168
        %v9395 = vunpack.c.0.s8 %v9394
        %v9396 = vlaneseq
        %v9397 = vshrl.u32 %v9396, 7
        %v9398 = vsub.s32 %v9395, %v9397
        %v9399 = vrot.slane %v9383, %v9398
        %v9401 = vunpack.c.l.s4 1966171168
        %v9402 = vunpack.c.0.s8 %v9401
        %v9403 = vlaneseq
        %v9404 = vshrl.u32 %v9403, 7
        %v9405 = vsub.s32 %v9402, %v9404
        %v9406 = vrot.slane %v9390, %v9405
        %v9408 = vunpack.c.l.s4 1966171168
        %v9409 = vunpack.c.0.s8 %v9408
        %v9410 = vlaneseq
        %v9411 = vshrl.u32 %v9410, 7
        %v9412 = vsub.s32 %v9409, %v9411
        %v9413 = vrot.slane %v9391, %v9412
        %v9415 = vunpack.c.l.s4 1966171168
        %v9416 = vunpack.c.0.s8 %v9415
        %v9417 = vlaneseq
        %v9418 = vshrl.u32 %v9417, 7
        %v9419 = vsub.s32 %v9416, %v9418
        %v9420 = vrot.slane %v9392, %v9419
        %v9421 = vcombine.high %v9399, %v9399
        %v9422 = vcombine.high %v9406, %v9406
        %v9423 = vcombine.high %v9413, %v9413
        %v9424 = vcombine.high %v9420, %v9420
        %v9425 = vlaneseq
        %v9426 = vshrl.u32 %v9425, 7
        %v9427 = vsub.s32 0, %v9426
        %v9428 = vrot.slane %v9399, %v9427
        %v9429 = vlaneseq
        %v9430 = vshrl.u32 %v9429, 7
        %v9431 = vsub.s32 0, %v9430
        %v9432 = vrot.slane %v9413, %v9431
        %v9433 = vlaneseq
        %v9434 = vshrl.u32 %v9433, 7
        %v9435 = vsub.s32 0, %v9434
        %v9436 = vrot.slane %v9421, %v9435
        %v9437 = vlaneseq
        %v9438 = vshrl.u32 %v9437, 7
        %v9439 = vsub.s32 0, %v9438
        %v9440 = vrot.slane %v9423, %v9439
        %v9441 = vlaneseq
        %v9442 = vshrl.u32 %v9441, 7
        %v9443 = vsub.s32 0, %v9442
        %v9444 = vrot.slane %v9406, %v9443
        %v9445 = vlaneseq
        %v9446 = vshrl.u32 %v9445, 7
        %v9447 = vsub.s32 0, %v9446
        %v9448 = vrot.slane %v9420, %v9447
        %v9449 = vlaneseq
        %v9450 = vshrl.u32 %v9449, 7
        %v9451 = vsub.s32 0, %v9450
        %v9452 = vrot.slane %v9422, %v9451
        %v9453 = vlaneseq
        %v9454 = vshrl.u32 %v9453, 7
        %v9455 = vsub.s32 0, %v9454
        %v9456 = vrot.slane %v9424, %v9455
        %v9465 = vmul.f32 %v9428, %v7362
        %v9466 = vmul.f32 %v9432, %v7362
        %v9467 = vmul.f32 %v9436, %v7362
        %v9468 = vmul.f32 %v9440, %v7362
        %v9469 = vmul.f32 %v9444, %v7362
        %v9470 = vmul.f32 %v9448, %v7362
        %v9471 = vmul.f32 %v9452, %v7362
        %v9472 = vmul.f32 %v9456, %v7362
        %v9473 = vadd.f32 %v9367, %v9465
        %v9474 = vadd.f32 %v9368, %v9466
        %v9475 = vadd.f32 %v9369, %v9467
        %v9476 = vadd.f32 %v9370, %v9468
        %v9477 = vadd.f32 %v9371, %v9469
        %v9478 = vadd.f32 %v9372, %v9470
        %v9479 = vadd.f32 %v9373, %v9471
        %v9480 = vadd.f32 %v9374, %v9472
        %v9482 = vcombine.high %v7303, %v7303
        %v9484 = vunpack.c.l.s4 1966171168
        %v9485 = vunpack.c.0.s8 %v9484
        %v9486 = vlaneseq
        %v9487 = vshrl.u32 %v9486, 7
        %v9488 = vsub.s32 %v9485, %v9487
        %v9489 = vrot.slane %v7303, %v9488
        %v9491 = vunpack.c.l.s4 1966171168
        %v9492 = vunpack.c.0.s8 %v9491
        %v9493 = vlaneseq
        %v9494 = vshrl.u32 %v9493, 7
        %v9495 = vsub.s32 %v9492, %v9494
        %v9496 = vrot.slane %v9482, %v9495
        %v9497 = vcombine.high %v9489, %v9489
        %v9498 = vcombine.high %v9496, %v9496
        %v9500 = vunpack.c.l.s4 1966171168
        %v9501 = vunpack.c.0.s8 %v9500
        %v9502 = vlaneseq
        %v9503 = vshrl.u32 %v9502, 7
        %v9504 = vsub.s32 %v9501, %v9503
        %v9505 = vrot.slane %v9489, %v9504
        %v9507 = vunpack.c.l.s4 1966171168
        %v9508 = vunpack.c.0.s8 %v9507
        %v9509 = vlaneseq
        %v9510 = vshrl.u32 %v9509, 7
        %v9511 = vsub.s32 %v9508, %v9510
        %v9512 = vrot.slane %v9496, %v9511
        %v9514 = vunpack.c.l.s4 1966171168
        %v9515 = vunpack.c.0.s8 %v9514
        %v9516 = vlaneseq
        %v9517 = vshrl.u32 %v9516, 7
        %v9518 = vsub.s32 %v9515, %v9517
        %v9519 = vrot.slane %v9497, %v9518
        %v9521 = vunpack.c.l.s4 1966171168
        %v9522 = vunpack.c.0.s8 %v9521
        %v9523 = vlaneseq
        %v9524 = vshrl.u32 %v9523, 7
        %v9525 = vsub.s32 %v9522, %v9524
        %v9526 = vrot.slane %v9498, %v9525
        %v9527 = vcombine.high %v9505, %v9505
        %v9528 = vcombine.high %v9512, %v9512
        %v9529 = vcombine.high %v9519, %v9519
        %v9530 = vcombine.high %v9526, %v9526
        %v9531 = vlaneseq
        %v9532 = vshrl.u32 %v9531, 7
        %v9533 = vsub.s32 0, %v9532
        %v9534 = vrot.slane %v9505, %v9533
        %v9535 = vlaneseq
        %v9536 = vshrl.u32 %v9535, 7
        %v9537 = vsub.s32 0, %v9536
        %v9538 = vrot.slane %v9519, %v9537
        %v9539 = vlaneseq
        %v9540 = vshrl.u32 %v9539, 7
        %v9541 = vsub.s32 0, %v9540
        %v9542 = vrot.slane %v9527, %v9541
        %v9543 = vlaneseq
        %v9544 = vshrl.u32 %v9543, 7
        %v9545 = vsub.s32 0, %v9544
        %v9546 = vrot.slane %v9529, %v9545
        %v9547 = vlaneseq
        %v9548 = vshrl.u32 %v9547, 7
        %v9549 = vsub.s32 0, %v9548
        %v9550 = vrot.slane %v9512, %v9549
        %v9551 = vlaneseq
        %v9552 = vshrl.u32 %v9551, 7
        %v9553 = vsub.s32 0, %v9552
        %v9554 = vrot.slane %v9526, %v9553
        %v9555 = vlaneseq
        %v9556 = vshrl.u32 %v9555, 7
        %v9557 = vsub.s32 0, %v9556
        %v9558 = vrot.slane %v9528, %v9557
        %v9559 = vlaneseq
        %v9560 = vshrl.u32 %v9559, 7
        %v9561 = vsub.s32 0, %v9560
        %v9562 = vrot.slane %v9530, %v9561
        %v9571 = vmul.f32 %v9534, %v7367
        %v9572 = vmul.f32 %v9538, %v7367
        %v9573 = vmul.f32 %v9542, %v7367
        %v9574 = vmul.f32 %v9546, %v7367
        %v9575 = vmul.f32 %v9550, %v7367
        %v9576 = vmul.f32 %v9554, %v7367
        %v9577 = vmul.f32 %v9558, %v7367
        %v9578 = vmul.f32 %v9562, %v7367
        %v9579 = vadd.f32 %v9473, %v9571
        %v9580 = vadd.f32 %v9474, %v9572
        %v9581 = vadd.f32 %v9475, %v9573
        %v9582 = vadd.f32 %v9476, %v9574
        %v9583 = vadd.f32 %v9477, %v9575
        %v9584 = vadd.f32 %v9478, %v9576
        %v9585 = vadd.f32 %v9479, %v9577
        %v9586 = vadd.f32 %v9480, %v9578
        %v9588 = vcombine.high %v7306, %v7306
        %v9590 = vunpack.c.l.s4 1966171168
        %v9591 = vunpack.c.0.s8 %v9590
        %v9592 = vlaneseq
        %v9593 = vshrl.u32 %v9592, 7
        %v9594 = vsub.s32 %v9591, %v9593
        %v9595 = vrot.slane %v7306, %v9594
        %v9597 = vunpack.c.l.s4 1966171168
        %v9598 = vunpack.c.0.s8 %v9597
        %v9599 = vlaneseq
        %v9600 = vshrl.u32 %v9599, 7
        %v9601 = vsub.s32 %v9598, %v9600
        %v9602 = vrot.slane %v9588, %v9601
        %v9603 = vcombine.high %v9595, %v9595
        %v9604 = vcombine.high %v9602, %v9602
        %v9606 = vunpack.c.l.s4 1966171168
        %v9607 = vunpack.c.0.s8 %v9606
        %v9608 = vlaneseq
        %v9609 = vshrl.u32 %v9608, 7
        %v9610 = vsub.s32 %v9607, %v9609
        %v9611 = vrot.slane %v9595, %v9610
        %v9613 = vunpack.c.l.s4 1966171168
        %v9614 = vunpack.c.0.s8 %v9613
        %v9615 = vlaneseq
        %v9616 = vshrl.u32 %v9615, 7
        %v9617 = vsub.s32 %v9614, %v9616
        %v9618 = vrot.slane %v9602, %v9617
        %v9620 = vunpack.c.l.s4 1966171168
        %v9621 = vunpack.c.0.s8 %v9620
        %v9622 = vlaneseq
        %v9623 = vshrl.u32 %v9622, 7
        %v9624 = vsub.s32 %v9621, %v9623
        %v9625 = vrot.slane %v9603, %v9624
        %v9627 = vunpack.c.l.s4 1966171168
        %v9628 = vunpack.c.0.s8 %v9627
        %v9629 = vlaneseq
        %v9630 = vshrl.u32 %v9629, 7
        %v9631 = vsub.s32 %v9628, %v9630
        %v9632 = vrot.slane %v9604, %v9631
        %v9633 = vcombine.high %v9611, %v9611
        %v9634 = vcombine.high %v9618, %v9618
        %v9635 = vcombine.high %v9625, %v9625
        %v9636 = vcombine.high %v9632, %v9632
        %v9637 = vlaneseq
        %v9638 = vshrl.u32 %v9637, 7
        %v9639 = vsub.s32 0, %v9638
        %v9640 = vrot.slane %v9611, %v9639
        %v9641 = vlaneseq
        %v9642 = vshrl.u32 %v9641, 7
        %v9643 = vsub.s32 0, %v9642
        %v9644 = vrot.slane %v9625, %v9643
        %v9645 = vlaneseq
        %v9646 = vshrl.u32 %v9645, 7
        %v9647 = vsub.s32 0, %v9646
        %v9648 = vrot.slane %v9633, %v9647
        %v9649 = vlaneseq
        %v9650 = vshrl.u32 %v9649, 7
        %v9651 = vsub.s32 0, %v9650
        %v9652 = vrot.slane %v9635, %v9651
        %v9653 = vlaneseq
        %v9654 = vshrl.u32 %v9653, 7
        %v9655 = vsub.s32 0, %v9654
        %v9656 = vrot.slane %v9618, %v9655
        %v9657 = vlaneseq
        %v9658 = vshrl.u32 %v9657, 7
        %v9659 = vsub.s32 0, %v9658
        %v9660 = vrot.slane %v9632, %v9659
        %v9661 = vlaneseq
        %v9662 = vshrl.u32 %v9661, 7
        %v9663 = vsub.s32 0, %v9662
        %v9664 = vrot.slane %v9634, %v9663
        %v9665 = vlaneseq
        %v9666 = vshrl.u32 %v9665, 7
        %v9667 = vsub.s32 0, %v9666
        %v9668 = vrot.slane %v9636, %v9667
        %v9677 = vmul.f32 %v9640, %v7370
        %v9678 = vmul.f32 %v9644, %v7370
        %v9679 = vmul.f32 %v9648, %v7370
        %v9680 = vmul.f32 %v9652, %v7370
        %v9681 = vmul.f32 %v9656, %v7370
        %v9682 = vmul.f32 %v9660, %v7370
        %v9683 = vmul.f32 %v9664, %v7370
        %v9684 = vmul.f32 %v9668, %v7370
        %v9685 = vadd.f32 %v9579, %v9677
        %v9686 = vadd.f32 %v9580, %v9678
        %v9687 = vadd.f32 %v9581, %v9679
        %v9688 = vadd.f32 %v9582, %v9680
        %v9689 = vadd.f32 %v9583, %v9681
        %v9690 = vadd.f32 %v9584, %v9682
        %v9691 = vadd.f32 %v9585, %v9683
        %v9692 = vadd.f32 %v9586, %v9684
        %v9693 = vrot.slane %v9685, 4
        %v9694 = vmax.f32 %v9685, %v9693
        %v9695 = vrot.slane %v9694, 2
        %v9696 = vmax.f32 %v9694, %v9695
        %v9697 = vrot.slane %v9696, 1
        %v9698 = vmax.f32 %v9696, %v9697
        %v9699 = vrot.slane %v9686, 4
        %v9700 = vmax.f32 %v9686, %v9699
        %v9701 = vrot.slane %v9700, 2
        %v9702 = vmax.f32 %v9700, %v9701
        %v9703 = vrot.slane %v9702, 1
        %v9704 = vmax.f32 %v9702, %v9703
        %v9705 = vrot.slane %v9687, 4
        %v9706 = vmax.f32 %v9687, %v9705
        %v9707 = vrot.slane %v9706, 2
        %v9708 = vmax.f32 %v9706, %v9707
        %v9709 = vrot.slane %v9708, 1
        %v9710 = vmax.f32 %v9708, %v9709
        %v9711 = vrot.slane %v9688, 4
        %v9712 = vmax.f32 %v9688, %v9711
        %v9713 = vrot.slane %v9712, 2
        %v9714 = vmax.f32 %v9712, %v9713
        %v9715 = vrot.slane %v9714, 1
        %v9716 = vmax.f32 %v9714, %v9715
        %v9717 = vrot.slane %v9689, 4
        %v9718 = vmax.f32 %v9689, %v9717
        %v9719 = vrot.slane %v9718, 2
        %v9720 = vmax.f32 %v9718, %v9719
        %v9721 = vrot.slane %v9720, 1
        %v9722 = vmax.f32 %v9720, %v9721
        %v9723 = vrot.slane %v9690, 4
        %v9724 = vmax.f32 %v9690, %v9723
        %v9725 = vrot.slane %v9724, 2
        %v9726 = vmax.f32 %v9724, %v9725
        %v9727 = vrot.slane %v9726, 1
        %v9728 = vmax.f32 %v9726, %v9727
        %v9729 = vrot.slane %v9691, 4
        %v9730 = vmax.f32 %v9691, %v9729
        %v9731 = vrot.slane %v9730, 2
        %v9732 = vmax.f32 %v9730, %v9731
        %v9733 = vrot.slane %v9732, 1
        %v9734 = vmax.f32 %v9732, %v9733
        %v9735 = vrot.slane %v9692, 4
        %v9736 = vmax.f32 %v9692, %v9735
        %v9737 = vrot.slane %v9736, 2
        %v9738 = vmax.f32 %v9736, %v9737
        %v9739 = vrot.slane %v9738, 1
        %v9740 = vmax.f32 %v9738, %v9739
        %v9741 = vsub.f32 %v9685, %v9698
        %v9742 = vsub.f32 %v9686, %v9704
        %v9743 = vsub.f32 %v9687, %v9710
        %v9744 = vsub.f32 %v9688, %v9716
        %v9745 = vsub.f32 %v9689, %v9722
        %v9746 = vsub.f32 %v9690, %v9728
        %v9747 = vsub.f32 %v9691, %v9734
        %v9748 = vsub.f32 %v9692, %v9740
        %v9749 = vmul.f32 %v9741, 1.442695
        %v9750 = vpow.pop %v9749
        %v9751 = vmul.f32 %v9742, 1.442695
        %v9752 = vpow.pop %v9751
        %v9753 = vmul.f32 %v9743, 1.442695
        %v9754 = vpow.pop %v9753
        %v9755 = vmul.f32 %v9744, 1.442695
        %v9756 = vpow.pop %v9755
        %v9757 = vmul.f32 %v9745, 1.442695
        %v9758 = vpow.pop %v9757
        %v9759 = vmul.f32 %v9746, 1.442695
        %v9760 = vpow.pop %v9759
        %v9761 = vmul.f32 %v9747, 1.442695
        %v9762 = vpow.pop %v9761
        %v9763 = vmul.f32 %v9748, 1.442695
        %v9764 = vpow.pop %v9763
        %v9765 = vrot.slane %v9750, 4
        %v9766 = vadd.f32 %v9750, %v9765
        %v9767 = vrot.slane %v9766, 2
        %v9768 = vadd.f32 %v9766, %v9767
        %v9769 = vrot.slane %v9768, 1
        %v9770 = vadd.f32 %v9768, %v9769
        %v9771 = vrot.slane %v9752, 4
        %v9772 = vadd.f32 %v9752, %v9771
        %v9773 = vrot.slane %v9772, 2
        %v9774 = vadd.f32 %v9772, %v9773
        %v9775 = vrot.slane %v9774, 1
        %v9776 = vadd.f32 %v9774, %v9775
        %v9777 = vrot.slane %v9754, 4
        %v9778 = vadd.f32 %v9754, %v9777
        %v9779 = vrot.slane %v9778, 2
        %v9780 = vadd.f32 %v9778, %v9779
        %v9781 = vrot.slane %v9780, 1
        %v9782 = vadd.f32 %v9780, %v9781
        %v9783 = vrot.slane %v9756, 4
        %v9784 = vadd.f32 %v9756, %v9783
        %v9785 = vrot.slane %v9784, 2
        %v9786 = vadd.f32 %v9784, %v9785
        %v9787 = vrot.slane %v9786, 1
        %v9788 = vadd.f32 %v9786, %v9787
        %v9789 = vrot.slane %v9758, 4
        %v9790 = vadd.f32 %v9758, %v9789
        %v9791 = vrot.slane %v9790, 2
        %v9792 = vadd.f32 %v9790, %v9791
        %v9793 = vrot.slane %v9792, 1
        %v9794 = vadd.f32 %v9792, %v9793
        %v9795 = vrot.slane %v9760, 4
        %v9796 = vadd.f32 %v9760, %v9795
        %v9797 = vrot.slane %v9796, 2
        %v9798 = vadd.f32 %v9796, %v9797
        %v9799 = vrot.slane %v9798, 1
        %v9800 = vadd.f32 %v9798, %v9799
        %v9801 = vrot.slane %v9762, 4
        %v9802 = vadd.f32 %v9762, %v9801
        %v9803 = vrot.slane %v9802, 2
        %v9804 = vadd.f32 %v9802, %v9803
        %v9805 = vrot.slane %v9804, 1
        %v9806 = vadd.f32 %v9804, %v9805
        %v9807 = vrot.slane %v9764, 4
        %v9808 = vadd.f32 %v9764, %v9807
        %v9809 = vrot.slane %v9808, 2
        %v9810 = vadd.f32 %v9808, %v9809
        %v9811 = vrot.slane %v9810, 1
        %v9812 = vadd.f32 %v9810, %v9811
        %v9813 = vrcp.pop %v9770
        %v9814 = vrcp.pop %v9776
        %v9815 = vrcp.pop %v9782
        %v9816 = vrcp.pop %v9788
        %v9817 = vrcp.pop %v9794
        %v9818 = vrcp.pop %v9800
        %v9819 = vrcp.pop %v9806
        %v9820 = vrcp.pop %v9812
        %v9821 = vmul.f32 %v9750, %v9813
        %v9822 = vmul.f32 %v9752, %v9814
        %v9823 = vmul.f32 %v9754, %v9815
        %v9824 = vmul.f32 %v9756, %v9816
        %v9825 = vmul.f32 %v9758, %v9817
        %v9826 = vmul.f32 %v9760, %v9818
        %v9827 = vmul.f32 %v9762, %v9819
        %v9828 = vmul.f32 %v9764, %v9820
        %v9829 = vlaneseq
        %v9830 = vshrl.u32 %v9829, 7
        %v9831 = vsub.s32 0, %v9830
        %v9832 = vrot.slane %v9821, %v9831
        %v9833 = vlaneseq
        %v9834 = vshrl.u32 %v9833, 7
        %v9835 = vsub.s32 0, %v9834
        %v9836 = vrot.slane %v9822, %v9835
        %v9837 = vlaneseq
        %v9838 = vshrl.u32 %v9837, 7
        %v9839 = vsub.s32 0, %v9838
        %v9840 = vrot.slane %v9823, %v9839
        %v9841 = vlaneseq
        %v9842 = vshrl.u32 %v9841, 7
        %v9843 = vsub.s32 0, %v9842
        %v9844 = vrot.slane %v9824, %v9843
        %v9845 = vlaneseq
        %v9846 = vshrl.u32 %v9845, 7
        %v9847 = vsub.s32 0, %v9846
        %v9848 = vrot.slane %v9825, %v9847
        %v9849 = vlaneseq
        %v9850 = vshrl.u32 %v9849, 7
        %v9851 = vsub.s32 0, %v9850
        %v9852 = vrot.slane %v9826, %v9851
        %v9853 = vlaneseq
        %v9854 = vshrl.u32 %v9853, 7
        %v9855 = vsub.s32 0, %v9854
        %v9856 = vrot.slane %v9827, %v9855
        %v9857 = vlaneseq
        %v9858 = vshrl.u32 %v9857, 7
        %v9859 = vsub.s32 0, %v9858
        %v9860 = vrot.slane %v9828, %v9859
        %v9861 = vmul.f32 %v9832, %v7407
        %v9862 = vmul.f32 %v9836, %v7407
        %v9863 = vmul.f32 %v9840, %v7407
        %v9864 = vmul.f32 %v9844, %v7407
        %v9865 = vmul.f32 %v9848, %v7407
        %v9866 = vmul.f32 %v9852, %v7407
        %v9867 = vmul.f32 %v9856, %v7407
        %v9868 = vmul.f32 %v9860, %v7407
        %v9869 = vlaneseq
        %v9870 = vshrl.u32 %v9869, 7
        %v9871 = vsub.s32 1, %v9870
        %v9872 = vrot.slane %v9821, %v9871
        %v9873 = vlaneseq
        %v9874 = vshrl.u32 %v9873, 7
        %v9875 = vsub.s32 1, %v9874
        %v9876 = vrot.slane %v9822, %v9875
        %v9877 = vlaneseq
        %v9878 = vshrl.u32 %v9877, 7
        %v9879 = vsub.s32 1, %v9878
        %v9880 = vrot.slane %v9823, %v9879
        %v9881 = vlaneseq
        %v9882 = vshrl.u32 %v9881, 7
        %v9883 = vsub.s32 1, %v9882
        %v9884 = vrot.slane %v9824, %v9883
        %v9885 = vlaneseq
        %v9886 = vshrl.u32 %v9885, 7
        %v9887 = vsub.s32 1, %v9886
        %v9888 = vrot.slane %v9825, %v9887
        %v9889 = vlaneseq
        %v9890 = vshrl.u32 %v9889, 7
        %v9891 = vsub.s32 1, %v9890
        %v9892 = vrot.slane %v9826, %v9891
        %v9893 = vlaneseq
        %v9894 = vshrl.u32 %v9893, 7
        %v9895 = vsub.s32 1, %v9894
        %v9896 = vrot.slane %v9827, %v9895
        %v9897 = vlaneseq
        %v9898 = vshrl.u32 %v9897, 7
        %v9899 = vsub.s32 1, %v9898
        %v9900 = vrot.slane %v9828, %v9899
        %v9901 = vmul.f32 %v9872, %v7410
        %v9902 = vmul.f32 %v9876, %v7410
        %v9903 = vmul.f32 %v9880, %v7410
        %v9904 = vmul.f32 %v9884, %v7410
        %v9905 = vmul.f32 %v9888, %v7410
        %v9906 = vmul.f32 %v9892, %v7410
        %v9907 = vmul.f32 %v9896, %v7410
        %v9908 = vmul.f32 %v9900, %v7410
        %v9909 = vadd.f32 %v9861, %v9901
        %v9910 = vadd.f32 %v9862, %v9902
        %v9911 = vadd.f32 %v9863, %v9903
        %v9912 = vadd.f32 %v9864, %v9904
        %v9913 = vadd.f32 %v9865, %v9905
        %v9914 = vadd.f32 %v9866, %v9906
        %v9915 = vadd.f32 %v9867, %v9907
        %v9916 = vadd.f32 %v9868, %v9908
        %v9917 = vlaneseq
        %v9918 = vshrl.u32 %v9917, 7
        %v9919 = vsub.s32 2, %v9918
        %v9920 = vrot.slane %v9821, %v9919
        %v9921 = vlaneseq
        %v9922 = vshrl.u32 %v9921, 7
        %v9923 = vsub.s32 2, %v9922
        %v9924 = vrot.slane %v9822, %v9923
        %v9925 = vlaneseq
        %v9926 = vshrl.u32 %v9925, 7
        %v9927 = vsub.s32 2, %v9926
        %v9928 = vrot.slane %v9823, %v9927
        %v9929 = vlaneseq
        %v9930 = vshrl.u32 %v9929, 7
        %v9931 = vsub.s32 2, %v9930
        %v9932 = vrot.slane %v9824, %v9931
        %v9933 = vlaneseq
        %v9934 = vshrl.u32 %v9933, 7
        %v9935 = vsub.s32 2, %v9934
        %v9936 = vrot.slane %v9825, %v9935
        %v9937 = vlaneseq
        %v9938 = vshrl.u32 %v9937, 7
        %v9939 = vsub.s32 2, %v9938
        %v9940 = vrot.slane %v9826, %v9939
        %v9941 = vlaneseq
        %v9942 = vshrl.u32 %v9941, 7
        %v9943 = vsub.s32 2, %v9942
        %v9944 = vrot.slane %v9827, %v9943
        %v9945 = vlaneseq
        %v9946 = vshrl.u32 %v9945, 7
        %v9947 = vsub.s32 2, %v9946
        %v9948 = vrot.slane %v9828, %v9947
        %v9949 = vmul.f32 %v9920, %v7415
        %v9950 = vmul.f32 %v9924, %v7415
        %v9951 = vmul.f32 %v9928, %v7415
        %v9952 = vmul.f32 %v9932, %v7415
        %v9953 = vmul.f32 %v9936, %v7415
        %v9954 = vmul.f32 %v9940, %v7415
        %v9955 = vmul.f32 %v9944, %v7415
        %v9956 = vmul.f32 %v9948, %v7415
        %v9957 = vadd.f32 %v9909, %v9949
        %v9958 = vadd.f32 %v9910, %v9950
        %v9959 = vadd.f32 %v9911, %v9951
        %v9960 = vadd.f32 %v9912, %v9952
        %v9961 = vadd.f32 %v9913, %v9953
        %v9962 = vadd.f32 %v9914, %v9954
        %v9963 = vadd.f32 %v9915, %v9955
        %v9964 = vadd.f32 %v9916, %v9956
        %v9965 = vlaneseq
        %v9966 = vshrl.u32 %v9965, 7
        %v9967 = vsub.s32 3, %v9966
        %v9968 = vrot.slane %v9821, %v9967
        %v9969 = vlaneseq
        %v9970 = vshrl.u32 %v9969, 7
        %v9971 = vsub.s32 3, %v9970
        %v9972 = vrot.slane %v9822, %v9971
        %v9973 = vlaneseq
        %v9974 = vshrl.u32 %v9973, 7
        %v9975 = vsub.s32 3, %v9974
        %v9976 = vrot.slane %v9823, %v9975
        %v9977 = vlaneseq
        %v9978 = vshrl.u32 %v9977, 7
        %v9979 = vsub.s32 3, %v9978
        %v9980 = vrot.slane %v9824, %v9979
        %v9981 = vlaneseq
        %v9982 = vshrl.u32 %v9981, 7
        %v9983 = vsub.s32 3, %v9982
        %v9984 = vrot.slane %v9825, %v9983
        %v9985 = vlaneseq
        %v9986 = vshrl.u32 %v9985, 7
        %v9987 = vsub.s32 3, %v9986
        %v9988 = vrot.slane %v9826, %v9987
        %v9989 = vlaneseq
        %v9990 = vshrl.u32 %v9989, 7
        %v9991 = vsub.s32 3, %v9990
        %v9992 = vrot.slane %v9827, %v9991
        %v9993 = vlaneseq
        %v9994 = vshrl.u32 %v9993, 7
        %v9995 = vsub.s32 3, %v9994
        %v9996 = vrot.slane %v9828, %v9995
        %v9997 = vmul.f32 %v9968, %v7418
        %v9998 = vmul.f32 %v9972, %v7418
        %v9999 = vmul.f32 %v9976, %v7418
        %v10000 = vmul.f32 %v9980, %v7418
        %v10001 = vmul.f32 %v9984, %v7418
        %v10002 = vmul.f32 %v9988, %v7418
        %v10003 = vmul.f32 %v9992, %v7418
        %v10004 = vmul.f32 %v9996, %v7418
        %v10005 = vadd.f32 %v9957, %v9997
        %v10006 = vadd.f32 %v9958, %v9998
        %v10007 = vadd.f32 %v9959, %v9999
        %v10008 = vadd.f32 %v9960, %v10000
        %v10009 = vadd.f32 %v9961, %v10001
        %v10010 = vadd.f32 %v9962, %v10002
        %v10011 = vadd.f32 %v9963, %v10003
        %v10012 = vadd.f32 %v9964, %v10004
        %v10013 = vlaneseq
        %v10014 = vshrl.u32 %v10013, 7
        %v10015 = vsub.s32 4, %v10014
        %v10016 = vrot.slane %v9821, %v10015
        %v10017 = vlaneseq
        %v10018 = vshrl.u32 %v10017, 7
        %v10019 = vsub.s32 4, %v10018
        %v10020 = vrot.slane %v9822, %v10019
        %v10021 = vlaneseq
        %v10022 = vshrl.u32 %v10021, 7
        %v10023 = vsub.s32 4, %v10022
        %v10024 = vrot.slane %v9823, %v10023
        %v10025 = vlaneseq
        %v10026 = vshrl.u32 %v10025, 7
        %v10027 = vsub.s32 4, %v10026
        %v10028 = vrot.slane %v9824, %v10027
        %v10029 = vlaneseq
        %v10030 = vshrl.u32 %v10029, 7
        %v10031 = vsub.s32 4, %v10030
        %v10032 = vrot.slane %v9825, %v10031
        %v10033 = vlaneseq
        %v10034 = vshrl.u32 %v10033, 7
        %v10035 = vsub.s32 4, %v10034
        %v10036 = vrot.slane %v9826, %v10035
        %v10037 = vlaneseq
        %v10038 = vshrl.u32 %v10037, 7
        %v10039 = vsub.s32 4, %v10038
        %v10040 = vrot.slane %v9827, %v10039
        %v10041 = vlaneseq
        %v10042 = vshrl.u32 %v10041, 7
        %v10043 = vsub.s32 4, %v10042
        %v10044 = vrot.slane %v9828, %v10043
        %v10045 = vmul.f32 %v10016, %v7423
        %v10046 = vmul.f32 %v10020, %v7423
        %v10047 = vmul.f32 %v10024, %v7423
        %v10048 = vmul.f32 %v10028, %v7423
        %v10049 = vmul.f32 %v10032, %v7423
        %v10050 = vmul.f32 %v10036, %v7423
        %v10051 = vmul.f32 %v10040, %v7423
        %v10052 = vmul.f32 %v10044, %v7423
        %v10053 = vadd.f32 %v10005, %v10045
        %v10054 = vadd.f32 %v10006, %v10046
        %v10055 = vadd.f32 %v10007, %v10047
        %v10056 = vadd.f32 %v10008, %v10048
        %v10057 = vadd.f32 %v10009, %v10049
        %v10058 = vadd.f32 %v10010, %v10050
        %v10059 = vadd.f32 %v10011, %v10051
        %v10060 = vadd.f32 %v10012, %v10052
        %v10061 = vlaneseq
        %v10062 = vshrl.u32 %v10061, 7
        %v10063 = vsub.s32 5, %v10062
        %v10064 = vrot.slane %v9821, %v10063
        %v10065 = vlaneseq
        %v10066 = vshrl.u32 %v10065, 7
        %v10067 = vsub.s32 5, %v10066
        %v10068 = vrot.slane %v9822, %v10067
        %v10069 = vlaneseq
        %v10070 = vshrl.u32 %v10069, 7
        %v10071 = vsub.s32 5, %v10070
        %v10072 = vrot.slane %v9823, %v10071
        %v10073 = vlaneseq
        %v10074 = vshrl.u32 %v10073, 7
        %v10075 = vsub.s32 5, %v10074
        %v10076 = vrot.slane %v9824, %v10075
        %v10077 = vlaneseq
        %v10078 = vshrl.u32 %v10077, 7
        %v10079 = vsub.s32 5, %v10078
        %v10080 = vrot.slane %v9825, %v10079
        %v10081 = vlaneseq
        %v10082 = vshrl.u32 %v10081, 7
        %v10083 = vsub.s32 5, %v10082
        %v10084 = vrot.slane %v9826, %v10083
        %v10085 = vlaneseq
        %v10086 = vshrl.u32 %v10085, 7
        %v10087 = vsub.s32 5, %v10086
        %v10088 = vrot.slane %v9827, %v10087
        %v10089 = vlaneseq
        %v10090 = vshrl.u32 %v10089, 7
        %v10091 = vsub.s32 5, %v10090
        %v10092 = vrot.slane %v9828, %v10091
        %v10093 = vmul.f32 %v10064, %v7426
        %v10094 = vmul.f32 %v10068, %v7426
        %v10095 = vmul.f32 %v10072, %v7426
        %v10096 = vmul.f32 %v10076, %v7426
        %v10097 = vmul.f32 %v10080, %v7426
        %v10098 = vmul.f32 %v10084, %v7426
        %v10099 = vmul.f32 %v10088, %v7426
        %v10100 = vmul.f32 %v10092, %v7426
        %v10101 = vadd.f32 %v10053, %v10093
        %v10102 = vadd.f32 %v10054, %v10094
        %v10103 = vadd.f32 %v10055, %v10095
        %v10104 = vadd.f32 %v10056, %v10096
        %v10105 = vadd.f32 %v10057, %v10097
        %v10106 = vadd.f32 %v10058, %v10098
        %v10107 = vadd.f32 %v10059, %v10099
        %v10108 = vadd.f32 %v10060, %v10100
        %v10109 = vlaneseq
        %v10110 = vshrl.u32 %v10109, 7
        %v10111 = vsub.s32 6, %v10110
        %v10112 = vrot.slane %v9821, %v10111
        %v10113 = vlaneseq
        %v10114 = vshrl.u32 %v10113, 7
        %v10115 = vsub.s32 6, %v10114
        %v10116 = vrot.slane %v9822, %v10115
        %v10117 = vlaneseq
        %v10118 = vshrl.u32 %v10117, 7
        %v10119 = vsub.s32 6, %v10118
        %v10120 = vrot.slane %v9823, %v10119
        %v10121 = vlaneseq
        %v10122 = vshrl.u32 %v10121, 7
        %v10123 = vsub.s32 6, %v10122
        %v10124 = vrot.slane %v9824, %v10123
        %v10125 = vlaneseq
        %v10126 = vshrl.u32 %v10125, 7
        %v10127 = vsub.s32 6, %v10126
        %v10128 = vrot.slane %v9825, %v10127
        %v10129 = vlaneseq
        %v10130 = vshrl.u32 %v10129, 7
        %v10131 = vsub.s32 6, %v10130
        %v10132 = vrot.slane %v9826, %v10131
        %v10133 = vlaneseq
        %v10134 = vshrl.u32 %v10133, 7
        %v10135 = vsub.s32 6, %v10134
        %v10136 = vrot.slane %v9827, %v10135
        %v10137 = vlaneseq
        %v10138 = vshrl.u32 %v10137, 7
        %v10139 = vsub.s32 6, %v10138
        %v10140 = vrot.slane %v9828, %v10139
        %v10141 = vmul.f32 %v10112, %v7431
        %v10142 = vmul.f32 %v10116, %v7431
        %v10143 = vmul.f32 %v10120, %v7431
        %v10144 = vmul.f32 %v10124, %v7431
        %v10145 = vmul.f32 %v10128, %v7431
        %v10146 = vmul.f32 %v10132, %v7431
        %v10147 = vmul.f32 %v10136, %v7431
        %v10148 = vmul.f32 %v10140, %v7431
        %v10149 = vadd.f32 %v10101, %v10141
        %v10150 = vadd.f32 %v10102, %v10142
        %v10151 = vadd.f32 %v10103, %v10143
        %v10152 = vadd.f32 %v10104, %v10144
        %v10153 = vadd.f32 %v10105, %v10145
        %v10154 = vadd.f32 %v10106, %v10146
        %v10155 = vadd.f32 %v10107, %v10147
        %v10156 = vadd.f32 %v10108, %v10148
        %v10157 = vlaneseq
        %v10158 = vshrl.u32 %v10157, 7
        %v10159 = vsub.s32 7, %v10158
        %v10160 = vrot.slane %v9821, %v10159
        %v10161 = vlaneseq
        %v10162 = vshrl.u32 %v10161, 7
        %v10163 = vsub.s32 7, %v10162
        %v10164 = vrot.slane %v9822, %v10163
        %v10165 = vlaneseq
        %v10166 = vshrl.u32 %v10165, 7
        %v10167 = vsub.s32 7, %v10166
        %v10168 = vrot.slane %v9823, %v10167
        %v10169 = vlaneseq
        %v10170 = vshrl.u32 %v10169, 7
        %v10171 = vsub.s32 7, %v10170
        %v10172 = vrot.slane %v9824, %v10171
        %v10173 = vlaneseq
        %v10174 = vshrl.u32 %v10173, 7
        %v10175 = vsub.s32 7, %v10174
        %v10176 = vrot.slane %v9825, %v10175
        %v10177 = vlaneseq
        %v10178 = vshrl.u32 %v10177, 7
        %v10179 = vsub.s32 7, %v10178
        %v10180 = vrot.slane %v9826, %v10179
        %v10181 = vlaneseq
        %v10182 = vshrl.u32 %v10181, 7
        %v10183 = vsub.s32 7, %v10182
        %v10184 = vrot.slane %v9827, %v10183
        %v10185 = vlaneseq
        %v10186 = vshrl.u32 %v10185, 7
        %v10187 = vsub.s32 7, %v10186
        %v10188 = vrot.slane %v9828, %v10187
        %v10189 = vmul.f32 %v10160, %v7434
        %v10190 = vmul.f32 %v10164, %v7434
        %v10191 = vmul.f32 %v10168, %v7434
        %v10192 = vmul.f32 %v10172, %v7434
        %v10193 = vmul.f32 %v10176, %v7434
        %v10194 = vmul.f32 %v10180, %v7434
        %v10195 = vmul.f32 %v10184, %v7434
        %v10196 = vmul.f32 %v10188, %v7434
        %v10197 = vadd.f32 %v10149, %v10189
        %v10198 = vadd.f32 %v10150, %v10190
        %v10199 = vadd.f32 %v10151, %v10191
        %v10200 = vadd.f32 %v10152, %v10192
        %v10201 = vadd.f32 %v10153, %v10193
        %v10202 = vadd.f32 %v10154, %v10194
        %v10203 = vadd.f32 %v10155, %v10195
        %v10204 = vadd.f32 %v10156, %v10196
        %v10205 = vadd.f32 %v8845, %v7439
        %v10206 = vadd.f32 %v10197, %v7442
        %v10207 = vadd.f32 %v8846, %v7447
        %v10208 = vadd.f32 %v10198, %v7450
        %v10209 = vadd.f32 %v8847, %v7455
        %v10210 = vadd.f32 %v10199, %v7458
        %v10211 = vadd.f32 %v8848, %v7463
        %v10212 = vadd.f32 %v10200, %v7466
        %v10213 = vadd.f32 %v8849, %v7471
        %v10214 = vadd.f32 %v10201, %v7474
        %v10215 = vadd.f32 %v8850, %v7479
        %v10216 = vadd.f32 %v10202, %v7482
        %v10217 = vadd.f32 %v8851, %v7487
        %v10218 = vadd.f32 %v10203, %v7490
        %v10219 = vadd.f32 %v8852, %v7495
        %v10220 = vadd.f32 %v10204, %v7498
        %v10221 = vmax.f32 %v10205, 0.0
        %v10222 = vmax.f32 %v10206, 0.0
        %v10223 = vmax.f32 %v10207, 0.0
        %v10224 = vmax.f32 %v10208, 0.0
        %v10225 = vmax.f32 %v10209, 0.0
        %v10226 = vmax.f32 %v10210, 0.0
        %v10227 = vmax.f32 %v10211, 0.0
        %v10228 = vmax.f32 %v10212, 0.0
        %v10229 = vmax.f32 %v10213, 0.0
        %v10230 = vmax.f32 %v10214, 0.0
        %v10231 = vmax.f32 %v10215, 0.0
        %v10232 = vmax.f32 %v10216, 0.0
        %v10233 = vmax.f32 %v10217, 0.0
        %v10234 = vmax.f32 %v10218, 0.0
        %v10235 = vmax.f32 %v10219, 0.0
        %v10236 = vmax.f32 %v10220, 0.0
        %v10237 = vld [vmem:[%s4] sm:$0x1]
        %s10238 = sld [smem:[#allocation2]]
        %v10239 = vstv %s10238
        %10240 = vmatprep.subr.mxu0 0.0
        %10241 = vmatpush1.msra.mxu0 %v10236
        %10242 = vmatprep.subr.mxu0 0.0
        %10243 = vmatpush1.msra.mxu0 %v10235
        %10244 = vmatprep.subr.mxu0 0.0
        %10245 = vmatpush1.msra.mxu0 %v10234
        %10246 = vmatprep.subr.mxu0 0.0
        %10247 = vmatpush1.msra.mxu0 %v10233
        %10248 = vmatprep.subr.mxu0 0.0
        %10249 = vmatpush1.msra.mxu0 %v10232
        %10250 = vmatprep.subr.mxu0 0.0
        %10251 = vmatpush1.msra.mxu0 %v10231
        %10252 = vmatprep.subr.mxu0 0.0
        %10253 = vmatpush1.msra.mxu0 %v10230
        %10254 = vmatprep.subr.mxu0 0.0
        %10255 = vmatpush1.msra.mxu0 %v10229
        %10256 = vmatprep.subr.mxu0 0.0
        %10257 = vmatpush1.msra.mxu0 %v10228
        %10258 = vmatprep.subr.mxu0 0.0
        %10259 = vmatpush1.msra.mxu0 %v10227
        %10260 = vmatprep.subr.mxu0 0.0
        %10261 = vmatpush1.msra.mxu0 %v10226
        %10262 = vmatprep.subr.mxu0 0.0
        %10263 = vmatpush1.msra.mxu0 %v10225
        %10264 = vmatprep.subr.mxu0 0.0
        %10265 = vmatpush1.msra.mxu0 %v10224
        %10266 = vmatprep.subr.mxu0 0.0
        %10267 = vmatpush1.msra.mxu0 %v10223
        %10268 = vmatprep.subr.mxu0 0.0
        %10269 = vmatpush1.msra.mxu0 %v10222
        %10270 = vmatprep.subr.mxu0 0.0
        %10271 = vmatpush1.msra.mxu0 %v10221
        %10272 = vmatprep.subr.mxu0 0.0
        %10273 = vmatpush2.msra.mxu0 0.0
        %10274 = vmatprep.subr.mxu0 0.0
        %10275 = vmatpush2.msra.mxu0 0.0
        %10276 = vmatprep.subr.mxu0 0.0
        %10277 = vmatpush2.msra.mxu0 0.0
        %10278 = vmatprep.subr.mxu0 0.0
        %10279 = vmatpush2.msra.mxu0 0.0
        %10280 = vmatprep.subr.mxu0 0.0
        %10281 = vmatpush2.msra.mxu0 0.0
        %10282 = vmatprep.subr.mxu0 0.0
        %10283 = vmatpush2.msra.mxu0 0.0
        %10284 = vmatprep.subr.mxu0 0.0
        %10285 = vmatpush2.msra.mxu0 0.0
        %10286 = vmatprep.subr.mxu0 0.0
        %10287 = vmatpush2.msra.mxu0 0.0
        %10288 = vmatprep.subr.mxu0 0.0
        %10289 = vmatpush2.msra.mxu0 0.0
        %10290 = vmatprep.subr.mxu0 0.0
        %10291 = vmatpush2.msra.mxu0 0.0
        %10292 = vmatprep.subr.mxu0 0.0
        %10293 = vmatpush2.msra.mxu0 0.0
        %10294 = vmatprep.subr.mxu0 0.0
        %10295 = vmatpush2.msra.mxu0 0.0
        %10296 = vmatprep.subr.mxu0 0.0
        %10297 = vmatpush2.msra.mxu0 0.0
        %10298 = vmatprep.subr.mxu0 0.0
        %10299 = vmatpush2.msra.mxu0 0.0
        %10300 = vmatprep.subr.mxu0 0.0
        %10301 = vmatpush2.msra.mxu0 0.0
        %10302 = vmatprep.subr.mxu0 0.0
        %10303 = vmatpush2.msra.mxu0 0.0
        %10304 = vmatprep.mubr.f32.mxu0 0.0
        %10305 = vmatmul.mubr.f32.gmra.mxu0 %v10237
        %v10306 = vpop.f32.mrf.mxu0
        %v10307 = vadd.f32 %v10239, %v10306
        %v10308 = vpop.f32.mrf.mxu0
        %10309 = vdwg.mxu0
        %v10310 = vxor.u32 %v10307, 2147483648
        %v10311 = vmul.f32 %v10310, 1.442695
        %v10312 = vpow.pop %v10311
        %v10313 = vadd.f32 %v10312, 1.0
        %v10314 = vrcp.pop %v10313
        %v10315 = vmul.f32 1.0, %v10314
        %10316 = vst [vmem:[%s312] sm:$0x1] %v10315
        %s10317 = sand.u32 %s165, 1
        %s10318 = scalar_lea.sflag [#allocation5], %s10317
        %s10319 = sand.u32 %s165, 1
        %s10320 = scalar_lea.vmem [#allocation11], %s10319
        // Predicated region
        $region61: #{tpu_custom_call.1} parent=43 // pred_check
          %p10321 = pneg %p175
        $region62: #{tpu_custom_call.1} parent=43 // pred_check_branch
          %10323 = sbr.rel (%p10321) target = $region64
        $region63: #{tpu_custom_call.1} parent=43 // pred_region
          %s10325 = ssub.s32 16, 16
          %10326 = vsyncadd %s10318, %s10325
          %s10327 = smul.addr %s26, 16
          %s10328 = scalar_lea.hbm %s6, %s10327
          %s10330 = sshll.u32 %s10320, 4
          %s10331 = int_to_ptr.vmem [resolvable:$true] %s10330
          %10333 = dma.vmem_to_hbm [thread:$0]  %s10331, 16, %s10328, %s10318
        $region64: #{tpu_custom_call.1} parent=43 // pred_fallthru
          _
      $region44: #{tpu_custom_call.1} parent=5 // pred_fallthru
        _
      %p10334 = scmp.le.s32.totalorder 2, %s21
      // Predicated region
      $region65: #{tpu_custom_call.1} parent=5 // pred_check
        %p10335 = pneg %p10334
      $region66: #{tpu_custom_call.1} parent=5 // pred_check_branch
        %10337 = sbr.rel (%p10335) target = $region68
      $region67: #{tpu_custom_call.1} parent=5 // pred_region
        %s10338 = ssub.s32 %s21, 2
        // Predicated region
        $region69: #{tpu_custom_call.1} parent=67 // pred_check
          %p10339 = pneg %p181
        $region70: #{tpu_custom_call.1} parent=67 // pred_check_branch
          %10341 = sbr.rel (%p10339) target = $region72
        $region71: #{tpu_custom_call.1} parent=67 // pred_region
          %s10342 = sand.u32 %s166, 1
          %s10343 = scalar_lea.sflag [#allocation5], %s10342
          %s10344 = sand.u32 %s166, 1
          %s10345 = scalar_lea.vmem [#allocation11], %s10344
          %10346 = dma.done %s10343, 16
        $region72: #{tpu_custom_call.1} parent=67 // pred_fallthru
          _
      $region68: #{tpu_custom_call.1} parent=5 // pred_fallthru
        _
    $region6: #{tpu_custom_call.1} parent=1 // loop_footer
      %s25 = sadd.s32 1, %s21
    $region7: #{tpu_custom_call.1} parent=1 // loop_footer_branch
      %20 = sbr.rel target = $region3
    $region8: #{tpu_custom_call.1} parent=1 // loop_exit
      _
    %10347 = vsyncpa [#allocation4], 1
    %s10348 = scalar_lea.sflag [#allocation4], 1
    %10349 = vsyncpa %s10348, 1
    %10350 = vsyncpa [#allocation7], 1
    %10351 = vsyncpa [#allocation10], 1
    %10352 = vsyncpa [#allocation5], 1
    %s10353 = scalar_lea.sflag [#allocation5], 1
    %10354 = vsyncpa %s10353, 1

</llo_original>
